<compile_context>
chip_gen: v6e
topology: v6e:2x2x1
jax: 0.10.0
libtpu: 0.0.40
codegen_flags: <defaults>
</compile_context>

<pallas_src>
import functools

import jax
import jax.numpy as jnp
from jax.experimental import pallas as pl
from jax.experimental.pallas import tpu as pltpu

# ----------------------------- hyper-parameters ------------------------------
BATCH = 2
SEQ_LEN = 8          # number of particles P
INPUT_DIM = 4        # particle feature channels C
EMBED_DIM = 32       # transformer hidden dim D
NUM_HEADS = 4
HEAD_DIM = EMBED_DIM // NUM_HEADS
FC_DIM = 64          # block MLP hidden dim
PAIR_HIDDEN = 32     # pair-embed hidden dim
NUM_BLOCKS = 2       # particle attention blocks
NUM_CLS_BLOCKS = 1   # class attention blocks
NUM_CLASSES = 5


# ------------------------------ small helpers --------------------------------
def _gelu(y):
    # TODO(synk): PyTorch nn.GELU() defaults to the exact erf form; the tanh
    # approximation is used here (difference ~1e-3 level).
    return 0.5 * y * (1.0 + jnp.tanh(0.7978845608028654 * (y + 0.044715 * y * y * y)))


def _mm(a, w_bf16):
    """bf16-operand matmul with f32 accumulation (MXU)."""
    return jnp.dot(a.astype(jnp.bfloat16), w_bf16, preferred_element_type=jnp.float32)


def _qkt(a, b):
    """a @ b^T with bf16 operands and f32 accumulation (contraction on last dims)."""
    return jax.lax.dot_general(
        a.astype(jnp.bfloat16), b.astype(jnp.bfloat16),
        dimension_numbers=(((1,), (1,)), ((), ())),
        preferred_element_type=jnp.float32)


def _ln(v, g, b, eps=1e-5):
    mu = jnp.mean(v, axis=-1, keepdims=True)
    c = v - mu
    var = jnp.mean(c * c, axis=-1, keepdims=True)
    return c * jax.lax.rsqrt(var + eps) * g + b


def _attend(q_h, k_h, v_h, bias):
    """Single-head attention: q_h (M, dh), k_h/v_h (N, dh), bias (M, N) or (1, N)."""
    scale = 1.0 / (HEAD_DIM ** 0.5)
    s = _qkt(q_h, k_h) * scale + bias
    m = jnp.max(s, axis=-1, keepdims=True)
    e = jnp.exp(s - m)
    p = e * pl.reciprocal(jnp.sum(e, axis=-1, keepdims=True), approx=True)
    o = jnp.dot(p.astype(jnp.bfloat16), v_h.astype(jnp.bfloat16),
                preferred_element_type=jnp.float32)
    return o, p


# -------------------------- pair-embedding kernel -----------------------------
def _pair_kernel(u_ref, w1_ref, b1_ref, w2_ref, b2_ref, o_ref):
    h = _gelu(_mm(u_ref[...], w1_ref[...]) + b1_ref[...])
    o_ref[...] = _mm(h, w2_ref[...]) + b2_ref[...]


def pallas_pair_embed(u_flat, w1, b1, w2, b2):
    """u_flat: (M, 4) -> (M, NUM_HEADS). Single fused GELU-MLP kernel."""
    M = u_flat.shape[0]
    return pl.pallas_call(
        _pair_kernel,
        out_shape=jax.ShapeDtypeStruct((M, NUM_HEADS), jnp.float32),
        grid=(1,),
        in_specs=[
            pl.BlockSpec((M, 4), lambda i: (0, 0)),
            pl.BlockSpec(w1.shape, lambda i: (0, 0)),
            pl.BlockSpec(b1.shape, lambda i: (0, 0)),
            pl.BlockSpec(w2.shape, lambda i: (0, 0)),
            pl.BlockSpec(b2.shape, lambda i: (0, 0)),
        ],
        out_specs=pl.BlockSpec((M, NUM_HEADS), lambda i: (0, 0)),
    )(u_flat, w1, b1, w2, b2)


# ----------------------- fully fused transformer kernel -----------------------
def _fused_kernel(x_ref, bias_ref, mcol_ref, mrow_ref, *refs, n_weights):
    """Whole ParT forward for one batch element (one grid step).

    x_ref    : (1, P, C)      particle features
    bias_ref : (1, H, P, P)   interaction matrix U + key-padding bias
    mcol_ref : (1, P, 1)      particle mask (column layout)
    mrow_ref : (1, 1, P)      particle mask (row layout)
    refs     : weight refs (n_weights), then outputs (logits, probs),
               then VMEM scratch (u_buf, cb_buf, ho_buf).
    """
    w_refs = refs[:n_weights]
    logits_ref = refs[n_weights]
    probs_ref = refs[n_weights + 1]
    u_buf = refs[n_weights + 2]      # (P+1, D)  [particles ; cls]
    cb_buf = refs[n_weights + 3]     # (1, P+1)  class-attention key bias
    ho_buf = refs[n_weights + 4]     # (P, D)    per-head attention output assembly

    wit = iter(w_refs)
    nxt = lambda: next(wit)[...]

    D, H, dh = EMBED_DIM, NUM_HEADS, HEAD_DIM
    P = x_ref.shape[1]
    P1 = P + 1

    x_in = x_ref[0].astype(jnp.float32)           # (P, C)
    msk = mcol_ref[0]                             # (P, 1)
    mrow = mrow_ref[0]                            # (1, P)

    # ---------------- particle embedding (per-particle MLP) ----------------
    w1 = nxt(); b1 = nxt(); w2 = nxt(); b2 = nxt()
    h = _gelu(_mm(x_in, w1) + b1)
    h = _gelu(_mm(h, w2) + b2)
    x = h * msk                                   # (P, D)

    # ---------------- particle attention blocks ----------------
    for blk in range(NUM_BLOCKS):
        ln1_g = nxt(); ln1_b = nxt()
        qkv_w = nxt(); qkv_b = nxt()
        proj_w = nxt(); proj_b = nxt()
        ln2_g = nxt(); ln2_b = nxt()
        fc1_w = nxt(); fc1_b = nxt()
        fc2_w = nxt(); fc2_b = nxt()

        resid = x
        y = _ln(x, ln1_g, ln1_b)
        qkv = _mm(y, qkv_w) + qkv_b               # (P, 3D)
        for hh in range(H):
            lo = hh * dh
            q_h = qkv[:, lo:lo + dh]
            k_h = qkv[:, D + lo:D + lo + dh]
            v_h = qkv[:, 2 * D + lo:2 * D + lo + dh]
            o_h, p_h = _attend(q_h, k_h, v_h, bias_ref[0, hh])
            ho_buf[:, lo:lo + dh] = o_h
            if blk == NUM_BLOCKS - 1:
                # only the last block's probabilities are exposed -> only write those
                probs_ref[0, hh] = p_h
        o = _mm(ho_buf[...], proj_w) + proj_b
        x = resid + o

        resid = x
        y = _ln(x, ln2_g, ln2_b)
        mid = _gelu(_mm(y, fc1_w) + fc1_b)
        x = resid + _mm(mid, fc2_w) + fc2_b

    # ---------------- class attention blocks ----------------
    cls_tok = nxt()                               # (1, D)
    x_cls = cls_tok

    # class-attention key bias: particle keys get the padding bias, cls key = 0
    cb_buf[:, 0:P] = jnp.where(mrow > 0.0, 0.0, -1e9)
    cb_buf[:, P:P1] = jnp.zeros((1, 1), jnp.float32)
    cbias = cb_buf[...]                           # (1, P1)

    for _ in range(NUM_CLS_BLOCKS):
        ln1_g = nxt(); ln1_b = nxt()
        q_w = nxt(); q_b = nxt()
        kv_w = nxt(); kv_b = nxt()
        proj_w = nxt(); proj_b = nxt()
        ln2_g = nxt(); ln2_b = nxt()
        fc1_w = nxt(); fc1_b = nxt()
        fc2_w = nxt(); fc2_b = nxt()

        resid = x_cls
        # keys/values = [particles ; cls]   (key order is irrelevant to softmax)
        u_buf[0:P, :] = x
        u_buf[P:P1, :] = x_cls
        u = _ln(u_buf[...], ln1_g, ln1_b)         # (P1, D)
        q = _mm(u[P:P1, :], q_w) + q_b            # (1, D)  query from cls row
        kv = _mm(u, kv_w) + kv_b                  # (P1, 2D)
        for hh in range(H):
            lo = hh * dh
            q_h = q[:, lo:lo + dh]
            k_h = kv[:, lo:lo + dh]
            v_h = kv[:, D + lo:D + lo + dh]
            o_h, _ = _attend(q_h, k_h, v_h, cbias)
            ho_buf[0:1, lo:lo + dh] = o_h
        o = _mm(ho_buf[0:1, :], proj_w) + proj_b  # (1, D)
        x_cls = resid + o

        resid = x_cls
        y = _ln(x_cls, ln2_g, ln2_b)
        mid = _gelu(_mm(y, fc1_w) + fc1_b)
        x_cls = resid + _mm(mid, fc2_w) + fc2_b

    # ---------------- final norm + classifier ----------------
    fg = nxt(); fb = nxt(); fc_w = nxt(); fc_b = nxt()
    y = _ln(x_cls, fg, fb)
    logits_ref[0] = _mm(y, fc_w) + fc_b


def _flatten_params(params):
    """Flatten weights into the fixed order consumed by _fused_kernel.

    Matmul weights are pre-cast to bf16 (MXU operands); biases / LN scales /
    cls token stay f32 and are reshaped to (1, N)."""
    def w(a):
        return a.astype(jnp.bfloat16)

    def v(a):
        return a.reshape(1, -1).astype(jnp.float32)

    flat = [w(params["embed_w1"]), v(params["embed_b1"]),
            w(params["embed_w2"]), v(params["embed_b2"])]
    for blk in params["blocks"]:
        flat += [v(blk["ln1_g"]), v(blk["ln1_b"]),
                 w(blk["qkv_w"]), v(blk["qkv_b"]),
                 w(blk["proj_w"]), v(blk["proj_b"]),
                 v(blk["ln2_g"]), v(blk["ln2_b"]),
                 w(blk["fc1_w"]), v(blk["fc1_b"]),
                 w(blk["fc2_w"]), v(blk["fc2_b"])]
    flat.append(params["cls_token"].reshape(1, EMBED_DIM).astype(jnp.float32))
    for blk in params["cls_blocks"]:
        flat += [v(blk["ln1_g"]), v(blk["ln1_b"]),
                 w(blk["q_w"]), v(blk["q_b"]),
                 w(blk["kv_w"]), v(blk["kv_b"]),
                 w(blk["proj_w"]), v(blk["proj_b"]),
                 v(blk["ln2_g"]), v(blk["ln2_b"]),
                 w(blk["fc1_w"]), v(blk["fc1_b"]),
                 w(blk["fc2_w"]), v(blk["fc2_b"])]
    flat += [v(params["final_ln_g"]), v(params["final_ln_b"]),
             w(params["fc_w"]), v(params["fc_b"])]
    return flat


def pallas_fused_forward(flat_w, x0, attn_bias, m_col, m_row):
    """Run the fused ParT forward. Returns (logits (B, ncls), probs (B,H,P,P))."""
    B, P, C = x0.shape
    n_w = len(flat_w)
    kern = functools.partial(_fused_kernel, n_weights=n_w)

    in_specs = [
        pl.BlockSpec((1, P, C), lambda b: (b, 0, 0)),
        pl.BlockSpec((1, NUM_HEADS, P, P), lambda b: (b, 0, 0, 0)),
        pl.BlockSpec((1, P, 1), lambda b: (b, 0, 0)),
        pl.BlockSpec((1, 1, P), lambda b: (b, 0, 0)),
    ] + [pl.BlockSpec(t.shape, lambda b: (0, 0)) for t in flat_w]

    out_shape = (jax.ShapeDtypeStruct((B, 1, NUM_CLASSES), jnp.float32),
                 jax.ShapeDtypeStruct((B, NUM_HEADS, P, P), jnp.float32))
    out_specs = (pl.BlockSpec((1, 1, NUM_CLASSES), lambda b: (b, 0, 0)),
                 pl.BlockSpec((1, NUM_HEADS, P, P), lambda b: (b, 0, 0, 0)))

    logits, probs = pl.pallas_call(
        kern,
        out_shape=out_shape,
        grid=(B,),
        in_specs=in_specs,
        out_specs=out_specs,
        scratch_shapes=[
            pltpu.VMEM((P + 1, EMBED_DIM), jnp.float32),   # [particles ; cls]
            pltpu.VMEM((1, P + 1), jnp.float32),           # class key bias
            pltpu.VMEM((P, EMBED_DIM), jnp.float32),       # per-head output assembly
        ],
        compiler_params=pltpu.CompilerParams(
            dimension_semantics=("parallel",)),
    )(x0, attn_bias, m_col, m_row, *flat_w)
    return logits[:, 0, :], probs


# ------------------------------ plain-JAX glue --------------------------------
def pairwise_lv_features(v, eps=1e-8):
    """Pairwise Lorentz features (lndelta, lnkt, lnz, lnm2) as in ParT.

    v: (B, 4, P) -> (B, P, P, 4).  Kept in XLA (arctan2 has no clean Mosaic
    lowering guarantee); the tensor is tiny and computed once per call."""
    px, py, pz, E = v[:, 0], v[:, 1], v[:, 2], v[:, 3]     # each (B, P)
    pt = jnp.sqrt(px * px + py * py + eps)
    rap = 0.5 * jnp.log(jnp.clip((E + pz) / jnp.clip(E - pz, eps), eps))
    phi = jnp.arctan2(py, px)

    def ij(a):
        return a[:, :, None], a[:, None, :]

    rap_i, rap_j = ij(rap)
    phi_i, phi_j = ij(phi)
    dphi = jnp.arctan2(jnp.sin(phi_i - phi_j), jnp.cos(phi_i - phi_j))
    delta = jnp.sqrt((rap_i - rap_j) ** 2 + dphi * dphi + eps)

    pt_i, pt_j = ij(pt)
    ptmin = jnp.minimum(pt_i, pt_j)
    lndelta = jnp.log(jnp.clip(delta, eps))
    lnkt = jnp.log(jnp.clip(ptmin * delta, eps))
    lnz = jnp.log(jnp.clip(ptmin / jnp.clip(pt_i + pt_j, eps), eps))

    E_i, E_j = ij(E)
    px_i, px_j = ij(px)
    py_i, py_j = ij(py)
    pz_i, pz_j = ij(pz)
    m2 = ((E_i + E_j) ** 2 - (px_i + px_j) ** 2
          - (py_i + py_j) ** 2 - (pz_i + pz_j) ** 2)
    lnm2 = jnp.log(jnp.clip(m2, eps))
    return jnp.stack([lndelta, lnkt, lnz, lnm2], axis=-1)


def part_forward(params, features, lorentz_vectors, mask):
    """ParticleTransformer forward: returns (logits, attention_matrix, interaction_matrix)."""
    B, C, P = features.shape
    x0 = jnp.transpose(features, (0, 2, 1)).astype(jnp.float32)      # (B, P, C)
    m_col = jnp.transpose(mask, (0, 2, 1)).astype(jnp.float32)       # (B, P, 1)
    m_row = mask.astype(jnp.float32)                                 # (B, 1, P)

    # --- pair embedding -> interaction matrix U : (B, H, P, P) ---
    u_feats = pairwise_lv_features(lorentz_vectors.astype(jnp.float32))  # (B,P,P,4)
    u_flat = u_feats.reshape(B * P * P, 4)
    pw1 = params["pair_w1"].astype(jnp.bfloat16)
    pb1 = params["pair_b1"].reshape(1, -1).astype(jnp.float32)
    pw2 = params["pair_w2"].astype(jnp.bfloat16)
    pb2 = params["pair_b2"].reshape(1, -1).astype(jnp.float32)
    U_flat = pallas_pair_embed(u_flat, pw1, pb1, pw2, pb2)               # (B*P*P, H)
    U = U_flat.reshape(B, P, P, NUM_HEADS).transpose(0, 3, 1, 2)         # (B,H,P,P)

    # key-padding mask bias (applied to keys) + interaction bias
    key_bias_row = jnp.where(m_row[:, 0, :] > 0, 0.0, -1e9)              # (B, P)
    attn_bias = U + key_bias_row[:, None, None, :]                       # (B,H,P,P)

    # --- fused transformer (embedding + particle blocks + class blocks + head) ---
    flat_w = _flatten_params(params)
    logits, attn_probs = pallas_fused_forward(flat_w, x0, attn_bias, m_col, m_row)
    return logits, attn_probs, U


_forward_jit = jax.jit(part_forward)


# ------------------------------- wrapper class ---------------------------------
class ParticleTransformerWrapper:
    """JAX/Pallas port of the PyTorch ParticleTransformerWrapper."""

    def __init__(self, params):
        self.params = params
        self.attention_matrix = None
        self.interactionMatrix = None

    def no_weight_decay(self):
        return {"mod.cls_token"}

    def forward(self, points, features, lorentz_vectors, mask):
        # `points` is accepted but unused, exactly like the PyTorch reference.
        output, attn, inter = _forward_jit(self.params, features, lorentz_vectors, mask)
        self.attention_matrix = attn
        self.interactionMatrix = inter
        return output

    def get_attention_matrix(self):
        return self.attention_matrix

    def get_interactionMatrix(self):
        return self.interactionMatrix


# ------------------------------ parameter init ---------------------------------
def init_params(key):
    keys = iter(jax.random.split(key, 128))

    def dense(din, dout, scale=0.02):
        w = scale * jax.random.normal(next(keys), (din, dout), jnp.float32)
        b = jnp.zeros((dout,), jnp.float32)
        return w, b

    p = {}
    p["embed_w1"], p["embed_b1"] = dense(INPUT_DIM, EMBED_DIM)
    p["embed_w2"], p["embed_b2"] = dense(EMBED_DIM, EMBED_DIM)
    p["pair_w1"], p["pair_b1"] = dense(4, PAIR_HIDDEN)
    p["pair_w2"], p["pair_b2"] = dense(PAIR_HIDDEN, NUM_HEADS)

    p["blocks"] = []
    for _ in range(NUM_BLOCKS):
        blk = {
            "ln1_g": jnp.ones((EMBED_DIM,), jnp.float32),
            "ln1_b": jnp.zeros((EMBED_DIM,), jnp.float32),
            "ln2_g": jnp.ones((EMBED_DIM,), jnp.float32),
            "ln2_b": jnp.zeros((EMBED_DIM,), jnp.float32),
        }
        blk["qkv_w"], blk["qkv_b"] = dense(EMBED_DIM, 3 * EMBED_DIM)
        blk["proj_w"], blk["proj_b"] = dense(EMBED_DIM, EMBED_DIM)
        blk["fc1_w"], blk["fc1_b"] = dense(EMBED_DIM, FC_DIM)
        blk["fc2_w"], blk["fc2_b"] = dense(FC_DIM, EMBED_DIM)
        p["blocks"].append(blk)

    p["cls_blocks"] = []
    for _ in range(NUM_CLS_BLOCKS):
        blk = {
            "ln1_g": jnp.ones((EMBED_DIM,), jnp.float32),
            "ln1_b": jnp.zeros((EMBED_DIM,), jnp.float32),
            "ln2_g": jnp.ones((EMBED_DIM,), jnp.float32),
            "ln2_b": jnp.zeros((EMBED_DIM,), jnp.float32),
        }
        blk["q_w"], blk["q_b"] = dense(EMBED_DIM, EMBED_DIM)
        blk["kv_w"], blk["kv_b"] = dense(EMBED_DIM, 2 * EMBED_DIM)
        blk["proj_w"], blk["proj_b"] = dense(EMBED_DIM, EMBED_DIM)
        blk["fc1_w"], blk["fc1_b"] = dense(EMBED_DIM, FC_DIM)
        blk["fc2_w"], blk["fc2_b"] = dense(FC_DIM, EMBED_DIM)
        p["cls_blocks"].append(blk)

    p["cls_token"] = 0.02 * jax.random.normal(next(keys), (1, 1, EMBED_DIM), jnp.float32)
    p["final_ln_g"] = jnp.ones((EMBED_DIM,), jnp.float32)
    p["final_ln_b"] = jnp.zeros((EMBED_DIM,), jnp.float32)
    p["fc_w"], p["fc_b"] = dense(EMBED_DIM, NUM_CLASSES)
    return p


# ------------------------------------ main --------------------------------------
if __name__ == "__main__":
    # TODO(synk): the reference model includes dropout / quantization hooks
    # (ParticleTransformer_quant); inference path (dropout disabled) is implemented.
    key = jax.random.PRNGKey(0)
    kp, kf, kv_, km, kparam = jax.random.split(key, 5)

    B, P = BATCH, SEQ_LEN
    points = jax.random.normal(kp, (B, 2, P), jnp.float32)          # unused (as in torch)
    features = jax.random.normal(kf, (B, INPUT_DIM, P), jnp.float32)
    mom = jax.random.normal(kv_, (B, 3, P), jnp.float32)
    m_part = 0.1 + 0.4 * jax.random.uniform(km, (B, 1, P), jnp.float32)
    energy = jnp.sqrt(jnp.sum(mom * mom, axis=1, keepdims=True) + m_part * m_part)
    lorentz_vectors = jnp.concatenate([mom, energy], axis=1)        # (B, 4, P)

    lens = jnp.array([P, P - 2])
    mask = (jnp.arange(P)[None, :] < lens[:, None]).astype(jnp.float32)[:, None, :]  # (B,1,P)

    params = init_params(kparam)
    wrapper = ParticleTransformerWrapper(params)

    output = wrapper.forward(points, features, lorentz_vectors, mask)
    output = jax.block_until_ready(output)

    assert output.shape == (B, NUM_CLASSES)
    assert wrapper.get_attention_matrix().shape == (B, NUM_HEADS, P, P)
    assert wrapper.get_interactionMatrix().shape == (B, NUM_HEADS, P, P)
    assert bool(jnp.all(jnp.isfinite(output)))
    print("KERNEL_OK")
</pallas_src>

<mosaic_0001>
module attributes {stable_mosaic.version = 11 : i64} {
  func.func @_pair_kernel(%arg0: i32, %arg1: memref<128x4xf32, #tpu.memory_space<vmem>>, %arg2: memref<4x32xbf16, #tpu.memory_space<vmem>>, %arg3: memref<1x32xf32, #tpu.memory_space<vmem>>, %arg4: memref<32x4xbf16, #tpu.memory_space<vmem>>, %arg5: memref<1x4xf32, #tpu.memory_space<vmem>>, %arg6: memref<128x4xf32, #tpu.memory_space<vmem>>) attributes {dimension_semantics = [#tpu.dimension_semantics<arbitrary>], iteration_bounds = array<i64: 1>, scalar_prefetch = 0 : i64, scratch_operands = 0 : i64, tpu.core_type = #tpu.core_type<tc>, window_params = [{pipeline_mode = #tpu.pipeline_mode<synchronous>, transform_indices = @transform_0, window_bounds = array<i64: 128, 4>}, {pipeline_mode = #tpu.pipeline_mode<synchronous>, transform_indices = @transform_1, window_bounds = array<i64: 4, 32>}, {pipeline_mode = #tpu.pipeline_mode<synchronous>, transform_indices = @transform_2, window_bounds = array<i64: 1, 32>}, {pipeline_mode = #tpu.pipeline_mode<synchronous>, transform_indices = @transform_3, window_bounds = array<i64: 32, 4>}, {pipeline_mode = #tpu.pipeline_mode<synchronous>, transform_indices = @transform_4, window_bounds = array<i64: 1, 4>}, {pipeline_mode = #tpu.pipeline_mode<synchronous>, transform_indices = @transform_5, window_bounds = array<i64: 128, 4>}]} {
    %c0 = arith.constant 0 : index
    %c0_0 = arith.constant 0 : index
    %0 = vector.load %arg1[%c0, %c0_0] : memref<128x4xf32, #tpu.memory_space<vmem>>, vector<128x4xf32>
    %c0_1 = arith.constant 0 : index
    %c0_2 = arith.constant 0 : index
    %1 = vector.load %arg2[%c0_1, %c0_2] : memref<4x32xbf16, #tpu.memory_space<vmem>>, vector<4x32xbf16>
    %2 = arith.truncf %0 : vector<128x4xf32> to vector<128x4xbf16>
    %cst = arith.constant dense<0.000000e+00> : vector<128x32xf32>
    %3 = tpu.matmul %2, %1, %cst {dimension_numbers = #tpu.dot_dimension_numbers<[1], [0], [0], [1], [0, 0, 1, 1], [], []>} : vector<128x4xbf16>, vector<4x32xbf16>, vector<128x32xf32> -> vector<128x32xf32>
    %c0_3 = arith.constant 0 : index
    %c0_4 = arith.constant 0 : index
    %4 = vector.load %arg3[%c0_3, %c0_4] : memref<1x32xf32, #tpu.memory_space<vmem>>, vector<1x32xf32>
    %5 = vector.broadcast %4 : vector<1x32xf32> to vector<128x32xf32>
    %6 = arith.addf %3, %5 : vector<128x32xf32>
    %cst_5 = arith.constant 5.000000e-01 : f32
    %7 = vector.broadcast %cst_5 : f32 to vector<128x32xf32>
    %8 = arith.mulf %7, %6 : vector<128x32xf32>
    %cst_6 = arith.constant 4.471500e-02 : f32
    %9 = vector.broadcast %cst_6 : f32 to vector<128x32xf32>
    %10 = arith.mulf %9, %6 : vector<128x32xf32>
    %11 = arith.mulf %10, %6 : vector<128x32xf32>
    %12 = arith.mulf %11, %6 : vector<128x32xf32>
    %13 = arith.addf %6, %12 : vector<128x32xf32>
    %cst_7 = arith.constant 0.797884583 : f32
    %14 = vector.broadcast %cst_7 : f32 to vector<128x32xf32>
    %15 = arith.mulf %14, %13 : vector<128x32xf32>
    %16 = math.tanh %15 : vector<128x32xf32>
    %cst_8 = arith.constant 1.000000e+00 : f32
    %17 = vector.broadcast %cst_8 : f32 to vector<128x32xf32>
    %18 = arith.addf %17, %16 : vector<128x32xf32>
    %19 = arith.mulf %8, %18 : vector<128x32xf32>
    %c0_9 = arith.constant 0 : index
    %c0_10 = arith.constant 0 : index
    %20 = vector.load %arg4[%c0_9, %c0_10] : memref<32x4xbf16, #tpu.memory_space<vmem>>, vector<32x4xbf16>
    %21 = arith.truncf %19 : vector<128x32xf32> to vector<128x32xbf16>
    %cst_11 = arith.constant dense<0.000000e+00> : vector<128x4xf32>
    %22 = tpu.matmul %21, %20, %cst_11 {dimension_numbers = #tpu.dot_dimension_numbers<[1], [0], [0], [1], [0, 0, 1, 1], [], []>} : vector<128x32xbf16>, vector<32x4xbf16>, vector<128x4xf32> -> vector<128x4xf32>
    %c0_12 = arith.constant 0 : index
    %c0_13 = arith.constant 0 : index
    %23 = vector.load %arg5[%c0_12, %c0_13] : memref<1x4xf32, #tpu.memory_space<vmem>>, vector<1x4xf32>
    %24 = vector.broadcast %23 : vector<1x4xf32> to vector<128x4xf32>
    %25 = arith.addf %22, %24 : vector<128x4xf32>
    %c0_14 = arith.constant 0 : index
    %c0_15 = arith.constant 0 : index
    %26 = vector.load %arg6[%c0_14, %c0_15] : memref<128x4xf32, #tpu.memory_space<vmem>>, vector<128x4xf32>
    tpu.vector_store %arg6[%c0_14, %c0_15], %25 {strides = array<i32>} : memref<128x4xf32, #tpu.memory_space<vmem>>, vector<128x4xf32>,
    return
  }
  func.func @transform_0(%arg0: i32) -> (i32, i32) {
    %c0_i32 = arith.constant 0 : i32
    %c0_i32_0 = arith.constant 0 : i32
    %c0_i32_1 = arith.constant 0 : i32
    return %c0_i32, %c0_i32_0 : i32, i32
  }
  func.func @transform_1(%arg0: i32) -> (i32, i32) {
    %c0_i32 = arith.constant 0 : i32
    %c0_i32_0 = arith.constant 0 : i32
    %c0_i32_1 = arith.constant 0 : i32
    return %c0_i32, %c0_i32_0 : i32, i32
  }
  func.func @transform_2(%arg0: i32) -> (i32, i32) {
    %c0_i32 = arith.constant 0 : i32
    %c0_i32_0 = arith.constant 0 : i32
    %c0_i32_1 = arith.constant 0 : i32
    return %c0_i32, %c0_i32_0 : i32, i32
  }
  func.func @transform_3(%arg0: i32) -> (i32, i32) {
    %c0_i32 = arith.constant 0 : i32
    %c0_i32_0 = arith.constant 0 : i32
    %c0_i32_1 = arith.constant 0 : i32
    return %c0_i32, %c0_i32_0 : i32, i32
  }
  func.func @transform_4(%arg0: i32) -> (i32, i32) {
    %c0_i32 = arith.constant 0 : i32
    %c0_i32_0 = arith.constant 0 : i32
    %c0_i32_1 = arith.constant 0 : i32
    return %c0_i32, %c0_i32_0 : i32, i32
  }
  func.func @transform_5(%arg0: i32) -> (i32, i32) {
    %c0_i32 = arith.constant 0 : i32
    %c0_i32_0 = arith.constant 0 : i32
    %c0_i32_1 = arith.constant 0 : i32
    return %c0_i32, %c0_i32_0 : i32, i32
  }
}

module attributes {stable_mosaic.version = 11 : i64} {
  func.func @_fused_kernel(%arg0: i32, %arg1: memref<1x8x4xf32, #tpu.memory_space<vmem>>, %arg2: memref<1x4x8x8xf32, #tpu.memory_space<vmem>>, %arg3: memref<1x8x1xf32, #tpu.memory_space<vmem>>, %arg4: memref<1x1x8xf32, #tpu.memory_space<vmem>>, %arg5: memref<4x32xbf16, #tpu.memory_space<vmem>>, %arg6: memref<1x32xf32, #tpu.memory_space<vmem>>, %arg7: memref<32x32xbf16, #tpu.memory_space<vmem>>, %arg8: memref<1x32xf32, #tpu.memory_space<vmem>>, %arg9: memref<1x32xf32, #tpu.memory_space<vmem>>, %arg10: memref<1x32xf32, #tpu.memory_space<vmem>>, %arg11: memref<32x96xbf16, #tpu.memory_space<vmem>>, %arg12: memref<1x96xf32, #tpu.memory_space<vmem>>, %arg13: memref<32x32xbf16, #tpu.memory_space<vmem>>, %arg14: memref<1x32xf32, #tpu.memory_space<vmem>>, %arg15: memref<1x32xf32, #tpu.memory_space<vmem>>, %arg16: memref<1x32xf32, #tpu.memory_space<vmem>>, %arg17: memref<32x64xbf16, #tpu.memory_space<vmem>>, %arg18: memref<1x64xf32, #tpu.memory_space<vmem>>, %arg19: memref<64x32xbf16, #tpu.memory_space<vmem>>, %arg20: memref<1x32xf32, #tpu.memory_space<vmem>>, %arg21: memref<1x32xf32, #tpu.memory_space<vmem>>, %arg22: memref<1x32xf32, #tpu.memory_space<vmem>>, %arg23: memref<32x96xbf16, #tpu.memory_space<vmem>>, %arg24: memref<1x96xf32, #tpu.memory_space<vmem>>, %arg25: memref<32x32xbf16, #tpu.memory_space<vmem>>, %arg26: memref<1x32xf32, #tpu.memory_space<vmem>>, %arg27: memref<1x32xf32, #tpu.memory_space<vmem>>, %arg28: memref<1x32xf32, #tpu.memory_space<vmem>>, %arg29: memref<32x64xbf16, #tpu.memory_space<vmem>>, %arg30: memref<1x64xf32, #tpu.memory_space<vmem>>, %arg31: memref<64x32xbf16, #tpu.memory_space<vmem>>, %arg32: memref<1x32xf32, #tpu.memory_space<vmem>>, %arg33: memref<1x32xf32, #tpu.memory_space<vmem>>, %arg34: memref<1x32xf32, #tpu.memory_space<vmem>>, %arg35: memref<1x32xf32, #tpu.memory_space<vmem>>, %arg36: memref<32x32xbf16, #tpu.memory_space<vmem>>, %arg37: memref<1x32xf32, #tpu.memory_space<vmem>>, %arg38: memref<32x64xbf16, #tpu.memory_space<vmem>>, %arg39: memref<1x64xf32, #tpu.memory_space<vmem>>, %arg40: memref<32x32xbf16, #tpu.memory_space<vmem>>, %arg41: memref<1x32xf32, #tpu.memory_space<vmem>>, %arg42: memref<1x32xf32, #tpu.memory_space<vmem>>, %arg43: memref<1x32xf32, #tpu.memory_space<vmem>>, %arg44: memref<32x64xbf16, #tpu.memory_space<vmem>>, %arg45: memref<1x64xf32, #tpu.memory_space<vmem>>, %arg46: memref<64x32xbf16, #tpu.memory_space<vmem>>, %arg47: memref<1x32xf32, #tpu.memory_space<vmem>>, %arg48: memref<1x32xf32, #tpu.memory_space<vmem>>, %arg49: memref<1x32xf32, #tpu.memory_space<vmem>>, %arg50: memref<32x5xbf16, #tpu.memory_space<vmem>>, %arg51: memref<1x5xf32, #tpu.memory_space<vmem>>, %arg52: memref<1x1x5xf32, #tpu.memory_space<vmem>>, %arg53: memref<1x4x8x8xf32, #tpu.memory_space<vmem>>, %arg54: memref<9x32xf32, #tpu.memory_space<vmem>>, %arg55: memref<1x9xf32, #tpu.memory_space<vmem>>, %arg56: memref<8x32xf32, #tpu.memory_space<vmem>>) attributes {dimension_semantics = [#tpu.dimension_semantics<parallel>], iteration_bounds = array<i64: 2>, scalar_prefetch = 0 : i64, scratch_operands = 3 : i64, tpu.core_type = #tpu.core_type<tc>, window_params = [{transform_indices = @transform_0, window_bounds = array<i64: 1, 8, 4>}, {transform_indices = @transform_1, window_bounds = array<i64: 1, 4, 8, 8>}, {transform_indices = @transform_2, window_bounds = array<i64: 1, 8, 1>}, {transform_indices = @transform_3, window_bounds = array<i64: 1, 1, 8>}, {pipeline_mode = #tpu.pipeline_mode<synchronous>, transform_indices = @transform_4, window_bounds = array<i64: 4, 32>}, {pipeline_mode = #tpu.pipeline_mode<synchronous>, transform_indices = @transform_5, window_bounds = array<i64: 1, 32>}, {pipeline_mode = #tpu.pipeline_mode<synchronous>, transform_indices = @transform_6, window_bounds = array<i64: 32, 32>}, {pipeline_mode = #tpu.pipeline_mode<synchronous>, transform_indices = @transform_7, window_bounds = array<i64: 1, 32>}, {pipeline_mode = #tpu.pipeline_mode<synchronous>, transform_indices = @transform_8, window_bounds = array<i64: 1, 32>}, {pipeline_mode = #tpu.pipeline_mode<synchronous>, transform_indices = @transform_9, window_bounds = array<i64: 1, 32>}, {pipeline_mode = #tpu.pipeline_mode<synchronous>, transform_indices = @transform_10, window_bounds = array<i64: 32, 96>}, {pipeline_mode = #tpu.pipeline_mode<synchronous>, transform_indices = @transform_11, window_bounds = array<i64: 1, 96>}, {pipeline_mode = #tpu.pipeline_mode<synchronous>, transform_indices = @transform_12, window_bounds = array<i64: 32, 32>}, {pipeline_mode = #tpu.pipeline_mode<synchronous>, transform_indices = @transform_13, window_bounds = array<i64: 1, 32>}, {pipeline_mode = #tpu.pipeline_mode<synchronous>, transform_indices = @transform_14, window_bounds = array<i64: 1, 32>}, {pipeline_mode = #tpu.pipeline_mode<synchronous>, transform_indices = @transform_15, window_bounds = array<i64: 1, 32>}, {pipeline_mode = #tpu.pipeline_mode<synchronous>, transform_indices = @transform_16, window_bounds = array<i64: 32, 64>}, {pipeline_mode = #tpu.pipeline_mode<synchronous>, transform_indices = @transform_17, window_bounds = array<i64: 1, 64>}, {pipeline_mode = #tpu.pipeline_mode<synchronous>, transform_indices = @transform_18, window_bounds = array<i64: 64, 32>}, {pipeline_mode = #tpu.pipeline_mode<synchronous>, transform_indices = @transform_19, window_bounds = array<i64: 1, 32>}, {pipeline_mode = #tpu.pipeline_mode<synchronous>, transform_indices = @transform_20, window_bounds = array<i64: 1, 32>}, {pipeline_mode = #tpu.pipeline_mode<synchronous>, transform_indices = @transform_21, window_bounds = array<i64: 1, 32>}, {pipeline_mode = #tpu.pipeline_mode<synchronous>, transform_indices = @transform_22, window_bounds = array<i64: 32, 96>}, {pipeline_mode = #tpu.pipeline_mode<synchronous>, transform_indices = @transform_23, window_bounds = array<i64: 1, 96>}, {pipeline_mode = #tpu.pipeline_mode<synchronous>, transform_indices = @transform_24, window_bounds = array<i64: 32, 32>}, {pipeline_mode = #tpu.pipeline_mode<synchronous>, transform_indices = @transform_25, window_bounds = array<i64: 1, 32>}, {pipeline_mode = #tpu.pipeline_mode<synchronous>, transform_indices = @transform_26, window_bounds = array<i64: 1, 32>}, {pipeline_mode = #tpu.pipeline_mode<synchronous>, transform_indices = @transform_27, window_bounds = array<i64: 1, 32>}, {pipeline_mode = #tpu.pipeline_mode<synchronous>, transform_indices = @transform_28, window_bounds = array<i64: 32, 64>}, {pipeline_mode = #tpu.pipeline_mode<synchronous>, transform_indices = @transform_29, window_bounds = array<i64: 1, 64>}, {pipeline_mode = #tpu.pipeline_mode<synchronous>, transform_indices = @transform_30, window_bounds = array<i64: 64, 32>}, {pipeline_mode = #tpu.pipeline_mode<synchronous>, transform_indices = @transform_31, window_bounds = array<i64: 1, 32>}, {pipeline_mode = #tpu.pipeline_mode<synchronous>, transform_indices = @transform_32, window_bounds = array<i64: 1, 32>}, {pipeline_mode = #tpu.pipeline_mode<synchronous>, transform_indices = @transform_33, window_bounds = array<i64: 1, 32>}, {pipeline_mode = #tpu.pipeline_mode<synchronous>, transform_indices = @transform_34, window_bounds = array<i64: 1, 32>}, {pipeline_mode = #tpu.pipeline_mode<synchronous>, transform_indices = @transform_35, window_bounds = array<i64: 32, 32>}, {pipeline_mode = #tpu.pipeline_mode<synchronous>, transform_indices = @transform_36, window_bounds = array<i64: 1, 32>}, {pipeline_mode = #tpu.pipeline_mode<synchronous>, transform_indices = @transform_37, window_bounds = array<i64: 32, 64>}, {pipeline_mode = #tpu.pipeline_mode<synchronous>, transform_indices = @transform_38, window_bounds = array<i64: 1, 64>}, {pipeline_mode = #tpu.pipeline_mode<synchronous>, transform_indices = @transform_39, window_bounds = array<i64: 32, 32>}, {pipeline_mode = #tpu.pipeline_mode<synchronous>, transform_indices = @transform_40, window_bounds = array<i64: 1, 32>}, {pipeline_mode = #tpu.pipeline_mode<synchronous>, transform_indices = @transform_41, window_bounds = array<i64: 1, 32>}, {pipeline_mode = #tpu.pipeline_mode<synchronous>, transform_indices = @transform_42, window_bounds = array<i64: 1, 32>}, {pipeline_mode = #tpu.pipeline_mode<synchronous>, transform_indices = @transform_43, window_bounds = array<i64: 32, 64>}, {pipeline_mode = #tpu.pipeline_mode<synchronous>, transform_indices = @transform_44, window_bounds = array<i64: 1, 64>}, {pipeline_mode = #tpu.pipeline_mode<synchronous>, transform_indices = @transform_45, window_bounds = array<i64: 64, 32>}, {pipeline_mode = #tpu.pipeline_mode<synchronous>, transform_indices = @transform_46, window_bounds = array<i64: 1, 32>}, {pipeline_mode = #tpu.pipeline_mode<synchronous>, transform_indices = @transform_47, window_bounds = array<i64: 1, 32>}, {pipeline_mode = #tpu.pipeline_mode<synchronous>, transform_indices = @transform_48, window_bounds = array<i64: 1, 32>}, {pipeline_mode = #tpu.pipeline_mode<synchronous>, transform_indices = @transform_49, window_bounds = array<i64: 32, 5>}, {pipeline_mode = #tpu.pipeline_mode<synchronous>, transform_indices = @transform_50, window_bounds = array<i64: 1, 5>}, {transform_indices = @transform_51, window_bounds = array<i64: 1, 1, 5>}, {transform_indices = @transform_52, window_bounds = array<i64: 1, 4, 8, 8>}]} {
    %c0 = arith.constant 0 : index
    %c0_0 = arith.constant 0 : index
    %c0_1 = arith.constant 0 : index
    %0 = vector.load %arg1[%c0, %c0_0, %c0_1] : memref<1x8x4xf32, #tpu.memory_space<vmem>>, vector<1x8x4xf32>
    %1 = vector.shape_cast %0 : vector<1x8x4xf32> to vector<8x4xf32>
    %c0_2 = arith.constant 0 : index
    %c0_3 = arith.constant 0 : index
    %c0_4 = arith.constant 0 : index
    %2 = vector.load %arg3[%c0_2, %c0_3, %c0_4] : memref<1x8x1xf32, #tpu.memory_space<vmem>>, vector<1x8x1xf32>
    %3 = vector.shape_cast %2 : vector<1x8x1xf32> to vector<8x1xf32>
    %c0_5 = arith.constant 0 : index
    %c0_6 = arith.constant 0 : index
    %c0_7 = arith.constant 0 : index
    %4 = vector.load %arg4[%c0_5, %c0_6, %c0_7] : memref<1x1x8xf32, #tpu.memory_space<vmem>>, vector<1x1x8xf32>
    %5 = vector.shape_cast %4 : vector<1x1x8xf32> to vector<1x8xf32>
    %c0_8 = arith.constant 0 : index
    %c0_9 = arith.constant 0 : index
    %6 = vector.load %arg5[%c0_8, %c0_9] : memref<4x32xbf16, #tpu.memory_space<vmem>>, vector<4x32xbf16>
    %c0_10 = arith.constant 0 : index
    %c0_11 = arith.constant 0 : index
    %7 = vector.load %arg6[%c0_10, %c0_11] : memref<1x32xf32, #tpu.memory_space<vmem>>, vector<1x32xf32>
    %c0_12 = arith.constant 0 : index
    %c0_13 = arith.constant 0 : index
    %8 = vector.load %arg7[%c0_12, %c0_13] : memref<32x32xbf16, #tpu.memory_space<vmem>>, vector<32x32xbf16>
    %c0_14 = arith.constant 0 : index
    %c0_15 = arith.constant 0 : index
    %9 = vector.load %arg8[%c0_14, %c0_15] : memref<1x32xf32, #tpu.memory_space<vmem>>, vector<1x32xf32>
    %10 = arith.truncf %1 : vector<8x4xf32> to vector<8x4xbf16>
    %cst = arith.constant dense<0.000000e+00> : vector<8x32xf32>
    %11 = tpu.matmul %10, %6, %cst {dimension_numbers = #tpu.dot_dimension_numbers<[1], [0], [0], [1], [0, 0, 1, 1], [], []>} : vector<8x4xbf16>, vector<4x32xbf16>, vector<8x32xf32> -> vector<8x32xf32>
    %12 = vector.broadcast %7 : vector<1x32xf32> to vector<8x32xf32>
    %13 = arith.addf %11, %12 : vector<8x32xf32>
    %cst_16 = arith.constant 5.000000e-01 : f32
    %14 = vector.broadcast %cst_16 : f32 to vector<8x32xf32>
    %15 = arith.mulf %14, %13 : vector<8x32xf32>
    %cst_17 = arith.constant 4.471500e-02 : f32
    %16 = vector.broadcast %cst_17 : f32 to vector<8x32xf32>
    %17 = arith.mulf %16, %13 : vector<8x32xf32>
    %18 = arith.mulf %17, %13 : vector<8x32xf32>
    %19 = arith.mulf %18, %13 : vector<8x32xf32>
    %20 = arith.addf %13, %19 : vector<8x32xf32>
    %cst_18 = arith.constant 0.797884583 : f32
    %21 = vector.broadcast %cst_18 : f32 to vector<8x32xf32>
    %22 = arith.mulf %21, %20 : vector<8x32xf32>
    %23 = math.tanh %22 : vector<8x32xf32>
    %cst_19 = arith.constant 1.000000e+00 : f32
    %24 = vector.broadcast %cst_19 : f32 to vector<8x32xf32>
    %25 = arith.addf %24, %23 : vector<8x32xf32>
    %26 = arith.mulf %15, %25 : vector<8x32xf32>
    %27 = arith.truncf %26 : vector<8x32xf32> to vector<8x32xbf16>
    %cst_20 = arith.constant dense<0.000000e+00> : vector<8x32xf32>
    %28 = tpu.matmul %27, %8, %cst_20 {dimension_numbers = #tpu.dot_dimension_numbers<[1], [0], [0], [1], [0, 0, 1, 1], [], []>} : vector<8x32xbf16>, vector<32x32xbf16>, vector<8x32xf32> -> vector<8x32xf32>
    %29 = vector.broadcast %9 : vector<1x32xf32> to vector<8x32xf32>
    %30 = arith.addf %28, %29 : vector<8x32xf32>
    %cst_21 = arith.constant 5.000000e-01 : f32
    %31 = vector.broadcast %cst_21 : f32 to vector<8x32xf32>
    %32 = arith.mulf %31, %30 : vector<8x32xf32>
    %cst_22 = arith.constant 4.471500e-02 : f32
    %33 = vector.broadcast %cst_22 : f32 to vector<8x32xf32>
    %34 = arith.mulf %33, %30 : vector<8x32xf32>
    %35 = arith.mulf %34, %30 : vector<8x32xf32>
    %36 = arith.mulf %35, %30 : vector<8x32xf32>
    %37 = arith.addf %30, %36 : vector<8x32xf32>
    %cst_23 = arith.constant 0.797884583 : f32
    %38 = vector.broadcast %cst_23 : f32 to vector<8x32xf32>
    %39 = arith.mulf %38, %37 : vector<8x32xf32>
    %40 = math.tanh %39 : vector<8x32xf32>
    %cst_24 = arith.constant 1.000000e+00 : f32
    %41 = vector.broadcast %cst_24 : f32 to vector<8x32xf32>
    %42 = arith.addf %41, %40 : vector<8x32xf32>
    %43 = arith.mulf %32, %42 : vector<8x32xf32>
    %44 = vector.broadcast %3 : vector<8x1xf32> to vector<8x32xf32>
    %45 = arith.mulf %43, %44 : vector<8x32xf32>
    %c0_25 = arith.constant 0 : index
    %c0_26 = arith.constant 0 : index
    %46 = vector.load %arg9[%c0_25, %c0_26] : memref<1x32xf32, #tpu.memory_space<vmem>>, vector<1x32xf32>
    %c0_27 = arith.constant 0 : index
    %c0_28 = arith.constant 0 : index
    %47 = vector.load %arg10[%c0_27, %c0_28] : memref<1x32xf32, #tpu.memory_space<vmem>>, vector<1x32xf32>
    %c0_29 = arith.constant 0 : index
    %c0_30 = arith.constant 0 : index
    %48 = vector.load %arg11[%c0_29, %c0_30] : memref<32x96xbf16, #tpu.memory_space<vmem>>, vector<32x96xbf16>
    %c0_31 = arith.constant 0 : index
    %c0_32 = arith.constant 0 : index
    %49 = vector.load %arg12[%c0_31, %c0_32] : memref<1x96xf32, #tpu.memory_space<vmem>>, vector<1x96xf32>
    %c0_33 = arith.constant 0 : index
    %c0_34 = arith.constant 0 : index
    %50 = vector.load %arg13[%c0_33, %c0_34] : memref<32x32xbf16, #tpu.memory_space<vmem>>, vector<32x32xbf16>
    %c0_35 = arith.constant 0 : index
    %c0_36 = arith.constant 0 : index
    %51 = vector.load %arg14[%c0_35, %c0_36] : memref<1x32xf32, #tpu.memory_space<vmem>>, vector<1x32xf32>
    %c0_37 = arith.constant 0 : index
    %c0_38 = arith.constant 0 : index
    %52 = vector.load %arg15[%c0_37, %c0_38] : memref<1x32xf32, #tpu.memory_space<vmem>>, vector<1x32xf32>
    %c0_39 = arith.constant 0 : index
    %c0_40 = arith.constant 0 : index
    %53 = vector.load %arg16[%c0_39, %c0_40] : memref<1x32xf32, #tpu.memory_space<vmem>>, vector<1x32xf32>
    %c0_41 = arith.constant 0 : index
    %c0_42 = arith.constant 0 : index
    %54 = vector.load %arg17[%c0_41, %c0_42] : memref<32x64xbf16, #tpu.memory_space<vmem>>, vector<32x64xbf16>
    %c0_43 = arith.constant 0 : index
    %c0_44 = arith.constant 0 : index
    %55 = vector.load %arg18[%c0_43, %c0_44] : memref<1x64xf32, #tpu.memory_space<vmem>>, vector<1x64xf32>
    %c0_45 = arith.constant 0 : index
    %c0_46 = arith.constant 0 : index
    %56 = vector.load %arg19[%c0_45, %c0_46] : memref<64x32xbf16, #tpu.memory_space<vmem>>, vector<64x32xbf16>
    %c0_47 = arith.constant 0 : index
    %c0_48 = arith.constant 0 : index
    %57 = vector.load %arg20[%c0_47, %c0_48] : memref<1x32xf32, #tpu.memory_space<vmem>>, vector<1x32xf32>
    %cst_49 = arith.constant dense<0.000000e+00> : vector<8xf32>
    %58 = vector.multi_reduction <add>, %45, %cst_49 [1] : vector<8x32xf32> to vector<8xf32>
    %59 = vector.shape_cast %58 : vector<8xf32> to vector<8x1xf32>
    %cst_50 = arith.constant 3.200000e+01 : f32
    %60 = vector.broadcast %cst_50 : f32 to vector<8x1xf32>
    %61 = arith.divf %59, %60 : vector<8x1xf32>
    %62 = vector.broadcast %61 : vector<8x1xf32> to vector<8x32xf32>
    %63 = arith.subf %45, %62 : vector<8x32xf32>
    %64 = arith.mulf %63, %63 : vector<8x32xf32>
    %cst_51 = arith.constant dense<0.000000e+00> : vector<8xf32>
    %65 = vector.multi_reduction <add>, %64, %cst_51 [1] : vector<8x32xf32> to vector<8xf32>
    %66 = vector.shape_cast %65 : vector<8xf32> to vector<8x1xf32>
    %cst_52 = arith.constant 3.200000e+01 : f32
    %67 = vector.broadcast %cst_52 : f32 to vector<8x1xf32>
    %68 = arith.divf %66, %67 : vector<8x1xf32>
    %cst_53 = arith.constant 9.99999974E-6 : f32
    %69 = vector.broadcast %cst_53 : f32 to vector<8x1xf32>
    %70 = arith.addf %68, %69 : vector<8x1xf32>
    %71 = math.rsqrt %70 : vector<8x1xf32>
    %72 = vector.broadcast %71 : vector<8x1xf32> to vector<8x32xf32>
    %73 = arith.mulf %63, %72 : vector<8x32xf32>
    %74 = vector.broadcast %46 : vector<1x32xf32> to vector<8x32xf32>
    %75 = arith.mulf %73, %74 : vector<8x32xf32>
    %76 = vector.broadcast %47 : vector<1x32xf32> to vector<8x32xf32>
    %77 = arith.addf %75, %76 : vector<8x32xf32>
    %78 = arith.truncf %77 : vector<8x32xf32> to vector<8x32xbf16>
    %cst_54 = arith.constant dense<0.000000e+00> : vector<8x96xf32>
    %79 = tpu.matmul %78, %48, %cst_54 {dimension_numbers = #tpu.dot_dimension_numbers<[1], [0], [0], [1], [0, 0, 1, 1], [], []>} : vector<8x32xbf16>, vector<32x96xbf16>, vector<8x96xf32> -> vector<8x96xf32>
    %80 = vector.broadcast %49 : vector<1x96xf32> to vector<8x96xf32>
    %81 = arith.addf %79, %80 : vector<8x96xf32>
    %82 = vector.extract_strided_slice %81 {offsets = [0, 0], sizes = [8, 8], strides = [1, 1]} : vector<8x96xf32> to vector<8x8xf32>
    %83 = vector.extract_strided_slice %81 {offsets = [0, 32], sizes = [8, 8], strides = [1, 1]} : vector<8x96xf32> to vector<8x8xf32>
    %84 = vector.extract_strided_slice %81 {offsets = [0, 64], sizes = [8, 8], strides = [1, 1]} : vector<8x96xf32> to vector<8x8xf32>
    %c0_55 = arith.constant 0 : index
    %c0_56 = arith.constant 0 : index
    %c0_57 = arith.constant 0 : index
    %c0_58 = arith.constant 0 : index
    %85 = vector.load %arg2[%c0_55, %c0_56, %c0_57, %c0_58] : memref<1x4x8x8xf32, #tpu.memory_space<vmem>>, vector<1x1x8x8xf32>
    %86 = vector.shape_cast %85 : vector<1x1x8x8xf32> to vector<8x8xf32>
    %87 = arith.truncf %82 : vector<8x8xf32> to vector<8x8xbf16>
    %88 = arith.truncf %83 : vector<8x8xf32> to vector<8x8xbf16>
    %cst_59 = arith.constant dense<0.000000e+00> : vector<8x8xf32>
    %89 = tpu.matmul %87, %88, %cst_59 {dimension_numbers = #tpu.dot_dimension_numbers<[1], [1], [0], [0], [0, 0, 1, 0], [], []>} : vector<8x8xbf16>, vector<8x8xbf16>, vector<8x8xf32> -> vector<8x8xf32>
    %cst_60 = arith.constant 0.353553385 : f32
    %90 = vector.broadcast %cst_60 : f32 to vector<8x8xf32>
    %91 = arith.mulf %89, %90 : vector<8x8xf32>
    %92 = arith.addf %91, %86 : vector<8x8xf32>
    %cst_61 = arith.constant dense<0xFF800000> : vector<8xf32>
    %93 = vector.multi_reduction <maximumf>, %92, %cst_61 [1] : vector<8x8xf32> to vector<8xf32>
    %94 = vector.shape_cast %93 : vector<8xf32> to vector<8x1xf32>
    %95 = vector.broadcast %94 : vector<8x1xf32> to vector<8x8xf32>
    %96 = arith.subf %92, %95 : vector<8x8xf32>
    %97 = math.exp %96 : vector<8x8xf32>
    %cst_62 = arith.constant dense<0.000000e+00> : vector<8xf32>
    %98 = vector.multi_reduction <add>, %97, %cst_62 [1] : vector<8x8xf32> to vector<8xf32>
    %99 = vector.shape_cast %98 : vector<8xf32> to vector<8x1xf32>
    %100 = tpu.reciprocal %99 {approx = true} : vector<8x1xf32> -> vector<8x1xf32>
    %101 = vector.broadcast %100 : vector<8x1xf32> to vector<8x8xf32>
    %102 = arith.mulf %97, %101 : vector<8x8xf32>
    %103 = arith.truncf %102 : vector<8x8xf32> to vector<8x8xbf16>
    %104 = arith.truncf %84 : vector<8x8xf32> to vector<8x8xbf16>
    %cst_63 = arith.constant dense<0.000000e+00> : vector<8x8xf32>
    %105 = tpu.matmul %103, %104, %cst_63 {dimension_numbers = #tpu.dot_dimension_numbers<[1], [0], [0], [1], [0, 0, 1, 1], [], []>} : vector<8x8xbf16>, vector<8x8xbf16>, vector<8x8xf32> -> vector<8x8xf32>
    %c0_64 = arith.constant 0 : index
    %c0_65 = arith.constant 0 : index
    %106 = vector.load %arg56[%c0_64, %c0_65] : memref<8x32xf32, #tpu.memory_space<vmem>>, vector<8x8xf32>
    tpu.vector_store %arg56[%c0_64, %c0_65], %105 {strides = array<i32>} : memref<8x32xf32, #tpu.memory_space<vmem>>, vector<8x8xf32>,
    %107 = vector.extract_strided_slice %81 {offsets = [0, 8], sizes = [8, 8], strides = [1, 1]} : vector<8x96xf32> to vector<8x8xf32>
    %108 = vector.extract_strided_slice %81 {offsets = [0, 40], sizes = [8, 8], strides = [1, 1]} : vector<8x96xf32> to vector<8x8xf32>
    %109 = vector.extract_strided_slice %81 {offsets = [0, 72], sizes = [8, 8], strides = [1, 1]} : vector<8x96xf32> to vector<8x8xf32>
    %c0_66 = arith.constant 0 : index
    %c1 = arith.constant 1 : index
    %c0_67 = arith.constant 0 : index
    %c0_68 = arith.constant 0 : index
    %110 = vector.load %arg2[%c0_66, %c1, %c0_67, %c0_68] : memref<1x4x8x8xf32, #tpu.memory_space<vmem>>, vector<1x1x8x8xf32>
    %111 = vector.shape_cast %110 : vector<1x1x8x8xf32> to vector<8x8xf32>
    %112 = arith.truncf %107 : vector<8x8xf32> to vector<8x8xbf16>
    %113 = arith.truncf %108 : vector<8x8xf32> to vector<8x8xbf16>
    %cst_69 = arith.constant dense<0.000000e+00> : vector<8x8xf32>
    %114 = tpu.matmul %112, %113, %cst_69 {dimension_numbers = #tpu.dot_dimension_numbers<[1], [1], [0], [0], [0, 0, 1, 0], [], []>} : vector<8x8xbf16>, vector<8x8xbf16>, vector<8x8xf32> -> vector<8x8xf32>
    %cst_70 = arith.constant 0.353553385 : f32
    %115 = vector.broadcast %cst_70 : f32 to vector<8x8xf32>
    %116 = arith.mulf %114, %115 : vector<8x8xf32>
    %117 = arith.addf %116, %111 : vector<8x8xf32>
    %cst_71 = arith.constant dense<0xFF800000> : vector<8xf32>
    %118 = vector.multi_reduction <maximumf>, %117, %cst_71 [1] : vector<8x8xf32> to vector<8xf32>
    %119 = vector.shape_cast %118 : vector<8xf32> to vector<8x1xf32>
    %120 = vector.broadcast %119 : vector<8x1xf32> to vector<8x8xf32>
    %121 = arith.subf %117, %120 : vector<8x8xf32>
    %122 = math.exp %121 : vector<8x8xf32>
    %cst_72 = arith.constant dense<0.000000e+00> : vector<8xf32>
    %123 = vector.multi_reduction <add>, %122, %cst_72 [1] : vector<8x8xf32> to vector<8xf32>
    %124 = vector.shape_cast %123 : vector<8xf32> to vector<8x1xf32>
    %125 = tpu.reciprocal %124 {approx = true} : vector<8x1xf32> -> vector<8x1xf32>
    %126 = vector.broadcast %125 : vector<8x1xf32> to vector<8x8xf32>
    %127 = arith.mulf %122, %126 : vector<8x8xf32>
    %128 = arith.truncf %127 : vector<8x8xf32> to vector<8x8xbf16>
    %129 = arith.truncf %109 : vector<8x8xf32> to vector<8x8xbf16>
    %cst_73 = arith.constant dense<0.000000e+00> : vector<8x8xf32>
    %130 = tpu.matmul %128, %129, %cst_73 {dimension_numbers = #tpu.dot_dimension_numbers<[1], [0], [0], [1], [0, 0, 1, 1], [], []>} : vector<8x8xbf16>, vector<8x8xbf16>, vector<8x8xf32> -> vector<8x8xf32>
    %c0_74 = arith.constant 0 : index
    %c8 = arith.constant 8 : index
    %131 = vector.load %arg56[%c0_74, %c8] : memref<8x32xf32, #tpu.memory_space<vmem>>, vector<8x8xf32>
    tpu.vector_store %arg56[%c0_74, %c8], %130 {strides = array<i32>} : memref<8x32xf32, #tpu.memory_space<vmem>>, vector<8x8xf32>,
    %132 = vector.extract_strided_slice %81 {offsets = [0, 16], sizes = [8, 8], strides = [1, 1]} : vector<8x96xf32> to vector<8x8xf32>
    %133 = vector.extract_strided_slice %81 {offsets = [0, 48], sizes = [8, 8], strides = [1, 1]} : vector<8x96xf32> to vector<8x8xf32>
    %134 = vector.extract_strided_slice %81 {offsets = [0, 80], sizes = [8, 8], strides = [1, 1]} : vector<8x96xf32> to vector<8x8xf32>
    %c0_75 = arith.constant 0 : index
    %c2 = arith.constant 2 : index
    %c0_76 = arith.constant 0 : index
    %c0_77 = arith.constant 0 : index
    %135 = vector.load %arg2[%c0_75, %c2, %c0_76, %c0_77] : memref<1x4x8x8xf32, #tpu.memory_space<vmem>>, vector<1x1x8x8xf32>
    %136 = vector.shape_cast %135 : vector<1x1x8x8xf32> to vector<8x8xf32>
    %137 = arith.truncf %132 : vector<8x8xf32> to vector<8x8xbf16>
    %138 = arith.truncf %133 : vector<8x8xf32> to vector<8x8xbf16>
    %cst_78 = arith.constant dense<0.000000e+00> : vector<8x8xf32>
    %139 = tpu.matmul %137, %138, %cst_78 {dimension_numbers = #tpu.dot_dimension_numbers<[1], [1], [0], [0], [0, 0, 1, 0], [], []>} : vector<8x8xbf16>, vector<8x8xbf16>, vector<8x8xf32> -> vector<8x8xf32>
    %cst_79 = arith.constant 0.353553385 : f32
    %140 = vector.broadcast %cst_79 : f32 to vector<8x8xf32>
    %141 = arith.mulf %139, %140 : vector<8x8xf32>
    %142 = arith.addf %141, %136 : vector<8x8xf32>
    %cst_80 = arith.constant dense<0xFF800000> : vector<8xf32>
    %143 = vector.multi_reduction <maximumf>, %142, %cst_80 [1] : vector<8x8xf32> to vector<8xf32>
    %144 = vector.shape_cast %143 : vector<8xf32> to vector<8x1xf32>
    %145 = vector.broadcast %144 : vector<8x1xf32> to vector<8x8xf32>
    %146 = arith.subf %142, %145 : vector<8x8xf32>
    %147 = math.exp %146 : vector<8x8xf32>
    %cst_81 = arith.constant dense<0.000000e+00> : vector<8xf32>
    %148 = vector.multi_reduction <add>, %147, %cst_81 [1] : vector<8x8xf32> to vector<8xf32>
    %149 = vector.shape_cast %148 : vector<8xf32> to vector<8x1xf32>
    %150 = tpu.reciprocal %149 {approx = true} : vector<8x1xf32> -> vector<8x1xf32>
    %151 = vector.broadcast %150 : vector<8x1xf32> to vector<8x8xf32>
    %152 = arith.mulf %147, %151 : vector<8x8xf32>
    %153 = arith.truncf %152 : vector<8x8xf32> to vector<8x8xbf16>
    %154 = arith.truncf %134 : vector<8x8xf32> to vector<8x8xbf16>
    %cst_82 = arith.constant dense<0.000000e+00> : vector<8x8xf32>
    %155 = tpu.matmul %153, %154, %cst_82 {dimension_numbers = #tpu.dot_dimension_numbers<[1], [0], [0], [1], [0, 0, 1, 1], [], []>} : vector<8x8xbf16>, vector<8x8xbf16>, vector<8x8xf32> -> vector<8x8xf32>
    %c0_83 = arith.constant 0 : index
    %c16 = arith.constant 16 : index
    %156 = vector.load %arg56[%c0_83, %c16] : memref<8x32xf32, #tpu.memory_space<vmem>>, vector<8x8xf32>
    tpu.vector_store %arg56[%c0_83, %c16], %155 {strides = array<i32>} : memref<8x32xf32, #tpu.memory_space<vmem>>, vector<8x8xf32>,
    %157 = vector.extract_strided_slice %81 {offsets = [0, 24], sizes = [8, 8], strides = [1, 1]} : vector<8x96xf32> to vector<8x8xf32>
    %158 = vector.extract_strided_slice %81 {offsets = [0, 56], sizes = [8, 8], strides = [1, 1]} : vector<8x96xf32> to vector<8x8xf32>
    %159 = vector.extract_strided_slice %81 {offsets = [0, 88], sizes = [8, 8], strides = [1, 1]} : vector<8x96xf32> to vector<8x8xf32>
    %c0_84 = arith.constant 0 : index
    %c3 = arith.constant 3 : index
    %c0_85 = arith.constant 0 : index
    %c0_86 = arith.constant 0 : index
    %160 = vector.load %arg2[%c0_84, %c3, %c0_85, %c0_86] : memref<1x4x8x8xf32, #tpu.memory_space<vmem>>, vector<1x1x8x8xf32>
    %161 = vector.shape_cast %160 : vector<1x1x8x8xf32> to vector<8x8xf32>
    %162 = arith.truncf %157 : vector<8x8xf32> to vector<8x8xbf16>
    %163 = arith.truncf %158 : vector<8x8xf32> to vector<8x8xbf16>
    %cst_87 = arith.constant dense<0.000000e+00> : vector<8x8xf32>
    %164 = tpu.matmul %162, %163, %cst_87 {dimension_numbers = #tpu.dot_dimension_numbers<[1], [1], [0], [0], [0, 0, 1, 0], [], []>} : vector<8x8xbf16>, vector<8x8xbf16>, vector<8x8xf32> -> vector<8x8xf32>
    %cst_88 = arith.constant 0.353553385 : f32
    %165 = vector.broadcast %cst_88 : f32 to vector<8x8xf32>
    %166 = arith.mulf %164, %165 : vector<8x8xf32>
    %167 = arith.addf %166, %161 : vector<8x8xf32>
    %cst_89 = arith.constant dense<0xFF800000> : vector<8xf32>
    %168 = vector.multi_reduction <maximumf>, %167, %cst_89 [1] : vector<8x8xf32> to vector<8xf32>
    %169 = vector.shape_cast %168 : vector<8xf32> to vector<8x1xf32>
    %170 = vector.broadcast %169 : vector<8x1xf32> to vector<8x8xf32>
    %171 = arith.subf %167, %170 : vector<8x8xf32>
    %172 = math.exp %171 : vector<8x8xf32>
    %cst_90 = arith.constant dense<0.000000e+00> : vector<8xf32>
    %173 = vector.multi_reduction <add>, %172, %cst_90 [1] : vector<8x8xf32> to vector<8xf32>
    %174 = vector.shape_cast %173 : vector<8xf32> to vector<8x1xf32>
    %175 = tpu.reciprocal %174 {approx = true} : vector<8x1xf32> -> vector<8x1xf32>
    %176 = vector.broadcast %175 : vector<8x1xf32> to vector<8x8xf32>
    %177 = arith.mulf %172, %176 : vector<8x8xf32>
    %178 = arith.truncf %177 : vector<8x8xf32> to vector<8x8xbf16>
    %179 = arith.truncf %159 : vector<8x8xf32> to vector<8x8xbf16>
    %cst_91 = arith.constant dense<0.000000e+00> : vector<8x8xf32>
    %180 = tpu.matmul %178, %179, %cst_91 {dimension_numbers = #tpu.dot_dimension_numbers<[1], [0], [0], [1], [0, 0, 1, 1], [], []>} : vector<8x8xbf16>, vector<8x8xbf16>, vector<8x8xf32> -> vector<8x8xf32>
    %c0_92 = arith.constant 0 : index
    %c24 = arith.constant 24 : index
    %181 = vector.load %arg56[%c0_92, %c24] : memref<8x32xf32, #tpu.memory_space<vmem>>, vector<8x8xf32>
    tpu.vector_store %arg56[%c0_92, %c24], %180 {strides = array<i32>} : memref<8x32xf32, #tpu.memory_space<vmem>>, vector<8x8xf32>,
    %c0_93 = arith.constant 0 : index
    %c0_94 = arith.constant 0 : index
    %182 = vector.load %arg56[%c0_93, %c0_94] : memref<8x32xf32, #tpu.memory_space<vmem>>, vector<8x32xf32>
    %183 = arith.truncf %182 : vector<8x32xf32> to vector<8x32xbf16>
    %cst_95 = arith.constant dense<0.000000e+00> : vector<8x32xf32>
    %184 = tpu.matmul %183, %50, %cst_95 {dimension_numbers = #tpu.dot_dimension_numbers<[1], [0], [0], [1], [0, 0, 1, 1], [], []>} : vector<8x32xbf16>, vector<32x32xbf16>, vector<8x32xf32> -> vector<8x32xf32>
    %185 = vector.broadcast %51 : vector<1x32xf32> to vector<8x32xf32>
    %186 = arith.addf %184, %185 : vector<8x32xf32>
    %187 = arith.addf %45, %186 : vector<8x32xf32>
    %cst_96 = arith.constant dense<0.000000e+00> : vector<8xf32>
    %188 = vector.multi_reduction <add>, %187, %cst_96 [1] : vector<8x32xf32> to vector<8xf32>
    %189 = vector.shape_cast %188 : vector<8xf32> to vector<8x1xf32>
    %cst_97 = arith.constant 3.200000e+01 : f32
    %190 = vector.broadcast %cst_97 : f32 to vector<8x1xf32>
    %191 = arith.divf %189, %190 : vector<8x1xf32>
    %192 = vector.broadcast %191 : vector<8x1xf32> to vector<8x32xf32>
    %193 = arith.subf %187, %192 : vector<8x32xf32>
    %194 = arith.mulf %193, %193 : vector<8x32xf32>
    %cst_98 = arith.constant dense<0.000000e+00> : vector<8xf32>
    %195 = vector.multi_reduction <add>, %194, %cst_98 [1] : vector<8x32xf32> to vector<8xf32>
    %196 = vector.shape_cast %195 : vector<8xf32> to vector<8x1xf32>
    %cst_99 = arith.constant 3.200000e+01 : f32
    %197 = vector.broadcast %cst_99 : f32 to vector<8x1xf32>
    %198 = arith.divf %196, %197 : vector<8x1xf32>
    %cst_100 = arith.constant 9.99999974E-6 : f32
    %199 = vector.broadcast %cst_100 : f32 to vector<8x1xf32>
    %200 = arith.addf %198, %199 : vector<8x1xf32>
    %201 = math.rsqrt %200 : vector<8x1xf32>
    %202 = vector.broadcast %201 : vector<8x1xf32> to vector<8x32xf32>
    %203 = arith.mulf %193, %202 : vector<8x32xf32>
    %204 = vector.broadcast %52 : vector<1x32xf32> to vector<8x32xf32>
    %205 = arith.mulf %203, %204 : vector<8x32xf32>
    %206 = vector.broadcast %53 : vector<1x32xf32> to vector<8x32xf32>
    %207 = arith.addf %205, %206 : vector<8x32xf32>
    %208 = arith.truncf %207 : vector<8x32xf32> to vector<8x32xbf16>
    %cst_101 = arith.constant dense<0.000000e+00> : vector<8x64xf32>
    %209 = tpu.matmul %208, %54, %cst_101 {dimension_numbers = #tpu.dot_dimension_numbers<[1], [0], [0], [1], [0, 0, 1, 1], [], []>} : vector<8x32xbf16>, vector<32x64xbf16>, vector<8x64xf32> -> vector<8x64xf32>
    %210 = vector.broadcast %55 : vector<1x64xf32> to vector<8x64xf32>
    %211 = arith.addf %209, %210 : vector<8x64xf32>
    %cst_102 = arith.constant 5.000000e-01 : f32
    %212 = vector.broadcast %cst_102 : f32 to vector<8x64xf32>
    %213 = arith.mulf %212, %211 : vector<8x64xf32>
    %cst_103 = arith.constant 4.471500e-02 : f32
    %214 = vector.broadcast %cst_103 : f32 to vector<8x64xf32>
    %215 = arith.mulf %214, %211 : vector<8x64xf32>
    %216 = arith.mulf %215, %211 : vector<8x64xf32>
    %217 = arith.mulf %216, %211 : vector<8x64xf32>
    %218 = arith.addf %211, %217 : vector<8x64xf32>
    %cst_104 = arith.constant 0.797884583 : f32
    %219 = vector.broadcast %cst_104 : f32 to vector<8x64xf32>
    %220 = arith.mulf %219, %218 : vector<8x64xf32>
    %221 = math.tanh %220 : vector<8x64xf32>
    %cst_105 = arith.constant 1.000000e+00 : f32
    %222 = vector.broadcast %cst_105 : f32 to vector<8x64xf32>
    %223 = arith.addf %222, %221 : vector<8x64xf32>
    %224 = arith.mulf %213, %223 : vector<8x64xf32>
    %225 = arith.truncf %224 : vector<8x64xf32> to vector<8x64xbf16>
    %cst_106 = arith.constant dense<0.000000e+00> : vector<8x32xf32>
    %226 = tpu.matmul %225, %56, %cst_106 {dimension_numbers = #tpu.dot_dimension_numbers<[1], [0], [0], [1], [0, 0, 1, 1], [], []>} : vector<8x64xbf16>, vector<64x32xbf16>, vector<8x32xf32> -> vector<8x32xf32>
    %227 = arith.addf %187, %226 : vector<8x32xf32>
    %228 = vector.broadcast %57 : vector<1x32xf32> to vector<8x32xf32>
    %229 = arith.addf %227, %228 : vector<8x32xf32>
    %c0_107 = arith.constant 0 : index
    %c0_108 = arith.constant 0 : index
    %230 = vector.load %arg21[%c0_107, %c0_108] : memref<1x32xf32, #tpu.memory_space<vmem>>, vector<1x32xf32>
    %c0_109 = arith.constant 0 : index
    %c0_110 = arith.constant 0 : index
    %231 = vector.load %arg22[%c0_109, %c0_110] : memref<1x32xf32, #tpu.memory_space<vmem>>, vector<1x32xf32>
    %c0_111 = arith.constant 0 : index
    %c0_112 = arith.constant 0 : index
    %232 = vector.load %arg23[%c0_111, %c0_112] : memref<32x96xbf16, #tpu.memory_space<vmem>>, vector<32x96xbf16>
    %c0_113 = arith.constant 0 : index
    %c0_114 = arith.constant 0 : index
    %233 = vector.load %arg24[%c0_113, %c0_114] : memref<1x96xf32, #tpu.memory_space<vmem>>, vector<1x96xf32>
    %c0_115 = arith.constant 0 : index
    %c0_116 = arith.constant 0 : index
    %234 = vector.load %arg25[%c0_115, %c0_116] : memref<32x32xbf16, #tpu.memory_space<vmem>>, vector<32x32xbf16>
    %c0_117 = arith.constant 0 : index
    %c0_118 = arith.constant 0 : index
    %235 = vector.load %arg26[%c0_117, %c0_118] : memref<1x32xf32, #tpu.memory_space<vmem>>, vector<1x32xf32>
    %c0_119 = arith.constant 0 : index
    %c0_120 = arith.constant 0 : index
    %236 = vector.load %arg27[%c0_119, %c0_120] : memref<1x32xf32, #tpu.memory_space<vmem>>, vector<1x32xf32>
    %c0_121 = arith.constant 0 : index
    %c0_122 = arith.constant 0 : index
    %237 = vector.load %arg28[%c0_121, %c0_122] : memref<1x32xf32, #tpu.memory_space<vmem>>, vector<1x32xf32>
    %c0_123 = arith.constant 0 : index
    %c0_124 = arith.constant 0 : index
    %238 = vector.load %arg29[%c0_123, %c0_124] : memref<32x64xbf16, #tpu.memory_space<vmem>>, vector<32x64xbf16>
    %c0_125 = arith.constant 0 : index
    %c0_126 = arith.constant 0 : index
    %239 = vector.load %arg30[%c0_125, %c0_126] : memref<1x64xf32, #tpu.memory_space<vmem>>, vector<1x64xf32>
    %c0_127 = arith.constant 0 : index
    %c0_128 = arith.constant 0 : index
    %240 = vector.load %arg31[%c0_127, %c0_128] : memref<64x32xbf16, #tpu.memory_space<vmem>>, vector<64x32xbf16>
    %c0_129 = arith.constant 0 : index
    %c0_130 = arith.constant 0 : index
    %241 = vector.load %arg32[%c0_129, %c0_130] : memref<1x32xf32, #tpu.memory_space<vmem>>, vector<1x32xf32>
    %cst_131 = arith.constant dense<0.000000e+00> : vector<8xf32>
    %242 = vector.multi_reduction <add>, %229, %cst_131 [1] : vector<8x32xf32> to vector<8xf32>
    %243 = vector.shape_cast %242 : vector<8xf32> to vector<8x1xf32>
    %cst_132 = arith.constant 3.200000e+01 : f32
    %244 = vector.broadcast %cst_132 : f32 to vector<8x1xf32>
    %245 = arith.divf %243, %244 : vector<8x1xf32>
    %246 = vector.broadcast %245 : vector<8x1xf32> to vector<8x32xf32>
    %247 = arith.subf %229, %246 : vector<8x32xf32>
    %248 = arith.mulf %247, %247 : vector<8x32xf32>
    %cst_133 = arith.constant dense<0.000000e+00> : vector<8xf32>
    %249 = vector.multi_reduction <add>, %248, %cst_133 [1] : vector<8x32xf32> to vector<8xf32>
    %250 = vector.shape_cast %249 : vector<8xf32> to vector<8x1xf32>
    %cst_134 = arith.constant 3.200000e+01 : f32
    %251 = vector.broadcast %cst_134 : f32 to vector<8x1xf32>
    %252 = arith.divf %250, %251 : vector<8x1xf32>
    %cst_135 = arith.constant 9.99999974E-6 : f32
    %253 = vector.broadcast %cst_135 : f32 to vector<8x1xf32>
    %254 = arith.addf %252, %253 : vector<8x1xf32>
    %255 = math.rsqrt %254 : vector<8x1xf32>
    %256 = vector.broadcast %255 : vector<8x1xf32> to vector<8x32xf32>
    %257 = arith.mulf %247, %256 : vector<8x32xf32>
    %258 = vector.broadcast %230 : vector<1x32xf32> to vector<8x32xf32>
    %259 = arith.mulf %257, %258 : vector<8x32xf32>
    %260 = vector.broadcast %231 : vector<1x32xf32> to vector<8x32xf32>
    %261 = arith.addf %259, %260 : vector<8x32xf32>
    %262 = arith.truncf %261 : vector<8x32xf32> to vector<8x32xbf16>
    %cst_136 = arith.constant dense<0.000000e+00> : vector<8x96xf32>
    %263 = tpu.matmul %262, %232, %cst_136 {dimension_numbers = #tpu.dot_dimension_numbers<[1], [0], [0], [1], [0, 0, 1, 1], [], []>} : vector<8x32xbf16>, vector<32x96xbf16>, vector<8x96xf32> -> vector<8x96xf32>
    %264 = vector.broadcast %233 : vector<1x96xf32> to vector<8x96xf32>
    %265 = arith.addf %263, %264 : vector<8x96xf32>
    %266 = vector.extract_strided_slice %265 {offsets = [0, 0], sizes = [8, 8], strides = [1, 1]} : vector<8x96xf32> to vector<8x8xf32>
    %267 = vector.extract_strided_slice %265 {offsets = [0, 32], sizes = [8, 8], strides = [1, 1]} : vector<8x96xf32> to vector<8x8xf32>
    %268 = vector.extract_strided_slice %265 {offsets = [0, 64], sizes = [8, 8], strides = [1, 1]} : vector<8x96xf32> to vector<8x8xf32>
    %c0_137 = arith.constant 0 : index
    %c0_138 = arith.constant 0 : index
    %c0_139 = arith.constant 0 : index
    %c0_140 = arith.constant 0 : index
    %269 = vector.load %arg2[%c0_137, %c0_138, %c0_139, %c0_140] : memref<1x4x8x8xf32, #tpu.memory_space<vmem>>, vector<1x1x8x8xf32>
    %270 = vector.shape_cast %269 : vector<1x1x8x8xf32> to vector<8x8xf32>
    %271 = arith.truncf %266 : vector<8x8xf32> to vector<8x8xbf16>
    %272 = arith.truncf %267 : vector<8x8xf32> to vector<8x8xbf16>
    %cst_141 = arith.constant dense<0.000000e+00> : vector<8x8xf32>
    %273 = tpu.matmul %271, %272, %cst_141 {dimension_numbers = #tpu.dot_dimension_numbers<[1], [1], [0], [0], [0, 0, 1, 0], [], []>} : vector<8x8xbf16>, vector<8x8xbf16>, vector<8x8xf32> -> vector<8x8xf32>
    %cst_142 = arith.constant 0.353553385 : f32
    %274 = vector.broadcast %cst_142 : f32 to vector<8x8xf32>
    %275 = arith.mulf %273, %274 : vector<8x8xf32>
    %276 = arith.addf %275, %270 : vector<8x8xf32>
    %cst_143 = arith.constant dense<0xFF800000> : vector<8xf32>
    %277 = vector.multi_reduction <maximumf>, %276, %cst_143 [1] : vector<8x8xf32> to vector<8xf32>
    %278 = vector.shape_cast %277 : vector<8xf32> to vector<8x1xf32>
    %279 = vector.broadcast %278 : vector<8x1xf32> to vector<8x8xf32>
    %280 = arith.subf %276, %279 : vector<8x8xf32>
    %281 = math.exp %280 : vector<8x8xf32>
    %cst_144 = arith.constant dense<0.000000e+00> : vector<8xf32>
    %282 = vector.multi_reduction <add>, %281, %cst_144 [1] : vector<8x8xf32> to vector<8xf32>
    %283 = vector.shape_cast %282 : vector<8xf32> to vector<8x1xf32>
    %284 = tpu.reciprocal %283 {approx = true} : vector<8x1xf32> -> vector<8x1xf32>
    %285 = vector.broadcast %284 : vector<8x1xf32> to vector<8x8xf32>
    %286 = arith.mulf %281, %285 : vector<8x8xf32>
    %287 = arith.truncf %286 : vector<8x8xf32> to vector<8x8xbf16>
    %288 = arith.truncf %268 : vector<8x8xf32> to vector<8x8xbf16>
    %cst_145 = arith.constant dense<0.000000e+00> : vector<8x8xf32>
    %289 = tpu.matmul %287, %288, %cst_145 {dimension_numbers = #tpu.dot_dimension_numbers<[1], [0], [0], [1], [0, 0, 1, 1], [], []>} : vector<8x8xbf16>, vector<8x8xbf16>, vector<8x8xf32> -> vector<8x8xf32>
    %c0_146 = arith.constant 0 : index
    %c0_147 = arith.constant 0 : index
    %290 = vector.load %arg56[%c0_146, %c0_147] : memref<8x32xf32, #tpu.memory_space<vmem>>, vector<8x8xf32>
    tpu.vector_store %arg56[%c0_146, %c0_147], %289 {strides = array<i32>} : memref<8x32xf32, #tpu.memory_space<vmem>>, vector<8x8xf32>,
    %c0_148 = arith.constant 0 : index
    %c0_149 = arith.constant 0 : index
    %c0_150 = arith.constant 0 : index
    %c0_151 = arith.constant 0 : index
    %291 = vector.load %arg53[%c0_148, %c0_149, %c0_150, %c0_151] : memref<1x4x8x8xf32, #tpu.memory_space<vmem>>, vector<1x1x8x8xf32>
    %292 = vector.shape_cast %291 : vector<1x1x8x8xf32> to vector<8x8xf32>
    %293 = vector.shape_cast %286 : vector<8x8xf32> to vector<1x1x8x8xf32>
    tpu.vector_store %arg53[%c0_148, %c0_149, %c0_150, %c0_151], %293 {strides = array<i32>} : memref<1x4x8x8xf32, #tpu.memory_space<vmem>>, vector<1x1x8x8xf32>,
    %294 = vector.extract_strided_slice %265 {offsets = [0, 8], sizes = [8, 8], strides = [1, 1]} : vector<8x96xf32> to vector<8x8xf32>
    %295 = vector.extract_strided_slice %265 {offsets = [0, 40], sizes = [8, 8], strides = [1, 1]} : vector<8x96xf32> to vector<8x8xf32>
    %296 = vector.extract_strided_slice %265 {offsets = [0, 72], sizes = [8, 8], strides = [1, 1]} : vector<8x96xf32> to vector<8x8xf32>
    %c0_152 = arith.constant 0 : index
    %c1_153 = arith.constant 1 : index
    %c0_154 = arith.constant 0 : index
    %c0_155 = arith.constant 0 : index
    %297 = vector.load %arg2[%c0_152, %c1_153, %c0_154, %c0_155] : memref<1x4x8x8xf32, #tpu.memory_space<vmem>>, vector<1x1x8x8xf32>
    %298 = vector.shape_cast %297 : vector<1x1x8x8xf32> to vector<8x8xf32>
    %299 = arith.truncf %294 : vector<8x8xf32> to vector<8x8xbf16>
    %300 = arith.truncf %295 : vector<8x8xf32> to vector<8x8xbf16>
    %cst_156 = arith.constant dense<0.000000e+00> : vector<8x8xf32>
    %301 = tpu.matmul %299, %300, %cst_156 {dimension_numbers = #tpu.dot_dimension_numbers<[1], [1], [0], [0], [0, 0, 1, 0], [], []>} : vector<8x8xbf16>, vector<8x8xbf16>, vector<8x8xf32> -> vector<8x8xf32>
    %cst_157 = arith.constant 0.353553385 : f32
    %302 = vector.broadcast %cst_157 : f32 to vector<8x8xf32>
    %303 = arith.mulf %301, %302 : vector<8x8xf32>
    %304 = arith.addf %303, %298 : vector<8x8xf32>
    %cst_158 = arith.constant dense<0xFF800000> : vector<8xf32>
    %305 = vector.multi_reduction <maximumf>, %304, %cst_158 [1] : vector<8x8xf32> to vector<8xf32>
    %306 = vector.shape_cast %305 : vector<8xf32> to vector<8x1xf32>
    %307 = vector.broadcast %306 : vector<8x1xf32> to vector<8x8xf32>
    %308 = arith.subf %304, %307 : vector<8x8xf32>
    %309 = math.exp %308 : vector<8x8xf32>
    %cst_159 = arith.constant dense<0.000000e+00> : vector<8xf32>
    %310 = vector.multi_reduction <add>, %309, %cst_159 [1] : vector<8x8xf32> to vector<8xf32>
    %311 = vector.shape_cast %310 : vector<8xf32> to vector<8x1xf32>
    %312 = tpu.reciprocal %311 {approx = true} : vector<8x1xf32> -> vector<8x1xf32>
    %313 = vector.broadcast %312 : vector<8x1xf32> to vector<8x8xf32>
    %314 = arith.mulf %309, %313 : vector<8x8xf32>
    %315 = arith.truncf %314 : vector<8x8xf32> to vector<8x8xbf16>
    %316 = arith.truncf %296 : vector<8x8xf32> to vector<8x8xbf16>
    %cst_160 = arith.constant dense<0.000000e+00> : vector<8x8xf32>
    %317 = tpu.matmul %315, %316, %cst_160 {dimension_numbers = #tpu.dot_dimension_numbers<[1], [0], [0], [1], [0, 0, 1, 1], [], []>} : vector<8x8xbf16>, vector<8x8xbf16>, vector<8x8xf32> -> vector<8x8xf32>
    %c0_161 = arith.constant 0 : index
    %c8_162 = arith.constant 8 : index
    %318 = vector.load %arg56[%c0_161, %c8_162] : memref<8x32xf32, #tpu.memory_space<vmem>>, vector<8x8xf32>
    tpu.vector_store %arg56[%c0_161, %c8_162], %317 {strides = array<i32>} : memref<8x32xf32, #tpu.memory_space<vmem>>, vector<8x8xf32>,
    %c0_163 = arith.constant 0 : index
    %c1_164 = arith.constant 1 : index
    %c0_165 = arith.constant 0 : index
    %c0_166 = arith.constant 0 : index
    %319 = vector.load %arg53[%c0_163, %c1_164, %c0_165, %c0_166] : memref<1x4x8x8xf32, #tpu.memory_space<vmem>>, vector<1x1x8x8xf32>
    %320 = vector.shape_cast %319 : vector<1x1x8x8xf32> to vector<8x8xf32>
    %321 = vector.shape_cast %314 : vector<8x8xf32> to vector<1x1x8x8xf32>
    tpu.vector_store %arg53[%c0_163, %c1_164, %c0_165, %c0_166], %321 {strides = array<i32>} : memref<1x4x8x8xf32, #tpu.memory_space<vmem>>, vector<1x1x8x8xf32>,
    %322 = vector.extract_strided_slice %265 {offsets = [0, 16], sizes = [8, 8], strides = [1, 1]} : vector<8x96xf32> to vector<8x8xf32>
    %323 = vector.extract_strided_slice %265 {offsets = [0, 48], sizes = [8, 8], strides = [1, 1]} : vector<8x96xf32> to vector<8x8xf32>
    %324 = vector.extract_strided_slice %265 {offsets = [0, 80], sizes = [8, 8], strides = [1, 1]} : vector<8x96xf32> to vector<8x8xf32>
    %c0_167 = arith.constant 0 : index
    %c2_168 = arith.constant 2 : index
    %c0_169 = arith.constant 0 : index
    %c0_170 = arith.constant 0 : index
    %325 = vector.load %arg2[%c0_167, %c2_168, %c0_169, %c0_170] : memref<1x4x8x8xf32, #tpu.memory_space<vmem>>, vector<1x1x8x8xf32>
    %326 = vector.shape_cast %325 : vector<1x1x8x8xf32> to vector<8x8xf32>
    %327 = arith.truncf %322 : vector<8x8xf32> to vector<8x8xbf16>
    %328 = arith.truncf %323 : vector<8x8xf32> to vector<8x8xbf16>
    %cst_171 = arith.constant dense<0.000000e+00> : vector<8x8xf32>
    %329 = tpu.matmul %327, %328, %cst_171 {dimension_numbers = #tpu.dot_dimension_numbers<[1], [1], [0], [0], [0, 0, 1, 0], [], []>} : vector<8x8xbf16>, vector<8x8xbf16>, vector<8x8xf32> -> vector<8x8xf32>
    %cst_172 = arith.constant 0.353553385 : f32
    %330 = vector.broadcast %cst_172 : f32 to vector<8x8xf32>
    %331 = arith.mulf %329, %330 : vector<8x8xf32>
    %332 = arith.addf %331, %326 : vector<8x8xf32>
    %cst_173 = arith.constant dense<0xFF800000> : vector<8xf32>
    %333 = vector.multi_reduction <maximumf>, %332, %cst_173 [1] : vector<8x8xf32> to vector<8xf32>
    %334 = vector.shape_cast %333 : vector<8xf32> to vector<8x1xf32>
    %335 = vector.broadcast %334 : vector<8x1xf32> to vector<8x8xf32>
    %336 = arith.subf %332, %335 : vector<8x8xf32>
    %337 = math.exp %336 : vector<8x8xf32>
    %cst_174 = arith.constant dense<0.000000e+00> : vector<8xf32>
    %338 = vector.multi_reduction <add>, %337, %cst_174 [1] : vector<8x8xf32> to vector<8xf32>
    %339 = vector.shape_cast %338 : vector<8xf32> to vector<8x1xf32>
    %340 = tpu.reciprocal %339 {approx = true} : vector<8x1xf32> -> vector<8x1xf32>
    %341 = vector.broadcast %340 : vector<8x1xf32> to vector<8x8xf32>
    %342 = arith.mulf %337, %341 : vector<8x8xf32>
    %343 = arith.truncf %342 : vector<8x8xf32> to vector<8x8xbf16>
    %344 = arith.truncf %324 : vector<8x8xf32> to vector<8x8xbf16>
    %cst_175 = arith.constant dense<0.000000e+00> : vector<8x8xf32>
    %345 = tpu.matmul %343, %344, %cst_175 {dimension_numbers = #tpu.dot_dimension_numbers<[1], [0], [0], [1], [0, 0, 1, 1], [], []>} : vector<8x8xbf16>, vector<8x8xbf16>, vector<8x8xf32> -> vector<8x8xf32>
    %c0_176 = arith.constant 0 : index
    %c16_177 = arith.constant 16 : index
    %346 = vector.load %arg56[%c0_176, %c16_177] : memref<8x32xf32, #tpu.memory_space<vmem>>, vector<8x8xf32>
    tpu.vector_store %arg56[%c0_176, %c16_177], %345 {strides = array<i32>} : memref<8x32xf32, #tpu.memory_space<vmem>>, vector<8x8xf32>,
    %c0_178 = arith.constant 0 : index
    %c2_179 = arith.constant 2 : index
    %c0_180 = arith.constant 0 : index
    %c0_181 = arith.constant 0 : index
    %347 = vector.load %arg53[%c0_178, %c2_179, %c0_180, %c0_181] : memref<1x4x8x8xf32, #tpu.memory_space<vmem>>, vector<1x1x8x8xf32>
    %348 = vector.shape_cast %347 : vector<1x1x8x8xf32> to vector<8x8xf32>
    %349 = vector.shape_cast %342 : vector<8x8xf32> to vector<1x1x8x8xf32>
    tpu.vector_store %arg53[%c0_178, %c2_179, %c0_180, %c0_181], %349 {strides = array<i32>} : memref<1x4x8x8xf32, #tpu.memory_space<vmem>>, vector<1x1x8x8xf32>,
    %350 = vector.extract_strided_slice %265 {offsets = [0, 24], sizes = [8, 8], strides = [1, 1]} : vector<8x96xf32> to vector<8x8xf32>
    %351 = vector.extract_strided_slice %265 {offsets = [0, 56], sizes = [8, 8], strides = [1, 1]} : vector<8x96xf32> to vector<8x8xf32>
    %352 = vector.extract_strided_slice %265 {offsets = [0, 88], sizes = [8, 8], strides = [1, 1]} : vector<8x96xf32> to vector<8x8xf32>
    %c0_182 = arith.constant 0 : index
    %c3_183 = arith.constant 3 : index
    %c0_184 = arith.constant 0 : index
    %c0_185 = arith.constant 0 : index
    %353 = vector.load %arg2[%c0_182, %c3_183, %c0_184, %c0_185] : memref<1x4x8x8xf32, #tpu.memory_space<vmem>>, vector<1x1x8x8xf32>
    %354 = vector.shape_cast %353 : vector<1x1x8x8xf32> to vector<8x8xf32>
    %355 = arith.truncf %350 : vector<8x8xf32> to vector<8x8xbf16>
    %356 = arith.truncf %351 : vector<8x8xf32> to vector<8x8xbf16>
    %cst_186 = arith.constant dense<0.000000e+00> : vector<8x8xf32>
    %357 = tpu.matmul %355, %356, %cst_186 {dimension_numbers = #tpu.dot_dimension_numbers<[1], [1], [0], [0], [0, 0, 1, 0], [], []>} : vector<8x8xbf16>, vector<8x8xbf16>, vector<8x8xf32> -> vector<8x8xf32>
    %cst_187 = arith.constant 0.353553385 : f32
    %358 = vector.broadcast %cst_187 : f32 to vector<8x8xf32>
    %359 = arith.mulf %357, %358 : vector<8x8xf32>
    %360 = arith.addf %359, %354 : vector<8x8xf32>
    %cst_188 = arith.constant dense<0xFF800000> : vector<8xf32>
    %361 = vector.multi_reduction <maximumf>, %360, %cst_188 [1] : vector<8x8xf32> to vector<8xf32>
    %362 = vector.shape_cast %361 : vector<8xf32> to vector<8x1xf32>
    %363 = vector.broadcast %362 : vector<8x1xf32> to vector<8x8xf32>
    %364 = arith.subf %360, %363 : vector<8x8xf32>
    %365 = math.exp %364 : vector<8x8xf32>
    %cst_189 = arith.constant dense<0.000000e+00> : vector<8xf32>
    %366 = vector.multi_reduction <add>, %365, %cst_189 [1] : vector<8x8xf32> to vector<8xf32>
    %367 = vector.shape_cast %366 : vector<8xf32> to vector<8x1xf32>
    %368 = tpu.reciprocal %367 {approx = true} : vector<8x1xf32> -> vector<8x1xf32>
    %369 = vector.broadcast %368 : vector<8x1xf32> to vector<8x8xf32>
    %370 = arith.mulf %365, %369 : vector<8x8xf32>
    %371 = arith.truncf %370 : vector<8x8xf32> to vector<8x8xbf16>
    %372 = arith.truncf %352 : vector<8x8xf32> to vector<8x8xbf16>
    %cst_190 = arith.constant dense<0.000000e+00> : vector<8x8xf32>
    %373 = tpu.matmul %371, %372, %cst_190 {dimension_numbers = #tpu.dot_dimension_numbers<[1], [0], [0], [1], [0, 0, 1, 1], [], []>} : vector<8x8xbf16>, vector<8x8xbf16>, vector<8x8xf32> -> vector<8x8xf32>
    %c0_191 = arith.constant 0 : index
    %c24_192 = arith.constant 24 : index
    %374 = vector.load %arg56[%c0_191, %c24_192] : memref<8x32xf32, #tpu.memory_space<vmem>>, vector<8x8xf32>
    tpu.vector_store %arg56[%c0_191, %c24_192], %373 {strides = array<i32>} : memref<8x32xf32, #tpu.memory_space<vmem>>, vector<8x8xf32>,
    %c0_193 = arith.constant 0 : index
    %c3_194 = arith.constant 3 : index
    %c0_195 = arith.constant 0 : index
    %c0_196 = arith.constant 0 : index
    %375 = vector.load %arg53[%c0_193, %c3_194, %c0_195, %c0_196] : memref<1x4x8x8xf32, #tpu.memory_space<vmem>>, vector<1x1x8x8xf32>
    %376 = vector.shape_cast %375 : vector<1x1x8x8xf32> to vector<8x8xf32>
    %377 = vector.shape_cast %370 : vector<8x8xf32> to vector<1x1x8x8xf32>
    tpu.vector_store %arg53[%c0_193, %c3_194, %c0_195, %c0_196], %377 {strides = array<i32>} : memref<1x4x8x8xf32, #tpu.memory_space<vmem>>, vector<1x1x8x8xf32>,
    %c0_197 = arith.constant 0 : index
    %c0_198 = arith.constant 0 : index
    %378 = vector.load %arg56[%c0_197, %c0_198] : memref<8x32xf32, #tpu.memory_space<vmem>>, vector<8x32xf32>
    %379 = arith.truncf %378 : vector<8x32xf32> to vector<8x32xbf16>
    %cst_199 = arith.constant dense<0.000000e+00> : vector<8x32xf32>
    %380 = tpu.matmul %379, %234, %cst_199 {dimension_numbers = #tpu.dot_dimension_numbers<[1], [0], [0], [1], [0, 0, 1, 1], [], []>} : vector<8x32xbf16>, vector<32x32xbf16>, vector<8x32xf32> -> vector<8x32xf32>
    %381 = vector.broadcast %235 : vector<1x32xf32> to vector<8x32xf32>
    %382 = arith.addf %380, %381 : vector<8x32xf32>
    %383 = arith.addf %229, %382 : vector<8x32xf32>
    %cst_200 = arith.constant dense<0.000000e+00> : vector<8xf32>
    %384 = vector.multi_reduction <add>, %383, %cst_200 [1] : vector<8x32xf32> to vector<8xf32>
    %385 = vector.shape_cast %384 : vector<8xf32> to vector<8x1xf32>
    %cst_201 = arith.constant 3.200000e+01 : f32
    %386 = vector.broadcast %cst_201 : f32 to vector<8x1xf32>
    %387 = arith.divf %385, %386 : vector<8x1xf32>
    %388 = vector.broadcast %387 : vector<8x1xf32> to vector<8x32xf32>
    %389 = arith.subf %383, %388 : vector<8x32xf32>
    %390 = arith.mulf %389, %389 : vector<8x32xf32>
    %cst_202 = arith.constant dense<0.000000e+00> : vector<8xf32>
    %391 = vector.multi_reduction <add>, %390, %cst_202 [1] : vector<8x32xf32> to vector<8xf32>
    %392 = vector.shape_cast %391 : vector<8xf32> to vector<8x1xf32>
    %cst_203 = arith.constant 3.200000e+01 : f32
    %393 = vector.broadcast %cst_203 : f32 to vector<8x1xf32>
    %394 = arith.divf %392, %393 : vector<8x1xf32>
    %cst_204 = arith.constant 9.99999974E-6 : f32
    %395 = vector.broadcast %cst_204 : f32 to vector<8x1xf32>
    %396 = arith.addf %394, %395 : vector<8x1xf32>
    %397 = math.rsqrt %396 : vector<8x1xf32>
    %398 = vector.broadcast %397 : vector<8x1xf32> to vector<8x32xf32>
    %399 = arith.mulf %389, %398 : vector<8x32xf32>
    %400 = vector.broadcast %236 : vector<1x32xf32> to vector<8x32xf32>
    %401 = arith.mulf %399, %400 : vector<8x32xf32>
    %402 = vector.broadcast %237 : vector<1x32xf32> to vector<8x32xf32>
    %403 = arith.addf %401, %402 : vector<8x32xf32>
    %404 = arith.truncf %403 : vector<8x32xf32> to vector<8x32xbf16>
    %cst_205 = arith.constant dense<0.000000e+00> : vector<8x64xf32>
    %405 = tpu.matmul %404, %238, %cst_205 {dimension_numbers = #tpu.dot_dimension_numbers<[1], [0], [0], [1], [0, 0, 1, 1], [], []>} : vector<8x32xbf16>, vector<32x64xbf16>, vector<8x64xf32> -> vector<8x64xf32>
    %406 = vector.broadcast %239 : vector<1x64xf32> to vector<8x64xf32>
    %407 = arith.addf %405, %406 : vector<8x64xf32>
    %cst_206 = arith.constant 5.000000e-01 : f32
    %408 = vector.broadcast %cst_206 : f32 to vector<8x64xf32>
    %409 = arith.mulf %408, %407 : vector<8x64xf32>
    %cst_207 = arith.constant 4.471500e-02 : f32
    %410 = vector.broadcast %cst_207 : f32 to vector<8x64xf32>
    %411 = arith.mulf %410, %407 : vector<8x64xf32>
    %412 = arith.mulf %411, %407 : vector<8x64xf32>
    %413 = arith.mulf %412, %407 : vector<8x64xf32>
    %414 = arith.addf %407, %413 : vector<8x64xf32>
    %cst_208 = arith.constant 0.797884583 : f32
    %415 = vector.broadcast %cst_208 : f32 to vector<8x64xf32>
    %416 = arith.mulf %415, %414 : vector<8x64xf32>
    %417 = math.tanh %416 : vector<8x64xf32>
    %cst_209 = arith.constant 1.000000e+00 : f32
    %418 = vector.broadcast %cst_209 : f32 to vector<8x64xf32>
    %419 = arith.addf %418, %417 : vector<8x64xf32>
    %420 = arith.mulf %409, %419 : vector<8x64xf32>
    %421 = arith.truncf %420 : vector<8x64xf32> to vector<8x64xbf16>
    %cst_210 = arith.constant dense<0.000000e+00> : vector<8x32xf32>
    %422 = tpu.matmul %421, %240, %cst_210 {dimension_numbers = #tpu.dot_dimension_numbers<[1], [0], [0], [1], [0, 0, 1, 1], [], []>} : vector<8x64xbf16>, vector<64x32xbf16>, vector<8x32xf32> -> vector<8x32xf32>
    %423 = arith.addf %383, %422 : vector<8x32xf32>
    %424 = vector.broadcast %241 : vector<1x32xf32> to vector<8x32xf32>
    %425 = arith.addf %423, %424 : vector<8x32xf32>
    %c0_211 = arith.constant 0 : index
    %c0_212 = arith.constant 0 : index
    %426 = vector.load %arg33[%c0_211, %c0_212] : memref<1x32xf32, #tpu.memory_space<vmem>>, vector<1x32xf32>
    %cst_213 = arith.constant 0.000000e+00 : f32
    %427 = vector.broadcast %cst_213 : f32 to vector<1x8xf32>
    %428 = arith.cmpf ogt, %5, %427 : vector<1x8xf32>
    %cst_214 = arith.constant 0.000000e+00 : f32
    %cst_215 = arith.constant -1.000000e+09 : f32
    %429 = vector.broadcast %cst_214 : f32 to vector<1x8xf32>
    %430 = vector.broadcast %cst_215 : f32 to vector<1x8xf32>
    %431 = arith.select %428, %429, %430 : vector<1x8xi1>, vector<1x8xf32>
    %c0_216 = arith.constant 0 : index
    %c0_217 = arith.constant 0 : index
    %432 = vector.load %arg55[%c0_216, %c0_217] : memref<1x9xf32, #tpu.memory_space<vmem>>, vector<1x8xf32>
    tpu.vector_store %arg55[%c0_216, %c0_217], %431 {strides = array<i32>} : memref<1x9xf32, #tpu.memory_space<vmem>>, vector<1x8xf32>,
    %cst_218 = arith.constant 0.000000e+00 : f32
    %433 = vector.broadcast %cst_218 : f32 to vector<1x1xf32>
    %c0_219 = arith.constant 0 : index
    %c8_220 = arith.constant 8 : index
    %434 = vector.load %arg55[%c0_219, %c8_220] : memref<1x9xf32, #tpu.memory_space<vmem>>, vector<1x1xf32>
    tpu.vector_store %arg55[%c0_219, %c8_220], %433 {strides = array<i32>} : memref<1x9xf32, #tpu.memory_space<vmem>>, vector<1x1xf32>,
    %c0_221 = arith.constant 0 : index
    %c0_222 = arith.constant 0 : index
    %435 = vector.load %arg55[%c0_221, %c0_222] : memref<1x9xf32, #tpu.memory_space<vmem>>, vector<1x9xf32>
    %c0_223 = arith.constant 0 : index
    %c0_224 = arith.constant 0 : index
    %436 = vector.load %arg34[%c0_223, %c0_224] : memref<1x32xf32, #tpu.memory_space<vmem>>, vector<1x32xf32>
    %c0_225 = arith.constant 0 : index
    %c0_226 = arith.constant 0 : index
    %437 = vector.load %arg35[%c0_225, %c0_226] : memref<1x32xf32, #tpu.memory_space<vmem>>, vector<1x32xf32>
    %c0_227 = arith.constant 0 : index
    %c0_228 = arith.constant 0 : index
    %438 = vector.load %arg36[%c0_227, %c0_228] : memref<32x32xbf16, #tpu.memory_space<vmem>>, vector<32x32xbf16>
    %c0_229 = arith.constant 0 : index
    %c0_230 = arith.constant 0 : index
    %439 = vector.load %arg37[%c0_229, %c0_230] : memref<1x32xf32, #tpu.memory_space<vmem>>, vector<1x32xf32>
    %c0_231 = arith.constant 0 : index
    %c0_232 = arith.constant 0 : index
    %440 = vector.load %arg38[%c0_231, %c0_232] : memref<32x64xbf16, #tpu.memory_space<vmem>>, vector<32x64xbf16>
    %c0_233 = arith.constant 0 : index
    %c0_234 = arith.constant 0 : index
    %441 = vector.load %arg39[%c0_233, %c0_234] : memref<1x64xf32, #tpu.memory_space<vmem>>, vector<1x64xf32>
    %c0_235 = arith.constant 0 : index
    %c0_236 = arith.constant 0 : index
    %442 = vector.load %arg40[%c0_235, %c0_236] : memref<32x32xbf16, #tpu.memory_space<vmem>>, vector<32x32xbf16>
    %c0_237 = arith.constant 0 : index
    %c0_238 = arith.constant 0 : index
    %443 = vector.load %arg41[%c0_237, %c0_238] : memref<1x32xf32, #tpu.memory_space<vmem>>, vector<1x32xf32>
    %c0_239 = arith.constant 0 : index
    %c0_240 = arith.constant 0 : index
    %444 = vector.load %arg42[%c0_239, %c0_240] : memref<1x32xf32, #tpu.memory_space<vmem>>, vector<1x32xf32>
    %c0_241 = arith.constant 0 : index
    %c0_242 = arith.constant 0 : index
    %445 = vector.load %arg43[%c0_241, %c0_242] : memref<1x32xf32, #tpu.memory_space<vmem>>, vector<1x32xf32>
    %c0_243 = arith.constant 0 : index
    %c0_244 = arith.constant 0 : index
    %446 = vector.load %arg44[%c0_243, %c0_244] : memref<32x64xbf16, #tpu.memory_space<vmem>>, vector<32x64xbf16>
    %c0_245 = arith.constant 0 : index
    %c0_246 = arith.constant 0 : index
    %447 = vector.load %arg45[%c0_245, %c0_246] : memref<1x64xf32, #tpu.memory_space<vmem>>, vector<1x64xf32>
    %c0_247 = arith.constant 0 : index
    %c0_248 = arith.constant 0 : index
    %448 = vector.load %arg46[%c0_247, %c0_248] : memref<64x32xbf16, #tpu.memory_space<vmem>>, vector<64x32xbf16>
    %c0_249 = arith.constant 0 : index
    %c0_250 = arith.constant 0 : index
    %449 = vector.load %arg47[%c0_249, %c0_250] : memref<1x32xf32, #tpu.memory_space<vmem>>, vector<1x32xf32>
    %c0_251 = arith.constant 0 : index
    %c0_252 = arith.constant 0 : index
    %450 = vector.load %arg54[%c0_251, %c0_252] : memref<9x32xf32, #tpu.memory_space<vmem>>, vector<8x32xf32>
    tpu.vector_store %arg54[%c0_251, %c0_252], %425 {strides = array<i32>} : memref<9x32xf32, #tpu.memory_space<vmem>>, vector<8x32xf32>,
    %c8_253 = arith.constant 8 : index
    %c0_254 = arith.constant 0 : index
    %451 = vector.load %arg54[%c8_253, %c0_254] : memref<9x32xf32, #tpu.memory_space<vmem>>, vector<1x32xf32>
    tpu.vector_store %arg54[%c8_253, %c0_254], %426 {strides = array<i32>} : memref<9x32xf32, #tpu.memory_space<vmem>>, vector<1x32xf32>,
    %c0_255 = arith.constant 0 : index
    %c0_256 = arith.constant 0 : index
    %452 = vector.load %arg54[%c0_255, %c0_256] : memref<9x32xf32, #tpu.memory_space<vmem>>, vector<9x32xf32>
    %cst_257 = arith.constant dense<0.000000e+00> : vector<9xf32>
    %453 = vector.multi_reduction <add>, %452, %cst_257 [1] : vector<9x32xf32> to vector<9xf32>
    %454 = vector.shape_cast %453 : vector<9xf32> to vector<9x1xf32>
    %cst_258 = arith.constant 3.200000e+01 : f32
    %455 = vector.broadcast %cst_258 : f32 to vector<9x1xf32>
    %456 = arith.divf %454, %455 : vector<9x1xf32>
    %457 = vector.broadcast %456 : vector<9x1xf32> to vector<9x32xf32>
    %458 = arith.subf %452, %457 : vector<9x32xf32>
    %459 = arith.mulf %458, %458 : vector<9x32xf32>
    %cst_259 = arith.constant dense<0.000000e+00> : vector<9xf32>
    %460 = vector.multi_reduction <add>, %459, %cst_259 [1] : vector<9x32xf32> to vector<9xf32>
    %461 = vector.shape_cast %460 : vector<9xf32> to vector<9x1xf32>
    %cst_260 = arith.constant 3.200000e+01 : f32
    %462 = vector.broadcast %cst_260 : f32 to vector<9x1xf32>
    %463 = arith.divf %461, %462 : vector<9x1xf32>
    %cst_261 = arith.constant 9.99999974E-6 : f32
    %464 = vector.broadcast %cst_261 : f32 to vector<9x1xf32>
    %465 = arith.addf %463, %464 : vector<9x1xf32>
    %466 = math.rsqrt %465 : vector<9x1xf32>
    %467 = vector.broadcast %466 : vector<9x1xf32> to vector<9x32xf32>
    %468 = arith.mulf %458, %467 : vector<9x32xf32>
    %469 = vector.broadcast %436 : vector<1x32xf32> to vector<9x32xf32>
    %470 = arith.mulf %468, %469 : vector<9x32xf32>
    %471 = vector.broadcast %437 : vector<1x32xf32> to vector<9x32xf32>
    %472 = arith.addf %470, %471 : vector<9x32xf32>
    %473 = vector.extract_strided_slice %472 {offsets = [8, 0], sizes = [1, 32], strides = [1, 1]} : vector<9x32xf32> to vector<1x32xf32>
    %474 = arith.truncf %473 : vector<1x32xf32> to vector<1x32xbf16>
    %cst_262 = arith.constant dense<0.000000e+00> : vector<1x32xf32>
    %475 = tpu.matmul %474, %438, %cst_262 {dimension_numbers = #tpu.dot_dimension_numbers<[1], [0], [0], [1], [0, 0, 1, 1], [], []>} : vector<1x32xbf16>, vector<32x32xbf16>, vector<1x32xf32> -> vector<1x32xf32>
    %476 = arith.addf %475, %439 : vector<1x32xf32>
    %477 = arith.truncf %472 : vector<9x32xf32> to vector<9x32xbf16>
    %cst_263 = arith.constant dense<0.000000e+00> : vector<9x64xf32>
    %478 = tpu.matmul %477, %440, %cst_263 {dimension_numbers = #tpu.dot_dimension_numbers<[1], [0], [0], [1], [0, 0, 1, 1], [], []>} : vector<9x32xbf16>, vector<32x64xbf16>, vector<9x64xf32> -> vector<9x64xf32>
    %479 = vector.broadcast %441 : vector<1x64xf32> to vector<9x64xf32>
    %480 = arith.addf %478, %479 : vector<9x64xf32>
    %481 = vector.extract_strided_slice %476 {offsets = [0, 0], sizes = [1, 8], strides = [1, 1]} : vector<1x32xf32> to vector<1x8xf32>
    %482 = vector.extract_strided_slice %480 {offsets = [0, 0], sizes = [9, 8], strides = [1, 1]} : vector<9x64xf32> to vector<9x8xf32>
    %483 = vector.extract_strided_slice %480 {offsets = [0, 32], sizes = [9, 8], strides = [1, 1]} : vector<9x64xf32> to vector<9x8xf32>
    %484 = arith.truncf %481 : vector<1x8xf32> to vector<1x8xbf16>
    %485 = arith.truncf %482 : vector<9x8xf32> to vector<9x8xbf16>
    %cst_264 = arith.constant dense<0.000000e+00> : vector<1x9xf32>
    %486 = tpu.matmul %484, %485, %cst_264 {dimension_numbers = #tpu.dot_dimension_numbers<[1], [1], [0], [0], [0, 0, 1, 0], [], []>} : vector<1x8xbf16>, vector<9x8xbf16>, vector<1x9xf32> -> vector<1x9xf32>
    %cst_265 = arith.constant 0.353553385 : f32
    %487 = vector.broadcast %cst_265 : f32 to vector<1x9xf32>
    %488 = arith.mulf %486, %487 : vector<1x9xf32>
    %489 = arith.addf %488, %435 : vector<1x9xf32>
    %cst_266 = arith.constant dense<0xFF800000> : vector<1xf32>
    %490 = vector.multi_reduction <maximumf>, %489, %cst_266 [1] : vector<1x9xf32> to vector<1xf32>
    %491 = vector.shape_cast %490 : vector<1xf32> to vector<1x1xf32>
    %492 = vector.broadcast %491 : vector<1x1xf32> to vector<1x9xf32>
    %493 = arith.subf %489, %492 : vector<1x9xf32>
    %494 = math.exp %493 : vector<1x9xf32>
    %cst_267 = arith.constant dense<0.000000e+00> : vector<1xf32>
    %495 = vector.multi_reduction <add>, %494, %cst_267 [1] : vector<1x9xf32> to vector<1xf32>
    %496 = vector.shape_cast %495 : vector<1xf32> to vector<1x1xf32>
    %497 = tpu.reciprocal %496 {approx = true} : vector<1x1xf32> -> vector<1x1xf32>
    %498 = vector.broadcast %497 : vector<1x1xf32> to vector<1x9xf32>
    %499 = arith.mulf %494, %498 : vector<1x9xf32>
    %500 = arith.truncf %499 : vector<1x9xf32> to vector<1x9xbf16>
    %501 = arith.truncf %483 : vector<9x8xf32> to vector<9x8xbf16>
    %cst_268 = arith.constant dense<0.000000e+00> : vector<1x8xf32>
    %502 = tpu.matmul %500, %501, %cst_268 {dimension_numbers = #tpu.dot_dimension_numbers<[1], [0], [0], [1], [0, 0, 1, 1], [], []>} : vector<1x9xbf16>, vector<9x8xbf16>, vector<1x8xf32> -> vector<1x8xf32>
    %c0_269 = arith.constant 0 : index
    %c0_270 = arith.constant 0 : index
    %503 = vector.load %arg56[%c0_269, %c0_270] : memref<8x32xf32, #tpu.memory_space<vmem>>, vector<1x8xf32>
    tpu.vector_store %arg56[%c0_269, %c0_270], %502 {strides = array<i32>} : memref<8x32xf32, #tpu.memory_space<vmem>>, vector<1x8xf32>,
    %504 = vector.extract_strided_slice %476 {offsets = [0, 8], sizes = [1, 8], strides = [1, 1]} : vector<1x32xf32> to vector<1x8xf32>
    %505 = vector.extract_strided_slice %480 {offsets = [0, 8], sizes = [9, 8], strides = [1, 1]} : vector<9x64xf32> to vector<9x8xf32>
    %506 = vector.extract_strided_slice %480 {offsets = [0, 40], sizes = [9, 8], strides = [1, 1]} : vector<9x64xf32> to vector<9x8xf32>
    %507 = arith.truncf %504 : vector<1x8xf32> to vector<1x8xbf16>
    %508 = arith.truncf %505 : vector<9x8xf32> to vector<9x8xbf16>
    %cst_271 = arith.constant dense<0.000000e+00> : vector<1x9xf32>
    %509 = tpu.matmul %507, %508, %cst_271 {dimension_numbers = #tpu.dot_dimension_numbers<[1], [1], [0], [0], [0, 0, 1, 0], [], []>} : vector<1x8xbf16>, vector<9x8xbf16>, vector<1x9xf32> -> vector<1x9xf32>
    %cst_272 = arith.constant 0.353553385 : f32
    %510 = vector.broadcast %cst_272 : f32 to vector<1x9xf32>
    %511 = arith.mulf %509, %510 : vector<1x9xf32>
    %512 = arith.addf %511, %435 : vector<1x9xf32>
    %cst_273 = arith.constant dense<0xFF800000> : vector<1xf32>
    %513 = vector.multi_reduction <maximumf>, %512, %cst_273 [1] : vector<1x9xf32> to vector<1xf32>
    %514 = vector.shape_cast %513 : vector<1xf32> to vector<1x1xf32>
    %515 = vector.broadcast %514 : vector<1x1xf32> to vector<1x9xf32>
    %516 = arith.subf %512, %515 : vector<1x9xf32>
    %517 = math.exp %516 : vector<1x9xf32>
    %cst_274 = arith.constant dense<0.000000e+00> : vector<1xf32>
    %518 = vector.multi_reduction <add>, %517, %cst_274 [1] : vector<1x9xf32> to vector<1xf32>
    %519 = vector.shape_cast %518 : vector<1xf32> to vector<1x1xf32>
    %520 = tpu.reciprocal %519 {approx = true} : vector<1x1xf32> -> vector<1x1xf32>
    %521 = vector.broadcast %520 : vector<1x1xf32> to vector<1x9xf32>
    %522 = arith.mulf %517, %521 : vector<1x9xf32>
    %523 = arith.truncf %522 : vector<1x9xf32> to vector<1x9xbf16>
    %524 = arith.truncf %506 : vector<9x8xf32> to vector<9x8xbf16>
    %cst_275 = arith.constant dense<0.000000e+00> : vector<1x8xf32>
    %525 = tpu.matmul %523, %524, %cst_275 {dimension_numbers = #tpu.dot_dimension_numbers<[1], [0], [0], [1], [0, 0, 1, 1], [], []>} : vector<1x9xbf16>, vector<9x8xbf16>, vector<1x8xf32> -> vector<1x8xf32>
    %c0_276 = arith.constant 0 : index
    %c8_277 = arith.constant 8 : index
    %526 = vector.load %arg56[%c0_276, %c8_277] : memref<8x32xf32, #tpu.memory_space<vmem>>, vector<1x8xf32>
    tpu.vector_store %arg56[%c0_276, %c8_277], %525 {strides = array<i32>} : memref<8x32xf32, #tpu.memory_space<vmem>>, vector<1x8xf32>,
    %527 = vector.extract_strided_slice %476 {offsets = [0, 16], sizes = [1, 8], strides = [1, 1]} : vector<1x32xf32> to vector<1x8xf32>
    %528 = vector.extract_strided_slice %480 {offsets = [0, 16], sizes = [9, 8], strides = [1, 1]} : vector<9x64xf32> to vector<9x8xf32>
    %529 = vector.extract_strided_slice %480 {offsets = [0, 48], sizes = [9, 8], strides = [1, 1]} : vector<9x64xf32> to vector<9x8xf32>
    %530 = arith.truncf %527 : vector<1x8xf32> to vector<1x8xbf16>
    %531 = arith.truncf %528 : vector<9x8xf32> to vector<9x8xbf16>
    %cst_278 = arith.constant dense<0.000000e+00> : vector<1x9xf32>
    %532 = tpu.matmul %530, %531, %cst_278 {dimension_numbers = #tpu.dot_dimension_numbers<[1], [1], [0], [0], [0, 0, 1, 0], [], []>} : vector<1x8xbf16>, vector<9x8xbf16>, vector<1x9xf32> -> vector<1x9xf32>
    %cst_279 = arith.constant 0.353553385 : f32
    %533 = vector.broadcast %cst_279 : f32 to vector<1x9xf32>
    %534 = arith.mulf %532, %533 : vector<1x9xf32>
    %535 = arith.addf %534, %435 : vector<1x9xf32>
    %cst_280 = arith.constant dense<0xFF800000> : vector<1xf32>
    %536 = vector.multi_reduction <maximumf>, %535, %cst_280 [1] : vector<1x9xf32> to vector<1xf32>
    %537 = vector.shape_cast %536 : vector<1xf32> to vector<1x1xf32>
    %538 = vector.broadcast %537 : vector<1x1xf32> to vector<1x9xf32>
    %539 = arith.subf %535, %538 : vector<1x9xf32>
    %540 = math.exp %539 : vector<1x9xf32>
    %cst_281 = arith.constant dense<0.000000e+00> : vector<1xf32>
    %541 = vector.multi_reduction <add>, %540, %cst_281 [1] : vector<1x9xf32> to vector<1xf32>
    %542 = vector.shape_cast %541 : vector<1xf32> to vector<1x1xf32>
    %543 = tpu.reciprocal %542 {approx = true} : vector<1x1xf32> -> vector<1x1xf32>
    %544 = vector.broadcast %543 : vector<1x1xf32> to vector<1x9xf32>
    %545 = arith.mulf %540, %544 : vector<1x9xf32>
    %546 = arith.truncf %545 : vector<1x9xf32> to vector<1x9xbf16>
    %547 = arith.truncf %529 : vector<9x8xf32> to vector<9x8xbf16>
    %cst_282 = arith.constant dense<0.000000e+00> : vector<1x8xf32>
    %548 = tpu.matmul %546, %547, %cst_282 {dimension_numbers = #tpu.dot_dimension_numbers<[1], [0], [0], [1], [0, 0, 1, 1], [], []>} : vector<1x9xbf16>, vector<9x8xbf16>, vector<1x8xf32> -> vector<1x8xf32>
    %c0_283 = arith.constant 0 : index
    %c16_284 = arith.constant 16 : index
    %549 = vector.load %arg56[%c0_283, %c16_284] : memref<8x32xf32, #tpu.memory_space<vmem>>, vector<1x8xf32>
    tpu.vector_store %arg56[%c0_283, %c16_284], %548 {strides = array<i32>} : memref<8x32xf32, #tpu.memory_space<vmem>>, vector<1x8xf32>,
    %550 = vector.extract_strided_slice %476 {offsets = [0, 24], sizes = [1, 8], strides = [1, 1]} : vector<1x32xf32> to vector<1x8xf32>
    %551 = vector.extract_strided_slice %480 {offsets = [0, 24], sizes = [9, 8], strides = [1, 1]} : vector<9x64xf32> to vector<9x8xf32>
    %552 = vector.extract_strided_slice %480 {offsets = [0, 56], sizes = [9, 8], strides = [1, 1]} : vector<9x64xf32> to vector<9x8xf32>
    %553 = arith.truncf %550 : vector<1x8xf32> to vector<1x8xbf16>
    %554 = arith.truncf %551 : vector<9x8xf32> to vector<9x8xbf16>
    %cst_285 = arith.constant dense<0.000000e+00> : vector<1x9xf32>
    %555 = tpu.matmul %553, %554, %cst_285 {dimension_numbers = #tpu.dot_dimension_numbers<[1], [1], [0], [0], [0, 0, 1, 0], [], []>} : vector<1x8xbf16>, vector<9x8xbf16>, vector<1x9xf32> -> vector<1x9xf32>
    %cst_286 = arith.constant 0.353553385 : f32
    %556 = vector.broadcast %cst_286 : f32 to vector<1x9xf32>
    %557 = arith.mulf %555, %556 : vector<1x9xf32>
    %558 = arith.addf %557, %435 : vector<1x9xf32>
    %cst_287 = arith.constant dense<0xFF800000> : vector<1xf32>
    %559 = vector.multi_reduction <maximumf>, %558, %cst_287 [1] : vector<1x9xf32> to vector<1xf32>
    %560 = vector.shape_cast %559 : vector<1xf32> to vector<1x1xf32>
    %561 = vector.broadcast %560 : vector<1x1xf32> to vector<1x9xf32>
    %562 = arith.subf %558, %561 : vector<1x9xf32>
    %563 = math.exp %562 : vector<1x9xf32>
    %cst_288 = arith.constant dense<0.000000e+00> : vector<1xf32>
    %564 = vector.multi_reduction <add>, %563, %cst_288 [1] : vector<1x9xf32> to vector<1xf32>
    %565 = vector.shape_cast %564 : vector<1xf32> to vector<1x1xf32>
    %566 = tpu.reciprocal %565 {approx = true} : vector<1x1xf32> -> vector<1x1xf32>
    %567 = vector.broadcast %566 : vector<1x1xf32> to vector<1x9xf32>
    %568 = arith.mulf %563, %567 : vector<1x9xf32>
    %569 = arith.truncf %568 : vector<1x9xf32> to vector<1x9xbf16>
    %570 = arith.truncf %552 : vector<9x8xf32> to vector<9x8xbf16>
    %cst_289 = arith.constant dense<0.000000e+00> : vector<1x8xf32>
    %571 = tpu.matmul %569, %570, %cst_289 {dimension_numbers = #tpu.dot_dimension_numbers<[1], [0], [0], [1], [0, 0, 1, 1], [], []>} : vector<1x9xbf16>, vector<9x8xbf16>, vector<1x8xf32> -> vector<1x8xf32>
    %c0_290 = arith.constant 0 : index
    %c24_291 = arith.constant 24 : index
    %572 = vector.load %arg56[%c0_290, %c24_291] : memref<8x32xf32, #tpu.memory_space<vmem>>, vector<1x8xf32>
    tpu.vector_store %arg56[%c0_290, %c24_291], %571 {strides = array<i32>} : memref<8x32xf32, #tpu.memory_space<vmem>>, vector<1x8xf32>,
    %c0_292 = arith.constant 0 : index
    %c0_293 = arith.constant 0 : index
    %573 = vector.load %arg56[%c0_292, %c0_293] : memref<8x32xf32, #tpu.memory_space<vmem>>, vector<1x32xf32>
    %574 = arith.truncf %573 : vector<1x32xf32> to vector<1x32xbf16>
    %cst_294 = arith.constant dense<0.000000e+00> : vector<1x32xf32>
    %575 = tpu.matmul %574, %442, %cst_294 {dimension_numbers = #tpu.dot_dimension_numbers<[1], [0], [0], [1], [0, 0, 1, 1], [], []>} : vector<1x32xbf16>, vector<32x32xbf16>, vector<1x32xf32> -> vector<1x32xf32>
    %576 = arith.addf %575, %443 : vector<1x32xf32>
    %577 = arith.addf %426, %576 : vector<1x32xf32>
    %cst_295 = arith.constant dense<0.000000e+00> : vector<1xf32>
    %578 = vector.multi_reduction <add>, %577, %cst_295 [1] : vector<1x32xf32> to vector<1xf32>
    %579 = vector.shape_cast %578 : vector<1xf32> to vector<1x1xf32>
    %cst_296 = arith.constant 3.200000e+01 : f32
    %580 = vector.broadcast %cst_296 : f32 to vector<1x1xf32>
    %581 = arith.divf %579, %580 : vector<1x1xf32>
    %582 = vector.broadcast %581 : vector<1x1xf32> to vector<1x32xf32>
    %583 = arith.subf %577, %582 : vector<1x32xf32>
    %584 = arith.mulf %583, %583 : vector<1x32xf32>
    %cst_297 = arith.constant dense<0.000000e+00> : vector<1xf32>
    %585 = vector.multi_reduction <add>, %584, %cst_297 [1] : vector<1x32xf32> to vector<1xf32>
    %586 = vector.shape_cast %585 : vector<1xf32> to vector<1x1xf32>
    %cst_298 = arith.constant 3.200000e+01 : f32
    %587 = vector.broadcast %cst_298 : f32 to vector<1x1xf32>
    %588 = arith.divf %586, %587 : vector<1x1xf32>
    %cst_299 = arith.constant 9.99999974E-6 : f32
    %589 = vector.broadcast %cst_299 : f32 to vector<1x1xf32>
    %590 = arith.addf %588, %589 : vector<1x1xf32>
    %591 = math.rsqrt %590 : vector<1x1xf32>
    %592 = vector.broadcast %591 : vector<1x1xf32> to vector<1x32xf32>
    %593 = arith.mulf %583, %592 : vector<1x32xf32>
    %594 = arith.mulf %593, %444 : vector<1x32xf32>
    %595 = arith.addf %594, %445 : vector<1x32xf32>
    %596 = arith.truncf %595 : vector<1x32xf32> to vector<1x32xbf16>
    %cst_300 = arith.constant dense<0.000000e+00> : vector<1x64xf32>
    %597 = tpu.matmul %596, %446, %cst_300 {dimension_numbers = #tpu.dot_dimension_numbers<[1], [0], [0], [1], [0, 0, 1, 1], [], []>} : vector<1x32xbf16>, vector<32x64xbf16>, vector<1x64xf32> -> vector<1x64xf32>
    %598 = arith.addf %597, %447 : vector<1x64xf32>
    %cst_301 = arith.constant 5.000000e-01 : f32
    %599 = vector.broadcast %cst_301 : f32 to vector<1x64xf32>
    %600 = arith.mulf %599, %598 : vector<1x64xf32>
    %cst_302 = arith.constant 4.471500e-02 : f32
    %601 = vector.broadcast %cst_302 : f32 to vector<1x64xf32>
    %602 = arith.mulf %601, %598 : vector<1x64xf32>
    %603 = arith.mulf %602, %598 : vector<1x64xf32>
    %604 = arith.mulf %603, %598 : vector<1x64xf32>
    %605 = arith.addf %598, %604 : vector<1x64xf32>
    %cst_303 = arith.constant 0.797884583 : f32
    %606 = vector.broadcast %cst_303 : f32 to vector<1x64xf32>
    %607 = arith.mulf %606, %605 : vector<1x64xf32>
    %608 = math.tanh %607 : vector<1x64xf32>
    %cst_304 = arith.constant 1.000000e+00 : f32
    %609 = vector.broadcast %cst_304 : f32 to vector<1x64xf32>
    %610 = arith.addf %609, %608 : vector<1x64xf32>
    %611 = arith.mulf %600, %610 : vector<1x64xf32>
    %612 = arith.truncf %611 : vector<1x64xf32> to vector<1x64xbf16>
    %cst_305 = arith.constant dense<0.000000e+00> : vector<1x32xf32>
    %613 = tpu.matmul %612, %448, %cst_305 {dimension_numbers = #tpu.dot_dimension_numbers<[1], [0], [0], [1], [0, 0, 1, 1], [], []>} : vector<1x64xbf16>, vector<64x32xbf16>, vector<1x32xf32> -> vector<1x32xf32>
    %614 = arith.addf %577, %613 : vector<1x32xf32>
    %615 = arith.addf %614, %449 : vector<1x32xf32>
    %c0_306 = arith.constant 0 : index
    %c0_307 = arith.constant 0 : index
    %616 = vector.load %arg48[%c0_306, %c0_307] : memref<1x32xf32, #tpu.memory_space<vmem>>, vector<1x32xf32>
    %c0_308 = arith.constant 0 : index
    %c0_309 = arith.constant 0 : index
    %617 = vector.load %arg49[%c0_308, %c0_309] : memref<1x32xf32, #tpu.memory_space<vmem>>, vector<1x32xf32>
    %c0_310 = arith.constant 0 : index
    %c0_311 = arith.constant 0 : index
    %618 = vector.load %arg50[%c0_310, %c0_311] : memref<32x5xbf16, #tpu.memory_space<vmem>>, vector<32x5xbf16>
    %c0_312 = arith.constant 0 : index
    %c0_313 = arith.constant 0 : index
    %619 = vector.load %arg51[%c0_312, %c0_313] : memref<1x5xf32, #tpu.memory_space<vmem>>, vector<1x5xf32>
    %cst_314 = arith.constant dense<0.000000e+00> : vector<1xf32>
    %620 = vector.multi_reduction <add>, %615, %cst_314 [1] : vector<1x32xf32> to vector<1xf32>
    %621 = vector.shape_cast %620 : vector<1xf32> to vector<1x1xf32>
    %cst_315 = arith.constant 3.200000e+01 : f32
    %622 = vector.broadcast %cst_315 : f32 to vector<1x1xf32>
    %623 = arith.divf %621, %622 : vector<1x1xf32>
    %624 = vector.broadcast %623 : vector<1x1xf32> to vector<1x32xf32>
    %625 = arith.subf %615, %624 : vector<1x32xf32>
    %626 = arith.mulf %625, %625 : vector<1x32xf32>
    %cst_316 = arith.constant dense<0.000000e+00> : vector<1xf32>
    %627 = vector.multi_reduction <add>, %626, %cst_316 [1] : vector<1x32xf32> to vector<1xf32>
    %628 = vector.shape_cast %627 : vector<1xf32> to vector<1x1xf32>
    %cst_317 = arith.constant 3.200000e+01 : f32
    %629 = vector.broadcast %cst_317 : f32 to vector<1x1xf32>
    %630 = arith.divf %628, %629 : vector<1x1xf32>
    %cst_318 = arith.constant 9.99999974E-6 : f32
    %631 = vector.broadcast %cst_318 : f32 to vector<1x1xf32>
    %632 = arith.addf %630, %631 : vector<1x1xf32>
    %633 = math.rsqrt %632 : vector<1x1xf32>
    %634 = vector.broadcast %633 : vector<1x1xf32> to vector<1x32xf32>
    %635 = arith.mulf %625, %634 : vector<1x32xf32>
    %636 = arith.mulf %635, %616 : vector<1x32xf32>
    %637 = arith.addf %636, %617 : vector<1x32xf32>
    %638 = arith.truncf %637 : vector<1x32xf32> to vector<1x32xbf16>
    %cst_319 = arith.constant dense<0.000000e+00> : vector<1x5xf32>
    %639 = tpu.matmul %638, %618, %cst_319 {dimension_numbers = #tpu.dot_dimension_numbers<[1], [0], [0], [1], [0, 0, 1, 1], [], []>} : vector<1x32xbf16>, vector<32x5xbf16>, vector<1x5xf32> -> vector<1x5xf32>
    %640 = arith.addf %639, %619 : vector<1x5xf32>
    %c0_320 = arith.constant 0 : index
    %c0_321 = arith.constant 0 : index
    %c0_322 = arith.constant 0 : index
    %641 = vector.load %arg52[%c0_320, %c0_321, %c0_322] : memref<1x1x5xf32, #tpu.memory_space<vmem>>, vector<1x1x5xf32>
    %642 = vector.shape_cast %641 : vector<1x1x5xf32> to vector<1x5xf32>
    %643 = vector.shape_cast %640 : vector<1x5xf32> to vector<1x1x5xf32>
    tpu.vector_store %arg52[%c0_320, %c0_321, %c0_322], %643 {strides = array<i32>} : memref<1x1x5xf32, #tpu.memory_space<vmem>>, vector<1x1x5xf32>,
    return
  }
  func.func @transform_0(%arg0: i32) -> (i32, i32, i32) {
    %c0_i32 = arith.constant 0 : i32
    %c0_i32_0 = arith.constant 0 : i32
    %c0_i32_1 = arith.constant 0 : i32
    return %arg0, %c0_i32, %c0_i32_0 : i32, i32, i32
  }
  func.func @transform_1(%arg0: i32) -> (i32, i32, i32, i32) {
    %c0_i32 = arith.constant 0 : i32
    %c0_i32_0 = arith.constant 0 : i32
    %c0_i32_1 = arith.constant 0 : i32
    %c0_i32_2 = arith.constant 0 : i32
    return %arg0, %c0_i32, %c0_i32_0, %c0_i32_1 : i32, i32, i32, i32
  }
  func.func @transform_2(%arg0: i32) -> (i32, i32, i32) {
    %c0_i32 = arith.constant 0 : i32
    %c0_i32_0 = arith.constant 0 : i32
    %c0_i32_1 = arith.constant 0 : i32
    return %arg0, %c0_i32, %c0_i32_0 : i32, i32, i32
  }
  func.func @transform_3(%arg0: i32) -> (i32, i32, i32) {
    %c0_i32 = arith.constant 0 : i32
    %c0_i32_0 = arith.constant 0 : i32
    %c0_i32_1 = arith.constant 0 : i32
    return %arg0, %c0_i32, %c0_i32_0 : i32, i32, i32
  }
  func.func @transform_4(%arg0: i32) -> (i32, i32) {
    %c0_i32 = arith.constant 0 : i32
    %c0_i32_0 = arith.constant 0 : i32
    %c0_i32_1 = arith.constant 0 : i32
    return %c0_i32, %c0_i32_0 : i32, i32
  }
  func.func @transform_5(%arg0: i32) -> (i32, i32) {
    %c0_i32 = arith.constant 0 : i32
    %c0_i32_0 = arith.constant 0 : i32
    %c0_i32_1 = arith.constant 0 : i32
    return %c0_i32, %c0_i32_0 : i32, i32
  }
  func.func @transform_6(%arg0: i32) -> (i32, i32) {
    %c0_i32 = arith.constant 0 : i32
    %c0_i32_0 = arith.constant 0 : i32
    %c0_i32_1 = arith.constant 0 : i32
    return %c0_i32, %c0_i32_0 : i32, i32
  }
  func.func @transform_7(%arg0: i32) -> (i32, i32) {
    %c0_i32 = arith.constant 0 : i32
    %c0_i32_0 = arith.constant 0 : i32
    %c0_i32_1 = arith.constant 0 : i32
    return %c0_i32, %c0_i32_0 : i32, i32
  }
  func.func @transform_8(%arg0: i32) -> (i32, i32) {
    %c0_i32 = arith.constant 0 : i32
    %c0_i32_0 = arith.constant 0 : i32
    %c0_i32_1 = arith.constant 0 : i32
    return %c0_i32, %c0_i32_0 : i32, i32
  }
  func.func @transform_9(%arg0: i32) -> (i32, i32) {
    %c0_i32 = arith.constant 0 : i32
    %c0_i32_0 = arith.constant 0 : i32
    %c0_i32_1 = arith.constant 0 : i32
    return %c0_i32, %c0_i32_0 : i32, i32
  }
  func.func @transform_10(%arg0: i32) -> (i32, i32) {
    %c0_i32 = arith.constant 0 : i32
    %c0_i32_0 = arith.constant 0 : i32
    %c0_i32_1 = arith.constant 0 : i32
    return %c0_i32, %c0_i32_0 : i32, i32
  }
  func.func @transform_11(%arg0: i32) -> (i32, i32) {
    %c0_i32 = arith.constant 0 : i32
    %c0_i32_0 = arith.constant 0 : i32
    %c0_i32_1 = arith.constant 0 : i32
    return %c0_i32, %c0_i32_0 : i32, i32
  }
  func.func @transform_12(%arg0: i32) -> (i32, i32) {
    %c0_i32 = arith.constant 0 : i32
    %c0_i32_0 = arith.constant 0 : i32
    %c0_i32_1 = arith.constant 0 : i32
    return %c0_i32, %c0_i32_0 : i32, i32
  }
  func.func @transform_13(%arg0: i32) -> (i32, i32) {
    %c0_i32 = arith.constant 0 : i32
    %c0_i32_0 = arith.constant 0 : i32
    %c0_i32_1 = arith.constant 0 : i32
    return %c0_i32, %c0_i32_0 : i32, i32
  }
  func.func @transform_14(%arg0: i32) -> (i32, i32) {
    %c0_i32 = arith.constant 0 : i32
    %c0_i32_0 = arith.constant 0 : i32
    %c0_i32_1 = arith.constant 0 : i32
    return %c0_i32, %c0_i32_0 : i32, i32
  }
  func.func @transform_15(%arg0: i32) -> (i32, i32) {
    %c0_i32 = arith.constant 0 : i32
    %c0_i32_0 = arith.constant 0 : i32
    %c0_i32_1 = arith.constant 0 : i32
    return %c0_i32, %c0_i32_0 : i32, i32
  }
  func.func @transform_16(%arg0: i32) -> (i32, i32) {
    %c0_i32 = arith.constant 0 : i32
    %c0_i32_0 = arith.constant 0 : i32
    %c0_i32_1 = arith.constant 0 : i32
    return %c0_i32, %c0_i32_0 : i32, i32
  }
  func.func @transform_17(%arg0: i32) -> (i32, i32) {
    %c0_i32 = arith.constant 0 : i32
    %c0_i32_0 = arith.constant 0 : i32
    %c0_i32_1 = arith.constant 0 : i32
    return %c0_i32, %c0_i32_0 : i32, i32
  }
  func.func @transform_18(%arg0: i32) -> (i32, i32) {
    %c0_i32 = arith.constant 0 : i32
    %c0_i32_0 = arith.constant 0 : i32
    %c0_i32_1 = arith.constant 0 : i32
    return %c0_i32, %c0_i32_0 : i32, i32
  }
  func.func @transform_19(%arg0: i32) -> (i32, i32) {
    %c0_i32 = arith.constant 0 : i32
    %c0_i32_0 = arith.constant 0 : i32
    %c0_i32_1 = arith.constant 0 : i32
    return %c0_i32, %c0_i32_0 : i32, i32
  }
  func.func @transform_20(%arg0: i32) -> (i32, i32) {
    %c0_i32 = arith.constant 0 : i32
    %c0_i32_0 = arith.constant 0 : i32
    %c0_i32_1 = arith.constant 0 : i32
    return %c0_i32, %c0_i32_0 : i32, i32
  }
  func.func @transform_21(%arg0: i32) -> (i32, i32) {
    %c0_i32 = arith.constant 0 : i32
    %c0_i32_0 = arith.constant 0 : i32
    %c0_i32_1 = arith.constant 0 : i32
    return %c0_i32, %c0_i32_0 : i32, i32
  }
  func.func @transform_22(%arg0: i32) -> (i32, i32) {
    %c0_i32 = arith.constant 0 : i32
    %c0_i32_0 = arith.constant 0 : i32
    %c0_i32_1 = arith.constant 0 : i32
    return %c0_i32, %c0_i32_0 : i32, i32
  }
  func.func @transform_23(%arg0: i32) -> (i32, i32) {
    %c0_i32 = arith.constant 0 : i32
    %c0_i32_0 = arith.constant 0 : i32
    %c0_i32_1 = arith.constant 0 : i32
    return %c0_i32, %c0_i32_0 : i32, i32
  }
  func.func @transform_24(%arg0: i32) -> (i32, i32) {
    %c0_i32 = arith.constant 0 : i32
    %c0_i32_0 = arith.constant 0 : i32
    %c0_i32_1 = arith.constant 0 : i32
    return %c0_i32, %c0_i32_0 : i32, i32
  }
  func.func @transform_25(%arg0: i32) -> (i32, i32) {
    %c0_i32 = arith.constant 0 : i32
    %c0_i32_0 = arith.constant 0 : i32
    %c0_i32_1 = arith.constant 0 : i32
    return %c0_i32, %c0_i32_0 : i32, i32
  }
  func.func @transform_26(%arg0: i32) -> (i32, i32) {
    %c0_i32 = arith.constant 0 : i32
    %c0_i32_0 = arith.constant 0 : i32
    %c0_i32_1 = arith.constant 0 : i32
    return %c0_i32, %c0_i32_0 : i32, i32
  }
  func.func @transform_27(%arg0: i32) -> (i32, i32) {
    %c0_i32 = arith.constant 0 : i32
    %c0_i32_0 = arith.constant 0 : i32
    %c0_i32_1 = arith.constant 0 : i32
    return %c0_i32, %c0_i32_0 : i32, i32
  }
  func.func @transform_28(%arg0: i32) -> (i32, i32) {
    %c0_i32 = arith.constant 0 : i32
    %c0_i32_0 = arith.constant 0 : i32
    %c0_i32_1 = arith.constant 0 : i32
    return %c0_i32, %c0_i32_0 : i32, i32
  }
  func.func @transform_29(%arg0: i32) -> (i32, i32) {
    %c0_i32 = arith.constant 0 : i32
    %c0_i32_0 = arith.constant 0 : i32
    %c0_i32_1 = arith.constant 0 : i32
    return %c0_i32, %c0_i32_0 : i32, i32
  }
  func.func @transform_30(%arg0: i32) -> (i32, i32) {
    %c0_i32 = arith.constant 0 : i32
    %c0_i32_0 = arith.constant 0 : i32
    %c0_i32_1 = arith.constant 0 : i32
    return %c0_i32, %c0_i32_0 : i32, i32
  }
  func.func @transform_31(%arg0: i32) -> (i32, i32) {
    %c0_i32 = arith.constant 0 : i32
    %c0_i32_0 = arith.constant 0 : i32
    %c0_i32_1 = arith.constant 0 : i32
    return %c0_i32, %c0_i32_0 : i32, i32
  }
  func.func @transform_32(%arg0: i32) -> (i32, i32) {
    %c0_i32 = arith.constant 0 : i32
    %c0_i32_0 = arith.constant 0 : i32
    %c0_i32_1 = arith.constant 0 : i32
    return %c0_i32, %c0_i32_0 : i32, i32
  }
  func.func @transform_33(%arg0: i32) -> (i32, i32) {
    %c0_i32 = arith.constant 0 : i32
    %c0_i32_0 = arith.constant 0 : i32
    %c0_i32_1 = arith.constant 0 : i32
    return %c0_i32, %c0_i32_0 : i32, i32
  }
  func.func @transform_34(%arg0: i32) -> (i32, i32) {
    %c0_i32 = arith.constant 0 : i32
    %c0_i32_0 = arith.constant 0 : i32
    %c0_i32_1 = arith.constant 0 : i32
    return %c0_i32, %c0_i32_0 : i32, i32
  }
  func.func @transform_35(%arg0: i32) -> (i32, i32) {
    %c0_i32 = arith.constant 0 : i32
    %c0_i32_0 = arith.constant 0 : i32
    %c0_i32_1 = arith.constant 0 : i32
    return %c0_i32, %c0_i32_0 : i32, i32
  }
  func.func @transform_36(%arg0: i32) -> (i32, i32) {
    %c0_i32 = arith.constant 0 : i32
    %c0_i32_0 = arith.constant 0 : i32
    %c0_i32_1 = arith.constant 0 : i32
    return %c0_i32, %c0_i32_0 : i32, i32
  }
  func.func @transform_37(%arg0: i32) -> (i32, i32) {
    %c0_i32 = arith.constant 0 : i32
    %c0_i32_0 = arith.constant 0 : i32
    %c0_i32_1 = arith.constant 0 : i32
    return %c0_i32, %c0_i32_0 : i32, i32
  }
  func.func @transform_38(%arg0: i32) -> (i32, i32) {
    %c0_i32 = arith.constant 0 : i32
    %c0_i32_0 = arith.constant 0 : i32
    %c0_i32_1 = arith.constant 0 : i32
    return %c0_i32, %c0_i32_0 : i32, i32
  }
  func.func @transform_39(%arg0: i32) -> (i32, i32) {
    %c0_i32 = arith.constant 0 : i32
    %c0_i32_0 = arith.constant 0 : i32
    %c0_i32_1 = arith.constant 0 : i32
    return %c0_i32, %c0_i32_0 : i32, i32
  }
  func.func @transform_40(%arg0: i32) -> (i32, i32) {
    %c0_i32 = arith.constant 0 : i32
    %c0_i32_0 = arith.constant 0 : i32
    %c0_i32_1 = arith.constant 0 : i32
    return %c0_i32, %c0_i32_0 : i32, i32
  }
  func.func @transform_41(%arg0: i32) -> (i32, i32) {
    %c0_i32 = arith.constant 0 : i32
    %c0_i32_0 = arith.constant 0 : i32
    %c0_i32_1 = arith.constant 0 : i32
    return %c0_i32, %c0_i32_0 : i32, i32
  }
  func.func @transform_42(%arg0: i32) -> (i32, i32) {
    %c0_i32 = arith.constant 0 : i32
    %c0_i32_0 = arith.constant 0 : i32
    %c0_i32_1 = arith.constant 0 : i32
    return %c0_i32, %c0_i32_0 : i32, i32
  }
  func.func @transform_43(%arg0: i32) -> (i32, i32) {
    %c0_i32 = arith.constant 0 : i32
    %c0_i32_0 = arith.constant 0 : i32
    %c0_i32_1 = arith.constant 0 : i32
    return %c0_i32, %c0_i32_0 : i32, i32
  }
  func.func @transform_44(%arg0: i32) -> (i32, i32) {
    %c0_i32 = arith.constant 0 : i32
    %c0_i32_0 = arith.constant 0 : i32
    %c0_i32_1 = arith.constant 0 : i32
    return %c0_i32, %c0_i32_0 : i32, i32
  }
  func.func @transform_45(%arg0: i32) -> (i32, i32) {
    %c0_i32 = arith.constant 0 : i32
    %c0_i32_0 = arith.constant 0 : i32
    %c0_i32_1 = arith.constant 0 : i32
    return %c0_i32, %c0_i32_0 : i32, i32
  }
  func.func @transform_46(%arg0: i32) -> (i32, i32) {
    %c0_i32 = arith.constant 0 : i32
    %c0_i32_0 = arith.constant 0 : i32
    %c0_i32_1 = arith.constant 0 : i32
    return %c0_i32, %c0_i32_0 : i32, i32
  }
  func.func @transform_47(%arg0: i32) -> (i32, i32) {
    %c0_i32 = arith.constant 0 : i32
    %c0_i32_0 = arith.constant 0 : i32
    %c0_i32_1 = arith.constant 0 : i32
    return %c0_i32, %c0_i32_0 : i32, i32
  }
  func.func @transform_48(%arg0: i32) -> (i32, i32) {
    %c0_i32 = arith.constant 0 : i32
    %c0_i32_0 = arith.constant 0 : i32
    %c0_i32_1 = arith.constant 0 : i32
    return %c0_i32, %c0_i32_0 : i32, i32
  }
  func.func @transform_49(%arg0: i32) -> (i32, i32) {
    %c0_i32 = arith.constant 0 : i32
    %c0_i32_0 = arith.constant 0 : i32
    %c0_i32_1 = arith.constant 0 : i32
    return %c0_i32, %c0_i32_0 : i32, i32
  }
  func.func @transform_50(%arg0: i32) -> (i32, i32) {
    %c0_i32 = arith.constant 0 : i32
    %c0_i32_0 = arith.constant 0 : i32
    %c0_i32_1 = arith.constant 0 : i32
    return %c0_i32, %c0_i32_0 : i32, i32
  }
  func.func @transform_51(%arg0: i32) -> (i32, i32, i32) {
    %c0_i32 = arith.constant 0 : i32
    %c0_i32_0 = arith.constant 0 : i32
    %c0_i32_1 = arith.constant 0 : i32
    return %arg0, %c0_i32, %c0_i32_0 : i32, i32, i32
  }
  func.func @transform_52(%arg0: i32) -> (i32, i32, i32, i32) {
    %c0_i32 = arith.constant 0 : i32
    %c0_i32_0 = arith.constant 0 : i32
    %c0_i32_1 = arith.constant 0 : i32
    %c0_i32_2 = arith.constant 0 : i32
    return %arg0, %c0_i32, %c0_i32_0, %c0_i32_1 : i32, i32, i32, i32
  }
}

</mosaic_0001>

<llo_original>
// kernel: part_forward.2
$region0: #{part_forward.2}
  #allocation0 [shape = 'u32[]', space=smem, size = 0x4, offset = 0x4, fixed_abs, tag = 'smem constant byte address 0x4 - core index']
  #allocation1 [shape = 'u32[144,128]{1,0:T(1,128)}', space=vmem, size = 0x12000, scoped, tag = 'internal scratch']
  %s0 = inlined_call_operand.vmem [shape: f32[128,4], index: 0, kind: input, shape index: {}]
  %s1 = inlined_call_operand.vmem [shape: bf16[4,32], index: 1, kind: input, shape index: {}]
  %s2 = inlined_call_operand.vmem [shape: f32[1,32], index: 2, kind: input, shape index: {}]
  %s3 = inlined_call_operand.vmem [shape: bf16[32,4], index: 3, kind: input, shape index: {}]
  %s4 = inlined_call_operand.vmem [shape: f32[1,4], index: 4, kind: input, shape index: {}]
  %s5 = inlined_call_operand.vmem [shape: f32[128,4], index: 5, kind: output, shape index: {}]
  %s6 = sld [smem:[#allocation0]]
  $region30: #{part_forward.2} parent=0
    _
  %s8 = ssub.s32 1, %s6
  %s9 = scalar_select 0, %s8, %s6
  // Predicated region
  $region2: #{part_forward.2} parent=0 // pred_check
    _
  $region3: #{part_forward.2} parent=0 // pred_check_branch
    %11 = sbr.rel (0) target = $region5
  $region4: #{part_forward.2} parent=0 // pred_region
    _
  $region5: #{part_forward.2} parent=0 // pred_fallthru
    _
  // Predicated region
  $region6: #{part_forward.2} parent=0 // pred_check
    _
  $region7: #{part_forward.2} parent=0 // pred_check_branch
    %13 = sbr.rel (0) target = $region9
  $region8: #{part_forward.2} parent=0 // pred_region
    _
  $region9: #{part_forward.2} parent=0 // pred_fallthru
    _
  // Predicated region
  $region10: #{part_forward.2} parent=0 // pred_check
    _
  $region11: #{part_forward.2} parent=0 // pred_check_branch
    %15 = sbr.rel (0) target = $region13
  $region12: #{part_forward.2} parent=0 // pred_region
    _
  $region13: #{part_forward.2} parent=0 // pred_fallthru
    _
  // Predicated region
  $region14: #{part_forward.2} parent=0 // pred_check
    _
  $region15: #{part_forward.2} parent=0 // pred_check_branch
    %17 = sbr.rel (0) target = $region17
  $region16: #{part_forward.2} parent=0 // pred_region
    _
  $region17: #{part_forward.2} parent=0 // pred_fallthru
    _
  // Predicated region
  $region18: #{part_forward.2} parent=0 // pred_check
    _
  $region19: #{part_forward.2} parent=0 // pred_check_branch
    %19 = sbr.rel (0) target = $region21
  $region20: #{part_forward.2} parent=0 // pred_region
    _
  $region21: #{part_forward.2} parent=0 // pred_fallthru
    _
  %v21 = vld [vmem:[%s0] sm:$0xff]
  %v22 = vld [vmem:[%s0 + $0x8] sm:$0xff]
  %v23 = vld [vmem:[%s0 + $0x10] sm:$0xff]
  %v24 = vld [vmem:[%s0 + $0x18] sm:$0xff]
  %v25 = vld [vmem:[%s0 + $0x20] sm:$0xff]
  %v26 = vld [vmem:[%s0 + $0x28] sm:$0xff]
  %v27 = vld [vmem:[%s0 + $0x30] sm:$0xff]
  %v28 = vld [vmem:[%s0 + $0x38] sm:$0xff]
  %v29 = vld [vmem:[%s0 + $0x40] sm:$0xff]
  %v30 = vld [vmem:[%s0 + $0x48] sm:$0xff]
  %v31 = vld [vmem:[%s0 + $0x50] sm:$0xff]
  %v32 = vld [vmem:[%s0 + $0x58] sm:$0xff]
  %v33 = vld [vmem:[%s0 + $0x60] sm:$0xff]
  %v34 = vld [vmem:[%s0 + $0x68] sm:$0xff]
  %v35 = vld [vmem:[%s0 + $0x70] sm:$0xff]
  %v36 = vld [vmem:[%s0 + $0x78] sm:$0xff]
  %v37 = vld [vmem:[%s1] sm:$0x3]
  %v38 = vpack.c.bf16 %v22, %v21
  %v39 = vpack.c.bf16 %v24, %v23
  %v40 = vpack.c.bf16 %v26, %v25
  %v41 = vpack.c.bf16 %v28, %v27
  %v42 = vpack.c.bf16 %v30, %v29
  %v43 = vpack.c.bf16 %v32, %v31
  %v44 = vpack.c.bf16 %v34, %v33
  %v45 = vpack.c.bf16 %v36, %v35
  %v46 = vld [vmem:[%s2] sm:$0x1]
  %v48 = vlaneseq
  %v49 = vshrl.u32 %v48, 7
  %v50 = vsub.s32 0, %v49
  %v51 = vrot.slane %v46, %v50
  %vm53 = vcmask 31744
  %v55 = vsel %vm53, %v38, 0
  %v58 = vsel %vm53, %v39, 0
  %v61 = vsel %vm53, %v40, 0
  %v64 = vsel %vm53, %v41, 0
  %v67 = vsel %vm53, %v42, 0
  %v70 = vsel %vm53, %v43, 0
  %v73 = vsel %vm53, %v44, 0
  %v76 = vsel %vm53, %v45, 0
  %vm78 = vcmask 1041408
  %v80 = vsel %vm78, %v37, 0
  %82 = vmatprep.subr.bf16.mxu0 0
  %83 = vmatpush1.bf16.msra.mxu0 0
  %84 = vmatprep.subr.bf16.mxu0 0
  %85 = vmatpush1.bf16.msra.mxu0 0
  %86 = vmatprep.subr.bf16.mxu0 0
  %87 = vmatpush1.bf16.msra.mxu0 0
  %88 = vmatprep.subr.bf16.mxu0 0
  %89 = vmatpush1.bf16.msra.mxu0 0
  %90 = vmatprep.subr.bf16.mxu0 0
  %91 = vmatpush1.bf16.msra.mxu0 0
  %92 = vmatprep.subr.bf16.mxu0 0
  %93 = vmatpush1.bf16.msra.mxu0 0
  %94 = vmatprep.subr.bf16.mxu0 0
  %95 = vmatpush1.bf16.msra.mxu0 0
  %96 = vmatprep.subr.bf16.mxu0 0
  %97 = vmatpush1.bf16.msra.mxu0 %v80
  %98 = vmatprep.subr.bf16.mxu0 0
  %99 = vmatpush2.bf16.msra.mxu0 0
  %100 = vmatprep.subr.bf16.mxu0 0
  %101 = vmatpush2.bf16.msra.mxu0 0
  %102 = vmatprep.subr.bf16.mxu0 0
  %103 = vmatpush2.bf16.msra.mxu0 0
  %104 = vmatprep.subr.bf16.mxu0 0
  %105 = vmatpush2.bf16.msra.mxu0 0
  %106 = vmatprep.subr.bf16.mxu0 0
  %107 = vmatpush2.bf16.msra.mxu0 0
  %108 = vmatprep.subr.bf16.mxu0 0
  %109 = vmatpush2.bf16.msra.mxu0 0
  %110 = vmatprep.subr.bf16.mxu0 0
  %111 = vmatpush2.bf16.msra.mxu0 0
  %112 = vmatprep.subr.bf16.mxu0 0
  %113 = vmatpush2.bf16.msra.mxu0 0
  %114 = vmatprep.mubr.bf16.mxu0 0
  %115 = vmatmul.mubr.bf16.gmra.mxu0 %v55
  %v116 = vpop.f32.mrf.mxu0
  %v117 = vadd.f32 %v51, %v116
  %v118 = vpop.f32.mrf.mxu0
  %v119 = vpop.f32.mrf.mxu0
  %v120 = vadd.f32 %v51, %v119
  %v121 = vpop.f32.mrf.mxu0
  %122 = vmatprep.mubr.bf16.mxu0 0
  %123 = vmatmul.mubr.bf16.gmra.mxu0 %v58
  %v124 = vpop.f32.mrf.mxu0
  %v125 = vadd.f32 %v51, %v124
  %v126 = vpop.f32.mrf.mxu0
  %v127 = vpop.f32.mrf.mxu0
  %v128 = vadd.f32 %v51, %v127
  %v129 = vpop.f32.mrf.mxu0
  %130 = vmatprep.mubr.bf16.mxu0 0
  %131 = vmatmul.mubr.bf16.gmra.mxu0 %v61
  %v132 = vpop.f32.mrf.mxu0
  %v133 = vadd.f32 %v51, %v132
  %v134 = vpop.f32.mrf.mxu0
  %v135 = vpop.f32.mrf.mxu0
  %v136 = vadd.f32 %v51, %v135
  %v137 = vpop.f32.mrf.mxu0
  %138 = vmatprep.mubr.bf16.mxu0 0
  %139 = vmatmul.mubr.bf16.gmra.mxu0 %v64
  %v140 = vpop.f32.mrf.mxu0
  %v141 = vadd.f32 %v51, %v140
  %v142 = vpop.f32.mrf.mxu0
  %v143 = vpop.f32.mrf.mxu0
  %v144 = vadd.f32 %v51, %v143
  %v145 = vpop.f32.mrf.mxu0
  %146 = vmatprep.mubr.bf16.mxu0 0
  %147 = vmatmul.mubr.bf16.gmra.mxu0 %v67
  %v148 = vpop.f32.mrf.mxu0
  %v149 = vadd.f32 %v51, %v148
  %v150 = vpop.f32.mrf.mxu0
  %v151 = vpop.f32.mrf.mxu0
  %v152 = vadd.f32 %v51, %v151
  %v153 = vpop.f32.mrf.mxu0
  %154 = vmatprep.mubr.bf16.mxu0 0
  %155 = vmatmul.mubr.bf16.gmra.mxu0 %v70
  %v156 = vpop.f32.mrf.mxu0
  %v157 = vadd.f32 %v51, %v156
  %v158 = vpop.f32.mrf.mxu0
  %v159 = vpop.f32.mrf.mxu0
  %v160 = vadd.f32 %v51, %v159
  %v161 = vpop.f32.mrf.mxu0
  %162 = vmatprep.mubr.bf16.mxu0 0
  %163 = vmatmul.mubr.bf16.gmra.mxu0 %v73
  %v164 = vpop.f32.mrf.mxu0
  %v165 = vadd.f32 %v51, %v164
  %v166 = vpop.f32.mrf.mxu0
  %v167 = vpop.f32.mrf.mxu0
  %v168 = vadd.f32 %v51, %v167
  %v169 = vpop.f32.mrf.mxu0
  %170 = vmatprep.mubr.bf16.mxu0 0
  %171 = vmatmul.mubr.bf16.gmra.mxu0 %v76
  %v172 = vpop.f32.mrf.mxu0
  %v173 = vadd.f32 %v51, %v172
  %v174 = vpop.f32.mrf.mxu0
  %v175 = vpop.f32.mrf.mxu0
  %v176 = vadd.f32 %v51, %v175
  %v177 = vpop.f32.mrf.mxu0
  %178 = vdwg.mxu0
  %v179 = vmul.f32 %v117, 0.5
  %v180 = vmul.f32 %v120, 0.5
  %v181 = vmul.f32 %v125, 0.5
  %v182 = vmul.f32 %v128, 0.5
  %v183 = vmul.f32 %v133, 0.5
  %v184 = vmul.f32 %v136, 0.5
  %v185 = vmul.f32 %v141, 0.5
  %v186 = vmul.f32 %v144, 0.5
  %v187 = vmul.f32 %v149, 0.5
  %v188 = vmul.f32 %v152, 0.5
  %v189 = vmul.f32 %v157, 0.5
  %v190 = vmul.f32 %v160, 0.5
  %v191 = vmul.f32 %v165, 0.5
  %v192 = vmul.f32 %v168, 0.5
  %v193 = vmul.f32 %v173, 0.5
  %v194 = vmul.f32 %v176, 0.5
  %v195 = vmul.f32 %v117, 0.044715
  %v196 = vmul.f32 %v120, 0.044715
  %v197 = vmul.f32 %v125, 0.044715
  %v198 = vmul.f32 %v128, 0.044715
  %v199 = vmul.f32 %v133, 0.044715
  %v200 = vmul.f32 %v136, 0.044715
  %v201 = vmul.f32 %v141, 0.044715
  %v202 = vmul.f32 %v144, 0.044715
  %v203 = vmul.f32 %v149, 0.044715
  %v204 = vmul.f32 %v152, 0.044715
  %v205 = vmul.f32 %v157, 0.044715
  %v206 = vmul.f32 %v160, 0.044715
  %v207 = vmul.f32 %v165, 0.044715
  %v208 = vmul.f32 %v168, 0.044715
  %v209 = vmul.f32 %v173, 0.044715
  %v210 = vmul.f32 %v176, 0.044715
  %v211 = vmul.f32 %v195, %v117
  %v212 = vmul.f32 %v196, %v120
  %v213 = vmul.f32 %v197, %v125
  %v214 = vmul.f32 %v198, %v128
  %v215 = vmul.f32 %v199, %v133
  %v216 = vmul.f32 %v200, %v136
  %v217 = vmul.f32 %v201, %v141
  %v218 = vmul.f32 %v202, %v144
  %v219 = vmul.f32 %v203, %v149
  %v220 = vmul.f32 %v204, %v152
  %v221 = vmul.f32 %v205, %v157
  %v222 = vmul.f32 %v206, %v160
  %v223 = vmul.f32 %v207, %v165
  %v224 = vmul.f32 %v208, %v168
  %v225 = vmul.f32 %v209, %v173
  %v226 = vmul.f32 %v210, %v176
  %v227 = vmul.f32 %v211, %v117
  %v228 = vmul.f32 %v212, %v120
  %v229 = vmul.f32 %v213, %v125
  %v230 = vmul.f32 %v214, %v128
  %v231 = vmul.f32 %v215, %v133
  %v232 = vmul.f32 %v216, %v136
  %v233 = vmul.f32 %v217, %v141
  %v234 = vmul.f32 %v218, %v144
  %v235 = vmul.f32 %v219, %v149
  %v236 = vmul.f32 %v220, %v152
  %v237 = vmul.f32 %v221, %v157
  %v238 = vmul.f32 %v222, %v160
  %v239 = vmul.f32 %v223, %v165
  %v240 = vmul.f32 %v224, %v168
  %v241 = vmul.f32 %v225, %v173
  %v242 = vmul.f32 %v226, %v176
  %v243 = vadd.f32 %v117, %v227
  %v244 = vadd.f32 %v120, %v228
  %v245 = vadd.f32 %v125, %v229
  %v246 = vadd.f32 %v128, %v230
  %v247 = vadd.f32 %v133, %v231
  %v248 = vadd.f32 %v136, %v232
  %v249 = vadd.f32 %v141, %v233
  %v250 = vadd.f32 %v144, %v234
  %v251 = vadd.f32 %v149, %v235
  %v252 = vadd.f32 %v152, %v236
  %v253 = vadd.f32 %v157, %v237
  %v254 = vadd.f32 %v160, %v238
  %v255 = vadd.f32 %v165, %v239
  %v256 = vadd.f32 %v168, %v240
  %v257 = vadd.f32 %v173, %v241
  %v258 = vadd.f32 %v176, %v242
  %v259 = vmul.f32 %v243, 0.7978846
  %v260 = vmul.f32 %v244, 0.7978846
  %v261 = vmul.f32 %v245, 0.7978846
  %v262 = vmul.f32 %v246, 0.7978846
  %v263 = vmul.f32 %v247, 0.7978846
  %v264 = vmul.f32 %v248, 0.7978846
  %v265 = vmul.f32 %v249, 0.7978846
  %v266 = vmul.f32 %v250, 0.7978846
  %v267 = vmul.f32 %v251, 0.7978846
  %v268 = vmul.f32 %v252, 0.7978846
  %v269 = vmul.f32 %v253, 0.7978846
  %v270 = vmul.f32 %v254, 0.7978846
  %v271 = vmul.f32 %v255, 0.7978846
  %v272 = vmul.f32 %v256, 0.7978846
  %v273 = vmul.f32 %v257, 0.7978846
  %v274 = vmul.f32 %v258, 0.7978846
  %v275 = vtanh.pop %v259
  %v276 = vtanh.pop %v260
  %v277 = vtanh.pop %v261
  %v278 = vtanh.pop %v262
  %v279 = vtanh.pop %v263
  %v280 = vtanh.pop %v264
  %v281 = vtanh.pop %v265
  %v282 = vtanh.pop %v266
  %v283 = vtanh.pop %v267
  %v284 = vtanh.pop %v268
  %v285 = vtanh.pop %v269
  %v286 = vtanh.pop %v270
  %v287 = vtanh.pop %v271
  %v288 = vtanh.pop %v272
  %v289 = vtanh.pop %v273
  %v290 = vtanh.pop %v274
  %v291 = vadd.f32 %v275, 1.0
  %v292 = vadd.f32 %v276, 1.0
  %v293 = vadd.f32 %v277, 1.0
  %v294 = vadd.f32 %v278, 1.0
  %v295 = vadd.f32 %v279, 1.0
  %v296 = vadd.f32 %v280, 1.0
  %v297 = vadd.f32 %v281, 1.0
  %v298 = vadd.f32 %v282, 1.0
  %v299 = vadd.f32 %v283, 1.0
  %v300 = vadd.f32 %v284, 1.0
  %v301 = vadd.f32 %v285, 1.0
  %v302 = vadd.f32 %v286, 1.0
  %v303 = vadd.f32 %v287, 1.0
  %v304 = vadd.f32 %v288, 1.0
  %v305 = vadd.f32 %v289, 1.0
  %v306 = vadd.f32 %v290, 1.0
  %v307 = vmul.f32 %v179, %v291
  %v308 = vmul.f32 %v180, %v292
  %v309 = vmul.f32 %v181, %v293
  %v310 = vmul.f32 %v182, %v294
  %v311 = vmul.f32 %v183, %v295
  %v312 = vmul.f32 %v184, %v296
  %v313 = vmul.f32 %v185, %v297
  %v314 = vmul.f32 %v186, %v298
  %v315 = vmul.f32 %v187, %v299
  %v316 = vmul.f32 %v188, %v300
  %v317 = vmul.f32 %v189, %v301
  %v318 = vmul.f32 %v190, %v302
  %v319 = vmul.f32 %v191, %v303
  %v320 = vmul.f32 %v192, %v304
  %v321 = vmul.f32 %v193, %v305
  %v322 = vmul.f32 %v194, %v306
  %v323 = vld [vmem:[%s3] sm:$0xf]
  %v324 = vld [vmem:[%s3 + $0x4] sm:$0xf]
  %v325 = vld [vmem:[%s3 + $0x8] sm:$0xf]
  %v326 = vld [vmem:[%s3 + $0xc] sm:$0xf]
  %v327 = vpack.c.bf16 %v308, %v307
  %v328 = vpack.c.bf16 %v310, %v309
  %v329 = vpack.c.bf16 %v312, %v311
  %v330 = vpack.c.bf16 %v314, %v313
  %v331 = vpack.c.bf16 %v316, %v315
  %v332 = vpack.c.bf16 %v318, %v317
  %v333 = vpack.c.bf16 %v320, %v319
  %v334 = vpack.c.bf16 %v322, %v321
  %v335 = vld [vmem:[%s4] sm:$0x1]
  %v337 = vlaneseq
  %v338 = vshrl.u32 %v337, 7
  %v339 = vsub.s32 0, %v338
  %v340 = vrot.slane %v335, %v339
  %v346 = vunpack.c.l.b16 %v323
  %v347 = vunpack.c.l.b16 %v324
  %v348 = vunpack.c.l.b16 %v325
  %v349 = vunpack.c.l.b16 %v326
  %v350 = vpack.c.b16 %v347, %v346
  %v351 = vpack.c.b16 %v349, %v348
  %vm354 = vcmask 261120
  %v356 = vsel %vm354, %v327, 0
  %v359 = vsel %vm354, %v328, 0
  %v362 = vsel %vm354, %v329, 0
  %v365 = vsel %vm354, %v330, 0
  %v368 = vsel %vm354, %v331, 0
  %v371 = vsel %vm354, %v332, 0
  %v374 = vsel %vm354, %v333, 0
  %v377 = vsel %vm354, %v334, 0
  %379 = vmatprep.subr.bf16.mxu0 0
  %380 = vmatpush1.bf16.msra.mxu0 0
  %381 = vmatprep.subr.bf16.mxu0 0
  %382 = vmatpush1.bf16.msra.mxu0 0
  %383 = vmatprep.subr.bf16.mxu0 0
  %384 = vmatpush1.bf16.msra.mxu0 0
  %385 = vmatprep.subr.bf16.mxu0 0
  %386 = vmatpush1.bf16.msra.mxu0 0
  %387 = vmatprep.subr.bf16.mxu0 0
  %388 = vmatpush1.bf16.msra.mxu0 0
  %389 = vmatprep.subr.bf16.mxu0 0
  %390 = vmatpush1.bf16.msra.mxu0 0
  %391 = vmatprep.subr.bf16.mxu0 0
  %392 = vmatpush1.bf16.msra.mxu0 %v351
  %393 = vmatprep.subr.bf16.mxu0 0
  %394 = vmatpush1.bf16.msra.mxu0 %v350
  %395 = vmatprep.subr.bf16.mxu0 0
  %396 = vmatpush2.bf16.msra.mxu0 0
  %397 = vmatprep.subr.bf16.mxu0 0
  %398 = vmatpush2.bf16.msra.mxu0 0
  %399 = vmatprep.subr.bf16.mxu0 0
  %400 = vmatpush2.bf16.msra.mxu0 0
  %401 = vmatprep.subr.bf16.mxu0 0
  %402 = vmatpush2.bf16.msra.mxu0 0
  %403 = vmatprep.subr.bf16.mxu0 0
  %404 = vmatpush2.bf16.msra.mxu0 0
  %405 = vmatprep.subr.bf16.mxu0 0
  %406 = vmatpush2.bf16.msra.mxu0 0
  %407 = vmatprep.subr.bf16.mxu0 0
  %408 = vmatpush2.bf16.msra.mxu0 0
  %409 = vmatprep.subr.bf16.mxu0 0
  %410 = vmatpush2.bf16.msra.mxu0 0
  %411 = vmatprep.mubr.bf16.mxu0 0
  %412 = vmatmul.mubr.bf16.gmra.mxu0 %v356
  %v413 = vpop.f32.mrf.mxu0
  %v414 = vadd.f32 %v340, %v413
  %v415 = vpop.f32.mrf.mxu0
  %v416 = vpop.f32.mrf.mxu0
  %v417 = vadd.f32 %v340, %v416
  %v418 = vpop.f32.mrf.mxu0
  %419 = vmatprep.mubr.bf16.mxu0 0
  %420 = vmatmul.mubr.bf16.gmra.mxu0 %v359
  %v421 = vpop.f32.mrf.mxu0
  %v422 = vadd.f32 %v340, %v421
  %v423 = vpop.f32.mrf.mxu0
  %v424 = vpop.f32.mrf.mxu0
  %v425 = vadd.f32 %v340, %v424
  %v426 = vpop.f32.mrf.mxu0
  %427 = vmatprep.mubr.bf16.mxu0 0
  %428 = vmatmul.mubr.bf16.gmra.mxu0 %v362
  %v429 = vpop.f32.mrf.mxu0
  %v430 = vadd.f32 %v340, %v429
  %v431 = vpop.f32.mrf.mxu0
  %v432 = vpop.f32.mrf.mxu0
  %v433 = vadd.f32 %v340, %v432
  %v434 = vpop.f32.mrf.mxu0
  %435 = vmatprep.mubr.bf16.mxu0 0
  %436 = vmatmul.mubr.bf16.gmra.mxu0 %v365
  %v437 = vpop.f32.mrf.mxu0
  %v438 = vadd.f32 %v340, %v437
  %v439 = vpop.f32.mrf.mxu0
  %v440 = vpop.f32.mrf.mxu0
  %v441 = vadd.f32 %v340, %v440
  %v442 = vpop.f32.mrf.mxu0
  %443 = vmatprep.mubr.bf16.mxu0 0
  %444 = vmatmul.mubr.bf16.gmra.mxu0 %v368
  %v445 = vpop.f32.mrf.mxu0
  %v446 = vadd.f32 %v340, %v445
  %v447 = vpop.f32.mrf.mxu0
  %v448 = vpop.f32.mrf.mxu0
  %v449 = vadd.f32 %v340, %v448
  %v450 = vpop.f32.mrf.mxu0
  %451 = vmatprep.mubr.bf16.mxu0 0
  %452 = vmatmul.mubr.bf16.gmra.mxu0 %v371
  %v453 = vpop.f32.mrf.mxu0
  %v454 = vadd.f32 %v340, %v453
  %v455 = vpop.f32.mrf.mxu0
  %v456 = vpop.f32.mrf.mxu0
  %v457 = vadd.f32 %v340, %v456
  %v458 = vpop.f32.mrf.mxu0
  %459 = vmatprep.mubr.bf16.mxu0 0
  %460 = vmatmul.mubr.bf16.gmra.mxu0 %v374
  %v461 = vpop.f32.mrf.mxu0
  %v462 = vadd.f32 %v340, %v461
  %v463 = vpop.f32.mrf.mxu0
  %v464 = vpop.f32.mrf.mxu0
  %v465 = vadd.f32 %v340, %v464
  %v466 = vpop.f32.mrf.mxu0
  %467 = vmatprep.mubr.bf16.mxu0 0
  %468 = vmatmul.mubr.bf16.gmra.mxu0 %v377
  %v469 = vpop.f32.mrf.mxu0
  %v470 = vadd.f32 %v340, %v469
  %v471 = vpop.f32.mrf.mxu0
  %v472 = vpop.f32.mrf.mxu0
  %v473 = vadd.f32 %v340, %v472
  %v474 = vpop.f32.mrf.mxu0
  %475 = vdwg.mxu0
  %476 = vst.msk [vmem:[%s5] sm:$0xff] %vm53, %v414
  %477 = vst.msk [vmem:[%s5 + $0x8] sm:$0xff] %vm53, %v417
  %478 = vst.msk [vmem:[%s5 + $0x10] sm:$0xff] %vm53, %v422
  %479 = vst.msk [vmem:[%s5 + $0x18] sm:$0xff] %vm53, %v425
  %480 = vst.msk [vmem:[%s5 + $0x20] sm:$0xff] %vm53, %v430
  %481 = vst.msk [vmem:[%s5 + $0x28] sm:$0xff] %vm53, %v433
  %482 = vst.msk [vmem:[%s5 + $0x30] sm:$0xff] %vm53, %v438
  %483 = vst.msk [vmem:[%s5 + $0x38] sm:$0xff] %vm53, %v441
  %484 = vst.msk [vmem:[%s5 + $0x40] sm:$0xff] %vm53, %v446
  %485 = vst.msk [vmem:[%s5 + $0x48] sm:$0xff] %vm53, %v449
  %486 = vst.msk [vmem:[%s5 + $0x50] sm:$0xff] %vm53, %v454
  %487 = vst.msk [vmem:[%s5 + $0x58] sm:$0xff] %vm53, %v457
  %488 = vst.msk [vmem:[%s5 + $0x60] sm:$0xff] %vm53, %v462
  %489 = vst.msk [vmem:[%s5 + $0x68] sm:$0xff] %vm53, %v465
  %490 = vst.msk [vmem:[%s5 + $0x70] sm:$0xff] %vm53, %v470
  %491 = vst.msk [vmem:[%s5 + $0x78] sm:$0xff] %vm53, %v473
  // Predicated region
  $region22: #{part_forward.2} parent=0 // pred_check
    _
  $region23: #{part_forward.2} parent=0 // pred_check_branch
    %493 = sbr.rel (0) target = $region25
  $region24: #{part_forward.2} parent=0 // pred_region
    _
  $region25: #{part_forward.2} parent=0 // pred_fallthru
    _
  // Predicated region
  $region26: #{part_forward.2} parent=0 // pred_check
    _
  $region27: #{part_forward.2} parent=0 // pred_check_branch
    %495 = sbr.rel (0) target = $region29
  $region28: #{part_forward.2} parent=0 // pred_region
    _
  $region29: #{part_forward.2} parent=0 // pred_fallthru
    _

// kernel: part_forward.3
$region0: #{part_forward.3}
  #allocation0 [shape = 'u32[]', space=smem, size = 0x4, offset = 0x4, fixed_abs, tag = 'smem constant byte address 0x4 - core index']
  #allocation1 [shape = 'u32[144,128]{1,0:T(1,128)}', space=vmem, size = 0x12000, scoped, tag = 'internal scratch']
  #allocation2 [shape = 'f32[9,32]{1,0:T(8,128)}', space=vmem, size = 0x2000, scoped, tag = 'scratch operand']
  #allocation3 [shape = 'f32[1,9]{1,0:T(1,128)}', space=vmem, size = 0x200, scoped, tag = 'scratch operand']
  #allocation4 [shape = 'f32[8,32]{1,0:T(8,128)}', space=vmem, size = 0x1000, scoped, tag = 'scratch operand']
  %s0 = inlined_call_operand.smem [shape: u32[53], index: -1, kind: input, shape index: {}]
  %s1 = sld [smem:[%s0]]
  %s2 = scalar_lea.smem %s0, 1
  %s3 = sld [smem:[%s2]]
  %s4 = scalar_lea.smem %s0, 2
  %s5 = sld [smem:[%s4]]
  %s6 = scalar_lea.smem %s0, 3
  %s7 = sld [smem:[%s6]]
  %s8 = scalar_lea.smem %s0, 4
  %s9 = sld [smem:[%s8]]
  %s10 = scalar_lea.smem %s0, 5
  %s11 = sld [smem:[%s10]]
  %s12 = scalar_lea.smem %s0, 6
  %s13 = sld [smem:[%s12]]
  %s14 = scalar_lea.smem %s0, 7
  %s15 = sld [smem:[%s14]]
  %s16 = scalar_lea.smem %s0, 8
  %s17 = sld [smem:[%s16]]
  %s18 = scalar_lea.smem %s0, 9
  %s19 = sld [smem:[%s18]]
  %s20 = scalar_lea.smem %s0, 10
  %s21 = sld [smem:[%s20]]
  %s22 = scalar_lea.smem %s0, 11
  %s23 = sld [smem:[%s22]]
  %s24 = scalar_lea.smem %s0, 12
  %s25 = sld [smem:[%s24]]
  %s26 = scalar_lea.smem %s0, 13
  %s27 = sld [smem:[%s26]]
  %s28 = scalar_lea.smem %s0, 14
  %s29 = sld [smem:[%s28]]
  %s30 = scalar_lea.smem %s0, 15
  %s31 = sld [smem:[%s30]]
  %s32 = scalar_lea.smem %s0, 16
  %s33 = sld [smem:[%s32]]
  %s34 = scalar_lea.smem %s0, 17
  %s35 = sld [smem:[%s34]]
  %s36 = scalar_lea.smem %s0, 18
  %s37 = sld [smem:[%s36]]
  %s38 = scalar_lea.smem %s0, 19
  %s39 = sld [smem:[%s38]]
  %s40 = scalar_lea.smem %s0, 20
  %s41 = sld [smem:[%s40]]
  %s42 = scalar_lea.smem %s0, 21
  %s43 = sld [smem:[%s42]]
  %s44 = scalar_lea.smem %s0, 22
  %s45 = sld [smem:[%s44]]
  %s46 = scalar_lea.smem %s0, 23
  %s47 = sld [smem:[%s46]]
  %s48 = scalar_lea.smem %s0, 24
  %s49 = sld [smem:[%s48]]
  %s50 = scalar_lea.smem %s0, 25
  %s51 = sld [smem:[%s50]]
  %s52 = scalar_lea.smem %s0, 26
  %s53 = sld [smem:[%s52]]
  %s54 = scalar_lea.smem %s0, 27
  %s55 = sld [smem:[%s54]]
  %s56 = scalar_lea.smem %s0, 28
  %s57 = sld [smem:[%s56]]
  %s58 = scalar_lea.smem %s0, 29
  %s59 = sld [smem:[%s58]]
  %s60 = scalar_lea.smem %s0, 30
  %s61 = sld [smem:[%s60]]
  %s62 = scalar_lea.smem %s0, 31
  %s63 = sld [smem:[%s62]]
  %s64 = scalar_lea.smem %s0, 32
  %s65 = sld [smem:[%s64]]
  %s66 = scalar_lea.smem %s0, 33
  %s67 = sld [smem:[%s66]]
  %s68 = scalar_lea.smem %s0, 34
  %s69 = sld [smem:[%s68]]
  %s70 = scalar_lea.smem %s0, 35
  %s71 = sld [smem:[%s70]]
  %s72 = scalar_lea.smem %s0, 36
  %s73 = sld [smem:[%s72]]
  %s74 = scalar_lea.smem %s0, 37
  %s75 = sld [smem:[%s74]]
  %s76 = scalar_lea.smem %s0, 38
  %s77 = sld [smem:[%s76]]
  %s78 = scalar_lea.smem %s0, 39
  %s79 = sld [smem:[%s78]]
  %s80 = scalar_lea.smem %s0, 40
  %s81 = sld [smem:[%s80]]
  %s82 = scalar_lea.smem %s0, 41
  %s83 = sld [smem:[%s82]]
  %s84 = scalar_lea.smem %s0, 42
  %s85 = sld [smem:[%s84]]
  %s86 = scalar_lea.smem %s0, 43
  %s87 = sld [smem:[%s86]]
  %s88 = scalar_lea.smem %s0, 44
  %s89 = sld [smem:[%s88]]
  %s90 = scalar_lea.smem %s0, 45
  %s91 = sld [smem:[%s90]]
  %s92 = scalar_lea.smem %s0, 46
  %s93 = sld [smem:[%s92]]
  %s94 = scalar_lea.smem %s0, 47
  %s95 = sld [smem:[%s94]]
  %s96 = scalar_lea.smem %s0, 48
  %s97 = sld [smem:[%s96]]
  %s98 = scalar_lea.smem %s0, 49
  %s99 = sld [smem:[%s98]]
  %s100 = scalar_lea.smem %s0, 50
  %s101 = sld [smem:[%s100]]
  %s102 = scalar_lea.smem %s0, 51
  %s103 = sld [smem:[%s102]]
  %s104 = scalar_lea.smem %s0, 52
  %s105 = sld [smem:[%s104]]
  %106 = xla_tuple %s103, %s105
  %s107 = sld [smem:[#allocation0]]
  $region245: #{part_forward.3} parent=0
    _
  %s109 = ssub.s32 1, %s107
  %s110 = scalar_select 0, %s109, %s107
  $region1: #{part_forward.3} parent=0
    #allocation5 [shape = 'u8[1024]{0}', space=vmem, size = 0x400, scoped, tag = 'output window, operand 0']
    #allocation6 [shape = 's32[2]{0}', space=sflag, size = 0x8, scoped, tag = 'scoped memory for part_forward.3']
    #allocation7 [shape = 'u8[32768]{0}', space=vmem, size = 0x8000, scoped, tag = 'output window, operand 1']
    #allocation8 [shape = 's32[2]{0}', space=sflag, size = 0x8, scoped, tag = 'scoped memory for part_forward.3']
    %111 = vsyncpa [#allocation6], 0
    %s112 = scalar_lea.sflag [#allocation6], 1
    %113 = vsyncpa %s112, 0
    %114 = vsyncpa [#allocation8], 0
    %s115 = scalar_lea.sflag [#allocation8], 1
    %116 = vsyncpa %s115, 0
    loop: start=0, step=1, limit=4
    $region2: #{part_forward.3} parent=1 // loop_pre_header
      _
    $region3: #{part_forward.3} parent=1 // loop_header
      %s118 = sphi 0, %s122
      %p119 = scmp.ge.s32.totalorder %s118, 4
      %s128 = sphi 0, %s130
      %s131 = sphi 0, %s128
      %s132 = sphi 0, %s131
      %s148 = sphi 0, %s132
      %s154 = sphi 0, %s156
      %s157 = sphi 0, %s154
      %s158 = sphi 0, %s157
      %s174 = sphi 0, %s158
      %s180 = sphi 0, %s182
      %s183 = sphi 0, %s180
      %s184 = sphi 0, %s183
      %s200 = sphi 0, %s184
      %s206 = sphi 0, %s208
      %s209 = sphi 0, %s206
      %s210 = sphi 0, %s209
      %s226 = sphi 0, %s210
      %s230 = sphi 0, %s230
      %s232 = sphi 0, %s230
      %s233 = sphi 0, %s232
      %s247 = sphi 0, %s233
      %s251 = sphi 0, %s251
      %s253 = sphi 0, %s251
      %s254 = sphi 0, %s253
      %s268 = sphi 0, %s254
      %s272 = sphi 0, %s272
      %s274 = sphi 0, %s272
      %s275 = sphi 0, %s274
      %s289 = sphi 0, %s275
      %s293 = sphi 0, %s293
      %s295 = sphi 0, %s293
      %s296 = sphi 0, %s295
      %s310 = sphi 0, %s296
      %s314 = sphi 0, %s314
      %s316 = sphi 0, %s314
      %s317 = sphi 0, %s316
      %s331 = sphi 0, %s317
      %s335 = sphi 0, %s335
      %s337 = sphi 0, %s335
      %s338 = sphi 0, %s337
      %s352 = sphi 0, %s338
      %s356 = sphi 0, %s356
      %s358 = sphi 0, %s356
      %s359 = sphi 0, %s358
      %s373 = sphi 0, %s359
      %s377 = sphi 0, %s377
      %s379 = sphi 0, %s377
      %s380 = sphi 0, %s379
      %s394 = sphi 0, %s380
      %s398 = sphi 0, %s398
      %s400 = sphi 0, %s398
      %s401 = sphi 0, %s400
      %s415 = sphi 0, %s401
      %s419 = sphi 0, %s419
      %s421 = sphi 0, %s419
      %s422 = sphi 0, %s421
      %s436 = sphi 0, %s422
      %s440 = sphi 0, %s440
      %s442 = sphi 0, %s440
      %s443 = sphi 0, %s442
      %s457 = sphi 0, %s443
      %s461 = sphi 0, %s461
      %s463 = sphi 0, %s461
      %s464 = sphi 0, %s463
      %s478 = sphi 0, %s464
      %s482 = sphi 0, %s482
      %s484 = sphi 0, %s482
      %s485 = sphi 0, %s484
      %s499 = sphi 0, %s485
      %s503 = sphi 0, %s503
      %s505 = sphi 0, %s503
      %s506 = sphi 0, %s505
      %s520 = sphi 0, %s506
      %s524 = sphi 0, %s524
      %s526 = sphi 0, %s524
      %s527 = sphi 0, %s526
      %s541 = sphi 0, %s527
      %s545 = sphi 0, %s545
      %s547 = sphi 0, %s545
      %s548 = sphi 0, %s547
      %s562 = sphi 0, %s548
      %s566 = sphi 0, %s566
      %s568 = sphi 0, %s566
      %s569 = sphi 0, %s568
      %s583 = sphi 0, %s569
      %s587 = sphi 0, %s587
      %s589 = sphi 0, %s587
      %s590 = sphi 0, %s589
      %s604 = sphi 0, %s590
      %s608 = sphi 0, %s608
      %s610 = sphi 0, %s608
      %s611 = sphi 0, %s610
      %s625 = sphi 0, %s611
      %s629 = sphi 0, %s629
      %s631 = sphi 0, %s629
      %s632 = sphi 0, %s631
      %s646 = sphi 0, %s632
      %s650 = sphi 0, %s650
      %s652 = sphi 0, %s650
      %s653 = sphi 0, %s652
      %s667 = sphi 0, %s653
      %s671 = sphi 0, %s671
      %s673 = sphi 0, %s671
      %s674 = sphi 0, %s673
      %s688 = sphi 0, %s674
      %s692 = sphi 0, %s692
      %s694 = sphi 0, %s692
      %s695 = sphi 0, %s694
      %s709 = sphi 0, %s695
      %s713 = sphi 0, %s713
      %s715 = sphi 0, %s713
      %s716 = sphi 0, %s715
      %s730 = sphi 0, %s716
      %s734 = sphi 0, %s734
      %s736 = sphi 0, %s734
      %s737 = sphi 0, %s736
      %s751 = sphi 0, %s737
      %s755 = sphi 0, %s755
      %s757 = sphi 0, %s755
      %s758 = sphi 0, %s757
      %s772 = sphi 0, %s758
      %s776 = sphi 0, %s776
      %s778 = sphi 0, %s776
      %s779 = sphi 0, %s778
      %s793 = sphi 0, %s779
      %s797 = sphi 0, %s797
      %s799 = sphi 0, %s797
      %s800 = sphi 0, %s799
      %s814 = sphi 0, %s800
      %s818 = sphi 0, %s818
      %s820 = sphi 0, %s818
      %s821 = sphi 0, %s820
      %s835 = sphi 0, %s821
      %s839 = sphi 0, %s839
      %s841 = sphi 0, %s839
      %s842 = sphi 0, %s841
      %s856 = sphi 0, %s842
      %s860 = sphi 0, %s860
      %s862 = sphi 0, %s860
      %s863 = sphi 0, %s862
      %s877 = sphi 0, %s863
      %s881 = sphi 0, %s881
      %s883 = sphi 0, %s881
      %s884 = sphi 0, %s883
      %s898 = sphi 0, %s884
      %s902 = sphi 0, %s902
      %s904 = sphi 0, %s902
      %s905 = sphi 0, %s904
      %s919 = sphi 0, %s905
      %s923 = sphi 0, %s923
      %s925 = sphi 0, %s923
      %s926 = sphi 0, %s925
      %s940 = sphi 0, %s926
      %s944 = sphi 0, %s944
      %s946 = sphi 0, %s944
      %s947 = sphi 0, %s946
      %s961 = sphi 0, %s947
      %s965 = sphi 0, %s965
      %s967 = sphi 0, %s965
      %s968 = sphi 0, %s967
      %s982 = sphi 0, %s968
      %s986 = sphi 0, %s986
      %s988 = sphi 0, %s986
      %s989 = sphi 0, %s988
      %s1003 = sphi 0, %s989
      %s1007 = sphi 0, %s1007
      %s1009 = sphi 0, %s1007
      %s1010 = sphi 0, %s1009
      %s1024 = sphi 0, %s1010
      %s1028 = sphi 0, %s1028
      %s1030 = sphi 0, %s1028
      %s1031 = sphi 0, %s1030
      %s1045 = sphi 0, %s1031
      %s1049 = sphi 0, %s1049
      %s1051 = sphi 0, %s1049
      %s1052 = sphi 0, %s1051
      %s1066 = sphi 0, %s1052
      %s1070 = sphi 0, %s1070
      %s1072 = sphi 0, %s1070
      %s1073 = sphi 0, %s1072
      %s1087 = sphi 0, %s1073
      %s1091 = sphi 0, %s1091
      %s1093 = sphi 0, %s1091
      %s1094 = sphi 0, %s1093
      %s1108 = sphi 0, %s1094
      %s1112 = sphi 0, %s1112
      %s1114 = sphi 0, %s1112
      %s1115 = sphi 0, %s1114
      %s1129 = sphi 0, %s1115
      %s1133 = sphi 0, %s1133
      %s1135 = sphi 0, %s1133
      %s1136 = sphi 0, %s1135
      %s1150 = sphi 0, %s1136
      %s1154 = sphi 0, %s1154
      %s1156 = sphi 0, %s1154
      %s1157 = sphi 0, %s1156
      %s1171 = sphi 0, %s1157
      %s1175 = sphi 0, %s1175
      %s1177 = sphi 0, %s1175
      %s1178 = sphi 0, %s1177
      %s1192 = sphi 0, %s1178
      %s1196 = sphi 0, %s1196
      %s1198 = sphi 0, %s1196
      %s1199 = sphi 0, %s1198
      %s1213 = sphi 0, %s1199
      %s1219 = sphi 0, %s1221
      %s1222 = sphi 0, %s1219
      %s1223 = sphi 0, %s1222
      %s1239 = sphi 0, %s1223
      %s1245 = sphi 0, %s1247
      %s1248 = sphi 0, %s1245
      %s1249 = sphi 0, %s1248
      %s1265 = sphi 0, %s1249
    $region4: #{part_forward.3} parent=1 // loop_header_branch
      %121 = sbr.rel (%p119) target = $region8
    $region5: #{part_forward.3} parent=1 // loop_body
      %s123 = ssub.s32 %s118, 1
      %s124 = ssub.s32 %s118, 2
      %s125 = sadd.s32 %s118, 1
      %s126 = ssub.s32 %s118, %s125
      %p127 = scmp.eq.s32.totalorder %s126, 0
      %s129 = sadd.s32 %s128, 1
      %s130 = scalar_select %p127, %s128, %s129
      %p133 = pneg %p127
      %p134 = scmp.eq.s32.totalorder %s118, 1
      %p135 = por %p133, %p134
      %p136 = scmp.ne.s32.totalorder %s128, %s131
      %p137 = scmp.eq.s32.totalorder %s118, 0
      %p138 = por %p136, %p137
      %p139 = scmp.ne.s32.totalorder %s128, %s131
      %p140 = scmp.eq.s32.totalorder %s123, 1
      %p141 = por %p139, %p140
      %p142 = scmp.ne.s32.totalorder %s131, %s132
      %p143 = scmp.eq.s32.totalorder %s123, 0
      %p144 = por %p142, %p143
      %p145 = scmp.ne.s32.totalorder %s131, %s132
      %p146 = scmp.eq.s32.totalorder %s124, 1
      %p147 = por %p145, %p146
      %p149 = scmp.ne.s32.totalorder %s132, %s148
      %p150 = scmp.eq.s32.totalorder %s124, 0
      %p151 = por %p149, %p150
      %s152 = ssub.s32 %s118, %s125
      %p153 = scmp.eq.s32.totalorder %s152, 0
      %s155 = sadd.s32 %s154, 1
      %s156 = scalar_select %p153, %s154, %s155
      %p159 = pneg %p153
      %p160 = scmp.eq.s32.totalorder %s118, 1
      %p161 = por %p159, %p160
      %p162 = scmp.ne.s32.totalorder %s154, %s157
      %p163 = scmp.eq.s32.totalorder %s118, 0
      %p164 = por %p162, %p163
      %p165 = scmp.ne.s32.totalorder %s154, %s157
      %p166 = scmp.eq.s32.totalorder %s123, 1
      %p167 = por %p165, %p166
      %p168 = scmp.ne.s32.totalorder %s157, %s158
      %p169 = scmp.eq.s32.totalorder %s123, 0
      %p170 = por %p168, %p169
      %p171 = scmp.ne.s32.totalorder %s157, %s158
      %p172 = scmp.eq.s32.totalorder %s124, 1
      %p173 = por %p171, %p172
      %p175 = scmp.ne.s32.totalorder %s158, %s174
      %p176 = scmp.eq.s32.totalorder %s124, 0
      %p177 = por %p175, %p176
      %s178 = ssub.s32 %s118, %s125
      %p179 = scmp.eq.s32.totalorder %s178, 0
      %s181 = sadd.s32 %s180, 1
      %s182 = scalar_select %p179, %s180, %s181
      %p185 = pneg %p179
      %p186 = scmp.eq.s32.totalorder %s118, 1
      %p187 = por %p185, %p186
      %p188 = scmp.ne.s32.totalorder %s180, %s183
      %p189 = scmp.eq.s32.totalorder %s118, 0
      %p190 = por %p188, %p189
      %p191 = scmp.ne.s32.totalorder %s180, %s183
      %p192 = scmp.eq.s32.totalorder %s123, 1
      %p193 = por %p191, %p192
      %p194 = scmp.ne.s32.totalorder %s183, %s184
      %p195 = scmp.eq.s32.totalorder %s123, 0
      %p196 = por %p194, %p195
      %p197 = scmp.ne.s32.totalorder %s183, %s184
      %p198 = scmp.eq.s32.totalorder %s124, 1
      %p199 = por %p197, %p198
      %p201 = scmp.ne.s32.totalorder %s184, %s200
      %p202 = scmp.eq.s32.totalorder %s124, 0
      %p203 = por %p201, %p202
      %s204 = ssub.s32 %s118, %s125
      %p205 = scmp.eq.s32.totalorder %s204, 0
      %s207 = sadd.s32 %s206, 1
      %s208 = scalar_select %p205, %s206, %s207
      %p211 = pneg %p205
      %p212 = scmp.eq.s32.totalorder %s118, 1
      %p213 = por %p211, %p212
      %p214 = scmp.ne.s32.totalorder %s206, %s209
      %p215 = scmp.eq.s32.totalorder %s118, 0
      %p216 = por %p214, %p215
      %p217 = scmp.ne.s32.totalorder %s206, %s209
      %p218 = scmp.eq.s32.totalorder %s123, 1
      %p219 = por %p217, %p218
      %p220 = scmp.ne.s32.totalorder %s209, %s210
      %p221 = scmp.eq.s32.totalorder %s123, 0
      %p222 = por %p220, %p221
      %p223 = scmp.ne.s32.totalorder %s209, %s210
      %p224 = scmp.eq.s32.totalorder %s124, 1
      %p225 = por %p223, %p224
      %p227 = scmp.ne.s32.totalorder %s210, %s226
      %p228 = scmp.eq.s32.totalorder %s124, 0
      %p229 = por %p227, %p228
      %s231 = sadd.s32 %s230, 1
      %p234 = scmp.eq.s32.totalorder %s118, 1
      %p235 = scmp.ne.s32.totalorder %s230, %s232
      %p236 = scmp.eq.s32.totalorder %s118, 0
      %p237 = por %p235, %p236
      %p238 = scmp.ne.s32.totalorder %s230, %s232
      %p239 = scmp.eq.s32.totalorder %s123, 1
      %p240 = por %p238, %p239
      %p241 = scmp.ne.s32.totalorder %s232, %s233
      %p242 = scmp.eq.s32.totalorder %s123, 0
      %p243 = por %p241, %p242
      %p244 = scmp.ne.s32.totalorder %s232, %s233
      %p245 = scmp.eq.s32.totalorder %s124, 1
      %p246 = por %p244, %p245
      %p248 = scmp.ne.s32.totalorder %s233, %s247
      %p249 = scmp.eq.s32.totalorder %s124, 0
      %p250 = por %p248, %p249
      %s252 = sadd.s32 %s251, 1
      %p255 = scmp.eq.s32.totalorder %s118, 1
      %p256 = scmp.ne.s32.totalorder %s251, %s253
      %p257 = scmp.eq.s32.totalorder %s118, 0
      %p258 = por %p256, %p257
      %p259 = scmp.ne.s32.totalorder %s251, %s253
      %p260 = scmp.eq.s32.totalorder %s123, 1
      %p261 = por %p259, %p260
      %p262 = scmp.ne.s32.totalorder %s253, %s254
      %p263 = scmp.eq.s32.totalorder %s123, 0
      %p264 = por %p262, %p263
      %p265 = scmp.ne.s32.totalorder %s253, %s254
      %p266 = scmp.eq.s32.totalorder %s124, 1
      %p267 = por %p265, %p266
      %p269 = scmp.ne.s32.totalorder %s254, %s268
      %p270 = scmp.eq.s32.totalorder %s124, 0
      %p271 = por %p269, %p270
      %s273 = sadd.s32 %s272, 1
      %p276 = scmp.eq.s32.totalorder %s118, 1
      %p277 = scmp.ne.s32.totalorder %s272, %s274
      %p278 = scmp.eq.s32.totalorder %s118, 0
      %p279 = por %p277, %p278
      %p280 = scmp.ne.s32.totalorder %s272, %s274
      %p281 = scmp.eq.s32.totalorder %s123, 1
      %p282 = por %p280, %p281
      %p283 = scmp.ne.s32.totalorder %s274, %s275
      %p284 = scmp.eq.s32.totalorder %s123, 0
      %p285 = por %p283, %p284
      %p286 = scmp.ne.s32.totalorder %s274, %s275
      %p287 = scmp.eq.s32.totalorder %s124, 1
      %p288 = por %p286, %p287
      %p290 = scmp.ne.s32.totalorder %s275, %s289
      %p291 = scmp.eq.s32.totalorder %s124, 0
      %p292 = por %p290, %p291
      %s294 = sadd.s32 %s293, 1
      %p297 = scmp.eq.s32.totalorder %s118, 1
      %p298 = scmp.ne.s32.totalorder %s293, %s295
      %p299 = scmp.eq.s32.totalorder %s118, 0
      %p300 = por %p298, %p299
      %p301 = scmp.ne.s32.totalorder %s293, %s295
      %p302 = scmp.eq.s32.totalorder %s123, 1
      %p303 = por %p301, %p302
      %p304 = scmp.ne.s32.totalorder %s295, %s296
      %p305 = scmp.eq.s32.totalorder %s123, 0
      %p306 = por %p304, %p305
      %p307 = scmp.ne.s32.totalorder %s295, %s296
      %p308 = scmp.eq.s32.totalorder %s124, 1
      %p309 = por %p307, %p308
      %p311 = scmp.ne.s32.totalorder %s296, %s310
      %p312 = scmp.eq.s32.totalorder %s124, 0
      %p313 = por %p311, %p312
      %s315 = sadd.s32 %s314, 1
      %p318 = scmp.eq.s32.totalorder %s118, 1
      %p319 = scmp.ne.s32.totalorder %s314, %s316
      %p320 = scmp.eq.s32.totalorder %s118, 0
      %p321 = por %p319, %p320
      %p322 = scmp.ne.s32.totalorder %s314, %s316
      %p323 = scmp.eq.s32.totalorder %s123, 1
      %p324 = por %p322, %p323
      %p325 = scmp.ne.s32.totalorder %s316, %s317
      %p326 = scmp.eq.s32.totalorder %s123, 0
      %p327 = por %p325, %p326
      %p328 = scmp.ne.s32.totalorder %s316, %s317
      %p329 = scmp.eq.s32.totalorder %s124, 1
      %p330 = por %p328, %p329
      %p332 = scmp.ne.s32.totalorder %s317, %s331
      %p333 = scmp.eq.s32.totalorder %s124, 0
      %p334 = por %p332, %p333
      %s336 = sadd.s32 %s335, 1
      %p339 = scmp.eq.s32.totalorder %s118, 1
      %p340 = scmp.ne.s32.totalorder %s335, %s337
      %p341 = scmp.eq.s32.totalorder %s118, 0
      %p342 = por %p340, %p341
      %p343 = scmp.ne.s32.totalorder %s335, %s337
      %p344 = scmp.eq.s32.totalorder %s123, 1
      %p345 = por %p343, %p344
      %p346 = scmp.ne.s32.totalorder %s337, %s338
      %p347 = scmp.eq.s32.totalorder %s123, 0
      %p348 = por %p346, %p347
      %p349 = scmp.ne.s32.totalorder %s337, %s338
      %p350 = scmp.eq.s32.totalorder %s124, 1
      %p351 = por %p349, %p350
      %p353 = scmp.ne.s32.totalorder %s338, %s352
      %p354 = scmp.eq.s32.totalorder %s124, 0
      %p355 = por %p353, %p354
      %s357 = sadd.s32 %s356, 1
      %p360 = scmp.eq.s32.totalorder %s118, 1
      %p361 = scmp.ne.s32.totalorder %s356, %s358
      %p362 = scmp.eq.s32.totalorder %s118, 0
      %p363 = por %p361, %p362
      %p364 = scmp.ne.s32.totalorder %s356, %s358
      %p365 = scmp.eq.s32.totalorder %s123, 1
      %p366 = por %p364, %p365
      %p367 = scmp.ne.s32.totalorder %s358, %s359
      %p368 = scmp.eq.s32.totalorder %s123, 0
      %p369 = por %p367, %p368
      %p370 = scmp.ne.s32.totalorder %s358, %s359
      %p371 = scmp.eq.s32.totalorder %s124, 1
      %p372 = por %p370, %p371
      %p374 = scmp.ne.s32.totalorder %s359, %s373
      %p375 = scmp.eq.s32.totalorder %s124, 0
      %p376 = por %p374, %p375
      %s378 = sadd.s32 %s377, 1
      %p381 = scmp.eq.s32.totalorder %s118, 1
      %p382 = scmp.ne.s32.totalorder %s377, %s379
      %p383 = scmp.eq.s32.totalorder %s118, 0
      %p384 = por %p382, %p383
      %p385 = scmp.ne.s32.totalorder %s377, %s379
      %p386 = scmp.eq.s32.totalorder %s123, 1
      %p387 = por %p385, %p386
      %p388 = scmp.ne.s32.totalorder %s379, %s380
      %p389 = scmp.eq.s32.totalorder %s123, 0
      %p390 = por %p388, %p389
      %p391 = scmp.ne.s32.totalorder %s379, %s380
      %p392 = scmp.eq.s32.totalorder %s124, 1
      %p393 = por %p391, %p392
      %p395 = scmp.ne.s32.totalorder %s380, %s394
      %p396 = scmp.eq.s32.totalorder %s124, 0
      %p397 = por %p395, %p396
      %s399 = sadd.s32 %s398, 1
      %p402 = scmp.eq.s32.totalorder %s118, 1
      %p403 = scmp.ne.s32.totalorder %s398, %s400
      %p404 = scmp.eq.s32.totalorder %s118, 0
      %p405 = por %p403, %p404
      %p406 = scmp.ne.s32.totalorder %s398, %s400
      %p407 = scmp.eq.s32.totalorder %s123, 1
      %p408 = por %p406, %p407
      %p409 = scmp.ne.s32.totalorder %s400, %s401
      %p410 = scmp.eq.s32.totalorder %s123, 0
      %p411 = por %p409, %p410
      %p412 = scmp.ne.s32.totalorder %s400, %s401
      %p413 = scmp.eq.s32.totalorder %s124, 1
      %p414 = por %p412, %p413
      %p416 = scmp.ne.s32.totalorder %s401, %s415
      %p417 = scmp.eq.s32.totalorder %s124, 0
      %p418 = por %p416, %p417
      %s420 = sadd.s32 %s419, 1
      %p423 = scmp.eq.s32.totalorder %s118, 1
      %p424 = scmp.ne.s32.totalorder %s419, %s421
      %p425 = scmp.eq.s32.totalorder %s118, 0
      %p426 = por %p424, %p425
      %p427 = scmp.ne.s32.totalorder %s419, %s421
      %p428 = scmp.eq.s32.totalorder %s123, 1
      %p429 = por %p427, %p428
      %p430 = scmp.ne.s32.totalorder %s421, %s422
      %p431 = scmp.eq.s32.totalorder %s123, 0
      %p432 = por %p430, %p431
      %p433 = scmp.ne.s32.totalorder %s421, %s422
      %p434 = scmp.eq.s32.totalorder %s124, 1
      %p435 = por %p433, %p434
      %p437 = scmp.ne.s32.totalorder %s422, %s436
      %p438 = scmp.eq.s32.totalorder %s124, 0
      %p439 = por %p437, %p438
      %s441 = sadd.s32 %s440, 1
      %p444 = scmp.eq.s32.totalorder %s118, 1
      %p445 = scmp.ne.s32.totalorder %s440, %s442
      %p446 = scmp.eq.s32.totalorder %s118, 0
      %p447 = por %p445, %p446
      %p448 = scmp.ne.s32.totalorder %s440, %s442
      %p449 = scmp.eq.s32.totalorder %s123, 1
      %p450 = por %p448, %p449
      %p451 = scmp.ne.s32.totalorder %s442, %s443
      %p452 = scmp.eq.s32.totalorder %s123, 0
      %p453 = por %p451, %p452
      %p454 = scmp.ne.s32.totalorder %s442, %s443
      %p455 = scmp.eq.s32.totalorder %s124, 1
      %p456 = por %p454, %p455
      %p458 = scmp.ne.s32.totalorder %s443, %s457
      %p459 = scmp.eq.s32.totalorder %s124, 0
      %p460 = por %p458, %p459
      %s462 = sadd.s32 %s461, 1
      %p465 = scmp.eq.s32.totalorder %s118, 1
      %p466 = scmp.ne.s32.totalorder %s461, %s463
      %p467 = scmp.eq.s32.totalorder %s118, 0
      %p468 = por %p466, %p467
      %p469 = scmp.ne.s32.totalorder %s461, %s463
      %p470 = scmp.eq.s32.totalorder %s123, 1
      %p471 = por %p469, %p470
      %p472 = scmp.ne.s32.totalorder %s463, %s464
      %p473 = scmp.eq.s32.totalorder %s123, 0
      %p474 = por %p472, %p473
      %p475 = scmp.ne.s32.totalorder %s463, %s464
      %p476 = scmp.eq.s32.totalorder %s124, 1
      %p477 = por %p475, %p476
      %p479 = scmp.ne.s32.totalorder %s464, %s478
      %p480 = scmp.eq.s32.totalorder %s124, 0
      %p481 = por %p479, %p480
      %s483 = sadd.s32 %s482, 1
      %p486 = scmp.eq.s32.totalorder %s118, 1
      %p487 = scmp.ne.s32.totalorder %s482, %s484
      %p488 = scmp.eq.s32.totalorder %s118, 0
      %p489 = por %p487, %p488
      %p490 = scmp.ne.s32.totalorder %s482, %s484
      %p491 = scmp.eq.s32.totalorder %s123, 1
      %p492 = por %p490, %p491
      %p493 = scmp.ne.s32.totalorder %s484, %s485
      %p494 = scmp.eq.s32.totalorder %s123, 0
      %p495 = por %p493, %p494
      %p496 = scmp.ne.s32.totalorder %s484, %s485
      %p497 = scmp.eq.s32.totalorder %s124, 1
      %p498 = por %p496, %p497
      %p500 = scmp.ne.s32.totalorder %s485, %s499
      %p501 = scmp.eq.s32.totalorder %s124, 0
      %p502 = por %p500, %p501
      %s504 = sadd.s32 %s503, 1
      %p507 = scmp.eq.s32.totalorder %s118, 1
      %p508 = scmp.ne.s32.totalorder %s503, %s505
      %p509 = scmp.eq.s32.totalorder %s118, 0
      %p510 = por %p508, %p509
      %p511 = scmp.ne.s32.totalorder %s503, %s505
      %p512 = scmp.eq.s32.totalorder %s123, 1
      %p513 = por %p511, %p512
      %p514 = scmp.ne.s32.totalorder %s505, %s506
      %p515 = scmp.eq.s32.totalorder %s123, 0
      %p516 = por %p514, %p515
      %p517 = scmp.ne.s32.totalorder %s505, %s506
      %p518 = scmp.eq.s32.totalorder %s124, 1
      %p519 = por %p517, %p518
      %p521 = scmp.ne.s32.totalorder %s506, %s520
      %p522 = scmp.eq.s32.totalorder %s124, 0
      %p523 = por %p521, %p522
      %s525 = sadd.s32 %s524, 1
      %p528 = scmp.eq.s32.totalorder %s118, 1
      %p529 = scmp.ne.s32.totalorder %s524, %s526
      %p530 = scmp.eq.s32.totalorder %s118, 0
      %p531 = por %p529, %p530
      %p532 = scmp.ne.s32.totalorder %s524, %s526
      %p533 = scmp.eq.s32.totalorder %s123, 1
      %p534 = por %p532, %p533
      %p535 = scmp.ne.s32.totalorder %s526, %s527
      %p536 = scmp.eq.s32.totalorder %s123, 0
      %p537 = por %p535, %p536
      %p538 = scmp.ne.s32.totalorder %s526, %s527
      %p539 = scmp.eq.s32.totalorder %s124, 1
      %p540 = por %p538, %p539
      %p542 = scmp.ne.s32.totalorder %s527, %s541
      %p543 = scmp.eq.s32.totalorder %s124, 0
      %p544 = por %p542, %p543
      %s546 = sadd.s32 %s545, 1
      %p549 = scmp.eq.s32.totalorder %s118, 1
      %p550 = scmp.ne.s32.totalorder %s545, %s547
      %p551 = scmp.eq.s32.totalorder %s118, 0
      %p552 = por %p550, %p551
      %p553 = scmp.ne.s32.totalorder %s545, %s547
      %p554 = scmp.eq.s32.totalorder %s123, 1
      %p555 = por %p553, %p554
      %p556 = scmp.ne.s32.totalorder %s547, %s548
      %p557 = scmp.eq.s32.totalorder %s123, 0
      %p558 = por %p556, %p557
      %p559 = scmp.ne.s32.totalorder %s547, %s548
      %p560 = scmp.eq.s32.totalorder %s124, 1
      %p561 = por %p559, %p560
      %p563 = scmp.ne.s32.totalorder %s548, %s562
      %p564 = scmp.eq.s32.totalorder %s124, 0
      %p565 = por %p563, %p564
      %s567 = sadd.s32 %s566, 1
      %p570 = scmp.eq.s32.totalorder %s118, 1
      %p571 = scmp.ne.s32.totalorder %s566, %s568
      %p572 = scmp.eq.s32.totalorder %s118, 0
      %p573 = por %p571, %p572
      %p574 = scmp.ne.s32.totalorder %s566, %s568
      %p575 = scmp.eq.s32.totalorder %s123, 1
      %p576 = por %p574, %p575
      %p577 = scmp.ne.s32.totalorder %s568, %s569
      %p578 = scmp.eq.s32.totalorder %s123, 0
      %p579 = por %p577, %p578
      %p580 = scmp.ne.s32.totalorder %s568, %s569
      %p581 = scmp.eq.s32.totalorder %s124, 1
      %p582 = por %p580, %p581
      %p584 = scmp.ne.s32.totalorder %s569, %s583
      %p585 = scmp.eq.s32.totalorder %s124, 0
      %p586 = por %p584, %p585
      %s588 = sadd.s32 %s587, 1
      %p591 = scmp.eq.s32.totalorder %s118, 1
      %p592 = scmp.ne.s32.totalorder %s587, %s589
      %p593 = scmp.eq.s32.totalorder %s118, 0
      %p594 = por %p592, %p593
      %p595 = scmp.ne.s32.totalorder %s587, %s589
      %p596 = scmp.eq.s32.totalorder %s123, 1
      %p597 = por %p595, %p596
      %p598 = scmp.ne.s32.totalorder %s589, %s590
      %p599 = scmp.eq.s32.totalorder %s123, 0
      %p600 = por %p598, %p599
      %p601 = scmp.ne.s32.totalorder %s589, %s590
      %p602 = scmp.eq.s32.totalorder %s124, 1
      %p603 = por %p601, %p602
      %p605 = scmp.ne.s32.totalorder %s590, %s604
      %p606 = scmp.eq.s32.totalorder %s124, 0
      %p607 = por %p605, %p606
      %s609 = sadd.s32 %s608, 1
      %p612 = scmp.eq.s32.totalorder %s118, 1
      %p613 = scmp.ne.s32.totalorder %s608, %s610
      %p614 = scmp.eq.s32.totalorder %s118, 0
      %p615 = por %p613, %p614
      %p616 = scmp.ne.s32.totalorder %s608, %s610
      %p617 = scmp.eq.s32.totalorder %s123, 1
      %p618 = por %p616, %p617
      %p619 = scmp.ne.s32.totalorder %s610, %s611
      %p620 = scmp.eq.s32.totalorder %s123, 0
      %p621 = por %p619, %p620
      %p622 = scmp.ne.s32.totalorder %s610, %s611
      %p623 = scmp.eq.s32.totalorder %s124, 1
      %p624 = por %p622, %p623
      %p626 = scmp.ne.s32.totalorder %s611, %s625
      %p627 = scmp.eq.s32.totalorder %s124, 0
      %p628 = por %p626, %p627
      %s630 = sadd.s32 %s629, 1
      %p633 = scmp.eq.s32.totalorder %s118, 1
      %p634 = scmp.ne.s32.totalorder %s629, %s631
      %p635 = scmp.eq.s32.totalorder %s118, 0
      %p636 = por %p634, %p635
      %p637 = scmp.ne.s32.totalorder %s629, %s631
      %p638 = scmp.eq.s32.totalorder %s123, 1
      %p639 = por %p637, %p638
      %p640 = scmp.ne.s32.totalorder %s631, %s632
      %p641 = scmp.eq.s32.totalorder %s123, 0
      %p642 = por %p640, %p641
      %p643 = scmp.ne.s32.totalorder %s631, %s632
      %p644 = scmp.eq.s32.totalorder %s124, 1
      %p645 = por %p643, %p644
      %p647 = scmp.ne.s32.totalorder %s632, %s646
      %p648 = scmp.eq.s32.totalorder %s124, 0
      %p649 = por %p647, %p648
      %s651 = sadd.s32 %s650, 1
      %p654 = scmp.eq.s32.totalorder %s118, 1
      %p655 = scmp.ne.s32.totalorder %s650, %s652
      %p656 = scmp.eq.s32.totalorder %s118, 0
      %p657 = por %p655, %p656
      %p658 = scmp.ne.s32.totalorder %s650, %s652
      %p659 = scmp.eq.s32.totalorder %s123, 1
      %p660 = por %p658, %p659
      %p661 = scmp.ne.s32.totalorder %s652, %s653
      %p662 = scmp.eq.s32.totalorder %s123, 0
      %p663 = por %p661, %p662
      %p664 = scmp.ne.s32.totalorder %s652, %s653
      %p665 = scmp.eq.s32.totalorder %s124, 1
      %p666 = por %p664, %p665
      %p668 = scmp.ne.s32.totalorder %s653, %s667
      %p669 = scmp.eq.s32.totalorder %s124, 0
      %p670 = por %p668, %p669
      %s672 = sadd.s32 %s671, 1
      %p675 = scmp.eq.s32.totalorder %s118, 1
      %p676 = scmp.ne.s32.totalorder %s671, %s673
      %p677 = scmp.eq.s32.totalorder %s118, 0
      %p678 = por %p676, %p677
      %p679 = scmp.ne.s32.totalorder %s671, %s673
      %p680 = scmp.eq.s32.totalorder %s123, 1
      %p681 = por %p679, %p680
      %p682 = scmp.ne.s32.totalorder %s673, %s674
      %p683 = scmp.eq.s32.totalorder %s123, 0
      %p684 = por %p682, %p683
      %p685 = scmp.ne.s32.totalorder %s673, %s674
      %p686 = scmp.eq.s32.totalorder %s124, 1
      %p687 = por %p685, %p686
      %p689 = scmp.ne.s32.totalorder %s674, %s688
      %p690 = scmp.eq.s32.totalorder %s124, 0
      %p691 = por %p689, %p690
      %s693 = sadd.s32 %s692, 1
      %p696 = scmp.eq.s32.totalorder %s118, 1
      %p697 = scmp.ne.s32.totalorder %s692, %s694
      %p698 = scmp.eq.s32.totalorder %s118, 0
      %p699 = por %p697, %p698
      %p700 = scmp.ne.s32.totalorder %s692, %s694
      %p701 = scmp.eq.s32.totalorder %s123, 1
      %p702 = por %p700, %p701
      %p703 = scmp.ne.s32.totalorder %s694, %s695
      %p704 = scmp.eq.s32.totalorder %s123, 0
      %p705 = por %p703, %p704
      %p706 = scmp.ne.s32.totalorder %s694, %s695
      %p707 = scmp.eq.s32.totalorder %s124, 1
      %p708 = por %p706, %p707
      %p710 = scmp.ne.s32.totalorder %s695, %s709
      %p711 = scmp.eq.s32.totalorder %s124, 0
      %p712 = por %p710, %p711
      %s714 = sadd.s32 %s713, 1
      %p717 = scmp.eq.s32.totalorder %s118, 1
      %p718 = scmp.ne.s32.totalorder %s713, %s715
      %p719 = scmp.eq.s32.totalorder %s118, 0
      %p720 = por %p718, %p719
      %p721 = scmp.ne.s32.totalorder %s713, %s715
      %p722 = scmp.eq.s32.totalorder %s123, 1
      %p723 = por %p721, %p722
      %p724 = scmp.ne.s32.totalorder %s715, %s716
      %p725 = scmp.eq.s32.totalorder %s123, 0
      %p726 = por %p724, %p725
      %p727 = scmp.ne.s32.totalorder %s715, %s716
      %p728 = scmp.eq.s32.totalorder %s124, 1
      %p729 = por %p727, %p728
      %p731 = scmp.ne.s32.totalorder %s716, %s730
      %p732 = scmp.eq.s32.totalorder %s124, 0
      %p733 = por %p731, %p732
      %s735 = sadd.s32 %s734, 1
      %p738 = scmp.eq.s32.totalorder %s118, 1
      %p739 = scmp.ne.s32.totalorder %s734, %s736
      %p740 = scmp.eq.s32.totalorder %s118, 0
      %p741 = por %p739, %p740
      %p742 = scmp.ne.s32.totalorder %s734, %s736
      %p743 = scmp.eq.s32.totalorder %s123, 1
      %p744 = por %p742, %p743
      %p745 = scmp.ne.s32.totalorder %s736, %s737
      %p746 = scmp.eq.s32.totalorder %s123, 0
      %p747 = por %p745, %p746
      %p748 = scmp.ne.s32.totalorder %s736, %s737
      %p749 = scmp.eq.s32.totalorder %s124, 1
      %p750 = por %p748, %p749
      %p752 = scmp.ne.s32.totalorder %s737, %s751
      %p753 = scmp.eq.s32.totalorder %s124, 0
      %p754 = por %p752, %p753
      %s756 = sadd.s32 %s755, 1
      %p759 = scmp.eq.s32.totalorder %s118, 1
      %p760 = scmp.ne.s32.totalorder %s755, %s757
      %p761 = scmp.eq.s32.totalorder %s118, 0
      %p762 = por %p760, %p761
      %p763 = scmp.ne.s32.totalorder %s755, %s757
      %p764 = scmp.eq.s32.totalorder %s123, 1
      %p765 = por %p763, %p764
      %p766 = scmp.ne.s32.totalorder %s757, %s758
      %p767 = scmp.eq.s32.totalorder %s123, 0
      %p768 = por %p766, %p767
      %p769 = scmp.ne.s32.totalorder %s757, %s758
      %p770 = scmp.eq.s32.totalorder %s124, 1
      %p771 = por %p769, %p770
      %p773 = scmp.ne.s32.totalorder %s758, %s772
      %p774 = scmp.eq.s32.totalorder %s124, 0
      %p775 = por %p773, %p774
      %s777 = sadd.s32 %s776, 1
      %p780 = scmp.eq.s32.totalorder %s118, 1
      %p781 = scmp.ne.s32.totalorder %s776, %s778
      %p782 = scmp.eq.s32.totalorder %s118, 0
      %p783 = por %p781, %p782
      %p784 = scmp.ne.s32.totalorder %s776, %s778
      %p785 = scmp.eq.s32.totalorder %s123, 1
      %p786 = por %p784, %p785
      %p787 = scmp.ne.s32.totalorder %s778, %s779
      %p788 = scmp.eq.s32.totalorder %s123, 0
      %p789 = por %p787, %p788
      %p790 = scmp.ne.s32.totalorder %s778, %s779
      %p791 = scmp.eq.s32.totalorder %s124, 1
      %p792 = por %p790, %p791
      %p794 = scmp.ne.s32.totalorder %s779, %s793
      %p795 = scmp.eq.s32.totalorder %s124, 0
      %p796 = por %p794, %p795
      %s798 = sadd.s32 %s797, 1
      %p801 = scmp.eq.s32.totalorder %s118, 1
      %p802 = scmp.ne.s32.totalorder %s797, %s799
      %p803 = scmp.eq.s32.totalorder %s118, 0
      %p804 = por %p802, %p803
      %p805 = scmp.ne.s32.totalorder %s797, %s799
      %p806 = scmp.eq.s32.totalorder %s123, 1
      %p807 = por %p805, %p806
      %p808 = scmp.ne.s32.totalorder %s799, %s800
      %p809 = scmp.eq.s32.totalorder %s123, 0
      %p810 = por %p808, %p809
      %p811 = scmp.ne.s32.totalorder %s799, %s800
      %p812 = scmp.eq.s32.totalorder %s124, 1
      %p813 = por %p811, %p812
      %p815 = scmp.ne.s32.totalorder %s800, %s814
      %p816 = scmp.eq.s32.totalorder %s124, 0
      %p817 = por %p815, %p816
      %s819 = sadd.s32 %s818, 1
      %p822 = scmp.eq.s32.totalorder %s118, 1
      %p823 = scmp.ne.s32.totalorder %s818, %s820
      %p824 = scmp.eq.s32.totalorder %s118, 0
      %p825 = por %p823, %p824
      %p826 = scmp.ne.s32.totalorder %s818, %s820
      %p827 = scmp.eq.s32.totalorder %s123, 1
      %p828 = por %p826, %p827
      %p829 = scmp.ne.s32.totalorder %s820, %s821
      %p830 = scmp.eq.s32.totalorder %s123, 0
      %p831 = por %p829, %p830
      %p832 = scmp.ne.s32.totalorder %s820, %s821
      %p833 = scmp.eq.s32.totalorder %s124, 1
      %p834 = por %p832, %p833
      %p836 = scmp.ne.s32.totalorder %s821, %s835
      %p837 = scmp.eq.s32.totalorder %s124, 0
      %p838 = por %p836, %p837
      %s840 = sadd.s32 %s839, 1
      %p843 = scmp.eq.s32.totalorder %s118, 1
      %p844 = scmp.ne.s32.totalorder %s839, %s841
      %p845 = scmp.eq.s32.totalorder %s118, 0
      %p846 = por %p844, %p845
      %p847 = scmp.ne.s32.totalorder %s839, %s841
      %p848 = scmp.eq.s32.totalorder %s123, 1
      %p849 = por %p847, %p848
      %p850 = scmp.ne.s32.totalorder %s841, %s842
      %p851 = scmp.eq.s32.totalorder %s123, 0
      %p852 = por %p850, %p851
      %p853 = scmp.ne.s32.totalorder %s841, %s842
      %p854 = scmp.eq.s32.totalorder %s124, 1
      %p855 = por %p853, %p854
      %p857 = scmp.ne.s32.totalorder %s842, %s856
      %p858 = scmp.eq.s32.totalorder %s124, 0
      %p859 = por %p857, %p858
      %s861 = sadd.s32 %s860, 1
      %p864 = scmp.eq.s32.totalorder %s118, 1
      %p865 = scmp.ne.s32.totalorder %s860, %s862
      %p866 = scmp.eq.s32.totalorder %s118, 0
      %p867 = por %p865, %p866
      %p868 = scmp.ne.s32.totalorder %s860, %s862
      %p869 = scmp.eq.s32.totalorder %s123, 1
      %p870 = por %p868, %p869
      %p871 = scmp.ne.s32.totalorder %s862, %s863
      %p872 = scmp.eq.s32.totalorder %s123, 0
      %p873 = por %p871, %p872
      %p874 = scmp.ne.s32.totalorder %s862, %s863
      %p875 = scmp.eq.s32.totalorder %s124, 1
      %p876 = por %p874, %p875
      %p878 = scmp.ne.s32.totalorder %s863, %s877
      %p879 = scmp.eq.s32.totalorder %s124, 0
      %p880 = por %p878, %p879
      %s882 = sadd.s32 %s881, 1
      %p885 = scmp.eq.s32.totalorder %s118, 1
      %p886 = scmp.ne.s32.totalorder %s881, %s883
      %p887 = scmp.eq.s32.totalorder %s118, 0
      %p888 = por %p886, %p887
      %p889 = scmp.ne.s32.totalorder %s881, %s883
      %p890 = scmp.eq.s32.totalorder %s123, 1
      %p891 = por %p889, %p890
      %p892 = scmp.ne.s32.totalorder %s883, %s884
      %p893 = scmp.eq.s32.totalorder %s123, 0
      %p894 = por %p892, %p893
      %p895 = scmp.ne.s32.totalorder %s883, %s884
      %p896 = scmp.eq.s32.totalorder %s124, 1
      %p897 = por %p895, %p896
      %p899 = scmp.ne.s32.totalorder %s884, %s898
      %p900 = scmp.eq.s32.totalorder %s124, 0
      %p901 = por %p899, %p900
      %s903 = sadd.s32 %s902, 1
      %p906 = scmp.eq.s32.totalorder %s118, 1
      %p907 = scmp.ne.s32.totalorder %s902, %s904
      %p908 = scmp.eq.s32.totalorder %s118, 0
      %p909 = por %p907, %p908
      %p910 = scmp.ne.s32.totalorder %s902, %s904
      %p911 = scmp.eq.s32.totalorder %s123, 1
      %p912 = por %p910, %p911
      %p913 = scmp.ne.s32.totalorder %s904, %s905
      %p914 = scmp.eq.s32.totalorder %s123, 0
      %p915 = por %p913, %p914
      %p916 = scmp.ne.s32.totalorder %s904, %s905
      %p917 = scmp.eq.s32.totalorder %s124, 1
      %p918 = por %p916, %p917
      %p920 = scmp.ne.s32.totalorder %s905, %s919
      %p921 = scmp.eq.s32.totalorder %s124, 0
      %p922 = por %p920, %p921
      %s924 = sadd.s32 %s923, 1
      %p927 = scmp.eq.s32.totalorder %s118, 1
      %p928 = scmp.ne.s32.totalorder %s923, %s925
      %p929 = scmp.eq.s32.totalorder %s118, 0
      %p930 = por %p928, %p929
      %p931 = scmp.ne.s32.totalorder %s923, %s925
      %p932 = scmp.eq.s32.totalorder %s123, 1
      %p933 = por %p931, %p932
      %p934 = scmp.ne.s32.totalorder %s925, %s926
      %p935 = scmp.eq.s32.totalorder %s123, 0
      %p936 = por %p934, %p935
      %p937 = scmp.ne.s32.totalorder %s925, %s926
      %p938 = scmp.eq.s32.totalorder %s124, 1
      %p939 = por %p937, %p938
      %p941 = scmp.ne.s32.totalorder %s926, %s940
      %p942 = scmp.eq.s32.totalorder %s124, 0
      %p943 = por %p941, %p942
      %s945 = sadd.s32 %s944, 1
      %p948 = scmp.eq.s32.totalorder %s118, 1
      %p949 = scmp.ne.s32.totalorder %s944, %s946
      %p950 = scmp.eq.s32.totalorder %s118, 0
      %p951 = por %p949, %p950
      %p952 = scmp.ne.s32.totalorder %s944, %s946
      %p953 = scmp.eq.s32.totalorder %s123, 1
      %p954 = por %p952, %p953
      %p955 = scmp.ne.s32.totalorder %s946, %s947
      %p956 = scmp.eq.s32.totalorder %s123, 0
      %p957 = por %p955, %p956
      %p958 = scmp.ne.s32.totalorder %s946, %s947
      %p959 = scmp.eq.s32.totalorder %s124, 1
      %p960 = por %p958, %p959
      %p962 = scmp.ne.s32.totalorder %s947, %s961
      %p963 = scmp.eq.s32.totalorder %s124, 0
      %p964 = por %p962, %p963
      %s966 = sadd.s32 %s965, 1
      %p969 = scmp.eq.s32.totalorder %s118, 1
      %p970 = scmp.ne.s32.totalorder %s965, %s967
      %p971 = scmp.eq.s32.totalorder %s118, 0
      %p972 = por %p970, %p971
      %p973 = scmp.ne.s32.totalorder %s965, %s967
      %p974 = scmp.eq.s32.totalorder %s123, 1
      %p975 = por %p973, %p974
      %p976 = scmp.ne.s32.totalorder %s967, %s968
      %p977 = scmp.eq.s32.totalorder %s123, 0
      %p978 = por %p976, %p977
      %p979 = scmp.ne.s32.totalorder %s967, %s968
      %p980 = scmp.eq.s32.totalorder %s124, 1
      %p981 = por %p979, %p980
      %p983 = scmp.ne.s32.totalorder %s968, %s982
      %p984 = scmp.eq.s32.totalorder %s124, 0
      %p985 = por %p983, %p984
      %s987 = sadd.s32 %s986, 1
      %p990 = scmp.eq.s32.totalorder %s118, 1
      %p991 = scmp.ne.s32.totalorder %s986, %s988
      %p992 = scmp.eq.s32.totalorder %s118, 0
      %p993 = por %p991, %p992
      %p994 = scmp.ne.s32.totalorder %s986, %s988
      %p995 = scmp.eq.s32.totalorder %s123, 1
      %p996 = por %p994, %p995
      %p997 = scmp.ne.s32.totalorder %s988, %s989
      %p998 = scmp.eq.s32.totalorder %s123, 0
      %p999 = por %p997, %p998
      %p1000 = scmp.ne.s32.totalorder %s988, %s989
      %p1001 = scmp.eq.s32.totalorder %s124, 1
      %p1002 = por %p1000, %p1001
      %p1004 = scmp.ne.s32.totalorder %s989, %s1003
      %p1005 = scmp.eq.s32.totalorder %s124, 0
      %p1006 = por %p1004, %p1005
      %s1008 = sadd.s32 %s1007, 1
      %p1011 = scmp.eq.s32.totalorder %s118, 1
      %p1012 = scmp.ne.s32.totalorder %s1007, %s1009
      %p1013 = scmp.eq.s32.totalorder %s118, 0
      %p1014 = por %p1012, %p1013
      %p1015 = scmp.ne.s32.totalorder %s1007, %s1009
      %p1016 = scmp.eq.s32.totalorder %s123, 1
      %p1017 = por %p1015, %p1016
      %p1018 = scmp.ne.s32.totalorder %s1009, %s1010
      %p1019 = scmp.eq.s32.totalorder %s123, 0
      %p1020 = por %p1018, %p1019
      %p1021 = scmp.ne.s32.totalorder %s1009, %s1010
      %p1022 = scmp.eq.s32.totalorder %s124, 1
      %p1023 = por %p1021, %p1022
      %p1025 = scmp.ne.s32.totalorder %s1010, %s1024
      %p1026 = scmp.eq.s32.totalorder %s124, 0
      %p1027 = por %p1025, %p1026
      %s1029 = sadd.s32 %s1028, 1
      %p1032 = scmp.eq.s32.totalorder %s118, 1
      %p1033 = scmp.ne.s32.totalorder %s1028, %s1030
      %p1034 = scmp.eq.s32.totalorder %s118, 0
      %p1035 = por %p1033, %p1034
      %p1036 = scmp.ne.s32.totalorder %s1028, %s1030
      %p1037 = scmp.eq.s32.totalorder %s123, 1
      %p1038 = por %p1036, %p1037
      %p1039 = scmp.ne.s32.totalorder %s1030, %s1031
      %p1040 = scmp.eq.s32.totalorder %s123, 0
      %p1041 = por %p1039, %p1040
      %p1042 = scmp.ne.s32.totalorder %s1030, %s1031
      %p1043 = scmp.eq.s32.totalorder %s124, 1
      %p1044 = por %p1042, %p1043
      %p1046 = scmp.ne.s32.totalorder %s1031, %s1045
      %p1047 = scmp.eq.s32.totalorder %s124, 0
      %p1048 = por %p1046, %p1047
      %s1050 = sadd.s32 %s1049, 1
      %p1053 = scmp.eq.s32.totalorder %s118, 1
      %p1054 = scmp.ne.s32.totalorder %s1049, %s1051
      %p1055 = scmp.eq.s32.totalorder %s118, 0
      %p1056 = por %p1054, %p1055
      %p1057 = scmp.ne.s32.totalorder %s1049, %s1051
      %p1058 = scmp.eq.s32.totalorder %s123, 1
      %p1059 = por %p1057, %p1058
      %p1060 = scmp.ne.s32.totalorder %s1051, %s1052
      %p1061 = scmp.eq.s32.totalorder %s123, 0
      %p1062 = por %p1060, %p1061
      %p1063 = scmp.ne.s32.totalorder %s1051, %s1052
      %p1064 = scmp.eq.s32.totalorder %s124, 1
      %p1065 = por %p1063, %p1064
      %p1067 = scmp.ne.s32.totalorder %s1052, %s1066
      %p1068 = scmp.eq.s32.totalorder %s124, 0
      %p1069 = por %p1067, %p1068
      %s1071 = sadd.s32 %s1070, 1
      %p1074 = scmp.eq.s32.totalorder %s118, 1
      %p1075 = scmp.ne.s32.totalorder %s1070, %s1072
      %p1076 = scmp.eq.s32.totalorder %s118, 0
      %p1077 = por %p1075, %p1076
      %p1078 = scmp.ne.s32.totalorder %s1070, %s1072
      %p1079 = scmp.eq.s32.totalorder %s123, 1
      %p1080 = por %p1078, %p1079
      %p1081 = scmp.ne.s32.totalorder %s1072, %s1073
      %p1082 = scmp.eq.s32.totalorder %s123, 0
      %p1083 = por %p1081, %p1082
      %p1084 = scmp.ne.s32.totalorder %s1072, %s1073
      %p1085 = scmp.eq.s32.totalorder %s124, 1
      %p1086 = por %p1084, %p1085
      %p1088 = scmp.ne.s32.totalorder %s1073, %s1087
      %p1089 = scmp.eq.s32.totalorder %s124, 0
      %p1090 = por %p1088, %p1089
      %s1092 = sadd.s32 %s1091, 1
      %p1095 = scmp.eq.s32.totalorder %s118, 1
      %p1096 = scmp.ne.s32.totalorder %s1091, %s1093
      %p1097 = scmp.eq.s32.totalorder %s118, 0
      %p1098 = por %p1096, %p1097
      %p1099 = scmp.ne.s32.totalorder %s1091, %s1093
      %p1100 = scmp.eq.s32.totalorder %s123, 1
      %p1101 = por %p1099, %p1100
      %p1102 = scmp.ne.s32.totalorder %s1093, %s1094
      %p1103 = scmp.eq.s32.totalorder %s123, 0
      %p1104 = por %p1102, %p1103
      %p1105 = scmp.ne.s32.totalorder %s1093, %s1094
      %p1106 = scmp.eq.s32.totalorder %s124, 1
      %p1107 = por %p1105, %p1106
      %p1109 = scmp.ne.s32.totalorder %s1094, %s1108
      %p1110 = scmp.eq.s32.totalorder %s124, 0
      %p1111 = por %p1109, %p1110
      %s1113 = sadd.s32 %s1112, 1
      %p1116 = scmp.eq.s32.totalorder %s118, 1
      %p1117 = scmp.ne.s32.totalorder %s1112, %s1114
      %p1118 = scmp.eq.s32.totalorder %s118, 0
      %p1119 = por %p1117, %p1118
      %p1120 = scmp.ne.s32.totalorder %s1112, %s1114
      %p1121 = scmp.eq.s32.totalorder %s123, 1
      %p1122 = por %p1120, %p1121
      %p1123 = scmp.ne.s32.totalorder %s1114, %s1115
      %p1124 = scmp.eq.s32.totalorder %s123, 0
      %p1125 = por %p1123, %p1124
      %p1126 = scmp.ne.s32.totalorder %s1114, %s1115
      %p1127 = scmp.eq.s32.totalorder %s124, 1
      %p1128 = por %p1126, %p1127
      %p1130 = scmp.ne.s32.totalorder %s1115, %s1129
      %p1131 = scmp.eq.s32.totalorder %s124, 0
      %p1132 = por %p1130, %p1131
      %s1134 = sadd.s32 %s1133, 1
      %p1137 = scmp.eq.s32.totalorder %s118, 1
      %p1138 = scmp.ne.s32.totalorder %s1133, %s1135
      %p1139 = scmp.eq.s32.totalorder %s118, 0
      %p1140 = por %p1138, %p1139
      %p1141 = scmp.ne.s32.totalorder %s1133, %s1135
      %p1142 = scmp.eq.s32.totalorder %s123, 1
      %p1143 = por %p1141, %p1142
      %p1144 = scmp.ne.s32.totalorder %s1135, %s1136
      %p1145 = scmp.eq.s32.totalorder %s123, 0
      %p1146 = por %p1144, %p1145
      %p1147 = scmp.ne.s32.totalorder %s1135, %s1136
      %p1148 = scmp.eq.s32.totalorder %s124, 1
      %p1149 = por %p1147, %p1148
      %p1151 = scmp.ne.s32.totalorder %s1136, %s1150
      %p1152 = scmp.eq.s32.totalorder %s124, 0
      %p1153 = por %p1151, %p1152
      %s1155 = sadd.s32 %s1154, 1
      %p1158 = scmp.eq.s32.totalorder %s118, 1
      %p1159 = scmp.ne.s32.totalorder %s1154, %s1156
      %p1160 = scmp.eq.s32.totalorder %s118, 0
      %p1161 = por %p1159, %p1160
      %p1162 = scmp.ne.s32.totalorder %s1154, %s1156
      %p1163 = scmp.eq.s32.totalorder %s123, 1
      %p1164 = por %p1162, %p1163
      %p1165 = scmp.ne.s32.totalorder %s1156, %s1157
      %p1166 = scmp.eq.s32.totalorder %s123, 0
      %p1167 = por %p1165, %p1166
      %p1168 = scmp.ne.s32.totalorder %s1156, %s1157
      %p1169 = scmp.eq.s32.totalorder %s124, 1
      %p1170 = por %p1168, %p1169
      %p1172 = scmp.ne.s32.totalorder %s1157, %s1171
      %p1173 = scmp.eq.s32.totalorder %s124, 0
      %p1174 = por %p1172, %p1173
      %s1176 = sadd.s32 %s1175, 1
      %p1179 = scmp.eq.s32.totalorder %s118, 1
      %p1180 = scmp.ne.s32.totalorder %s1175, %s1177
      %p1181 = scmp.eq.s32.totalorder %s118, 0
      %p1182 = por %p1180, %p1181
      %p1183 = scmp.ne.s32.totalorder %s1175, %s1177
      %p1184 = scmp.eq.s32.totalorder %s123, 1
      %p1185 = por %p1183, %p1184
      %p1186 = scmp.ne.s32.totalorder %s1177, %s1178
      %p1187 = scmp.eq.s32.totalorder %s123, 0
      %p1188 = por %p1186, %p1187
      %p1189 = scmp.ne.s32.totalorder %s1177, %s1178
      %p1190 = scmp.eq.s32.totalorder %s124, 1
      %p1191 = por %p1189, %p1190
      %p1193 = scmp.ne.s32.totalorder %s1178, %s1192
      %p1194 = scmp.eq.s32.totalorder %s124, 0
      %p1195 = por %p1193, %p1194
      %s1197 = sadd.s32 %s1196, 1
      %p1200 = scmp.eq.s32.totalorder %s118, 1
      %p1201 = scmp.ne.s32.totalorder %s1196, %s1198
      %p1202 = scmp.eq.s32.totalorder %s118, 0
      %p1203 = por %p1201, %p1202
      %p1204 = scmp.ne.s32.totalorder %s1196, %s1198
      %p1205 = scmp.eq.s32.totalorder %s123, 1
      %p1206 = por %p1204, %p1205
      %p1207 = scmp.ne.s32.totalorder %s1198, %s1199
      %p1208 = scmp.eq.s32.totalorder %s123, 0
      %p1209 = por %p1207, %p1208
      %p1210 = scmp.ne.s32.totalorder %s1198, %s1199
      %p1211 = scmp.eq.s32.totalorder %s124, 1
      %p1212 = por %p1210, %p1211
      %p1214 = scmp.ne.s32.totalorder %s1199, %s1213
      %p1215 = scmp.eq.s32.totalorder %s124, 0
      %p1216 = por %p1214, %p1215
      %s1217 = ssub.s32 %s118, %s125
      %p1218 = scmp.eq.s32.totalorder %s1217, 0
      %s1220 = sadd.s32 %s1219, 1
      %s1221 = scalar_select %p1218, %s1219, %s1220
      %p1224 = pneg %p1218
      %p1225 = scmp.eq.s32.totalorder %s118, 1
      %p1226 = por %p1224, %p1225
      %p1227 = scmp.ne.s32.totalorder %s1219, %s1222
      %p1228 = scmp.eq.s32.totalorder %s118, 0
      %p1229 = por %p1227, %p1228
      %p1230 = scmp.ne.s32.totalorder %s1219, %s1222
      %p1231 = scmp.eq.s32.totalorder %s123, 1
      %p1232 = por %p1230, %p1231
      %p1233 = scmp.ne.s32.totalorder %s1222, %s1223
      %p1234 = scmp.eq.s32.totalorder %s123, 0
      %p1235 = por %p1233, %p1234
      %p1236 = scmp.ne.s32.totalorder %s1222, %s1223
      %p1237 = scmp.eq.s32.totalorder %s124, 1
      %p1238 = por %p1236, %p1237
      %p1240 = scmp.ne.s32.totalorder %s1223, %s1239
      %p1241 = scmp.eq.s32.totalorder %s124, 0
      %p1242 = por %p1240, %p1241
      %s1243 = ssub.s32 %s118, %s125
      %p1244 = scmp.eq.s32.totalorder %s1243, 0
      %s1246 = sadd.s32 %s1245, 1
      %s1247 = scalar_select %p1244, %s1245, %s1246
      %p1250 = pneg %p1244
      %p1251 = scmp.eq.s32.totalorder %s118, 1
      %p1252 = por %p1250, %p1251
      %p1253 = scmp.ne.s32.totalorder %s1245, %s1248
      %p1254 = scmp.eq.s32.totalorder %s118, 0
      %p1255 = por %p1253, %p1254
      %p1256 = scmp.ne.s32.totalorder %s1245, %s1248
      %p1257 = scmp.eq.s32.totalorder %s123, 1
      %p1258 = por %p1256, %p1257
      %p1259 = scmp.ne.s32.totalorder %s1248, %s1249
      %p1260 = scmp.eq.s32.totalorder %s123, 0
      %p1261 = por %p1259, %p1260
      %p1262 = scmp.ne.s32.totalorder %s1248, %s1249
      %p1263 = scmp.eq.s32.totalorder %s124, 1
      %p1264 = por %p1262, %p1263
      %p1266 = scmp.ne.s32.totalorder %s1249, %s1265
      %p1267 = scmp.eq.s32.totalorder %s124, 0
      %p1268 = por %p1266, %p1267
      %p1269 = scmp.le.s32.totalorder 1, %s118
      %p1270 = scmp.lt.s32.totalorder %s118, 3
      %p1271 = pnand %p1269, %p1270
      %p1272 = pneg %p1271
      // Predicated region
      $region9: #{part_forward.3} parent=5 // pred_check
        _
      $region10: #{part_forward.3} parent=5 // pred_check_branch
        %1274 = sbr.rel (%p1271) target = $region12
      $region11: #{part_forward.3} parent=5 // pred_region
        %s1275 = ssub.s32 %s118, 1
        // Predicated region
        $region13: #{part_forward.3} parent=11 // pred_check
          %p1276 = pneg %p243
        $region14: #{part_forward.3} parent=11 // pred_check_branch
          %1278 = sbr.rel (%p1276) target = $region16
        $region15: #{part_forward.3} parent=11 // pred_region
          _
        $region16: #{part_forward.3} parent=11 // pred_fallthru
          _
        // Predicated region
        $region17: #{part_forward.3} parent=11 // pred_check
          %p1279 = pneg %p264
        $region18: #{part_forward.3} parent=11 // pred_check_branch
          %1281 = sbr.rel (%p1279) target = $region20
        $region19: #{part_forward.3} parent=11 // pred_region
          _
        $region20: #{part_forward.3} parent=11 // pred_fallthru
          _
        // Predicated region
        $region21: #{part_forward.3} parent=11 // pred_check
          %p1282 = pneg %p285
        $region22: #{part_forward.3} parent=11 // pred_check_branch
          %1284 = sbr.rel (%p1282) target = $region24
        $region23: #{part_forward.3} parent=11 // pred_region
          _
        $region24: #{part_forward.3} parent=11 // pred_fallthru
          _
        // Predicated region
        $region25: #{part_forward.3} parent=11 // pred_check
          %p1285 = pneg %p306
        $region26: #{part_forward.3} parent=11 // pred_check_branch
          %1287 = sbr.rel (%p1285) target = $region28
        $region27: #{part_forward.3} parent=11 // pred_region
          _
        $region28: #{part_forward.3} parent=11 // pred_fallthru
          _
        // Predicated region
        $region29: #{part_forward.3} parent=11 // pred_check
          %p1288 = pneg %p327
        $region30: #{part_forward.3} parent=11 // pred_check_branch
          %1290 = sbr.rel (%p1288) target = $region32
        $region31: #{part_forward.3} parent=11 // pred_region
          _
        $region32: #{part_forward.3} parent=11 // pred_fallthru
          _
        // Predicated region
        $region33: #{part_forward.3} parent=11 // pred_check
          %p1291 = pneg %p348
        $region34: #{part_forward.3} parent=11 // pred_check_branch
          %1293 = sbr.rel (%p1291) target = $region36
        $region35: #{part_forward.3} parent=11 // pred_region
          _
        $region36: #{part_forward.3} parent=11 // pred_fallthru
          _
        // Predicated region
        $region37: #{part_forward.3} parent=11 // pred_check
          %p1294 = pneg %p369
        $region38: #{part_forward.3} parent=11 // pred_check_branch
          %1296 = sbr.rel (%p1294) target = $region40
        $region39: #{part_forward.3} parent=11 // pred_region
          _
        $region40: #{part_forward.3} parent=11 // pred_fallthru
          _
        // Predicated region
        $region41: #{part_forward.3} parent=11 // pred_check
          %p1297 = pneg %p390
        $region42: #{part_forward.3} parent=11 // pred_check_branch
          %1299 = sbr.rel (%p1297) target = $region44
        $region43: #{part_forward.3} parent=11 // pred_region
          _
        $region44: #{part_forward.3} parent=11 // pred_fallthru
          _
        // Predicated region
        $region45: #{part_forward.3} parent=11 // pred_check
          %p1300 = pneg %p411
        $region46: #{part_forward.3} parent=11 // pred_check_branch
          %1302 = sbr.rel (%p1300) target = $region48
        $region47: #{part_forward.3} parent=11 // pred_region
          _
        $region48: #{part_forward.3} parent=11 // pred_fallthru
          _
        // Predicated region
        $region49: #{part_forward.3} parent=11 // pred_check
          %p1303 = pneg %p432
        $region50: #{part_forward.3} parent=11 // pred_check_branch
          %1305 = sbr.rel (%p1303) target = $region52
        $region51: #{part_forward.3} parent=11 // pred_region
          _
        $region52: #{part_forward.3} parent=11 // pred_fallthru
          _
        // Predicated region
        $region53: #{part_forward.3} parent=11 // pred_check
          %p1306 = pneg %p453
        $region54: #{part_forward.3} parent=11 // pred_check_branch
          %1308 = sbr.rel (%p1306) target = $region56
        $region55: #{part_forward.3} parent=11 // pred_region
          _
        $region56: #{part_forward.3} parent=11 // pred_fallthru
          _
        // Predicated region
        $region57: #{part_forward.3} parent=11 // pred_check
          %p1309 = pneg %p474
        $region58: #{part_forward.3} parent=11 // pred_check_branch
          %1311 = sbr.rel (%p1309) target = $region60
        $region59: #{part_forward.3} parent=11 // pred_region
          _
        $region60: #{part_forward.3} parent=11 // pred_fallthru
          _
        // Predicated region
        $region61: #{part_forward.3} parent=11 // pred_check
          %p1312 = pneg %p495
        $region62: #{part_forward.3} parent=11 // pred_check_branch
          %1314 = sbr.rel (%p1312) target = $region64
        $region63: #{part_forward.3} parent=11 // pred_region
          _
        $region64: #{part_forward.3} parent=11 // pred_fallthru
          _
        // Predicated region
        $region65: #{part_forward.3} parent=11 // pred_check
          %p1315 = pneg %p516
        $region66: #{part_forward.3} parent=11 // pred_check_branch
          %1317 = sbr.rel (%p1315) target = $region68
        $region67: #{part_forward.3} parent=11 // pred_region
          _
        $region68: #{part_forward.3} parent=11 // pred_fallthru
          _
        // Predicated region
        $region69: #{part_forward.3} parent=11 // pred_check
          %p1318 = pneg %p537
        $region70: #{part_forward.3} parent=11 // pred_check_branch
          %1320 = sbr.rel (%p1318) target = $region72
        $region71: #{part_forward.3} parent=11 // pred_region
          _
        $region72: #{part_forward.3} parent=11 // pred_fallthru
          _
        // Predicated region
        $region73: #{part_forward.3} parent=11 // pred_check
          %p1321 = pneg %p558
        $region74: #{part_forward.3} parent=11 // pred_check_branch
          %1323 = sbr.rel (%p1321) target = $region76
        $region75: #{part_forward.3} parent=11 // pred_region
          _
        $region76: #{part_forward.3} parent=11 // pred_fallthru
          _
        // Predicated region
        $region77: #{part_forward.3} parent=11 // pred_check
          %p1324 = pneg %p579
        $region78: #{part_forward.3} parent=11 // pred_check_branch
          %1326 = sbr.rel (%p1324) target = $region80
        $region79: #{part_forward.3} parent=11 // pred_region
          _
        $region80: #{part_forward.3} parent=11 // pred_fallthru
          _
        // Predicated region
        $region81: #{part_forward.3} parent=11 // pred_check
          %p1327 = pneg %p600
        $region82: #{part_forward.3} parent=11 // pred_check_branch
          %1329 = sbr.rel (%p1327) target = $region84
        $region83: #{part_forward.3} parent=11 // pred_region
          _
        $region84: #{part_forward.3} parent=11 // pred_fallthru
          _
        // Predicated region
        $region85: #{part_forward.3} parent=11 // pred_check
          %p1330 = pneg %p621
        $region86: #{part_forward.3} parent=11 // pred_check_branch
          %1332 = sbr.rel (%p1330) target = $region88
        $region87: #{part_forward.3} parent=11 // pred_region
          _
        $region88: #{part_forward.3} parent=11 // pred_fallthru
          _
        // Predicated region
        $region89: #{part_forward.3} parent=11 // pred_check
          %p1333 = pneg %p642
        $region90: #{part_forward.3} parent=11 // pred_check_branch
          %1335 = sbr.rel (%p1333) target = $region92
        $region91: #{part_forward.3} parent=11 // pred_region
          _
        $region92: #{part_forward.3} parent=11 // pred_fallthru
          _
        // Predicated region
        $region93: #{part_forward.3} parent=11 // pred_check
          %p1336 = pneg %p663
        $region94: #{part_forward.3} parent=11 // pred_check_branch
          %1338 = sbr.rel (%p1336) target = $region96
        $region95: #{part_forward.3} parent=11 // pred_region
          _
        $region96: #{part_forward.3} parent=11 // pred_fallthru
          _
        // Predicated region
        $region97: #{part_forward.3} parent=11 // pred_check
          %p1339 = pneg %p684
        $region98: #{part_forward.3} parent=11 // pred_check_branch
          %1341 = sbr.rel (%p1339) target = $region100
        $region99: #{part_forward.3} parent=11 // pred_region
          _
        $region100: #{part_forward.3} parent=11 // pred_fallthru
          _
        // Predicated region
        $region101: #{part_forward.3} parent=11 // pred_check
          %p1342 = pneg %p705
        $region102: #{part_forward.3} parent=11 // pred_check_branch
          %1344 = sbr.rel (%p1342) target = $region104
        $region103: #{part_forward.3} parent=11 // pred_region
          _
        $region104: #{part_forward.3} parent=11 // pred_fallthru
          _
        // Predicated region
        $region105: #{part_forward.3} parent=11 // pred_check
          %p1345 = pneg %p726
        $region106: #{part_forward.3} parent=11 // pred_check_branch
          %1347 = sbr.rel (%p1345) target = $region108
        $region107: #{part_forward.3} parent=11 // pred_region
          _
        $region108: #{part_forward.3} parent=11 // pred_fallthru
          _
        // Predicated region
        $region109: #{part_forward.3} parent=11 // pred_check
          %p1348 = pneg %p747
        $region110: #{part_forward.3} parent=11 // pred_check_branch
          %1350 = sbr.rel (%p1348) target = $region112
        $region111: #{part_forward.3} parent=11 // pred_region
          _
        $region112: #{part_forward.3} parent=11 // pred_fallthru
          _
        // Predicated region
        $region113: #{part_forward.3} parent=11 // pred_check
          %p1351 = pneg %p768
        $region114: #{part_forward.3} parent=11 // pred_check_branch
          %1353 = sbr.rel (%p1351) target = $region116
        $region115: #{part_forward.3} parent=11 // pred_region
          _
        $region116: #{part_forward.3} parent=11 // pred_fallthru
          _
        // Predicated region
        $region117: #{part_forward.3} parent=11 // pred_check
          %p1354 = pneg %p789
        $region118: #{part_forward.3} parent=11 // pred_check_branch
          %1356 = sbr.rel (%p1354) target = $region120
        $region119: #{part_forward.3} parent=11 // pred_region
          _
        $region120: #{part_forward.3} parent=11 // pred_fallthru
          _
        // Predicated region
        $region121: #{part_forward.3} parent=11 // pred_check
          %p1357 = pneg %p810
        $region122: #{part_forward.3} parent=11 // pred_check_branch
          %1359 = sbr.rel (%p1357) target = $region124
        $region123: #{part_forward.3} parent=11 // pred_region
          _
        $region124: #{part_forward.3} parent=11 // pred_fallthru
          _
        // Predicated region
        $region125: #{part_forward.3} parent=11 // pred_check
          %p1360 = pneg %p831
        $region126: #{part_forward.3} parent=11 // pred_check_branch
          %1362 = sbr.rel (%p1360) target = $region128
        $region127: #{part_forward.3} parent=11 // pred_region
          _
        $region128: #{part_forward.3} parent=11 // pred_fallthru
          _
        // Predicated region
        $region129: #{part_forward.3} parent=11 // pred_check
          %p1363 = pneg %p852
        $region130: #{part_forward.3} parent=11 // pred_check_branch
          %1365 = sbr.rel (%p1363) target = $region132
        $region131: #{part_forward.3} parent=11 // pred_region
          _
        $region132: #{part_forward.3} parent=11 // pred_fallthru
          _
        // Predicated region
        $region133: #{part_forward.3} parent=11 // pred_check
          %p1366 = pneg %p873
        $region134: #{part_forward.3} parent=11 // pred_check_branch
          %1368 = sbr.rel (%p1366) target = $region136
        $region135: #{part_forward.3} parent=11 // pred_region
          _
        $region136: #{part_forward.3} parent=11 // pred_fallthru
          _
        // Predicated region
        $region137: #{part_forward.3} parent=11 // pred_check
          %p1369 = pneg %p894
        $region138: #{part_forward.3} parent=11 // pred_check_branch
          %1371 = sbr.rel (%p1369) target = $region140
        $region139: #{part_forward.3} parent=11 // pred_region
          _
        $region140: #{part_forward.3} parent=11 // pred_fallthru
          _
        // Predicated region
        $region141: #{part_forward.3} parent=11 // pred_check
          %p1372 = pneg %p915
        $region142: #{part_forward.3} parent=11 // pred_check_branch
          %1374 = sbr.rel (%p1372) target = $region144
        $region143: #{part_forward.3} parent=11 // pred_region
          _
        $region144: #{part_forward.3} parent=11 // pred_fallthru
          _
        // Predicated region
        $region145: #{part_forward.3} parent=11 // pred_check
          %p1375 = pneg %p936
        $region146: #{part_forward.3} parent=11 // pred_check_branch
          %1377 = sbr.rel (%p1375) target = $region148
        $region147: #{part_forward.3} parent=11 // pred_region
          _
        $region148: #{part_forward.3} parent=11 // pred_fallthru
          _
        // Predicated region
        $region149: #{part_forward.3} parent=11 // pred_check
          %p1378 = pneg %p957
        $region150: #{part_forward.3} parent=11 // pred_check_branch
          %1380 = sbr.rel (%p1378) target = $region152
        $region151: #{part_forward.3} parent=11 // pred_region
          _
        $region152: #{part_forward.3} parent=11 // pred_fallthru
          _
        // Predicated region
        $region153: #{part_forward.3} parent=11 // pred_check
          %p1381 = pneg %p978
        $region154: #{part_forward.3} parent=11 // pred_check_branch
          %1383 = sbr.rel (%p1381) target = $region156
        $region155: #{part_forward.3} parent=11 // pred_region
          _
        $region156: #{part_forward.3} parent=11 // pred_fallthru
          _
        // Predicated region
        $region157: #{part_forward.3} parent=11 // pred_check
          %p1384 = pneg %p999
        $region158: #{part_forward.3} parent=11 // pred_check_branch
          %1386 = sbr.rel (%p1384) target = $region160
        $region159: #{part_forward.3} parent=11 // pred_region
          _
        $region160: #{part_forward.3} parent=11 // pred_fallthru
          _
        // Predicated region
        $region161: #{part_forward.3} parent=11 // pred_check
          %p1387 = pneg %p1020
        $region162: #{part_forward.3} parent=11 // pred_check_branch
          %1389 = sbr.rel (%p1387) target = $region164
        $region163: #{part_forward.3} parent=11 // pred_region
          _
        $region164: #{part_forward.3} parent=11 // pred_fallthru
          _
        // Predicated region
        $region165: #{part_forward.3} parent=11 // pred_check
          %p1390 = pneg %p1041
        $region166: #{part_forward.3} parent=11 // pred_check_branch
          %1392 = sbr.rel (%p1390) target = $region168
        $region167: #{part_forward.3} parent=11 // pred_region
          _
        $region168: #{part_forward.3} parent=11 // pred_fallthru
          _
        // Predicated region
        $region169: #{part_forward.3} parent=11 // pred_check
          %p1393 = pneg %p1062
        $region170: #{part_forward.3} parent=11 // pred_check_branch
          %1395 = sbr.rel (%p1393) target = $region172
        $region171: #{part_forward.3} parent=11 // pred_region
          _
        $region172: #{part_forward.3} parent=11 // pred_fallthru
          _
        // Predicated region
        $region173: #{part_forward.3} parent=11 // pred_check
          %p1396 = pneg %p1083
        $region174: #{part_forward.3} parent=11 // pred_check_branch
          %1398 = sbr.rel (%p1396) target = $region176
        $region175: #{part_forward.3} parent=11 // pred_region
          _
        $region176: #{part_forward.3} parent=11 // pred_fallthru
          _
        // Predicated region
        $region177: #{part_forward.3} parent=11 // pred_check
          %p1399 = pneg %p1104
        $region178: #{part_forward.3} parent=11 // pred_check_branch
          %1401 = sbr.rel (%p1399) target = $region180
        $region179: #{part_forward.3} parent=11 // pred_region
          _
        $region180: #{part_forward.3} parent=11 // pred_fallthru
          _
        // Predicated region
        $region181: #{part_forward.3} parent=11 // pred_check
          %p1402 = pneg %p1125
        $region182: #{part_forward.3} parent=11 // pred_check_branch
          %1404 = sbr.rel (%p1402) target = $region184
        $region183: #{part_forward.3} parent=11 // pred_region
          _
        $region184: #{part_forward.3} parent=11 // pred_fallthru
          _
        // Predicated region
        $region185: #{part_forward.3} parent=11 // pred_check
          %p1405 = pneg %p1146
        $region186: #{part_forward.3} parent=11 // pred_check_branch
          %1407 = sbr.rel (%p1405) target = $region188
        $region187: #{part_forward.3} parent=11 // pred_region
          _
        $region188: #{part_forward.3} parent=11 // pred_fallthru
          _
        // Predicated region
        $region189: #{part_forward.3} parent=11 // pred_check
          %p1408 = pneg %p1167
        $region190: #{part_forward.3} parent=11 // pred_check_branch
          %1410 = sbr.rel (%p1408) target = $region192
        $region191: #{part_forward.3} parent=11 // pred_region
          _
        $region192: #{part_forward.3} parent=11 // pred_fallthru
          _
        // Predicated region
        $region193: #{part_forward.3} parent=11 // pred_check
          %p1411 = pneg %p1188
        $region194: #{part_forward.3} parent=11 // pred_check_branch
          %1413 = sbr.rel (%p1411) target = $region196
        $region195: #{part_forward.3} parent=11 // pred_region
          _
        $region196: #{part_forward.3} parent=11 // pred_fallthru
          _
        // Predicated region
        $region197: #{part_forward.3} parent=11 // pred_check
          %p1414 = pneg %p1209
        $region198: #{part_forward.3} parent=11 // pred_check_branch
          %1416 = sbr.rel (%p1414) target = $region200
        $region199: #{part_forward.3} parent=11 // pred_region
          _
        $region200: #{part_forward.3} parent=11 // pred_fallthru
          _
      $region12: #{part_forward.3} parent=5 // pred_fallthru
        _
      %p1417 = scmp.lt.s32.totalorder %s118, 2
      // Predicated region
      $region201: #{part_forward.3} parent=5 // pred_check
        %p1418 = pneg %p1417
      $region202: #{part_forward.3} parent=5 // pred_check_branch
        %1420 = sbr.rel (%p1418) target = $region204
      $region203: #{part_forward.3} parent=5 // pred_region
        // Predicated region
        $region205: #{part_forward.3} parent=203 // pred_check
          %p1421 = pneg %p138
        $region206: #{part_forward.3} parent=203 // pred_check_branch
          %1423 = sbr.rel (%p1421) target = $region208
        $region207: #{part_forward.3} parent=203 // pred_region
          %p1424 = scmp.lt.s32.totalorder %s118, 1
          %s1425 = scalar_select %p1424, %s118, 1
          %s1426 = smul.addr %s1425, 8
          %s1427 = scalar_lea.vmem %s1, %s1426
        $region208: #{part_forward.3} parent=203 // pred_fallthru
          _
        // Predicated region
        $region209: #{part_forward.3} parent=203 // pred_check
          %p1428 = pneg %p164
        $region210: #{part_forward.3} parent=203 // pred_check_branch
          %1430 = sbr.rel (%p1428) target = $region212
        $region211: #{part_forward.3} parent=203 // pred_region
          %p1431 = scmp.lt.s32.totalorder %s118, 1
          %s1432 = scalar_select %p1431, %s118, 1
          %s1433 = smul.addr %s1432, 4
          %s1434 = smul.addr %s1433, 8
          %s1435 = scalar_lea.vmem %s3, %s1434
        $region212: #{part_forward.3} parent=203 // pred_fallthru
          _
        // Predicated region
        $region213: #{part_forward.3} parent=203 // pred_check
          %p1436 = pneg %p190
        $region214: #{part_forward.3} parent=203 // pred_check_branch
          %1438 = sbr.rel (%p1436) target = $region216
        $region215: #{part_forward.3} parent=203 // pred_region
          %p1439 = scmp.lt.s32.totalorder %s118, 1
          %s1440 = scalar_select %p1439, %s118, 1
          %s1441 = smul.addr %s1440, 8
          %s1442 = scalar_lea.vmem %s5, %s1441
        $region216: #{part_forward.3} parent=203 // pred_fallthru
          _
        // Predicated region
        $region217: #{part_forward.3} parent=203 // pred_check
          %p1443 = pneg %p216
        $region218: #{part_forward.3} parent=203 // pred_check_branch
          %1445 = sbr.rel (%p1443) target = $region220
        $region219: #{part_forward.3} parent=203 // pred_region
          %p1446 = scmp.lt.s32.totalorder %s118, 1
          %s1447 = scalar_select %p1446, %s118, 1
          %s1448 = scalar_lea.vmem %s7, %s1447
        $region220: #{part_forward.3} parent=203 // pred_fallthru
          _
      $region204: #{part_forward.3} parent=5 // pred_fallthru
        _
      %p1449 = scmp.le.s32.totalorder 1, %s118
      %p1450 = scmp.lt.s32.totalorder %s118, 3
      %p1451 = pnand %p1449, %p1450
      %p1452 = pneg %p1451
      // Predicated region
      $region221: #{part_forward.3} parent=5 // pred_check
        _
      $region222: #{part_forward.3} parent=5 // pred_check_branch
        %1454 = sbr.rel (%p1451) target = $region224
      $region223: #{part_forward.3} parent=5 // pred_region
        %s1455 = ssub.s32 %s118, 1
        %p1456 = scmp.lt.s32.totalorder %s123, 1
        %s1457 = scalar_select %p1456, %s123, 1
        %s1458 = smul.addr %s1457, 8
        %s1459 = scalar_lea.vmem %s1, %s1458
        %p1460 = pneg %p144
        %p1461 = pneg %p141
        %p1462 = scmp.lt.s32.totalorder %s123, 1
        %s1463 = scalar_select %p1462, %s123, 1
        %s1464 = smul.addr %s1463, 4
        %s1465 = smul.addr %s1464, 8
        %s1466 = scalar_lea.vmem %s3, %s1465
        %p1467 = pneg %p170
        %p1468 = pneg %p167
        %p1469 = scmp.lt.s32.totalorder %s123, 1
        %s1470 = scalar_select %p1469, %s123, 1
        %s1471 = smul.addr %s1470, 8
        %s1472 = scalar_lea.vmem %s5, %s1471
        %p1473 = pneg %p196
        %p1474 = pneg %p193
        %p1475 = scmp.lt.s32.totalorder %s123, 1
        %s1476 = scalar_select %p1475, %s123, 1
        %s1477 = scalar_lea.vmem %s7, %s1476
        %p1478 = pneg %p222
        %p1479 = pneg %p219
        %p1480 = pneg %p243
        %p1481 = pneg %p240
        %p1482 = pneg %p264
        %p1483 = pneg %p261
        %p1484 = pneg %p285
        %p1485 = pneg %p282
        %p1486 = pneg %p306
        %p1487 = pneg %p303
        %p1488 = pneg %p327
        %p1489 = pneg %p324
        %p1490 = pneg %p348
        %p1491 = pneg %p345
        %p1492 = pneg %p369
        %p1493 = pneg %p366
        %p1494 = pneg %p390
        %p1495 = pneg %p387
        %p1496 = pneg %p411
        %p1497 = pneg %p408
        %p1498 = pneg %p432
        %p1499 = pneg %p429
        %p1500 = pneg %p453
        %p1501 = pneg %p450
        %p1502 = pneg %p474
        %p1503 = pneg %p471
        %p1504 = pneg %p495
        %p1505 = pneg %p492
        %p1506 = pneg %p516
        %p1507 = pneg %p513
        %p1508 = pneg %p537
        %p1509 = pneg %p534
        %p1510 = pneg %p558
        %p1511 = pneg %p555
        %p1512 = pneg %p579
        %p1513 = pneg %p576
        %p1514 = pneg %p600
        %p1515 = pneg %p597
        %p1516 = pneg %p621
        %p1517 = pneg %p618
        %p1518 = pneg %p642
        %p1519 = pneg %p639
        %p1520 = pneg %p663
        %p1521 = pneg %p660
        %p1522 = pneg %p684
        %p1523 = pneg %p681
        %p1524 = pneg %p705
        %p1525 = pneg %p702
        %p1526 = pneg %p726
        %p1527 = pneg %p723
        %p1528 = pneg %p747
        %p1529 = pneg %p744
        %p1530 = pneg %p768
        %p1531 = pneg %p765
        %p1532 = pneg %p789
        %p1533 = pneg %p786
        %p1534 = pneg %p810
        %p1535 = pneg %p807
        %p1536 = pneg %p831
        %p1537 = pneg %p828
        %p1538 = pneg %p852
        %p1539 = pneg %p849
        %p1540 = pneg %p873
        %p1541 = pneg %p870
        %p1542 = pneg %p894
        %p1543 = pneg %p891
        %p1544 = pneg %p915
        %p1545 = pneg %p912
        %p1546 = pneg %p936
        %p1547 = pneg %p933
        %p1548 = pneg %p957
        %p1549 = pneg %p954
        %p1550 = pneg %p978
        %p1551 = pneg %p975
        %p1552 = pneg %p999
        %p1553 = pneg %p996
        %p1554 = pneg %p1020
        %p1555 = pneg %p1017
        %p1556 = pneg %p1041
        %p1557 = pneg %p1038
        %p1558 = pneg %p1062
        %p1559 = pneg %p1059
        %p1560 = pneg %p1083
        %p1561 = pneg %p1080
        %p1562 = pneg %p1104
        %p1563 = pneg %p1101
        %p1564 = pneg %p1125
        %p1565 = pneg %p1122
        %p1566 = pneg %p1146
        %p1567 = pneg %p1143
        %p1568 = pneg %p1167
        %p1569 = pneg %p1164
        %p1570 = pneg %p1188
        %p1571 = pneg %p1185
        %p1572 = pneg %p1209
        %p1573 = pneg %p1206
        %p1574 = pneg %p1235
        %p1575 = pneg %p1232
        %s1576 = sand.u32 %s1222, 1
        %s1577 = scalar_lea.sflag [#allocation6], %s1576
        %s1578 = sand.u32 %s1222, 1
        %s1579 = scalar_lea.vmem [#allocation5], %s1578
        %p1580 = pneg %p1261
        %p1581 = pneg %p1258
        %s1582 = sand.u32 %s1248, 1
        %s1583 = scalar_lea.sflag [#allocation8], %s1582
        %s1584 = sand.u32 %s1248, 1
        %s1585 = smul.addr %s1584, 32
        %s1586 = scalar_lea.vmem [#allocation7], %s1585
        %p1587 = scmp.lt.s32.totalorder %s123, 1
        %s1588 = scalar_select %p1587, %s123, 1
        %s1589 = smul.addr %s1588, 8
        %s1590 = scalar_lea.vmem %s1, %s1589
        %p1591 = scmp.lt.s32.totalorder %s123, 1
        %s1592 = scalar_select %p1591, %s123, 1
        %s1593 = smul.addr %s1592, 4
        %s1594 = smul.addr %s1593, 8
        %s1595 = scalar_lea.vmem %s3, %s1594
        %p1596 = scmp.lt.s32.totalorder %s123, 1
        %s1597 = scalar_select %p1596, %s123, 1
        %s1598 = smul.addr %s1597, 8
        %s1599 = scalar_lea.vmem %s5, %s1598
        %p1600 = scmp.lt.s32.totalorder %s123, 1
        %s1601 = scalar_select %p1600, %s123, 1
        %s1602 = scalar_lea.vmem %s7, %s1601
        %v1604 = vld [vmem:[%s1590] sm:$0xff]
        %v1605 = vld [vmem:[%s1599] sm:$0xff]
        %v1606 = vld [vmem:[%s1602] sm:$0x1]
        %v1607 = vld [vmem:[%s9] sm:$0x3]
        %v1608 = vld [vmem:[%s11] sm:$0x1]
        %v1609 = vld [vmem:[%s13] sm:$0xf]
        %v1610 = vld [vmem:[%s13 + $0x4] sm:$0xf]
        %v1611 = vld [vmem:[%s13 + $0x8] sm:$0xf]
        %v1612 = vld [vmem:[%s13 + $0xc] sm:$0xf]
        %v1613 = vld [vmem:[%s15] sm:$0x1]
        %v1614 = vpack.c.bf16 %v1604, %v1604
        %v1616 = vlaneseq
        %v1617 = vshrl.u32 %v1616, 7
        %v1618 = vsub.s32 0, %v1617
        %v1619 = vrot.slane %v1608, %v1618
        %vm1621 = vcmask 31744
        %v1623 = vsel %vm1621, %v1614, 0
        %vm1625 = vcmask 1041408
        %v1627 = vsel %vm1625, %v1607, 0
        %1629 = vmatprep.subr.bf16.mxu0 0
        %1630 = vmatpush1.bf16.msra.mxu0 0
        %1631 = vmatprep.subr.bf16.mxu0 0
        %1632 = vmatpush1.bf16.msra.mxu0 0
        %1633 = vmatprep.subr.bf16.mxu0 0
        %1634 = vmatpush1.bf16.msra.mxu0 0
        %1635 = vmatprep.subr.bf16.mxu0 0
        %1636 = vmatpush1.bf16.msra.mxu0 0
        %1637 = vmatprep.subr.bf16.mxu0 0
        %1638 = vmatpush1.bf16.msra.mxu0 0
        %1639 = vmatprep.subr.bf16.mxu0 0
        %1640 = vmatpush1.bf16.msra.mxu0 0
        %1641 = vmatprep.subr.bf16.mxu0 0
        %1642 = vmatpush1.bf16.msra.mxu0 0
        %1643 = vmatprep.subr.bf16.mxu0 0
        %1644 = vmatpush1.bf16.msra.mxu0 %v1627
        %1645 = vmatprep.subr.bf16.mxu0 0
        %1646 = vmatpush2.bf16.msra.mxu0 0
        %1647 = vmatprep.subr.bf16.mxu0 0
        %1648 = vmatpush2.bf16.msra.mxu0 0
        %1649 = vmatprep.subr.bf16.mxu0 0
        %1650 = vmatpush2.bf16.msra.mxu0 0
        %1651 = vmatprep.subr.bf16.mxu0 0
        %1652 = vmatpush2.bf16.msra.mxu0 0
        %1653 = vmatprep.subr.bf16.mxu0 0
        %1654 = vmatpush2.bf16.msra.mxu0 0
        %1655 = vmatprep.subr.bf16.mxu0 0
        %1656 = vmatpush2.bf16.msra.mxu0 0
        %1657 = vmatprep.subr.bf16.mxu0 0
        %1658 = vmatpush2.bf16.msra.mxu0 0
        %1659 = vmatprep.subr.bf16.mxu0 0
        %1660 = vmatpush2.bf16.msra.mxu0 0
        %1661 = vmatprep.mubr.bf16.mxu0 0
        %1662 = vmatmul.mubr.bf16.gmra.mxu0 %v1623
        %v1663 = vpop.f32.mrf.mxu0
        %v1664 = vadd.f32 %v1619, %v1663
        %v1665 = vpop.f32.mrf.mxu0
        %v1666 = vpop.f32.mrf.mxu0
        %v1667 = vpop.f32.mrf.mxu0
        %1668 = vdwg.mxu0
        %v1669 = vmul.f32 %v1664, 0.5
        %v1670 = vmul.f32 %v1664, 0.044715
        %v1671 = vmul.f32 %v1670, %v1664
        %v1672 = vmul.f32 %v1671, %v1664
        %v1673 = vadd.f32 %v1664, %v1672
        %v1674 = vmul.f32 %v1673, 0.7978846
        %v1675 = vtanh.pop %v1674
        %v1676 = vadd.f32 %v1675, 1.0
        %v1677 = vmul.f32 %v1669, %v1676
        %v1678 = vpack.c.bf16 %v1677, %v1677
        %v1680 = vlaneseq
        %v1681 = vshrl.u32 %v1680, 7
        %v1682 = vsub.s32 0, %v1681
        %v1683 = vrot.slane %v1613, %v1682
        %v1689 = vunpack.c.l.b16 %v1609
        %v1690 = vunpack.c.l.b16 %v1610
        %v1691 = vunpack.c.l.b16 %v1611
        %v1692 = vunpack.c.l.b16 %v1612
        %v1693 = vpack.c.b16 %v1690, %v1689
        %v1694 = vpack.c.b16 %v1692, %v1691
        %vm1697 = vcmask 261120
        %v1699 = vsel %vm1697, %v1678, 0
        %1701 = vmatprep.subr.bf16.mxu0 0
        %1702 = vmatpush1.bf16.msra.mxu0 0
        %1703 = vmatprep.subr.bf16.mxu0 0
        %1704 = vmatpush1.bf16.msra.mxu0 0
        %1705 = vmatprep.subr.bf16.mxu0 0
        %1706 = vmatpush1.bf16.msra.mxu0 0
        %1707 = vmatprep.subr.bf16.mxu0 0
        %1708 = vmatpush1.bf16.msra.mxu0 0
        %1709 = vmatprep.subr.bf16.mxu0 0
        %1710 = vmatpush1.bf16.msra.mxu0 0
        %1711 = vmatprep.subr.bf16.mxu0 0
        %1712 = vmatpush1.bf16.msra.mxu0 0
        %1713 = vmatprep.subr.bf16.mxu0 0
        %1714 = vmatpush1.bf16.msra.mxu0 %v1694
        %1715 = vmatprep.subr.bf16.mxu0 0
        %1716 = vmatpush1.bf16.msra.mxu0 %v1693
        %1717 = vmatprep.subr.bf16.mxu0 0
        %1718 = vmatpush2.bf16.msra.mxu0 0
        %1719 = vmatprep.subr.bf16.mxu0 0
        %1720 = vmatpush2.bf16.msra.mxu0 0
        %1721 = vmatprep.subr.bf16.mxu0 0
        %1722 = vmatpush2.bf16.msra.mxu0 0
        %1723 = vmatprep.subr.bf16.mxu0 0
        %1724 = vmatpush2.bf16.msra.mxu0 0
        %1725 = vmatprep.subr.bf16.mxu0 0
        %1726 = vmatpush2.bf16.msra.mxu0 0
        %1727 = vmatprep.subr.bf16.mxu0 0
        %1728 = vmatpush2.bf16.msra.mxu0 0
        %1729 = vmatprep.subr.bf16.mxu0 0
        %1730 = vmatpush2.bf16.msra.mxu0 0
        %1731 = vmatprep.subr.bf16.mxu0 0
        %1732 = vmatpush2.bf16.msra.mxu0 0
        %1733 = vmatprep.mubr.bf16.mxu0 0
        %1734 = vmatmul.mubr.bf16.gmra.mxu0 %v1699
        %v1735 = vpop.f32.mrf.mxu0
        %v1736 = vadd.f32 %v1683, %v1735
        %v1737 = vpop.f32.mrf.mxu0
        %v1738 = vpop.f32.mrf.mxu0
        %v1739 = vpop.f32.mrf.mxu0
        %1740 = vdwg.mxu0
        %v1741 = vmul.f32 %v1736, 0.5
        %v1742 = vmul.f32 %v1736, 0.044715
        %v1743 = vmul.f32 %v1742, %v1736
        %v1744 = vmul.f32 %v1743, %v1736
        %v1745 = vadd.f32 %v1736, %v1744
        %v1746 = vmul.f32 %v1745, 0.7978846
        %v1747 = vtanh.pop %v1746
        %v1748 = vadd.f32 %v1747, 1.0
        %v1749 = vmul.f32 %v1741, %v1748
        %1751 = vset.pattern.permute.xlu0 0
        %1752 = vperm.xlu0 %1751, %v1605
        %v1753 = vpop.permute.xlu0 %1752
        %v1755 = vmul.f32 %v1749, %v1753
        %v1756 = vld [vmem:[%s17] sm:$0x1]
        %v1757 = vld [vmem:[%s19] sm:$0x1]
        %v1758 = vld [vmem:[%s21] sm:$0xf]
        %v1759 = vld [vmem:[%s21 + $0x4] sm:$0xf]
        %v1760 = vld [vmem:[%s21 + $0x8] sm:$0xf]
        %v1761 = vld [vmem:[%s21 + $0xc] sm:$0xf]
        %v1762 = vld [vmem:[%s23] sm:$0x1]
        %v1763 = vld [vmem:[%s25] sm:$0xf]
        %v1764 = vld [vmem:[%s25 + $0x4] sm:$0xf]
        %v1765 = vld [vmem:[%s25 + $0x8] sm:$0xf]
        %v1766 = vld [vmem:[%s25 + $0xc] sm:$0xf]
        %v1767 = vld [vmem:[%s27] sm:$0x1]
        %v1768 = vld [vmem:[%s29] sm:$0x1]
        %v1769 = vld [vmem:[%s31] sm:$0x1]
        %v1770 = vld [vmem:[%s33] sm:$0xf]
        %v1771 = vld [vmem:[%s33 + $0x4] sm:$0xf]
        %v1772 = vld [vmem:[%s33 + $0x8] sm:$0xf]
        %v1773 = vld [vmem:[%s33 + $0xc] sm:$0xf]
        %v1774 = vld [vmem:[%s35] sm:$0x1]
        %v1775 = vld [vmem:[%s37] sm:$0xf]
        %v1776 = vld [vmem:[%s37 + $0x4] sm:$0xf]
        %v1777 = vld [vmem:[%s37 + $0x8] sm:$0xf]
        %v1778 = vld [vmem:[%s37 + $0xc] sm:$0xf]
        %v1779 = vld [vmem:[%s37 + $0x10] sm:$0xf]
        %v1780 = vld [vmem:[%s37 + $0x14] sm:$0xf]
        %v1781 = vld [vmem:[%s37 + $0x18] sm:$0xf]
        %v1782 = vld [vmem:[%s37 + $0x1c] sm:$0xf]
        %v1783 = vld [vmem:[%s39] sm:$0x1]
        %v1784 = vsel %vm1697, %v1755, 0.0
        %1785 = vadd.xlane.f32.xlu0 %v1784
        %v1786 = vpop.xlane.xlu0 %1785
        %v1787 = vrcp.pop 32.0
        %v1788 = vmul.f32 %v1786, %v1787
        %v1789 = vsub.f32 %v1755, %v1788
        %v1790 = vmul.f32 %v1789, %v1789
        %v1791 = vsel %vm1697, %v1790, 0.0
        %1792 = vadd.xlane.f32.xlu0 %v1791
        %v1793 = vpop.xlane.xlu0 %1792
        %v1794 = vmul.f32 %v1793, %v1787
        %v1795 = vadd.f32 %v1794, 1e-05
        %v1796 = vrsqrt.pop %v1795
        %v1797 = vmul.f32 %v1789, %v1796
        %v1799 = vlaneseq
        %v1800 = vshrl.u32 %v1799, 7
        %v1801 = vsub.s32 0, %v1800
        %v1802 = vrot.slane %v1756, %v1801
        %v1804 = vmul.f32 %v1797, %v1802
        %v1806 = vlaneseq
        %v1807 = vshrl.u32 %v1806, 7
        %v1808 = vsub.s32 0, %v1807
        %v1809 = vrot.slane %v1757, %v1808
        %v1811 = vadd.f32 %v1804, %v1809
        %v1812 = vpack.c.bf16 %v1811, %v1811
        %v1814 = vlaneseq
        %v1815 = vshrl.u32 %v1814, 7
        %v1816 = vsub.s32 0, %v1815
        %v1817 = vrot.slane %v1762, %v1816
        %v1823 = vunpack.c.l.b16 %v1758
        %v1824 = vunpack.c.l.b16 %v1759
        %v1825 = vunpack.c.l.b16 %v1760
        %v1826 = vunpack.c.l.b16 %v1761
        %v1827 = vpack.c.b16 %v1824, %v1823
        %v1828 = vpack.c.b16 %v1826, %v1825
        %v1832 = vsel %vm1697, %v1812, 0
        %1834 = vmatprep.subr.bf16.mxu0 0
        %1835 = vmatpush1.bf16.msra.mxu0 0
        %1836 = vmatprep.subr.bf16.mxu0 0
        %1837 = vmatpush1.bf16.msra.mxu0 0
        %1838 = vmatprep.subr.bf16.mxu0 0
        %1839 = vmatpush1.bf16.msra.mxu0 0
        %1840 = vmatprep.subr.bf16.mxu0 0
        %1841 = vmatpush1.bf16.msra.mxu0 0
        %1842 = vmatprep.subr.bf16.mxu0 0
        %1843 = vmatpush1.bf16.msra.mxu0 0
        %1844 = vmatprep.subr.bf16.mxu0 0
        %1845 = vmatpush1.bf16.msra.mxu0 0
        %1846 = vmatprep.subr.bf16.mxu0 0
        %1847 = vmatpush1.bf16.msra.mxu0 %v1828
        %1848 = vmatprep.subr.bf16.mxu0 0
        %1849 = vmatpush1.bf16.msra.mxu0 %v1827
        %1850 = vmatprep.subr.bf16.mxu0 0
        %1851 = vmatpush2.bf16.msra.mxu0 0
        %1852 = vmatprep.subr.bf16.mxu0 0
        %1853 = vmatpush2.bf16.msra.mxu0 0
        %1854 = vmatprep.subr.bf16.mxu0 0
        %1855 = vmatpush2.bf16.msra.mxu0 0
        %1856 = vmatprep.subr.bf16.mxu0 0
        %1857 = vmatpush2.bf16.msra.mxu0 0
        %1858 = vmatprep.subr.bf16.mxu0 0
        %1859 = vmatpush2.bf16.msra.mxu0 0
        %1860 = vmatprep.subr.bf16.mxu0 0
        %1861 = vmatpush2.bf16.msra.mxu0 0
        %1862 = vmatprep.subr.bf16.mxu0 0
        %1863 = vmatpush2.bf16.msra.mxu0 0
        %1864 = vmatprep.subr.bf16.mxu0 0
        %1865 = vmatpush2.bf16.msra.mxu0 0
        %1866 = vmatprep.mubr.bf16.mxu0 0
        %1867 = vmatmul.mubr.bf16.gmra.mxu0 %v1832
        %v1868 = vpop.f32.mrf.mxu0
        %v1869 = vadd.f32 %v1817, %v1868
        %v1870 = vpop.f32.mrf.mxu0
        %v1871 = vpop.f32.mrf.mxu0
        %v1872 = vpop.f32.mrf.mxu0
        %1873 = vdwg.mxu0
        %v1874 = vld [vmem:[%s1595] sm:$0xff]
        %v1875 = vpack.c.bf16 %v1869, %v1869
        %1877 = vrot.lane.b32.xlu0 %v1875, 96
        %v1878 = vpop.permute.xlu0 %1877
        %vm1879 = vcmask 64512
        %v1881 = vsel %vm1879, %v1875, 0
        %v1884 = vsel %vm1879, %v1878, 0
        %1886 = vmatprep.subr.bf16.mxu0 0
        %1887 = vmatpush1.bf16.xpose.msra.mxu0 0
        %1888 = vmatprep.subr.bf16.mxu0 0
        %1889 = vmatpush1.bf16.xpose.msra.mxu0 0
        %1890 = vmatprep.subr.bf16.mxu0 0
        %1891 = vmatpush1.bf16.xpose.msra.mxu0 0
        %1892 = vmatprep.subr.bf16.mxu0 0
        %1893 = vmatpush1.bf16.xpose.msra.mxu0 0
        %1894 = vmatprep.subr.bf16.mxu0 0
        %1895 = vmatpush1.bf16.xpose.msra.mxu0 0
        %1896 = vmatprep.subr.bf16.mxu0 0
        %1897 = vmatpush1.bf16.xpose.msra.mxu0 0
        %1898 = vmatprep.subr.bf16.mxu0 0
        %1899 = vmatpush1.bf16.xpose.msra.mxu0 0
        %1900 = vmatprep.subr.bf16.mxu0 0
        %1901 = vmatpush1.bf16.xpose.msra.mxu0 %v1884
        %1902 = vmatprep.subr.bf16.mxu0 0
        %1903 = vmatpush2.bf16.xpose.msra.mxu0 0
        %1904 = vmatprep.subr.bf16.mxu0 0
        %1905 = vmatpush2.bf16.xpose.msra.mxu0 0
        %1906 = vmatprep.subr.bf16.mxu0 0
        %1907 = vmatpush2.bf16.xpose.msra.mxu0 0
        %1908 = vmatprep.subr.bf16.mxu0 0
        %1909 = vmatpush2.bf16.xpose.msra.mxu0 0
        %1910 = vmatprep.subr.bf16.mxu0 0
        %1911 = vmatpush2.bf16.xpose.msra.mxu0 0
        %1912 = vmatprep.subr.bf16.mxu0 0
        %1913 = vmatpush2.bf16.xpose.msra.mxu0 0
        %1914 = vmatprep.subr.bf16.mxu0 0
        %1915 = vmatpush2.bf16.xpose.msra.mxu0 0
        %1916 = vmatprep.subr.bf16.mxu0 0
        %1917 = vmatpush2.bf16.xpose.msra.mxu0 0
        %1918 = vmatprep.mubr.bf16.mxu0 0
        %1919 = vmatmul.mubr.bf16.gmra.mxu0 %v1881
        %v1920 = vpop.f32.mrf.mxu0
        %v1921 = vadd.f32 0.0, %v1920
        %v1922 = vpop.f32.mrf.mxu0
        %v1923 = vpop.f32.mrf.mxu0
        %v1924 = vpop.f32.mrf.mxu0
        %1925 = vdwg.mxu0
        %v1926 = vmul.f32 %v1921, 0.35355338
        %v1927 = vadd.f32 %v1926, %v1874
        %v1928 = vsel %vm1879, %v1927, -inf
        %1929 = vmax.xlane.f32.xlu0 %v1928
        %v1930 = vpop.xlane.xlu0 %1929
        %v1931 = vsub.f32 %v1927, %v1930
        %v1932 = vmul.f32 %v1931, 1.442695
        %v1933 = vpow.pop %v1932
        %v1934 = vsel %vm1879, %v1933, 0.0
        %1935 = vadd.xlane.f32.xlu0 %v1934
        %v1936 = vpop.xlane.xlu0 %1935
        %v1937 = vrcp.pop %v1936
        %v1938 = vmul.f32 %v1933, %v1937
        %v1939 = vpack.c.bf16 %v1938, %v1938
        %1940 = vrot.lane.b32.xlu0 %v1875, 64
        %v1941 = vpop.permute.xlu0 %1940
        %v1943 = vsel %vm1879, %v1939, 0
        %vm1945 = vcmask 1043456
        %v1947 = vsel %vm1945, %v1941, 0
        %1949 = vmatprep.subr.bf16.mxu0 0
        %1950 = vmatpush1.bf16.msra.mxu0 0
        %1951 = vmatprep.subr.bf16.mxu0 0
        %1952 = vmatpush1.bf16.msra.mxu0 0
        %1953 = vmatprep.subr.bf16.mxu0 0
        %1954 = vmatpush1.bf16.msra.mxu0 0
        %1955 = vmatprep.subr.bf16.mxu0 0
        %1956 = vmatpush1.bf16.msra.mxu0 0
        %1957 = vmatprep.subr.bf16.mxu0 0
        %1958 = vmatpush1.bf16.msra.mxu0 0
        %1959 = vmatprep.subr.bf16.mxu0 0
        %1960 = vmatpush1.bf16.msra.mxu0 0
        %1961 = vmatprep.subr.bf16.mxu0 0
        %1962 = vmatpush1.bf16.msra.mxu0 0
        %1963 = vmatprep.subr.bf16.mxu0 0
        %1964 = vmatpush1.bf16.msra.mxu0 %v1947
        %1965 = vmatprep.subr.bf16.mxu0 0
        %1966 = vmatpush2.bf16.msra.mxu0 0
        %1967 = vmatprep.subr.bf16.mxu0 0
        %1968 = vmatpush2.bf16.msra.mxu0 0
        %1969 = vmatprep.subr.bf16.mxu0 0
        %1970 = vmatpush2.bf16.msra.mxu0 0
        %1971 = vmatprep.subr.bf16.mxu0 0
        %1972 = vmatpush2.bf16.msra.mxu0 0
        %1973 = vmatprep.subr.bf16.mxu0 0
        %1974 = vmatpush2.bf16.msra.mxu0 0
        %1975 = vmatprep.subr.bf16.mxu0 0
        %1976 = vmatpush2.bf16.msra.mxu0 0
        %1977 = vmatprep.subr.bf16.mxu0 0
        %1978 = vmatpush2.bf16.msra.mxu0 0
        %1979 = vmatprep.subr.bf16.mxu0 0
        %1980 = vmatpush2.bf16.msra.mxu0 0
        %1981 = vmatprep.mubr.bf16.mxu0 0
        %1982 = vmatmul.mubr.bf16.gmra.mxu0 %v1943
        %v1983 = vpop.f32.mrf.mxu0
        %v1984 = vadd.f32 0.0, %v1983
        %v1985 = vpop.f32.mrf.mxu0
        %v1986 = vpop.f32.mrf.mxu0
        %v1987 = vpop.f32.mrf.mxu0
        %1988 = vdwg.mxu0
        %1989 = vst.msk [vmem:[#allocation4] sm:$0xff] %vm1879, %v1984
        %s1990 = scalar_lea.vmem %s1595, 8
        %v1991 = vld [vmem:[%s1990] sm:$0xff]
        %1992 = vrot.lane.b32.xlu0 %v1875, 120
        %v1993 = vpop.permute.xlu0 %1992
        %1994 = vrot.lane.b32.xlu0 %v1875, 88
        %v1995 = vpop.permute.xlu0 %1994
        %v1997 = vsel %vm1879, %v1993, 0
        %v2000 = vsel %vm1879, %v1995, 0
        %2002 = vmatprep.subr.bf16.mxu0 0
        %2003 = vmatpush1.bf16.xpose.msra.mxu0 0
        %2004 = vmatprep.subr.bf16.mxu0 0
        %2005 = vmatpush1.bf16.xpose.msra.mxu0 0
        %2006 = vmatprep.subr.bf16.mxu0 0
        %2007 = vmatpush1.bf16.xpose.msra.mxu0 0
        %2008 = vmatprep.subr.bf16.mxu0 0
        %2009 = vmatpush1.bf16.xpose.msra.mxu0 0
        %2010 = vmatprep.subr.bf16.mxu0 0
        %2011 = vmatpush1.bf16.xpose.msra.mxu0 0
        %2012 = vmatprep.subr.bf16.mxu0 0
        %2013 = vmatpush1.bf16.xpose.msra.mxu0 0
        %2014 = vmatprep.subr.bf16.mxu0 0
        %2015 = vmatpush1.bf16.xpose.msra.mxu0 0
        %2016 = vmatprep.subr.bf16.mxu0 0
        %2017 = vmatpush1.bf16.xpose.msra.mxu0 %v2000
        %2018 = vmatprep.subr.bf16.mxu0 0
        %2019 = vmatpush2.bf16.xpose.msra.mxu0 0
        %2020 = vmatprep.subr.bf16.mxu0 0
        %2021 = vmatpush2.bf16.xpose.msra.mxu0 0
        %2022 = vmatprep.subr.bf16.mxu0 0
        %2023 = vmatpush2.bf16.xpose.msra.mxu0 0
        %2024 = vmatprep.subr.bf16.mxu0 0
        %2025 = vmatpush2.bf16.xpose.msra.mxu0 0
        %2026 = vmatprep.subr.bf16.mxu0 0
        %2027 = vmatpush2.bf16.xpose.msra.mxu0 0
        %2028 = vmatprep.subr.bf16.mxu0 0
        %2029 = vmatpush2.bf16.xpose.msra.mxu0 0
        %2030 = vmatprep.subr.bf16.mxu0 0
        %2031 = vmatpush2.bf16.xpose.msra.mxu0 0
        %2032 = vmatprep.subr.bf16.mxu0 0
        %2033 = vmatpush2.bf16.xpose.msra.mxu0 0
        %2034 = vmatprep.mubr.bf16.mxu0 0
        %2035 = vmatmul.mubr.bf16.gmra.mxu0 %v1997
        %v2036 = vpop.f32.mrf.mxu0
        %v2037 = vadd.f32 0.0, %v2036
        %v2038 = vpop.f32.mrf.mxu0
        %v2039 = vpop.f32.mrf.mxu0
        %v2040 = vpop.f32.mrf.mxu0
        %2041 = vdwg.mxu0
        %v2042 = vmul.f32 %v2037, 0.35355338
        %v2043 = vadd.f32 %v2042, %v1991
        %v2044 = vsel %vm1879, %v2043, -inf
        %2045 = vmax.xlane.f32.xlu0 %v2044
        %v2046 = vpop.xlane.xlu0 %2045
        %v2047 = vsub.f32 %v2043, %v2046
        %v2048 = vmul.f32 %v2047, 1.442695
        %v2049 = vpow.pop %v2048
        %v2050 = vsel %vm1879, %v2049, 0.0
        %2051 = vadd.xlane.f32.xlu0 %v2050
        %v2052 = vpop.xlane.xlu0 %2051
        %v2053 = vrcp.pop %v2052
        %v2054 = vmul.f32 %v2049, %v2053
        %v2055 = vpack.c.bf16 %v2054, %v2054
        %2056 = vrot.lane.b32.xlu0 %v1875, 56
        %v2057 = vpop.permute.xlu0 %2056
        %v2059 = vsel %vm1879, %v2055, 0
        %v2062 = vsel %vm1945, %v2057, 0
        %2064 = vmatprep.subr.bf16.mxu0 0
        %2065 = vmatpush1.bf16.msra.mxu0 0
        %2066 = vmatprep.subr.bf16.mxu0 0
        %2067 = vmatpush1.bf16.msra.mxu0 0
        %2068 = vmatprep.subr.bf16.mxu0 0
        %2069 = vmatpush1.bf16.msra.mxu0 0
        %2070 = vmatprep.subr.bf16.mxu0 0
        %2071 = vmatpush1.bf16.msra.mxu0 0
        %2072 = vmatprep.subr.bf16.mxu0 0
        %2073 = vmatpush1.bf16.msra.mxu0 0
        %2074 = vmatprep.subr.bf16.mxu0 0
        %2075 = vmatpush1.bf16.msra.mxu0 0
        %2076 = vmatprep.subr.bf16.mxu0 0
        %2077 = vmatpush1.bf16.msra.mxu0 0
        %2078 = vmatprep.subr.bf16.mxu0 0
        %2079 = vmatpush1.bf16.msra.mxu0 %v2062
        %2080 = vmatprep.subr.bf16.mxu0 0
        %2081 = vmatpush2.bf16.msra.mxu0 0
        %2082 = vmatprep.subr.bf16.mxu0 0
        %2083 = vmatpush2.bf16.msra.mxu0 0
        %2084 = vmatprep.subr.bf16.mxu0 0
        %2085 = vmatpush2.bf16.msra.mxu0 0
        %2086 = vmatprep.subr.bf16.mxu0 0
        %2087 = vmatpush2.bf16.msra.mxu0 0
        %2088 = vmatprep.subr.bf16.mxu0 0
        %2089 = vmatpush2.bf16.msra.mxu0 0
        %2090 = vmatprep.subr.bf16.mxu0 0
        %2091 = vmatpush2.bf16.msra.mxu0 0
        %2092 = vmatprep.subr.bf16.mxu0 0
        %2093 = vmatpush2.bf16.msra.mxu0 0
        %2094 = vmatprep.subr.bf16.mxu0 0
        %2095 = vmatpush2.bf16.msra.mxu0 0
        %2096 = vmatprep.mubr.bf16.mxu0 0
        %2097 = vmatmul.mubr.bf16.gmra.mxu0 %v2059
        %v2098 = vpop.f32.mrf.mxu0
        %v2099 = vadd.f32 0.0, %v2098
        %v2100 = vpop.f32.mrf.mxu0
        %v2101 = vpop.f32.mrf.mxu0
        %v2102 = vpop.f32.mrf.mxu0
        %2103 = vdwg.mxu0
        %2105 = vrot.lane.b32.xlu0 %v2099, 8
        %v2106 = vpop.permute.xlu0 %2105
        %vm2108 = vcmask 130112
        %2109 = vst.msk [vmem:[#allocation4] sm:$0xff] %vm2108, %v2106
        %s2110 = scalar_lea.vmem %s1595, 16
        %v2111 = vld [vmem:[%s2110] sm:$0xff]
        %2112 = vrot.lane.b32.xlu0 %v1875, 112
        %v2113 = vpop.permute.xlu0 %2112
        %2114 = vrot.lane.b32.xlu0 %v1875, 80
        %v2115 = vpop.permute.xlu0 %2114
        %v2117 = vsel %vm1879, %v2113, 0
        %v2120 = vsel %vm1879, %v2115, 0
        %2122 = vmatprep.subr.bf16.mxu0 0
        %2123 = vmatpush1.bf16.xpose.msra.mxu0 0
        %2124 = vmatprep.subr.bf16.mxu0 0
        %2125 = vmatpush1.bf16.xpose.msra.mxu0 0
        %2126 = vmatprep.subr.bf16.mxu0 0
        %2127 = vmatpush1.bf16.xpose.msra.mxu0 0
        %2128 = vmatprep.subr.bf16.mxu0 0
        %2129 = vmatpush1.bf16.xpose.msra.mxu0 0
        %2130 = vmatprep.subr.bf16.mxu0 0
        %2131 = vmatpush1.bf16.xpose.msra.mxu0 0
        %2132 = vmatprep.subr.bf16.mxu0 0
        %2133 = vmatpush1.bf16.xpose.msra.mxu0 0
        %2134 = vmatprep.subr.bf16.mxu0 0
        %2135 = vmatpush1.bf16.xpose.msra.mxu0 0
        %2136 = vmatprep.subr.bf16.mxu0 0
        %2137 = vmatpush1.bf16.xpose.msra.mxu0 %v2120
        %2138 = vmatprep.subr.bf16.mxu0 0
        %2139 = vmatpush2.bf16.xpose.msra.mxu0 0
        %2140 = vmatprep.subr.bf16.mxu0 0
        %2141 = vmatpush2.bf16.xpose.msra.mxu0 0
        %2142 = vmatprep.subr.bf16.mxu0 0
        %2143 = vmatpush2.bf16.xpose.msra.mxu0 0
        %2144 = vmatprep.subr.bf16.mxu0 0
        %2145 = vmatpush2.bf16.xpose.msra.mxu0 0
        %2146 = vmatprep.subr.bf16.mxu0 0
        %2147 = vmatpush2.bf16.xpose.msra.mxu0 0
        %2148 = vmatprep.subr.bf16.mxu0 0
        %2149 = vmatpush2.bf16.xpose.msra.mxu0 0
        %2150 = vmatprep.subr.bf16.mxu0 0
        %2151 = vmatpush2.bf16.xpose.msra.mxu0 0
        %2152 = vmatprep.subr.bf16.mxu0 0
        %2153 = vmatpush2.bf16.xpose.msra.mxu0 0
        %2154 = vmatprep.mubr.bf16.mxu0 0
        %2155 = vmatmul.mubr.bf16.gmra.mxu0 %v2117
        %v2156 = vpop.f32.mrf.mxu0
        %v2157 = vadd.f32 0.0, %v2156
        %v2158 = vpop.f32.mrf.mxu0
        %v2159 = vpop.f32.mrf.mxu0
        %v2160 = vpop.f32.mrf.mxu0
        %2161 = vdwg.mxu0
        %v2162 = vmul.f32 %v2157, 0.35355338
        %v2163 = vadd.f32 %v2162, %v2111
        %v2164 = vsel %vm1879, %v2163, -inf
        %2165 = vmax.xlane.f32.xlu0 %v2164
        %v2166 = vpop.xlane.xlu0 %2165
        %v2167 = vsub.f32 %v2163, %v2166
        %v2168 = vmul.f32 %v2167, 1.442695
        %v2169 = vpow.pop %v2168
        %v2170 = vsel %vm1879, %v2169, 0.0
        %2171 = vadd.xlane.f32.xlu0 %v2170
        %v2172 = vpop.xlane.xlu0 %2171
        %v2173 = vrcp.pop %v2172
        %v2174 = vmul.f32 %v2169, %v2173
        %v2175 = vpack.c.bf16 %v2174, %v2174
        %2176 = vrot.lane.b32.xlu0 %v1875, 48
        %v2177 = vpop.permute.xlu0 %2176
        %v2179 = vsel %vm1879, %v2175, 0
        %v2182 = vsel %vm1945, %v2177, 0
        %2184 = vmatprep.subr.bf16.mxu0 0
        %2185 = vmatpush1.bf16.msra.mxu0 0
        %2186 = vmatprep.subr.bf16.mxu0 0
        %2187 = vmatpush1.bf16.msra.mxu0 0
        %2188 = vmatprep.subr.bf16.mxu0 0
        %2189 = vmatpush1.bf16.msra.mxu0 0
        %2190 = vmatprep.subr.bf16.mxu0 0
        %2191 = vmatpush1.bf16.msra.mxu0 0
        %2192 = vmatprep.subr.bf16.mxu0 0
        %2193 = vmatpush1.bf16.msra.mxu0 0
        %2194 = vmatprep.subr.bf16.mxu0 0
        %2195 = vmatpush1.bf16.msra.mxu0 0
        %2196 = vmatprep.subr.bf16.mxu0 0
        %2197 = vmatpush1.bf16.msra.mxu0 0
        %2198 = vmatprep.subr.bf16.mxu0 0
        %2199 = vmatpush1.bf16.msra.mxu0 %v2182
        %2200 = vmatprep.subr.bf16.mxu0 0
        %2201 = vmatpush2.bf16.msra.mxu0 0
        %2202 = vmatprep.subr.bf16.mxu0 0
        %2203 = vmatpush2.bf16.msra.mxu0 0
        %2204 = vmatprep.subr.bf16.mxu0 0
        %2205 = vmatpush2.bf16.msra.mxu0 0
        %2206 = vmatprep.subr.bf16.mxu0 0
        %2207 = vmatpush2.bf16.msra.mxu0 0
        %2208 = vmatprep.subr.bf16.mxu0 0
        %2209 = vmatpush2.bf16.msra.mxu0 0
        %2210 = vmatprep.subr.bf16.mxu0 0
        %2211 = vmatpush2.bf16.msra.mxu0 0
        %2212 = vmatprep.subr.bf16.mxu0 0
        %2213 = vmatpush2.bf16.msra.mxu0 0
        %2214 = vmatprep.subr.bf16.mxu0 0
        %2215 = vmatpush2.bf16.msra.mxu0 0
        %2216 = vmatprep.mubr.bf16.mxu0 0
        %2217 = vmatmul.mubr.bf16.gmra.mxu0 %v2179
        %v2218 = vpop.f32.mrf.mxu0
        %v2219 = vadd.f32 0.0, %v2218
        %v2220 = vpop.f32.mrf.mxu0
        %v2221 = vpop.f32.mrf.mxu0
        %v2222 = vpop.f32.mrf.mxu0
        %2223 = vdwg.mxu0
        %2225 = vrot.lane.b32.xlu0 %v2219, 16
        %v2226 = vpop.permute.xlu0 %2225
        %vm2228 = vcmask 195712
        %2229 = vst.msk [vmem:[#allocation4] sm:$0xff] %vm2228, %v2226
        %s2230 = scalar_lea.vmem %s1595, 24
        %v2231 = vld [vmem:[%s2230] sm:$0xff]
        %2232 = vrot.lane.b32.xlu0 %v1875, 104
        %v2233 = vpop.permute.xlu0 %2232
        %2234 = vrot.lane.b32.xlu0 %v1875, 72
        %v2235 = vpop.permute.xlu0 %2234
        %v2237 = vsel %vm1879, %v2233, 0
        %v2240 = vsel %vm1879, %v2235, 0
        %2242 = vmatprep.subr.bf16.mxu0 0
        %2243 = vmatpush1.bf16.xpose.msra.mxu0 0
        %2244 = vmatprep.subr.bf16.mxu0 0
        %2245 = vmatpush1.bf16.xpose.msra.mxu0 0
        %2246 = vmatprep.subr.bf16.mxu0 0
        %2247 = vmatpush1.bf16.xpose.msra.mxu0 0
        %2248 = vmatprep.subr.bf16.mxu0 0
        %2249 = vmatpush1.bf16.xpose.msra.mxu0 0
        %2250 = vmatprep.subr.bf16.mxu0 0
        %2251 = vmatpush1.bf16.xpose.msra.mxu0 0
        %2252 = vmatprep.subr.bf16.mxu0 0
        %2253 = vmatpush1.bf16.xpose.msra.mxu0 0
        %2254 = vmatprep.subr.bf16.mxu0 0
        %2255 = vmatpush1.bf16.xpose.msra.mxu0 0
        %2256 = vmatprep.subr.bf16.mxu0 0
        %2257 = vmatpush1.bf16.xpose.msra.mxu0 %v2240
        %2258 = vmatprep.subr.bf16.mxu0 0
        %2259 = vmatpush2.bf16.xpose.msra.mxu0 0
        %2260 = vmatprep.subr.bf16.mxu0 0
        %2261 = vmatpush2.bf16.xpose.msra.mxu0 0
        %2262 = vmatprep.subr.bf16.mxu0 0
        %2263 = vmatpush2.bf16.xpose.msra.mxu0 0
        %2264 = vmatprep.subr.bf16.mxu0 0
        %2265 = vmatpush2.bf16.xpose.msra.mxu0 0
        %2266 = vmatprep.subr.bf16.mxu0 0
        %2267 = vmatpush2.bf16.xpose.msra.mxu0 0
        %2268 = vmatprep.subr.bf16.mxu0 0
        %2269 = vmatpush2.bf16.xpose.msra.mxu0 0
        %2270 = vmatprep.subr.bf16.mxu0 0
        %2271 = vmatpush2.bf16.xpose.msra.mxu0 0
        %2272 = vmatprep.subr.bf16.mxu0 0
        %2273 = vmatpush2.bf16.xpose.msra.mxu0 0
        %2274 = vmatprep.mubr.bf16.mxu0 0
        %2275 = vmatmul.mubr.bf16.gmra.mxu0 %v2237
        %v2276 = vpop.f32.mrf.mxu0
        %v2277 = vadd.f32 0.0, %v2276
        %v2278 = vpop.f32.mrf.mxu0
        %v2279 = vpop.f32.mrf.mxu0
        %v2280 = vpop.f32.mrf.mxu0
        %2281 = vdwg.mxu0
        %v2282 = vmul.f32 %v2277, 0.35355338
        %v2283 = vadd.f32 %v2282, %v2231
        %v2284 = vsel %vm1879, %v2283, -inf
        %2285 = vmax.xlane.f32.xlu0 %v2284
        %v2286 = vpop.xlane.xlu0 %2285
        %v2287 = vsub.f32 %v2283, %v2286
        %v2288 = vmul.f32 %v2287, 1.442695
        %v2289 = vpow.pop %v2288
        %v2290 = vsel %vm1879, %v2289, 0.0
        %2291 = vadd.xlane.f32.xlu0 %v2290
        %v2292 = vpop.xlane.xlu0 %2291
        %v2293 = vrcp.pop %v2292
        %v2294 = vmul.f32 %v2289, %v2293
        %v2295 = vpack.c.bf16 %v2294, %v2294
        %2296 = vrot.lane.b32.xlu0 %v1875, 40
        %v2297 = vpop.permute.xlu0 %2296
        %v2299 = vsel %vm1879, %v2295, 0
        %v2302 = vsel %vm1945, %v2297, 0
        %2304 = vmatprep.subr.bf16.mxu0 0
        %2305 = vmatpush1.bf16.msra.mxu0 0
        %2306 = vmatprep.subr.bf16.mxu0 0
        %2307 = vmatpush1.bf16.msra.mxu0 0
        %2308 = vmatprep.subr.bf16.mxu0 0
        %2309 = vmatpush1.bf16.msra.mxu0 0
        %2310 = vmatprep.subr.bf16.mxu0 0
        %2311 = vmatpush1.bf16.msra.mxu0 0
        %2312 = vmatprep.subr.bf16.mxu0 0
        %2313 = vmatpush1.bf16.msra.mxu0 0
        %2314 = vmatprep.subr.bf16.mxu0 0
        %2315 = vmatpush1.bf16.msra.mxu0 0
        %2316 = vmatprep.subr.bf16.mxu0 0
        %2317 = vmatpush1.bf16.msra.mxu0 0
        %2318 = vmatprep.subr.bf16.mxu0 0
        %2319 = vmatpush1.bf16.msra.mxu0 %v2302
        %2320 = vmatprep.subr.bf16.mxu0 0
        %2321 = vmatpush2.bf16.msra.mxu0 0
        %2322 = vmatprep.subr.bf16.mxu0 0
        %2323 = vmatpush2.bf16.msra.mxu0 0
        %2324 = vmatprep.subr.bf16.mxu0 0
        %2325 = vmatpush2.bf16.msra.mxu0 0
        %2326 = vmatprep.subr.bf16.mxu0 0
        %2327 = vmatpush2.bf16.msra.mxu0 0
        %2328 = vmatprep.subr.bf16.mxu0 0
        %2329 = vmatpush2.bf16.msra.mxu0 0
        %2330 = vmatprep.subr.bf16.mxu0 0
        %2331 = vmatpush2.bf16.msra.mxu0 0
        %2332 = vmatprep.subr.bf16.mxu0 0
        %2333 = vmatpush2.bf16.msra.mxu0 0
        %2334 = vmatprep.subr.bf16.mxu0 0
        %2335 = vmatpush2.bf16.msra.mxu0 0
        %2336 = vmatprep.mubr.bf16.mxu0 0
        %2337 = vmatmul.mubr.bf16.gmra.mxu0 %v2299
        %v2338 = vpop.f32.mrf.mxu0
        %v2339 = vadd.f32 0.0, %v2338
        %v2340 = vpop.f32.mrf.mxu0
        %v2341 = vpop.f32.mrf.mxu0
        %v2342 = vpop.f32.mrf.mxu0
        %2343 = vdwg.mxu0
        %2345 = vrot.lane.b32.xlu0 %v2339, 24
        %v2346 = vpop.permute.xlu0 %2345
        %vm2348 = vcmask 261312
        %2349 = vst.msk [vmem:[#allocation4] sm:$0xff] %vm2348, %v2346
        %v2350 = vld [vmem:[#allocation4] sm:$0xff]
        %v2351 = vpack.c.bf16 %v2350, %v2350
        %v2353 = vlaneseq
        %v2354 = vshrl.u32 %v2353, 7
        %v2355 = vsub.s32 0, %v2354
        %v2356 = vrot.slane %v1767, %v2355
        %v2362 = vunpack.c.l.b16 %v1763
        %v2363 = vunpack.c.l.b16 %v1764
        %v2364 = vunpack.c.l.b16 %v1765
        %v2365 = vunpack.c.l.b16 %v1766
        %v2366 = vpack.c.b16 %v2363, %v2362
        %v2367 = vpack.c.b16 %v2365, %v2364
        %v2371 = vsel %vm1697, %v2351, 0
        %2373 = vmatprep.subr.bf16.mxu0 0
        %2374 = vmatpush1.bf16.msra.mxu0 0
        %2375 = vmatprep.subr.bf16.mxu0 0
        %2376 = vmatpush1.bf16.msra.mxu0 0
        %2377 = vmatprep.subr.bf16.mxu0 0
        %2378 = vmatpush1.bf16.msra.mxu0 0
        %2379 = vmatprep.subr.bf16.mxu0 0
        %2380 = vmatpush1.bf16.msra.mxu0 0
        %2381 = vmatprep.subr.bf16.mxu0 0
        %2382 = vmatpush1.bf16.msra.mxu0 0
        %2383 = vmatprep.subr.bf16.mxu0 0
        %2384 = vmatpush1.bf16.msra.mxu0 0
        %2385 = vmatprep.subr.bf16.mxu0 0
        %2386 = vmatpush1.bf16.msra.mxu0 %v2367
        %2387 = vmatprep.subr.bf16.mxu0 0
        %2388 = vmatpush1.bf16.msra.mxu0 %v2366
        %2389 = vmatprep.subr.bf16.mxu0 0
        %2390 = vmatpush2.bf16.msra.mxu0 0
        %2391 = vmatprep.subr.bf16.mxu0 0
        %2392 = vmatpush2.bf16.msra.mxu0 0
        %2393 = vmatprep.subr.bf16.mxu0 0
        %2394 = vmatpush2.bf16.msra.mxu0 0
        %2395 = vmatprep.subr.bf16.mxu0 0
        %2396 = vmatpush2.bf16.msra.mxu0 0
        %2397 = vmatprep.subr.bf16.mxu0 0
        %2398 = vmatpush2.bf16.msra.mxu0 0
        %2399 = vmatprep.subr.bf16.mxu0 0
        %2400 = vmatpush2.bf16.msra.mxu0 0
        %2401 = vmatprep.subr.bf16.mxu0 0
        %2402 = vmatpush2.bf16.msra.mxu0 0
        %2403 = vmatprep.subr.bf16.mxu0 0
        %2404 = vmatpush2.bf16.msra.mxu0 0
        %2405 = vmatprep.mubr.bf16.mxu0 0
        %2406 = vmatmul.mubr.bf16.gmra.mxu0 %v2371
        %v2407 = vpop.f32.mrf.mxu0
        %v2408 = vadd.f32 %v2356, %v2407
        %v2409 = vpop.f32.mrf.mxu0
        %v2410 = vpop.f32.mrf.mxu0
        %v2411 = vpop.f32.mrf.mxu0
        %2412 = vdwg.mxu0
        %v2413 = vadd.f32 %v1755, %v2408
        %v2414 = vsel %vm1697, %v2413, 0.0
        %2415 = vadd.xlane.f32.xlu0 %v2414
        %v2416 = vpop.xlane.xlu0 %2415
        %v2417 = vmul.f32 %v2416, %v1787
        %v2418 = vsub.f32 %v2413, %v2417
        %v2419 = vmul.f32 %v2418, %v2418
        %v2420 = vsel %vm1697, %v2419, 0.0
        %2421 = vadd.xlane.f32.xlu0 %v2420
        %v2422 = vpop.xlane.xlu0 %2421
        %v2423 = vmul.f32 %v2422, %v1787
        %v2424 = vadd.f32 %v2423, 1e-05
        %v2425 = vrsqrt.pop %v2424
        %v2426 = vmul.f32 %v2418, %v2425
        %v2428 = vlaneseq
        %v2429 = vshrl.u32 %v2428, 7
        %v2430 = vsub.s32 0, %v2429
        %v2431 = vrot.slane %v1768, %v2430
        %v2433 = vmul.f32 %v2426, %v2431
        %v2435 = vlaneseq
        %v2436 = vshrl.u32 %v2435, 7
        %v2437 = vsub.s32 0, %v2436
        %v2438 = vrot.slane %v1769, %v2437
        %v2440 = vadd.f32 %v2433, %v2438
        %v2441 = vpack.c.bf16 %v2440, %v2440
        %v2443 = vlaneseq
        %v2444 = vshrl.u32 %v2443, 7
        %v2445 = vsub.s32 0, %v2444
        %v2446 = vrot.slane %v1774, %v2445
        %v2452 = vunpack.c.l.b16 %v1770
        %v2453 = vunpack.c.l.b16 %v1771
        %v2454 = vunpack.c.l.b16 %v1772
        %v2455 = vunpack.c.l.b16 %v1773
        %v2456 = vpack.c.b16 %v2453, %v2452
        %v2457 = vpack.c.b16 %v2455, %v2454
        %v2461 = vsel %vm1697, %v2441, 0
        %2463 = vmatprep.subr.bf16.mxu0 0
        %2464 = vmatpush1.bf16.msra.mxu0 0
        %2465 = vmatprep.subr.bf16.mxu0 0
        %2466 = vmatpush1.bf16.msra.mxu0 0
        %2467 = vmatprep.subr.bf16.mxu0 0
        %2468 = vmatpush1.bf16.msra.mxu0 0
        %2469 = vmatprep.subr.bf16.mxu0 0
        %2470 = vmatpush1.bf16.msra.mxu0 0
        %2471 = vmatprep.subr.bf16.mxu0 0
        %2472 = vmatpush1.bf16.msra.mxu0 0
        %2473 = vmatprep.subr.bf16.mxu0 0
        %2474 = vmatpush1.bf16.msra.mxu0 0
        %2475 = vmatprep.subr.bf16.mxu0 0
        %2476 = vmatpush1.bf16.msra.mxu0 %v2457
        %2477 = vmatprep.subr.bf16.mxu0 0
        %2478 = vmatpush1.bf16.msra.mxu0 %v2456
        %2479 = vmatprep.subr.bf16.mxu0 0
        %2480 = vmatpush2.bf16.msra.mxu0 0
        %2481 = vmatprep.subr.bf16.mxu0 0
        %2482 = vmatpush2.bf16.msra.mxu0 0
        %2483 = vmatprep.subr.bf16.mxu0 0
        %2484 = vmatpush2.bf16.msra.mxu0 0
        %2485 = vmatprep.subr.bf16.mxu0 0
        %2486 = vmatpush2.bf16.msra.mxu0 0
        %2487 = vmatprep.subr.bf16.mxu0 0
        %2488 = vmatpush2.bf16.msra.mxu0 0
        %2489 = vmatprep.subr.bf16.mxu0 0
        %2490 = vmatpush2.bf16.msra.mxu0 0
        %2491 = vmatprep.subr.bf16.mxu0 0
        %2492 = vmatpush2.bf16.msra.mxu0 0
        %2493 = vmatprep.subr.bf16.mxu0 0
        %2494 = vmatpush2.bf16.msra.mxu0 0
        %2495 = vmatprep.mubr.bf16.mxu0 0
        %2496 = vmatmul.mubr.bf16.gmra.mxu0 %v2461
        %v2497 = vpop.f32.mrf.mxu0
        %v2498 = vadd.f32 %v2446, %v2497
        %v2499 = vpop.f32.mrf.mxu0
        %v2500 = vpop.f32.mrf.mxu0
        %v2501 = vpop.f32.mrf.mxu0
        %2502 = vdwg.mxu0
        %v2503 = vmul.f32 %v2498, 0.5
        %v2504 = vmul.f32 %v2498, 0.044715
        %v2505 = vmul.f32 %v2504, %v2498
        %v2506 = vmul.f32 %v2505, %v2498
        %v2507 = vadd.f32 %v2498, %v2506
        %v2508 = vmul.f32 %v2507, 0.7978846
        %v2509 = vtanh.pop %v2508
        %v2510 = vadd.f32 %v2509, 1.0
        %v2511 = vmul.f32 %v2503, %v2510
        %v2512 = vpack.c.bf16 %v2511, %v2511
        %v2521 = vunpack.c.l.b16 %v1775
        %v2522 = vunpack.c.l.b16 %v1776
        %v2523 = vunpack.c.l.b16 %v1777
        %v2524 = vunpack.c.l.b16 %v1778
        %v2525 = vunpack.c.l.b16 %v1779
        %v2526 = vunpack.c.l.b16 %v1780
        %v2527 = vunpack.c.l.b16 %v1781
        %v2528 = vunpack.c.l.b16 %v1782
        %v2529 = vpack.c.b16 %v2522, %v2521
        %v2530 = vpack.c.b16 %v2524, %v2523
        %v2531 = vpack.c.b16 %v2526, %v2525
        %v2532 = vpack.c.b16 %v2528, %v2527
        %vm2537 = vcmask 523264
        %v2539 = vsel %vm2537, %v2512, 0
        %2541 = vmatprep.subr.bf16.mxu0 0
        %2542 = vmatpush1.bf16.msra.mxu0 0
        %2543 = vmatprep.subr.bf16.mxu0 0
        %2544 = vmatpush1.bf16.msra.mxu0 0
        %2545 = vmatprep.subr.bf16.mxu0 0
        %2546 = vmatpush1.bf16.msra.mxu0 0
        %2547 = vmatprep.subr.bf16.mxu0 0
        %2548 = vmatpush1.bf16.msra.mxu0 0
        %2549 = vmatprep.subr.bf16.mxu0 0
        %2550 = vmatpush1.bf16.msra.mxu0 %v2532
        %2551 = vmatprep.subr.bf16.mxu0 0
        %2552 = vmatpush1.bf16.msra.mxu0 %v2531
        %2553 = vmatprep.subr.bf16.mxu0 0
        %2554 = vmatpush1.bf16.msra.mxu0 %v2530
        %2555 = vmatprep.subr.bf16.mxu0 0
        %2556 = vmatpush1.bf16.msra.mxu0 %v2529
        %2557 = vmatprep.subr.bf16.mxu0 0
        %2558 = vmatpush2.bf16.msra.mxu0 0
        %2559 = vmatprep.subr.bf16.mxu0 0
        %2560 = vmatpush2.bf16.msra.mxu0 0
        %2561 = vmatprep.subr.bf16.mxu0 0
        %2562 = vmatpush2.bf16.msra.mxu0 0
        %2563 = vmatprep.subr.bf16.mxu0 0
        %2564 = vmatpush2.bf16.msra.mxu0 0
        %2565 = vmatprep.subr.bf16.mxu0 0
        %2566 = vmatpush2.bf16.msra.mxu0 0
        %2567 = vmatprep.subr.bf16.mxu0 0
        %2568 = vmatpush2.bf16.msra.mxu0 0
        %2569 = vmatprep.subr.bf16.mxu0 0
        %2570 = vmatpush2.bf16.msra.mxu0 0
        %2571 = vmatprep.subr.bf16.mxu0 0
        %2572 = vmatpush2.bf16.msra.mxu0 0
        %2573 = vmatprep.mubr.bf16.mxu0 0
        %2574 = vmatmul.mubr.bf16.gmra.mxu0 %v2539
        %v2575 = vpop.f32.mrf.mxu0
        %v2576 = vadd.f32 0.0, %v2575
        %v2577 = vpop.f32.mrf.mxu0
        %v2578 = vpop.f32.mrf.mxu0
        %v2579 = vpop.f32.mrf.mxu0
        %2580 = vdwg.mxu0
        %v2581 = vadd.f32 %v2413, %v2576
        %v2583 = vlaneseq
        %v2584 = vshrl.u32 %v2583, 7
        %v2585 = vsub.s32 0, %v2584
        %v2586 = vrot.slane %v1783, %v2585
        %v2588 = vadd.f32 %v2581, %v2586
        %v2589 = vld [vmem:[%s41] sm:$0x1]
        %v2590 = vld [vmem:[%s43] sm:$0x1]
        %v2591 = vld [vmem:[%s45] sm:$0xf]
        %v2592 = vld [vmem:[%s45 + $0x4] sm:$0xf]
        %v2593 = vld [vmem:[%s45 + $0x8] sm:$0xf]
        %v2594 = vld [vmem:[%s45 + $0xc] sm:$0xf]
        %v2595 = vld [vmem:[%s47] sm:$0x1]
        %v2596 = vld [vmem:[%s49] sm:$0xf]
        %v2597 = vld [vmem:[%s49 + $0x4] sm:$0xf]
        %v2598 = vld [vmem:[%s49 + $0x8] sm:$0xf]
        %v2599 = vld [vmem:[%s49 + $0xc] sm:$0xf]
        %v2600 = vld [vmem:[%s51] sm:$0x1]
        %v2601 = vld [vmem:[%s53] sm:$0x1]
        %v2602 = vld [vmem:[%s55] sm:$0x1]
        %v2603 = vld [vmem:[%s57] sm:$0xf]
        %v2604 = vld [vmem:[%s57 + $0x4] sm:$0xf]
        %v2605 = vld [vmem:[%s57 + $0x8] sm:$0xf]
        %v2606 = vld [vmem:[%s57 + $0xc] sm:$0xf]
        %v2607 = vld [vmem:[%s59] sm:$0x1]
        %v2608 = vld [vmem:[%s61] sm:$0xf]
        %v2609 = vld [vmem:[%s61 + $0x4] sm:$0xf]
        %v2610 = vld [vmem:[%s61 + $0x8] sm:$0xf]
        %v2611 = vld [vmem:[%s61 + $0xc] sm:$0xf]
        %v2612 = vld [vmem:[%s61 + $0x10] sm:$0xf]
        %v2613 = vld [vmem:[%s61 + $0x14] sm:$0xf]
        %v2614 = vld [vmem:[%s61 + $0x18] sm:$0xf]
        %v2615 = vld [vmem:[%s61 + $0x1c] sm:$0xf]
        %v2616 = vld [vmem:[%s63] sm:$0x1]
        %v2617 = vsel %vm1697, %v2588, 0.0
        %2618 = vadd.xlane.f32.xlu0 %v2617
        %v2619 = vpop.xlane.xlu0 %2618
        %v2620 = vmul.f32 %v2619, %v1787
        %v2621 = vsub.f32 %v2588, %v2620
        %v2622 = vmul.f32 %v2621, %v2621
        %v2623 = vsel %vm1697, %v2622, 0.0
        %2624 = vadd.xlane.f32.xlu0 %v2623
        %v2625 = vpop.xlane.xlu0 %2624
        %v2626 = vmul.f32 %v2625, %v1787
        %v2627 = vadd.f32 %v2626, 1e-05
        %v2628 = vrsqrt.pop %v2627
        %v2629 = vmul.f32 %v2621, %v2628
        %v2631 = vlaneseq
        %v2632 = vshrl.u32 %v2631, 7
        %v2633 = vsub.s32 0, %v2632
        %v2634 = vrot.slane %v2589, %v2633
        %v2636 = vmul.f32 %v2629, %v2634
        %v2638 = vlaneseq
        %v2639 = vshrl.u32 %v2638, 7
        %v2640 = vsub.s32 0, %v2639
        %v2641 = vrot.slane %v2590, %v2640
        %v2643 = vadd.f32 %v2636, %v2641
        %v2644 = vpack.c.bf16 %v2643, %v2643
        %v2646 = vlaneseq
        %v2647 = vshrl.u32 %v2646, 7
        %v2648 = vsub.s32 0, %v2647
        %v2649 = vrot.slane %v2595, %v2648
        %v2655 = vunpack.c.l.b16 %v2591
        %v2656 = vunpack.c.l.b16 %v2592
        %v2657 = vunpack.c.l.b16 %v2593
        %v2658 = vunpack.c.l.b16 %v2594
        %v2659 = vpack.c.b16 %v2656, %v2655
        %v2660 = vpack.c.b16 %v2658, %v2657
        %v2664 = vsel %vm1697, %v2644, 0
        %2666 = vmatprep.subr.bf16.mxu0 0
        %2667 = vmatpush1.bf16.msra.mxu0 0
        %2668 = vmatprep.subr.bf16.mxu0 0
        %2669 = vmatpush1.bf16.msra.mxu0 0
        %2670 = vmatprep.subr.bf16.mxu0 0
        %2671 = vmatpush1.bf16.msra.mxu0 0
        %2672 = vmatprep.subr.bf16.mxu0 0
        %2673 = vmatpush1.bf16.msra.mxu0 0
        %2674 = vmatprep.subr.bf16.mxu0 0
        %2675 = vmatpush1.bf16.msra.mxu0 0
        %2676 = vmatprep.subr.bf16.mxu0 0
        %2677 = vmatpush1.bf16.msra.mxu0 0
        %2678 = vmatprep.subr.bf16.mxu0 0
        %2679 = vmatpush1.bf16.msra.mxu0 %v2660
        %2680 = vmatprep.subr.bf16.mxu0 0
        %2681 = vmatpush1.bf16.msra.mxu0 %v2659
        %2682 = vmatprep.subr.bf16.mxu0 0
        %2683 = vmatpush2.bf16.msra.mxu0 0
        %2684 = vmatprep.subr.bf16.mxu0 0
        %2685 = vmatpush2.bf16.msra.mxu0 0
        %2686 = vmatprep.subr.bf16.mxu0 0
        %2687 = vmatpush2.bf16.msra.mxu0 0
        %2688 = vmatprep.subr.bf16.mxu0 0
        %2689 = vmatpush2.bf16.msra.mxu0 0
        %2690 = vmatprep.subr.bf16.mxu0 0
        %2691 = vmatpush2.bf16.msra.mxu0 0
        %2692 = vmatprep.subr.bf16.mxu0 0
        %2693 = vmatpush2.bf16.msra.mxu0 0
        %2694 = vmatprep.subr.bf16.mxu0 0
        %2695 = vmatpush2.bf16.msra.mxu0 0
        %2696 = vmatprep.subr.bf16.mxu0 0
        %2697 = vmatpush2.bf16.msra.mxu0 0
        %2698 = vmatprep.mubr.bf16.mxu0 0
        %2699 = vmatmul.mubr.bf16.gmra.mxu0 %v2664
        %v2700 = vpop.f32.mrf.mxu0
        %v2701 = vadd.f32 %v2649, %v2700
        %v2702 = vpop.f32.mrf.mxu0
        %v2703 = vpop.f32.mrf.mxu0
        %v2704 = vpop.f32.mrf.mxu0
        %2705 = vdwg.mxu0
        %v2706 = vld [vmem:[%s1595] sm:$0xff]
        %v2707 = vpack.c.bf16 %v2701, %v2701
        %2709 = vrot.lane.b32.xlu0 %v2707, 96
        %v2710 = vpop.permute.xlu0 %2709
        %v2712 = vsel %vm1879, %v2707, 0
        %v2715 = vsel %vm1879, %v2710, 0
        %2717 = vmatprep.subr.bf16.mxu0 0
        %2718 = vmatpush1.bf16.xpose.msra.mxu0 0
        %2719 = vmatprep.subr.bf16.mxu0 0
        %2720 = vmatpush1.bf16.xpose.msra.mxu0 0
        %2721 = vmatprep.subr.bf16.mxu0 0
        %2722 = vmatpush1.bf16.xpose.msra.mxu0 0
        %2723 = vmatprep.subr.bf16.mxu0 0
        %2724 = vmatpush1.bf16.xpose.msra.mxu0 0
        %2725 = vmatprep.subr.bf16.mxu0 0
        %2726 = vmatpush1.bf16.xpose.msra.mxu0 0
        %2727 = vmatprep.subr.bf16.mxu0 0
        %2728 = vmatpush1.bf16.xpose.msra.mxu0 0
        %2729 = vmatprep.subr.bf16.mxu0 0
        %2730 = vmatpush1.bf16.xpose.msra.mxu0 0
        %2731 = vmatprep.subr.bf16.mxu0 0
        %2732 = vmatpush1.bf16.xpose.msra.mxu0 %v2715
        %2733 = vmatprep.subr.bf16.mxu0 0
        %2734 = vmatpush2.bf16.xpose.msra.mxu0 0
        %2735 = vmatprep.subr.bf16.mxu0 0
        %2736 = vmatpush2.bf16.xpose.msra.mxu0 0
        %2737 = vmatprep.subr.bf16.mxu0 0
        %2738 = vmatpush2.bf16.xpose.msra.mxu0 0
        %2739 = vmatprep.subr.bf16.mxu0 0
        %2740 = vmatpush2.bf16.xpose.msra.mxu0 0
        %2741 = vmatprep.subr.bf16.mxu0 0
        %2742 = vmatpush2.bf16.xpose.msra.mxu0 0
        %2743 = vmatprep.subr.bf16.mxu0 0
        %2744 = vmatpush2.bf16.xpose.msra.mxu0 0
        %2745 = vmatprep.subr.bf16.mxu0 0
        %2746 = vmatpush2.bf16.xpose.msra.mxu0 0
        %2747 = vmatprep.subr.bf16.mxu0 0
        %2748 = vmatpush2.bf16.xpose.msra.mxu0 0
        %2749 = vmatprep.mubr.bf16.mxu0 0
        %2750 = vmatmul.mubr.bf16.gmra.mxu0 %v2712
        %v2751 = vpop.f32.mrf.mxu0
        %v2752 = vadd.f32 0.0, %v2751
        %v2753 = vpop.f32.mrf.mxu0
        %v2754 = vpop.f32.mrf.mxu0
        %v2755 = vpop.f32.mrf.mxu0
        %2756 = vdwg.mxu0
        %v2757 = vmul.f32 %v2752, 0.35355338
        %v2758 = vadd.f32 %v2757, %v2706
        %v2759 = vsel %vm1879, %v2758, -inf
        %2760 = vmax.xlane.f32.xlu0 %v2759
        %v2761 = vpop.xlane.xlu0 %2760
        %v2762 = vsub.f32 %v2758, %v2761
        %v2763 = vmul.f32 %v2762, 1.442695
        %v2764 = vpow.pop %v2763
        %v2765 = vsel %vm1879, %v2764, 0.0
        %2766 = vadd.xlane.f32.xlu0 %v2765
        %v2767 = vpop.xlane.xlu0 %2766
        %v2768 = vrcp.pop %v2767
        %v2769 = vmul.f32 %v2764, %v2768
        %v2770 = vpack.c.bf16 %v2769, %v2769
        %2771 = vrot.lane.b32.xlu0 %v2707, 64
        %v2772 = vpop.permute.xlu0 %2771
        %v2774 = vsel %vm1879, %v2770, 0
        %v2777 = vsel %vm1945, %v2772, 0
        %2779 = vmatprep.subr.bf16.mxu0 0
        %2780 = vmatpush1.bf16.msra.mxu0 0
        %2781 = vmatprep.subr.bf16.mxu0 0
        %2782 = vmatpush1.bf16.msra.mxu0 0
        %2783 = vmatprep.subr.bf16.mxu0 0
        %2784 = vmatpush1.bf16.msra.mxu0 0
        %2785 = vmatprep.subr.bf16.mxu0 0
        %2786 = vmatpush1.bf16.msra.mxu0 0
        %2787 = vmatprep.subr.bf16.mxu0 0
        %2788 = vmatpush1.bf16.msra.mxu0 0
        %2789 = vmatprep.subr.bf16.mxu0 0
        %2790 = vmatpush1.bf16.msra.mxu0 0
        %2791 = vmatprep.subr.bf16.mxu0 0
        %2792 = vmatpush1.bf16.msra.mxu0 0
        %2793 = vmatprep.subr.bf16.mxu0 0
        %2794 = vmatpush1.bf16.msra.mxu0 %v2777
        %2795 = vmatprep.subr.bf16.mxu0 0
        %2796 = vmatpush2.bf16.msra.mxu0 0
        %2797 = vmatprep.subr.bf16.mxu0 0
        %2798 = vmatpush2.bf16.msra.mxu0 0
        %2799 = vmatprep.subr.bf16.mxu0 0
        %2800 = vmatpush2.bf16.msra.mxu0 0
        %2801 = vmatprep.subr.bf16.mxu0 0
        %2802 = vmatpush2.bf16.msra.mxu0 0
        %2803 = vmatprep.subr.bf16.mxu0 0
        %2804 = vmatpush2.bf16.msra.mxu0 0
        %2805 = vmatprep.subr.bf16.mxu0 0
        %2806 = vmatpush2.bf16.msra.mxu0 0
        %2807 = vmatprep.subr.bf16.mxu0 0
        %2808 = vmatpush2.bf16.msra.mxu0 0
        %2809 = vmatprep.subr.bf16.mxu0 0
        %2810 = vmatpush2.bf16.msra.mxu0 0
        %2811 = vmatprep.mubr.bf16.mxu0 0
        %2812 = vmatmul.mubr.bf16.gmra.mxu0 %v2774
        %v2813 = vpop.f32.mrf.mxu0
        %v2814 = vadd.f32 0.0, %v2813
        %v2815 = vpop.f32.mrf.mxu0
        %v2816 = vpop.f32.mrf.mxu0
        %v2817 = vpop.f32.mrf.mxu0
        %2818 = vdwg.mxu0
        %2819 = vst.msk [vmem:[#allocation4] sm:$0xff] %vm1879, %v2814
        %2820 = vst.msk [vmem:[%s1586] sm:$0xff] %vm1879, %v2769
        %v2821 = vld [vmem:[%s1990] sm:$0xff]
        %2822 = vrot.lane.b32.xlu0 %v2707, 120
        %v2823 = vpop.permute.xlu0 %2822
        %2824 = vrot.lane.b32.xlu0 %v2707, 88
        %v2825 = vpop.permute.xlu0 %2824
        %v2827 = vsel %vm1879, %v2823, 0
        %v2830 = vsel %vm1879, %v2825, 0
        %2832 = vmatprep.subr.bf16.mxu0 0
        %2833 = vmatpush1.bf16.xpose.msra.mxu0 0
        %2834 = vmatprep.subr.bf16.mxu0 0
        %2835 = vmatpush1.bf16.xpose.msra.mxu0 0
        %2836 = vmatprep.subr.bf16.mxu0 0
        %2837 = vmatpush1.bf16.xpose.msra.mxu0 0
        %2838 = vmatprep.subr.bf16.mxu0 0
        %2839 = vmatpush1.bf16.xpose.msra.mxu0 0
        %2840 = vmatprep.subr.bf16.mxu0 0
        %2841 = vmatpush1.bf16.xpose.msra.mxu0 0
        %2842 = vmatprep.subr.bf16.mxu0 0
        %2843 = vmatpush1.bf16.xpose.msra.mxu0 0
        %2844 = vmatprep.subr.bf16.mxu0 0
        %2845 = vmatpush1.bf16.xpose.msra.mxu0 0
        %2846 = vmatprep.subr.bf16.mxu0 0
        %2847 = vmatpush1.bf16.xpose.msra.mxu0 %v2830
        %2848 = vmatprep.subr.bf16.mxu0 0
        %2849 = vmatpush2.bf16.xpose.msra.mxu0 0
        %2850 = vmatprep.subr.bf16.mxu0 0
        %2851 = vmatpush2.bf16.xpose.msra.mxu0 0
        %2852 = vmatprep.subr.bf16.mxu0 0
        %2853 = vmatpush2.bf16.xpose.msra.mxu0 0
        %2854 = vmatprep.subr.bf16.mxu0 0
        %2855 = vmatpush2.bf16.xpose.msra.mxu0 0
        %2856 = vmatprep.subr.bf16.mxu0 0
        %2857 = vmatpush2.bf16.xpose.msra.mxu0 0
        %2858 = vmatprep.subr.bf16.mxu0 0
        %2859 = vmatpush2.bf16.xpose.msra.mxu0 0
        %2860 = vmatprep.subr.bf16.mxu0 0
        %2861 = vmatpush2.bf16.xpose.msra.mxu0 0
        %2862 = vmatprep.subr.bf16.mxu0 0
        %2863 = vmatpush2.bf16.xpose.msra.mxu0 0
        %2864 = vmatprep.mubr.bf16.mxu0 0
        %2865 = vmatmul.mubr.bf16.gmra.mxu0 %v2827
        %v2866 = vpop.f32.mrf.mxu0
        %v2867 = vadd.f32 0.0, %v2866
        %v2868 = vpop.f32.mrf.mxu0
        %v2869 = vpop.f32.mrf.mxu0
        %v2870 = vpop.f32.mrf.mxu0
        %2871 = vdwg.mxu0
        %v2872 = vmul.f32 %v2867, 0.35355338
        %v2873 = vadd.f32 %v2872, %v2821
        %v2874 = vsel %vm1879, %v2873, -inf
        %2875 = vmax.xlane.f32.xlu0 %v2874
        %v2876 = vpop.xlane.xlu0 %2875
        %v2877 = vsub.f32 %v2873, %v2876
        %v2878 = vmul.f32 %v2877, 1.442695
        %v2879 = vpow.pop %v2878
        %v2880 = vsel %vm1879, %v2879, 0.0
        %2881 = vadd.xlane.f32.xlu0 %v2880
        %v2882 = vpop.xlane.xlu0 %2881
        %v2883 = vrcp.pop %v2882
        %v2884 = vmul.f32 %v2879, %v2883
        %v2885 = vpack.c.bf16 %v2884, %v2884
        %2886 = vrot.lane.b32.xlu0 %v2707, 56
        %v2887 = vpop.permute.xlu0 %2886
        %v2889 = vsel %vm1879, %v2885, 0
        %v2892 = vsel %vm1945, %v2887, 0
        %2894 = vmatprep.subr.bf16.mxu0 0
        %2895 = vmatpush1.bf16.msra.mxu0 0
        %2896 = vmatprep.subr.bf16.mxu0 0
        %2897 = vmatpush1.bf16.msra.mxu0 0
        %2898 = vmatprep.subr.bf16.mxu0 0
        %2899 = vmatpush1.bf16.msra.mxu0 0
        %2900 = vmatprep.subr.bf16.mxu0 0
        %2901 = vmatpush1.bf16.msra.mxu0 0
        %2902 = vmatprep.subr.bf16.mxu0 0
        %2903 = vmatpush1.bf16.msra.mxu0 0
        %2904 = vmatprep.subr.bf16.mxu0 0
        %2905 = vmatpush1.bf16.msra.mxu0 0
        %2906 = vmatprep.subr.bf16.mxu0 0
        %2907 = vmatpush1.bf16.msra.mxu0 0
        %2908 = vmatprep.subr.bf16.mxu0 0
        %2909 = vmatpush1.bf16.msra.mxu0 %v2892
        %2910 = vmatprep.subr.bf16.mxu0 0
        %2911 = vmatpush2.bf16.msra.mxu0 0
        %2912 = vmatprep.subr.bf16.mxu0 0
        %2913 = vmatpush2.bf16.msra.mxu0 0
        %2914 = vmatprep.subr.bf16.mxu0 0
        %2915 = vmatpush2.bf16.msra.mxu0 0
        %2916 = vmatprep.subr.bf16.mxu0 0
        %2917 = vmatpush2.bf16.msra.mxu0 0
        %2918 = vmatprep.subr.bf16.mxu0 0
        %2919 = vmatpush2.bf16.msra.mxu0 0
        %2920 = vmatprep.subr.bf16.mxu0 0
        %2921 = vmatpush2.bf16.msra.mxu0 0
        %2922 = vmatprep.subr.bf16.mxu0 0
        %2923 = vmatpush2.bf16.msra.mxu0 0
        %2924 = vmatprep.subr.bf16.mxu0 0
        %2925 = vmatpush2.bf16.msra.mxu0 0
        %2926 = vmatprep.mubr.bf16.mxu0 0
        %2927 = vmatmul.mubr.bf16.gmra.mxu0 %v2889
        %v2928 = vpop.f32.mrf.mxu0
        %v2929 = vadd.f32 0.0, %v2928
        %v2930 = vpop.f32.mrf.mxu0
        %v2931 = vpop.f32.mrf.mxu0
        %v2932 = vpop.f32.mrf.mxu0
        %2933 = vdwg.mxu0
        %2935 = vrot.lane.b32.xlu0 %v2929, 8
        %v2936 = vpop.permute.xlu0 %2935
        %2938 = vst.msk [vmem:[#allocation4] sm:$0xff] %vm2108, %v2936
        %s2939 = scalar_lea.vmem %s1586, 8 [#allocation7]
        %2940 = vst.msk [vmem:[%s2939] sm:$0xff] %vm1879, %v2884
        %v2941 = vld [vmem:[%s2110] sm:$0xff]
        %2942 = vrot.lane.b32.xlu0 %v2707, 112
        %v2943 = vpop.permute.xlu0 %2942
        %2944 = vrot.lane.b32.xlu0 %v2707, 80
        %v2945 = vpop.permute.xlu0 %2944
        %v2947 = vsel %vm1879, %v2943, 0
        %v2950 = vsel %vm1879, %v2945, 0
        %2952 = vmatprep.subr.bf16.mxu0 0
        %2953 = vmatpush1.bf16.xpose.msra.mxu0 0
        %2954 = vmatprep.subr.bf16.mxu0 0
        %2955 = vmatpush1.bf16.xpose.msra.mxu0 0
        %2956 = vmatprep.subr.bf16.mxu0 0
        %2957 = vmatpush1.bf16.xpose.msra.mxu0 0
        %2958 = vmatprep.subr.bf16.mxu0 0
        %2959 = vmatpush1.bf16.xpose.msra.mxu0 0
        %2960 = vmatprep.subr.bf16.mxu0 0
        %2961 = vmatpush1.bf16.xpose.msra.mxu0 0
        %2962 = vmatprep.subr.bf16.mxu0 0
        %2963 = vmatpush1.bf16.xpose.msra.mxu0 0
        %2964 = vmatprep.subr.bf16.mxu0 0
        %2965 = vmatpush1.bf16.xpose.msra.mxu0 0
        %2966 = vmatprep.subr.bf16.mxu0 0
        %2967 = vmatpush1.bf16.xpose.msra.mxu0 %v2950
        %2968 = vmatprep.subr.bf16.mxu0 0
        %2969 = vmatpush2.bf16.xpose.msra.mxu0 0
        %2970 = vmatprep.subr.bf16.mxu0 0
        %2971 = vmatpush2.bf16.xpose.msra.mxu0 0
        %2972 = vmatprep.subr.bf16.mxu0 0
        %2973 = vmatpush2.bf16.xpose.msra.mxu0 0
        %2974 = vmatprep.subr.bf16.mxu0 0
        %2975 = vmatpush2.bf16.xpose.msra.mxu0 0
        %2976 = vmatprep.subr.bf16.mxu0 0
        %2977 = vmatpush2.bf16.xpose.msra.mxu0 0
        %2978 = vmatprep.subr.bf16.mxu0 0
        %2979 = vmatpush2.bf16.xpose.msra.mxu0 0
        %2980 = vmatprep.subr.bf16.mxu0 0
        %2981 = vmatpush2.bf16.xpose.msra.mxu0 0
        %2982 = vmatprep.subr.bf16.mxu0 0
        %2983 = vmatpush2.bf16.xpose.msra.mxu0 0
        %2984 = vmatprep.mubr.bf16.mxu0 0
        %2985 = vmatmul.mubr.bf16.gmra.mxu0 %v2947
        %v2986 = vpop.f32.mrf.mxu0
        %v2987 = vadd.f32 0.0, %v2986
        %v2988 = vpop.f32.mrf.mxu0
        %v2989 = vpop.f32.mrf.mxu0
        %v2990 = vpop.f32.mrf.mxu0
        %2991 = vdwg.mxu0
        %v2992 = vmul.f32 %v2987, 0.35355338
        %v2993 = vadd.f32 %v2992, %v2941
        %v2994 = vsel %vm1879, %v2993, -inf
        %2995 = vmax.xlane.f32.xlu0 %v2994
        %v2996 = vpop.xlane.xlu0 %2995
        %v2997 = vsub.f32 %v2993, %v2996
        %v2998 = vmul.f32 %v2997, 1.442695
        %v2999 = vpow.pop %v2998
        %v3000 = vsel %vm1879, %v2999, 0.0
        %3001 = vadd.xlane.f32.xlu0 %v3000
        %v3002 = vpop.xlane.xlu0 %3001
        %v3003 = vrcp.pop %v3002
        %v3004 = vmul.f32 %v2999, %v3003
        %v3005 = vpack.c.bf16 %v3004, %v3004
        %3006 = vrot.lane.b32.xlu0 %v2707, 48
        %v3007 = vpop.permute.xlu0 %3006
        %v3009 = vsel %vm1879, %v3005, 0
        %v3012 = vsel %vm1945, %v3007, 0
        %3014 = vmatprep.subr.bf16.mxu0 0
        %3015 = vmatpush1.bf16.msra.mxu0 0
        %3016 = vmatprep.subr.bf16.mxu0 0
        %3017 = vmatpush1.bf16.msra.mxu0 0
        %3018 = vmatprep.subr.bf16.mxu0 0
        %3019 = vmatpush1.bf16.msra.mxu0 0
        %3020 = vmatprep.subr.bf16.mxu0 0
        %3021 = vmatpush1.bf16.msra.mxu0 0
        %3022 = vmatprep.subr.bf16.mxu0 0
        %3023 = vmatpush1.bf16.msra.mxu0 0
        %3024 = vmatprep.subr.bf16.mxu0 0
        %3025 = vmatpush1.bf16.msra.mxu0 0
        %3026 = vmatprep.subr.bf16.mxu0 0
        %3027 = vmatpush1.bf16.msra.mxu0 0
        %3028 = vmatprep.subr.bf16.mxu0 0
        %3029 = vmatpush1.bf16.msra.mxu0 %v3012
        %3030 = vmatprep.subr.bf16.mxu0 0
        %3031 = vmatpush2.bf16.msra.mxu0 0
        %3032 = vmatprep.subr.bf16.mxu0 0
        %3033 = vmatpush2.bf16.msra.mxu0 0
        %3034 = vmatprep.subr.bf16.mxu0 0
        %3035 = vmatpush2.bf16.msra.mxu0 0
        %3036 = vmatprep.subr.bf16.mxu0 0
        %3037 = vmatpush2.bf16.msra.mxu0 0
        %3038 = vmatprep.subr.bf16.mxu0 0
        %3039 = vmatpush2.bf16.msra.mxu0 0
        %3040 = vmatprep.subr.bf16.mxu0 0
        %3041 = vmatpush2.bf16.msra.mxu0 0
        %3042 = vmatprep.subr.bf16.mxu0 0
        %3043 = vmatpush2.bf16.msra.mxu0 0
        %3044 = vmatprep.subr.bf16.mxu0 0
        %3045 = vmatpush2.bf16.msra.mxu0 0
        %3046 = vmatprep.mubr.bf16.mxu0 0
        %3047 = vmatmul.mubr.bf16.gmra.mxu0 %v3009
        %v3048 = vpop.f32.mrf.mxu0
        %v3049 = vadd.f32 0.0, %v3048
        %v3050 = vpop.f32.mrf.mxu0
        %v3051 = vpop.f32.mrf.mxu0
        %v3052 = vpop.f32.mrf.mxu0
        %3053 = vdwg.mxu0
        %3055 = vrot.lane.b32.xlu0 %v3049, 16
        %v3056 = vpop.permute.xlu0 %3055
        %3058 = vst.msk [vmem:[#allocation4] sm:$0xff] %vm2228, %v3056
        %s3059 = scalar_lea.vmem %s1586, 16 [#allocation7]
        %3060 = vst.msk [vmem:[%s3059] sm:$0xff] %vm1879, %v3004
        %v3061 = vld [vmem:[%s2230] sm:$0xff]
        %3062 = vrot.lane.b32.xlu0 %v2707, 104
        %v3063 = vpop.permute.xlu0 %3062
        %3064 = vrot.lane.b32.xlu0 %v2707, 72
        %v3065 = vpop.permute.xlu0 %3064
        %v3067 = vsel %vm1879, %v3063, 0
        %v3070 = vsel %vm1879, %v3065, 0
        %3072 = vmatprep.subr.bf16.mxu0 0
        %3073 = vmatpush1.bf16.xpose.msra.mxu0 0
        %3074 = vmatprep.subr.bf16.mxu0 0
        %3075 = vmatpush1.bf16.xpose.msra.mxu0 0
        %3076 = vmatprep.subr.bf16.mxu0 0
        %3077 = vmatpush1.bf16.xpose.msra.mxu0 0
        %3078 = vmatprep.subr.bf16.mxu0 0
        %3079 = vmatpush1.bf16.xpose.msra.mxu0 0
        %3080 = vmatprep.subr.bf16.mxu0 0
        %3081 = vmatpush1.bf16.xpose.msra.mxu0 0
        %3082 = vmatprep.subr.bf16.mxu0 0
        %3083 = vmatpush1.bf16.xpose.msra.mxu0 0
        %3084 = vmatprep.subr.bf16.mxu0 0
        %3085 = vmatpush1.bf16.xpose.msra.mxu0 0
        %3086 = vmatprep.subr.bf16.mxu0 0
        %3087 = vmatpush1.bf16.xpose.msra.mxu0 %v3070
        %3088 = vmatprep.subr.bf16.mxu0 0
        %3089 = vmatpush2.bf16.xpose.msra.mxu0 0
        %3090 = vmatprep.subr.bf16.mxu0 0
        %3091 = vmatpush2.bf16.xpose.msra.mxu0 0
        %3092 = vmatprep.subr.bf16.mxu0 0
        %3093 = vmatpush2.bf16.xpose.msra.mxu0 0
        %3094 = vmatprep.subr.bf16.mxu0 0
        %3095 = vmatpush2.bf16.xpose.msra.mxu0 0
        %3096 = vmatprep.subr.bf16.mxu0 0
        %3097 = vmatpush2.bf16.xpose.msra.mxu0 0
        %3098 = vmatprep.subr.bf16.mxu0 0
        %3099 = vmatpush2.bf16.xpose.msra.mxu0 0
        %3100 = vmatprep.subr.bf16.mxu0 0
        %3101 = vmatpush2.bf16.xpose.msra.mxu0 0
        %3102 = vmatprep.subr.bf16.mxu0 0
        %3103 = vmatpush2.bf16.xpose.msra.mxu0 0
        %3104 = vmatprep.mubr.bf16.mxu0 0
        %3105 = vmatmul.mubr.bf16.gmra.mxu0 %v3067
        %v3106 = vpop.f32.mrf.mxu0
        %v3107 = vadd.f32 0.0, %v3106
        %v3108 = vpop.f32.mrf.mxu0
        %v3109 = vpop.f32.mrf.mxu0
        %v3110 = vpop.f32.mrf.mxu0
        %3111 = vdwg.mxu0
        %v3112 = vmul.f32 %v3107, 0.35355338
        %v3113 = vadd.f32 %v3112, %v3061
        %v3114 = vsel %vm1879, %v3113, -inf
        %3115 = vmax.xlane.f32.xlu0 %v3114
        %v3116 = vpop.xlane.xlu0 %3115
        %v3117 = vsub.f32 %v3113, %v3116
        %v3118 = vmul.f32 %v3117, 1.442695
        %v3119 = vpow.pop %v3118
        %v3120 = vsel %vm1879, %v3119, 0.0
        %3121 = vadd.xlane.f32.xlu0 %v3120
        %v3122 = vpop.xlane.xlu0 %3121
        %v3123 = vrcp.pop %v3122
        %v3124 = vmul.f32 %v3119, %v3123
        %v3125 = vpack.c.bf16 %v3124, %v3124
        %3126 = vrot.lane.b32.xlu0 %v2707, 40
        %v3127 = vpop.permute.xlu0 %3126
        %v3129 = vsel %vm1879, %v3125, 0
        %v3132 = vsel %vm1945, %v3127, 0
        %3134 = vmatprep.subr.bf16.mxu0 0
        %3135 = vmatpush1.bf16.msra.mxu0 0
        %3136 = vmatprep.subr.bf16.mxu0 0
        %3137 = vmatpush1.bf16.msra.mxu0 0
        %3138 = vmatprep.subr.bf16.mxu0 0
        %3139 = vmatpush1.bf16.msra.mxu0 0
        %3140 = vmatprep.subr.bf16.mxu0 0
        %3141 = vmatpush1.bf16.msra.mxu0 0
        %3142 = vmatprep.subr.bf16.mxu0 0
        %3143 = vmatpush1.bf16.msra.mxu0 0
        %3144 = vmatprep.subr.bf16.mxu0 0
        %3145 = vmatpush1.bf16.msra.mxu0 0
        %3146 = vmatprep.subr.bf16.mxu0 0
        %3147 = vmatpush1.bf16.msra.mxu0 0
        %3148 = vmatprep.subr.bf16.mxu0 0
        %3149 = vmatpush1.bf16.msra.mxu0 %v3132
        %3150 = vmatprep.subr.bf16.mxu0 0
        %3151 = vmatpush2.bf16.msra.mxu0 0
        %3152 = vmatprep.subr.bf16.mxu0 0
        %3153 = vmatpush2.bf16.msra.mxu0 0
        %3154 = vmatprep.subr.bf16.mxu0 0
        %3155 = vmatpush2.bf16.msra.mxu0 0
        %3156 = vmatprep.subr.bf16.mxu0 0
        %3157 = vmatpush2.bf16.msra.mxu0 0
        %3158 = vmatprep.subr.bf16.mxu0 0
        %3159 = vmatpush2.bf16.msra.mxu0 0
        %3160 = vmatprep.subr.bf16.mxu0 0
        %3161 = vmatpush2.bf16.msra.mxu0 0
        %3162 = vmatprep.subr.bf16.mxu0 0
        %3163 = vmatpush2.bf16.msra.mxu0 0
        %3164 = vmatprep.subr.bf16.mxu0 0
        %3165 = vmatpush2.bf16.msra.mxu0 0
        %3166 = vmatprep.mubr.bf16.mxu0 0
        %3167 = vmatmul.mubr.bf16.gmra.mxu0 %v3129
        %v3168 = vpop.f32.mrf.mxu0
        %v3169 = vadd.f32 0.0, %v3168
        %v3170 = vpop.f32.mrf.mxu0
        %v3171 = vpop.f32.mrf.mxu0
        %v3172 = vpop.f32.mrf.mxu0
        %3173 = vdwg.mxu0
        %3175 = vrot.lane.b32.xlu0 %v3169, 24
        %v3176 = vpop.permute.xlu0 %3175
        %3178 = vst.msk [vmem:[#allocation4] sm:$0xff] %vm2348, %v3176
        %s3179 = scalar_lea.vmem %s1586, 24 [#allocation7]
        %3180 = vst.msk [vmem:[%s3179] sm:$0xff] %vm1879, %v3124
        %v3181 = vld [vmem:[#allocation4] sm:$0xff]
        %v3182 = vpack.c.bf16 %v3181, %v3181
        %v3184 = vlaneseq
        %v3185 = vshrl.u32 %v3184, 7
        %v3186 = vsub.s32 0, %v3185
        %v3187 = vrot.slane %v2600, %v3186
        %v3193 = vunpack.c.l.b16 %v2596
        %v3194 = vunpack.c.l.b16 %v2597
        %v3195 = vunpack.c.l.b16 %v2598
        %v3196 = vunpack.c.l.b16 %v2599
        %v3197 = vpack.c.b16 %v3194, %v3193
        %v3198 = vpack.c.b16 %v3196, %v3195
        %v3202 = vsel %vm1697, %v3182, 0
        %3204 = vmatprep.subr.bf16.mxu0 0
        %3205 = vmatpush1.bf16.msra.mxu0 0
        %3206 = vmatprep.subr.bf16.mxu0 0
        %3207 = vmatpush1.bf16.msra.mxu0 0
        %3208 = vmatprep.subr.bf16.mxu0 0
        %3209 = vmatpush1.bf16.msra.mxu0 0
        %3210 = vmatprep.subr.bf16.mxu0 0
        %3211 = vmatpush1.bf16.msra.mxu0 0
        %3212 = vmatprep.subr.bf16.mxu0 0
        %3213 = vmatpush1.bf16.msra.mxu0 0
        %3214 = vmatprep.subr.bf16.mxu0 0
        %3215 = vmatpush1.bf16.msra.mxu0 0
        %3216 = vmatprep.subr.bf16.mxu0 0
        %3217 = vmatpush1.bf16.msra.mxu0 %v3198
        %3218 = vmatprep.subr.bf16.mxu0 0
        %3219 = vmatpush1.bf16.msra.mxu0 %v3197
        %3220 = vmatprep.subr.bf16.mxu0 0
        %3221 = vmatpush2.bf16.msra.mxu0 0
        %3222 = vmatprep.subr.bf16.mxu0 0
        %3223 = vmatpush2.bf16.msra.mxu0 0
        %3224 = vmatprep.subr.bf16.mxu0 0
        %3225 = vmatpush2.bf16.msra.mxu0 0
        %3226 = vmatprep.subr.bf16.mxu0 0
        %3227 = vmatpush2.bf16.msra.mxu0 0
        %3228 = vmatprep.subr.bf16.mxu0 0
        %3229 = vmatpush2.bf16.msra.mxu0 0
        %3230 = vmatprep.subr.bf16.mxu0 0
        %3231 = vmatpush2.bf16.msra.mxu0 0
        %3232 = vmatprep.subr.bf16.mxu0 0
        %3233 = vmatpush2.bf16.msra.mxu0 0
        %3234 = vmatprep.subr.bf16.mxu0 0
        %3235 = vmatpush2.bf16.msra.mxu0 0
        %3236 = vmatprep.mubr.bf16.mxu0 0
        %3237 = vmatmul.mubr.bf16.gmra.mxu0 %v3202
        %v3238 = vpop.f32.mrf.mxu0
        %v3239 = vadd.f32 %v3187, %v3238
        %v3240 = vpop.f32.mrf.mxu0
        %v3241 = vpop.f32.mrf.mxu0
        %v3242 = vpop.f32.mrf.mxu0
        %3243 = vdwg.mxu0
        %v3244 = vadd.f32 %v2588, %v3239
        %v3245 = vsel %vm1697, %v3244, 0.0
        %3246 = vadd.xlane.f32.xlu0 %v3245
        %v3247 = vpop.xlane.xlu0 %3246
        %v3248 = vmul.f32 %v3247, %v1787
        %v3249 = vsub.f32 %v3244, %v3248
        %v3250 = vmul.f32 %v3249, %v3249
        %v3251 = vsel %vm1697, %v3250, 0.0
        %3252 = vadd.xlane.f32.xlu0 %v3251
        %v3253 = vpop.xlane.xlu0 %3252
        %v3254 = vmul.f32 %v3253, %v1787
        %v3255 = vadd.f32 %v3254, 1e-05
        %v3256 = vrsqrt.pop %v3255
        %v3257 = vmul.f32 %v3249, %v3256
        %v3259 = vlaneseq
        %v3260 = vshrl.u32 %v3259, 7
        %v3261 = vsub.s32 0, %v3260
        %v3262 = vrot.slane %v2601, %v3261
        %v3264 = vmul.f32 %v3257, %v3262
        %v3266 = vlaneseq
        %v3267 = vshrl.u32 %v3266, 7
        %v3268 = vsub.s32 0, %v3267
        %v3269 = vrot.slane %v2602, %v3268
        %v3271 = vadd.f32 %v3264, %v3269
        %v3272 = vpack.c.bf16 %v3271, %v3271
        %v3274 = vlaneseq
        %v3275 = vshrl.u32 %v3274, 7
        %v3276 = vsub.s32 0, %v3275
        %v3277 = vrot.slane %v2607, %v3276
        %v3283 = vunpack.c.l.b16 %v2603
        %v3284 = vunpack.c.l.b16 %v2604
        %v3285 = vunpack.c.l.b16 %v2605
        %v3286 = vunpack.c.l.b16 %v2606
        %v3287 = vpack.c.b16 %v3284, %v3283
        %v3288 = vpack.c.b16 %v3286, %v3285
        %v3292 = vsel %vm1697, %v3272, 0
        %3294 = vmatprep.subr.bf16.mxu0 0
        %3295 = vmatpush1.bf16.msra.mxu0 0
        %3296 = vmatprep.subr.bf16.mxu0 0
        %3297 = vmatpush1.bf16.msra.mxu0 0
        %3298 = vmatprep.subr.bf16.mxu0 0
        %3299 = vmatpush1.bf16.msra.mxu0 0
        %3300 = vmatprep.subr.bf16.mxu0 0
        %3301 = vmatpush1.bf16.msra.mxu0 0
        %3302 = vmatprep.subr.bf16.mxu0 0
        %3303 = vmatpush1.bf16.msra.mxu0 0
        %3304 = vmatprep.subr.bf16.mxu0 0
        %3305 = vmatpush1.bf16.msra.mxu0 0
        %3306 = vmatprep.subr.bf16.mxu0 0
        %3307 = vmatpush1.bf16.msra.mxu0 %v3288
        %3308 = vmatprep.subr.bf16.mxu0 0
        %3309 = vmatpush1.bf16.msra.mxu0 %v3287
        %3310 = vmatprep.subr.bf16.mxu0 0
        %3311 = vmatpush2.bf16.msra.mxu0 0
        %3312 = vmatprep.subr.bf16.mxu0 0
        %3313 = vmatpush2.bf16.msra.mxu0 0
        %3314 = vmatprep.subr.bf16.mxu0 0
        %3315 = vmatpush2.bf16.msra.mxu0 0
        %3316 = vmatprep.subr.bf16.mxu0 0
        %3317 = vmatpush2.bf16.msra.mxu0 0
        %3318 = vmatprep.subr.bf16.mxu0 0
        %3319 = vmatpush2.bf16.msra.mxu0 0
        %3320 = vmatprep.subr.bf16.mxu0 0
        %3321 = vmatpush2.bf16.msra.mxu0 0
        %3322 = vmatprep.subr.bf16.mxu0 0
        %3323 = vmatpush2.bf16.msra.mxu0 0
        %3324 = vmatprep.subr.bf16.mxu0 0
        %3325 = vmatpush2.bf16.msra.mxu0 0
        %3326 = vmatprep.mubr.bf16.mxu0 0
        %3327 = vmatmul.mubr.bf16.gmra.mxu0 %v3292
        %v3328 = vpop.f32.mrf.mxu0
        %v3329 = vadd.f32 %v3277, %v3328
        %v3330 = vpop.f32.mrf.mxu0
        %v3331 = vpop.f32.mrf.mxu0
        %v3332 = vpop.f32.mrf.mxu0
        %3333 = vdwg.mxu0
        %v3334 = vmul.f32 %v3329, 0.5
        %v3335 = vmul.f32 %v3329, 0.044715
        %v3336 = vmul.f32 %v3335, %v3329
        %v3337 = vmul.f32 %v3336, %v3329
        %v3338 = vadd.f32 %v3329, %v3337
        %v3339 = vmul.f32 %v3338, 0.7978846
        %v3340 = vtanh.pop %v3339
        %v3341 = vadd.f32 %v3340, 1.0
        %v3342 = vmul.f32 %v3334, %v3341
        %v3343 = vpack.c.bf16 %v3342, %v3342
        %v3352 = vunpack.c.l.b16 %v2608
        %v3353 = vunpack.c.l.b16 %v2609
        %v3354 = vunpack.c.l.b16 %v2610
        %v3355 = vunpack.c.l.b16 %v2611
        %v3356 = vunpack.c.l.b16 %v2612
        %v3357 = vunpack.c.l.b16 %v2613
        %v3358 = vunpack.c.l.b16 %v2614
        %v3359 = vunpack.c.l.b16 %v2615
        %v3360 = vpack.c.b16 %v3353, %v3352
        %v3361 = vpack.c.b16 %v3355, %v3354
        %v3362 = vpack.c.b16 %v3357, %v3356
        %v3363 = vpack.c.b16 %v3359, %v3358
        %v3369 = vsel %vm2537, %v3343, 0
        %3371 = vmatprep.subr.bf16.mxu0 0
        %3372 = vmatpush1.bf16.msra.mxu0 0
        %3373 = vmatprep.subr.bf16.mxu0 0
        %3374 = vmatpush1.bf16.msra.mxu0 0
        %3375 = vmatprep.subr.bf16.mxu0 0
        %3376 = vmatpush1.bf16.msra.mxu0 0
        %3377 = vmatprep.subr.bf16.mxu0 0
        %3378 = vmatpush1.bf16.msra.mxu0 0
        %3379 = vmatprep.subr.bf16.mxu0 0
        %3380 = vmatpush1.bf16.msra.mxu0 %v3363
        %3381 = vmatprep.subr.bf16.mxu0 0
        %3382 = vmatpush1.bf16.msra.mxu0 %v3362
        %3383 = vmatprep.subr.bf16.mxu0 0
        %3384 = vmatpush1.bf16.msra.mxu0 %v3361
        %3385 = vmatprep.subr.bf16.mxu0 0
        %3386 = vmatpush1.bf16.msra.mxu0 %v3360
        %3387 = vmatprep.subr.bf16.mxu0 0
        %3388 = vmatpush2.bf16.msra.mxu0 0
        %3389 = vmatprep.subr.bf16.mxu0 0
        %3390 = vmatpush2.bf16.msra.mxu0 0
        %3391 = vmatprep.subr.bf16.mxu0 0
        %3392 = vmatpush2.bf16.msra.mxu0 0
        %3393 = vmatprep.subr.bf16.mxu0 0
        %3394 = vmatpush2.bf16.msra.mxu0 0
        %3395 = vmatprep.subr.bf16.mxu0 0
        %3396 = vmatpush2.bf16.msra.mxu0 0
        %3397 = vmatprep.subr.bf16.mxu0 0
        %3398 = vmatpush2.bf16.msra.mxu0 0
        %3399 = vmatprep.subr.bf16.mxu0 0
        %3400 = vmatpush2.bf16.msra.mxu0 0
        %3401 = vmatprep.subr.bf16.mxu0 0
        %3402 = vmatpush2.bf16.msra.mxu0 0
        %3403 = vmatprep.mubr.bf16.mxu0 0
        %3404 = vmatmul.mubr.bf16.gmra.mxu0 %v3369
        %v3405 = vpop.f32.mrf.mxu0
        %v3406 = vadd.f32 0.0, %v3405
        %v3407 = vpop.f32.mrf.mxu0
        %v3408 = vpop.f32.mrf.mxu0
        %v3409 = vpop.f32.mrf.mxu0
        %3410 = vdwg.mxu0
        %v3411 = vadd.f32 %v3244, %v3406
        %v3413 = vlaneseq
        %v3414 = vshrl.u32 %v3413, 7
        %v3415 = vsub.s32 0, %v3414
        %v3416 = vrot.slane %v2616, %v3415
        %v3418 = vadd.f32 %v3411, %v3416
        %v3419 = vld [vmem:[%s65] sm:$0x1]
        %vm3420 = vcmp.gt.f32.partialorder %v1606, 0.0
        %v3421 = vsel %vm3420, 0.0, -1e+09
        %vm3422 = vcmask 57344
        %3423 = vst.msk [vmem:[#allocation3] sm:$0x1] %vm3422, %v3421
        %vm3424 = vcmask 65600
        %3425 = vst.msk [vmem:[#allocation3] sm:$0x1] %vm3424, 0.0
        %v3426 = vld [vmem:[#allocation3] sm:$0x1]
        %v3427 = vld [vmem:[%s67] sm:$0x1]
        %v3428 = vld [vmem:[%s69] sm:$0x1]
        %v3429 = vld [vmem:[%s71] sm:$0xf]
        %v3430 = vld [vmem:[%s71 + $0x4] sm:$0xf]
        %v3431 = vld [vmem:[%s71 + $0x8] sm:$0xf]
        %v3432 = vld [vmem:[%s71 + $0xc] sm:$0xf]
        %v3433 = vld [vmem:[%s73] sm:$0x1]
        %v3434 = vld [vmem:[%s75] sm:$0xf]
        %v3435 = vld [vmem:[%s75 + $0x4] sm:$0xf]
        %v3436 = vld [vmem:[%s75 + $0x8] sm:$0xf]
        %v3437 = vld [vmem:[%s75 + $0xc] sm:$0xf]
        %v3438 = vld [vmem:[%s77] sm:$0x1]
        %v3439 = vld [vmem:[%s79] sm:$0xf]
        %v3440 = vld [vmem:[%s79 + $0x4] sm:$0xf]
        %v3441 = vld [vmem:[%s79 + $0x8] sm:$0xf]
        %v3442 = vld [vmem:[%s79 + $0xc] sm:$0xf]
        %v3443 = vld [vmem:[%s81] sm:$0x1]
        %v3444 = vld [vmem:[%s83] sm:$0x1]
        %v3445 = vld [vmem:[%s85] sm:$0x1]
        %v3446 = vld [vmem:[%s87] sm:$0xf]
        %v3447 = vld [vmem:[%s87 + $0x4] sm:$0xf]
        %v3448 = vld [vmem:[%s87 + $0x8] sm:$0xf]
        %v3449 = vld [vmem:[%s87 + $0xc] sm:$0xf]
        %v3450 = vld [vmem:[%s89] sm:$0x1]
        %v3451 = vld [vmem:[%s91] sm:$0xf]
        %v3452 = vld [vmem:[%s91 + $0x4] sm:$0xf]
        %v3453 = vld [vmem:[%s91 + $0x8] sm:$0xf]
        %v3454 = vld [vmem:[%s91 + $0xc] sm:$0xf]
        %v3455 = vld [vmem:[%s91 + $0x10] sm:$0xf]
        %v3456 = vld [vmem:[%s91 + $0x14] sm:$0xf]
        %v3457 = vld [vmem:[%s91 + $0x18] sm:$0xf]
        %v3458 = vld [vmem:[%s91 + $0x1c] sm:$0xf]
        %v3459 = vld [vmem:[%s93] sm:$0x1]
        %3460 = vst.msk [vmem:[#allocation2] sm:$0xff] %vm1697, %v3418
        %vm3461 = vcmask 253952
        %3462 = vst.msk [vmem:[#allocation2 + $0x8] sm:$0x1] %vm3461, %v3419
        %v3463 = vld [vmem:[#allocation2] sm:$0xff]
        %v3464 = vld [vmem:[#allocation2 + $0x8] sm:$0x1]
        %v3465 = vsel %vm1697, %v3463, 0.0
        %3466 = vadd.xlane.f32.xlu0 %v3465
        %v3467 = vpop.xlane.xlu0 %3466
        %v3468 = vsel %vm3461, %v3464, 0.0
        %3469 = vadd.xlane.f32.xlu0 %v3468
        %v3470 = vpop.xlane.xlu0 %3469
        %v3471 = vmul.f32 %v3467, %v1787
        %v3472 = vmul.f32 %v3470, %v1787
        %v3473 = vsub.f32 %v3463, %v3471
        %v3474 = vsub.f32 %v3464, %v3472
        %v3475 = vmul.f32 %v3473, %v3473
        %v3476 = vmul.f32 %v3474, %v3474
        %v3477 = vsel %vm1697, %v3475, 0.0
        %3478 = vadd.xlane.f32.xlu0 %v3477
        %v3479 = vpop.xlane.xlu0 %3478
        %v3480 = vsel %vm3461, %v3476, 0.0
        %3481 = vadd.xlane.f32.xlu0 %v3480
        %v3482 = vpop.xlane.xlu0 %3481
        %v3483 = vmul.f32 %v3479, %v1787
        %v3484 = vmul.f32 %v3482, %v1787
        %v3485 = vadd.f32 %v3483, 1e-05
        %v3486 = vadd.f32 %v3484, 1e-05
        %v3487 = vrsqrt.pop %v3485
        %v3488 = vrsqrt.pop %v3486
        %v3489 = vmul.f32 %v3473, %v3487
        %v3490 = vmul.f32 %v3474, %v3488
        %v3492 = vlaneseq
        %v3493 = vshrl.u32 %v3492, 7
        %v3494 = vsub.s32 0, %v3493
        %v3495 = vrot.slane %v3427, %v3494
        %v3497 = vmul.f32 %v3489, %v3495
        %v3498 = vmul.f32 %v3490, %v3495
        %v3500 = vlaneseq
        %v3501 = vshrl.u32 %v3500, 7
        %v3502 = vsub.s32 0, %v3501
        %v3503 = vrot.slane %v3428, %v3502
        %v3505 = vadd.f32 %v3497, %v3503
        %v3506 = vadd.f32 %v3498, %v3503
        %v3507 = vpack.c.bf16 %v3506, %v3506
        %v3512 = vunpack.c.l.b16 %v3429
        %v3513 = vunpack.c.l.b16 %v3430
        %v3514 = vunpack.c.l.b16 %v3431
        %v3515 = vunpack.c.l.b16 %v3432
        %v3516 = vpack.c.b16 %v3513, %v3512
        %v3517 = vpack.c.b16 %v3515, %v3514
        %v3521 = vsel %vm1697, %v3507, 0
        %3523 = vmatprep.subr.bf16.mxu0 0
        %3524 = vmatpush1.bf16.msra.mxu0 0
        %3525 = vmatprep.subr.bf16.mxu0 0
        %3526 = vmatpush1.bf16.msra.mxu0 0
        %3527 = vmatprep.subr.bf16.mxu0 0
        %3528 = vmatpush1.bf16.msra.mxu0 0
        %3529 = vmatprep.subr.bf16.mxu0 0
        %3530 = vmatpush1.bf16.msra.mxu0 0
        %3531 = vmatprep.subr.bf16.mxu0 0
        %3532 = vmatpush1.bf16.msra.mxu0 0
        %3533 = vmatprep.subr.bf16.mxu0 0
        %3534 = vmatpush1.bf16.msra.mxu0 0
        %3535 = vmatprep.subr.bf16.mxu0 0
        %3536 = vmatpush1.bf16.msra.mxu0 %v3517
        %3537 = vmatprep.subr.bf16.mxu0 0
        %3538 = vmatpush1.bf16.msra.mxu0 %v3516
        %3539 = vmatprep.subr.bf16.mxu0 0
        %3540 = vmatpush2.bf16.msra.mxu0 0
        %3541 = vmatprep.subr.bf16.mxu0 0
        %3542 = vmatpush2.bf16.msra.mxu0 0
        %3543 = vmatprep.subr.bf16.mxu0 0
        %3544 = vmatpush2.bf16.msra.mxu0 0
        %3545 = vmatprep.subr.bf16.mxu0 0
        %3546 = vmatpush2.bf16.msra.mxu0 0
        %3547 = vmatprep.subr.bf16.mxu0 0
        %3548 = vmatpush2.bf16.msra.mxu0 0
        %3549 = vmatprep.subr.bf16.mxu0 0
        %3550 = vmatpush2.bf16.msra.mxu0 0
        %3551 = vmatprep.subr.bf16.mxu0 0
        %3552 = vmatpush2.bf16.msra.mxu0 0
        %3553 = vmatprep.subr.bf16.mxu0 0
        %3554 = vmatpush2.bf16.msra.mxu0 0
        %3555 = vmatprep.mubr.bf16.mxu0 0
        %3556 = vmatmul.mubr.bf16.gmra.mxu0 %v3521
        %v3557 = vpop.f32.mrf.mxu0
        %v3558 = vadd.f32 %v3433, %v3557
        %v3559 = vpop.f32.mrf.mxu0
        %v3560 = vpop.f32.mrf.mxu0
        %v3561 = vpop.f32.mrf.mxu0
        %3562 = vdwg.mxu0
        %v3563 = vpack.c.bf16 %v3506, %v3505
        %v3565 = vlaneseq
        %v3566 = vshrl.u32 %v3565, 7
        %v3567 = vsub.s32 0, %v3566
        %v3568 = vrot.slane %v3438, %v3567
        %v3574 = vunpack.c.l.b16 %v3434
        %v3575 = vunpack.c.l.b16 %v3435
        %v3576 = vunpack.c.l.b16 %v3436
        %v3577 = vunpack.c.l.b16 %v3437
        %v3578 = vpack.c.b16 %v3575, %v3574
        %v3579 = vpack.c.b16 %v3577, %v3576
        %v3583 = vsel %vm1697, %v3563, 0
        %3585 = vmatprep.subr.bf16.mxu0 0
        %3586 = vmatpush1.bf16.msra.mxu0 0
        %3587 = vmatprep.subr.bf16.mxu0 0
        %3588 = vmatpush1.bf16.msra.mxu0 0
        %3589 = vmatprep.subr.bf16.mxu0 0
        %3590 = vmatpush1.bf16.msra.mxu0 0
        %3591 = vmatprep.subr.bf16.mxu0 0
        %3592 = vmatpush1.bf16.msra.mxu0 0
        %3593 = vmatprep.subr.bf16.mxu0 0
        %3594 = vmatpush1.bf16.msra.mxu0 0
        %3595 = vmatprep.subr.bf16.mxu0 0
        %3596 = vmatpush1.bf16.msra.mxu0 0
        %3597 = vmatprep.subr.bf16.mxu0 0
        %3598 = vmatpush1.bf16.msra.mxu0 %v3579
        %3599 = vmatprep.subr.bf16.mxu0 0
        %3600 = vmatpush1.bf16.msra.mxu0 %v3578
        %3601 = vmatprep.subr.bf16.mxu0 0
        %3602 = vmatpush2.bf16.msra.mxu0 0
        %3603 = vmatprep.subr.bf16.mxu0 0
        %3604 = vmatpush2.bf16.msra.mxu0 0
        %3605 = vmatprep.subr.bf16.mxu0 0
        %3606 = vmatpush2.bf16.msra.mxu0 0
        %3607 = vmatprep.subr.bf16.mxu0 0
        %3608 = vmatpush2.bf16.msra.mxu0 0
        %3609 = vmatprep.subr.bf16.mxu0 0
        %3610 = vmatpush2.bf16.msra.mxu0 0
        %3611 = vmatprep.subr.bf16.mxu0 0
        %3612 = vmatpush2.bf16.msra.mxu0 0
        %3613 = vmatprep.subr.bf16.mxu0 0
        %3614 = vmatpush2.bf16.msra.mxu0 0
        %3615 = vmatprep.subr.bf16.mxu0 0
        %3616 = vmatpush2.bf16.msra.mxu0 0
        %3617 = vmatprep.mubr.bf16.mxu0 0
        %3618 = vmatmul.mubr.bf16.gmra.mxu0 %v3583
        %v3619 = vpop.f32.mrf.mxu0
        %v3620 = vadd.f32 %v3568, %v3619
        %v3621 = vpop.f32.mrf.mxu0
        %v3622 = vpop.f32.mrf.mxu0
        %v3623 = vadd.f32 %v3568, %v3622
        %v3624 = vpop.f32.mrf.mxu0
        %3625 = vdwg.mxu0
        %v3626 = vpack.c.bf16 %v3558, %v3558
        %v3627 = vpack.c.bf16 %v3623, %v3620
        %v3629 = vsel %vm1879, %v3626, 0
        %v3632 = vsel %vm1879, %v3627, 0
        %3634 = vmatprep.subr.bf16.mxu0 0
        %3635 = vmatpush1.bf16.xpose.msra.mxu0 0
        %3636 = vmatprep.subr.bf16.mxu0 0
        %3637 = vmatpush1.bf16.xpose.msra.mxu0 0
        %3638 = vmatprep.subr.bf16.mxu0 0
        %3639 = vmatpush1.bf16.xpose.msra.mxu0 0
        %3640 = vmatprep.subr.bf16.mxu0 0
        %3641 = vmatpush1.bf16.xpose.msra.mxu0 0
        %3642 = vmatprep.subr.bf16.mxu0 0
        %3643 = vmatpush1.bf16.xpose.msra.mxu0 0
        %3644 = vmatprep.subr.bf16.mxu0 0
        %3645 = vmatpush1.bf16.xpose.msra.mxu0 0
        %3646 = vmatprep.subr.bf16.mxu0 0
        %3647 = vmatpush1.bf16.xpose.msra.mxu0 0
        %3648 = vmatprep.subr.bf16.mxu0 0
        %3649 = vmatpush1.bf16.xpose.msra.mxu0 %v3632
        %3650 = vmatprep.subr.bf16.mxu0 0
        %3651 = vmatpush2.bf16.xpose.msra.mxu0 0
        %3652 = vmatprep.subr.bf16.mxu0 0
        %3653 = vmatpush2.bf16.xpose.msra.mxu0 0
        %3654 = vmatprep.subr.bf16.mxu0 0
        %3655 = vmatpush2.bf16.xpose.msra.mxu0 0
        %3656 = vmatprep.subr.bf16.mxu0 0
        %3657 = vmatpush2.bf16.xpose.msra.mxu0 0
        %3658 = vmatprep.subr.bf16.mxu0 0
        %3659 = vmatpush2.bf16.xpose.msra.mxu0 0
        %3660 = vmatprep.subr.bf16.mxu0 0
        %3661 = vmatpush2.bf16.xpose.msra.mxu0 0
        %3662 = vmatprep.subr.bf16.mxu0 0
        %3663 = vmatpush2.bf16.xpose.msra.mxu0 0
        %3664 = vmatprep.subr.bf16.mxu0 0
        %3665 = vmatpush2.bf16.xpose.msra.mxu0 0
        %3666 = vmatprep.mubr.bf16.mxu0 0
        %3667 = vmatmul.mubr.bf16.gmra.mxu0 %v3629
        %v3668 = vpop.f32.mrf.mxu0
        %v3669 = vadd.f32 0.0, %v3668
        %v3670 = vpop.f32.mrf.mxu0
        %v3671 = vpop.f32.mrf.mxu0
        %v3672 = vpop.f32.mrf.mxu0
        %3673 = vdwg.mxu0
        %v3674 = vmul.f32 %v3669, 0.35355338
        %v3675 = vadd.f32 %v3674, %v3426
        %vm3676 = vcmask 65536
        %v3677 = vsel %vm3676, %v3675, -inf
        %3678 = vmax.xlane.f32.xlu0 %v3677
        %v3679 = vpop.xlane.xlu0 %3678
        %v3680 = vsub.f32 %v3675, %v3679
        %v3681 = vmul.f32 %v3680, 1.442695
        %v3682 = vpow.pop %v3681
        %v3683 = vsel %vm3676, %v3682, 0.0
        %3684 = vadd.xlane.f32.xlu0 %v3683
        %v3685 = vpop.xlane.xlu0 %3684
        %v3686 = vrcp.pop %v3685
        %v3687 = vmul.f32 %v3682, %v3686
        %v3688 = vpack.c.bf16 %v3687, %v3687
        %3690 = vrot.lane.b32.xlu0 %v3627, 96
        %v3691 = vpop.permute.xlu0 %3690
        %vm3692 = vcmask 72704
        %v3694 = vsel %vm3692, %v3688, 0
        %vm3696 = vcmask 1044480
        %v3697 = vsel %vm1945, 4294967295, 65535
        %v3698 = vsel %vm3696, %v3697, 0
        %v3700 = vand.u32 %v3691, %v3698
        %3702 = vmatprep.subr.bf16.mxu0 0
        %3703 = vmatpush1.bf16.msra.mxu0 0
        %3704 = vmatprep.subr.bf16.mxu0 0
        %3705 = vmatpush1.bf16.msra.mxu0 0
        %3706 = vmatprep.subr.bf16.mxu0 0
        %3707 = vmatpush1.bf16.msra.mxu0 0
        %3708 = vmatprep.subr.bf16.mxu0 0
        %3709 = vmatpush1.bf16.msra.mxu0 0
        %3710 = vmatprep.subr.bf16.mxu0 0
        %3711 = vmatpush1.bf16.msra.mxu0 0
        %3712 = vmatprep.subr.bf16.mxu0 0
        %3713 = vmatpush1.bf16.msra.mxu0 0
        %3714 = vmatprep.subr.bf16.mxu0 0
        %3715 = vmatpush1.bf16.msra.mxu0 0
        %3716 = vmatprep.subr.bf16.mxu0 0
        %3717 = vmatpush1.bf16.msra.mxu0 %v3700
        %3718 = vmatprep.subr.bf16.mxu0 0
        %3719 = vmatpush2.bf16.msra.mxu0 0
        %3720 = vmatprep.subr.bf16.mxu0 0
        %3721 = vmatpush2.bf16.msra.mxu0 0
        %3722 = vmatprep.subr.bf16.mxu0 0
        %3723 = vmatpush2.bf16.msra.mxu0 0
        %3724 = vmatprep.subr.bf16.mxu0 0
        %3725 = vmatpush2.bf16.msra.mxu0 0
        %3726 = vmatprep.subr.bf16.mxu0 0
        %3727 = vmatpush2.bf16.msra.mxu0 0
        %3728 = vmatprep.subr.bf16.mxu0 0
        %3729 = vmatpush2.bf16.msra.mxu0 0
        %3730 = vmatprep.subr.bf16.mxu0 0
        %3731 = vmatpush2.bf16.msra.mxu0 0
        %3732 = vmatprep.subr.bf16.mxu0 0
        %3733 = vmatpush2.bf16.msra.mxu0 0
        %3734 = vmatprep.mubr.bf16.mxu0 0
        %3735 = vmatmul.mubr.bf16.gmra.mxu0 %v3694
        %v3736 = vpop.f32.mrf.mxu0
        %v3737 = vadd.f32 0.0, %v3736
        %v3738 = vpop.f32.mrf.mxu0
        %v3739 = vpop.f32.mrf.mxu0
        %v3740 = vpop.f32.mrf.mxu0
        %3741 = vdwg.mxu0
        %3742 = vst.msk [vmem:[#allocation4] sm:$0x1] %vm3422, %v3737
        %3744 = vrot.lane.b32.xlu0 %v3626, 120
        %v3745 = vpop.permute.xlu0 %3744
        %3746 = vrot.lane.b32.xlu0 %v3627, 120
        %v3747 = vpop.permute.xlu0 %3746
        %v3749 = vsel %vm1879, %v3745, 0
        %v3752 = vsel %vm1879, %v3747, 0
        %3754 = vmatprep.subr.bf16.mxu0 0
        %3755 = vmatpush1.bf16.xpose.msra.mxu0 0
        %3756 = vmatprep.subr.bf16.mxu0 0
        %3757 = vmatpush1.bf16.xpose.msra.mxu0 0
        %3758 = vmatprep.subr.bf16.mxu0 0
        %3759 = vmatpush1.bf16.xpose.msra.mxu0 0
        %3760 = vmatprep.subr.bf16.mxu0 0
        %3761 = vmatpush1.bf16.xpose.msra.mxu0 0
        %3762 = vmatprep.subr.bf16.mxu0 0
        %3763 = vmatpush1.bf16.xpose.msra.mxu0 0
        %3764 = vmatprep.subr.bf16.mxu0 0
        %3765 = vmatpush1.bf16.xpose.msra.mxu0 0
        %3766 = vmatprep.subr.bf16.mxu0 0
        %3767 = vmatpush1.bf16.xpose.msra.mxu0 0
        %3768 = vmatprep.subr.bf16.mxu0 0
        %3769 = vmatpush1.bf16.xpose.msra.mxu0 %v3752
        %3770 = vmatprep.subr.bf16.mxu0 0
        %3771 = vmatpush2.bf16.xpose.msra.mxu0 0
        %3772 = vmatprep.subr.bf16.mxu0 0
        %3773 = vmatpush2.bf16.xpose.msra.mxu0 0
        %3774 = vmatprep.subr.bf16.mxu0 0
        %3775 = vmatpush2.bf16.xpose.msra.mxu0 0
        %3776 = vmatprep.subr.bf16.mxu0 0
        %3777 = vmatpush2.bf16.xpose.msra.mxu0 0
        %3778 = vmatprep.subr.bf16.mxu0 0
        %3779 = vmatpush2.bf16.xpose.msra.mxu0 0
        %3780 = vmatprep.subr.bf16.mxu0 0
        %3781 = vmatpush2.bf16.xpose.msra.mxu0 0
        %3782 = vmatprep.subr.bf16.mxu0 0
        %3783 = vmatpush2.bf16.xpose.msra.mxu0 0
        %3784 = vmatprep.subr.bf16.mxu0 0
        %3785 = vmatpush2.bf16.xpose.msra.mxu0 0
        %3786 = vmatprep.mubr.bf16.mxu0 0
        %3787 = vmatmul.mubr.bf16.gmra.mxu0 %v3749
        %v3788 = vpop.f32.mrf.mxu0
        %v3789 = vadd.f32 0.0, %v3788
        %v3790 = vpop.f32.mrf.mxu0
        %v3791 = vpop.f32.mrf.mxu0
        %v3792 = vpop.f32.mrf.mxu0
        %3793 = vdwg.mxu0
        %v3794 = vmul.f32 %v3789, 0.35355338
        %v3795 = vadd.f32 %v3794, %v3426
        %v3796 = vsel %vm3676, %v3795, -inf
        %3797 = vmax.xlane.f32.xlu0 %v3796
        %v3798 = vpop.xlane.xlu0 %3797
        %v3799 = vsub.f32 %v3795, %v3798
        %v3800 = vmul.f32 %v3799, 1.442695
        %v3801 = vpow.pop %v3800
        %v3802 = vsel %vm3676, %v3801, 0.0
        %3803 = vadd.xlane.f32.xlu0 %v3802
        %v3804 = vpop.xlane.xlu0 %3803
        %v3805 = vrcp.pop %v3804
        %v3806 = vmul.f32 %v3801, %v3805
        %v3807 = vpack.c.bf16 %v3806, %v3806
        %3808 = vrot.lane.b32.xlu0 %v3627, 88
        %v3809 = vpop.permute.xlu0 %3808
        %v3811 = vsel %vm3692, %v3807, 0
        %v3814 = vand.u32 %v3809, %v3698
        %3816 = vmatprep.subr.bf16.mxu0 0
        %3817 = vmatpush1.bf16.msra.mxu0 0
        %3818 = vmatprep.subr.bf16.mxu0 0
        %3819 = vmatpush1.bf16.msra.mxu0 0
        %3820 = vmatprep.subr.bf16.mxu0 0
        %3821 = vmatpush1.bf16.msra.mxu0 0
        %3822 = vmatprep.subr.bf16.mxu0 0
        %3823 = vmatpush1.bf16.msra.mxu0 0
        %3824 = vmatprep.subr.bf16.mxu0 0
        %3825 = vmatpush1.bf16.msra.mxu0 0
        %3826 = vmatprep.subr.bf16.mxu0 0
        %3827 = vmatpush1.bf16.msra.mxu0 0
        %3828 = vmatprep.subr.bf16.mxu0 0
        %3829 = vmatpush1.bf16.msra.mxu0 0
        %3830 = vmatprep.subr.bf16.mxu0 0
        %3831 = vmatpush1.bf16.msra.mxu0 %v3814
        %3832 = vmatprep.subr.bf16.mxu0 0
        %3833 = vmatpush2.bf16.msra.mxu0 0
        %3834 = vmatprep.subr.bf16.mxu0 0
        %3835 = vmatpush2.bf16.msra.mxu0 0
        %3836 = vmatprep.subr.bf16.mxu0 0
        %3837 = vmatpush2.bf16.msra.mxu0 0
        %3838 = vmatprep.subr.bf16.mxu0 0
        %3839 = vmatpush2.bf16.msra.mxu0 0
        %3840 = vmatprep.subr.bf16.mxu0 0
        %3841 = vmatpush2.bf16.msra.mxu0 0
        %3842 = vmatprep.subr.bf16.mxu0 0
        %3843 = vmatpush2.bf16.msra.mxu0 0
        %3844 = vmatprep.subr.bf16.mxu0 0
        %3845 = vmatpush2.bf16.msra.mxu0 0
        %3846 = vmatprep.subr.bf16.mxu0 0
        %3847 = vmatpush2.bf16.msra.mxu0 0
        %3848 = vmatprep.mubr.bf16.mxu0 0
        %3849 = vmatmul.mubr.bf16.gmra.mxu0 %v3811
        %v3850 = vpop.f32.mrf.mxu0
        %v3851 = vadd.f32 0.0, %v3850
        %v3852 = vpop.f32.mrf.mxu0
        %v3853 = vpop.f32.mrf.mxu0
        %v3854 = vpop.f32.mrf.mxu0
        %3855 = vdwg.mxu0
        %3857 = vrot.lane.b32.xlu0 %v3851, 8
        %v3858 = vpop.permute.xlu0 %3857
        %vm3860 = vcmask 122944
        %3861 = vst.msk [vmem:[#allocation4] sm:$0x1] %vm3860, %v3858
        %3862 = vrot.lane.b32.xlu0 %v3626, 112
        %v3863 = vpop.permute.xlu0 %3862
        %3864 = vrot.lane.b32.xlu0 %v3627, 112
        %v3865 = vpop.permute.xlu0 %3864
        %v3867 = vsel %vm1879, %v3863, 0
        %v3870 = vsel %vm1879, %v3865, 0
        %3872 = vmatprep.subr.bf16.mxu0 0
        %3873 = vmatpush1.bf16.xpose.msra.mxu0 0
        %3874 = vmatprep.subr.bf16.mxu0 0
        %3875 = vmatpush1.bf16.xpose.msra.mxu0 0
        %3876 = vmatprep.subr.bf16.mxu0 0
        %3877 = vmatpush1.bf16.xpose.msra.mxu0 0
        %3878 = vmatprep.subr.bf16.mxu0 0
        %3879 = vmatpush1.bf16.xpose.msra.mxu0 0
        %3880 = vmatprep.subr.bf16.mxu0 0
        %3881 = vmatpush1.bf16.xpose.msra.mxu0 0
        %3882 = vmatprep.subr.bf16.mxu0 0
        %3883 = vmatpush1.bf16.xpose.msra.mxu0 0
        %3884 = vmatprep.subr.bf16.mxu0 0
        %3885 = vmatpush1.bf16.xpose.msra.mxu0 0
        %3886 = vmatprep.subr.bf16.mxu0 0
        %3887 = vmatpush1.bf16.xpose.msra.mxu0 %v3870
        %3888 = vmatprep.subr.bf16.mxu0 0
        %3889 = vmatpush2.bf16.xpose.msra.mxu0 0
        %3890 = vmatprep.subr.bf16.mxu0 0
        %3891 = vmatpush2.bf16.xpose.msra.mxu0 0
        %3892 = vmatprep.subr.bf16.mxu0 0
        %3893 = vmatpush2.bf16.xpose.msra.mxu0 0
        %3894 = vmatprep.subr.bf16.mxu0 0
        %3895 = vmatpush2.bf16.xpose.msra.mxu0 0
        %3896 = vmatprep.subr.bf16.mxu0 0
        %3897 = vmatpush2.bf16.xpose.msra.mxu0 0
        %3898 = vmatprep.subr.bf16.mxu0 0
        %3899 = vmatpush2.bf16.xpose.msra.mxu0 0
        %3900 = vmatprep.subr.bf16.mxu0 0
        %3901 = vmatpush2.bf16.xpose.msra.mxu0 0
        %3902 = vmatprep.subr.bf16.mxu0 0
        %3903 = vmatpush2.bf16.xpose.msra.mxu0 0
        %3904 = vmatprep.mubr.bf16.mxu0 0
        %3905 = vmatmul.mubr.bf16.gmra.mxu0 %v3867
        %v3906 = vpop.f32.mrf.mxu0
        %v3907 = vadd.f32 0.0, %v3906
        %v3908 = vpop.f32.mrf.mxu0
        %v3909 = vpop.f32.mrf.mxu0
        %v3910 = vpop.f32.mrf.mxu0
        %3911 = vdwg.mxu0
        %v3912 = vmul.f32 %v3907, 0.35355338
        %v3913 = vadd.f32 %v3912, %v3426
        %v3914 = vsel %vm3676, %v3913, -inf
        %3915 = vmax.xlane.f32.xlu0 %v3914
        %v3916 = vpop.xlane.xlu0 %3915
        %v3917 = vsub.f32 %v3913, %v3916
        %v3918 = vmul.f32 %v3917, 1.442695
        %v3919 = vpow.pop %v3918
        %v3920 = vsel %vm3676, %v3919, 0.0
        %3921 = vadd.xlane.f32.xlu0 %v3920
        %v3922 = vpop.xlane.xlu0 %3921
        %v3923 = vrcp.pop %v3922
        %v3924 = vmul.f32 %v3919, %v3923
        %v3925 = vpack.c.bf16 %v3924, %v3924
        %3926 = vrot.lane.b32.xlu0 %v3627, 80
        %v3927 = vpop.permute.xlu0 %3926
        %v3929 = vsel %vm3692, %v3925, 0
        %v3932 = vand.u32 %v3927, %v3698
        %3934 = vmatprep.subr.bf16.mxu0 0
        %3935 = vmatpush1.bf16.msra.mxu0 0
        %3936 = vmatprep.subr.bf16.mxu0 0
        %3937 = vmatpush1.bf16.msra.mxu0 0
        %3938 = vmatprep.subr.bf16.mxu0 0
        %3939 = vmatpush1.bf16.msra.mxu0 0
        %3940 = vmatprep.subr.bf16.mxu0 0
        %3941 = vmatpush1.bf16.msra.mxu0 0
        %3942 = vmatprep.subr.bf16.mxu0 0
        %3943 = vmatpush1.bf16.msra.mxu0 0
        %3944 = vmatprep.subr.bf16.mxu0 0
        %3945 = vmatpush1.bf16.msra.mxu0 0
        %3946 = vmatprep.subr.bf16.mxu0 0
        %3947 = vmatpush1.bf16.msra.mxu0 0
        %3948 = vmatprep.subr.bf16.mxu0 0
        %3949 = vmatpush1.bf16.msra.mxu0 %v3932
        %3950 = vmatprep.subr.bf16.mxu0 0
        %3951 = vmatpush2.bf16.msra.mxu0 0
        %3952 = vmatprep.subr.bf16.mxu0 0
        %3953 = vmatpush2.bf16.msra.mxu0 0
        %3954 = vmatprep.subr.bf16.mxu0 0
        %3955 = vmatpush2.bf16.msra.mxu0 0
        %3956 = vmatprep.subr.bf16.mxu0 0
        %3957 = vmatpush2.bf16.msra.mxu0 0
        %3958 = vmatprep.subr.bf16.mxu0 0
        %3959 = vmatpush2.bf16.msra.mxu0 0
        %3960 = vmatprep.subr.bf16.mxu0 0
        %3961 = vmatpush2.bf16.msra.mxu0 0
        %3962 = vmatprep.subr.bf16.mxu0 0
        %3963 = vmatpush2.bf16.msra.mxu0 0
        %3964 = vmatprep.subr.bf16.mxu0 0
        %3965 = vmatpush2.bf16.msra.mxu0 0
        %3966 = vmatprep.mubr.bf16.mxu0 0
        %3967 = vmatmul.mubr.bf16.gmra.mxu0 %v3929
        %v3968 = vpop.f32.mrf.mxu0
        %v3969 = vadd.f32 0.0, %v3968
        %v3970 = vpop.f32.mrf.mxu0
        %v3971 = vpop.f32.mrf.mxu0
        %v3972 = vpop.f32.mrf.mxu0
        %3973 = vdwg.mxu0
        %3975 = vrot.lane.b32.xlu0 %v3969, 16
        %v3976 = vpop.permute.xlu0 %3975
        %vm3978 = vcmask 188544
        %3979 = vst.msk [vmem:[#allocation4] sm:$0x1] %vm3978, %v3976
        %3980 = vrot.lane.b32.xlu0 %v3626, 104
        %v3981 = vpop.permute.xlu0 %3980
        %3982 = vrot.lane.b32.xlu0 %v3627, 104
        %v3983 = vpop.permute.xlu0 %3982
        %v3985 = vsel %vm1879, %v3981, 0
        %v3988 = vsel %vm1879, %v3983, 0
        %3990 = vmatprep.subr.bf16.mxu0 0
        %3991 = vmatpush1.bf16.xpose.msra.mxu0 0
        %3992 = vmatprep.subr.bf16.mxu0 0
        %3993 = vmatpush1.bf16.xpose.msra.mxu0 0
        %3994 = vmatprep.subr.bf16.mxu0 0
        %3995 = vmatpush1.bf16.xpose.msra.mxu0 0
        %3996 = vmatprep.subr.bf16.mxu0 0
        %3997 = vmatpush1.bf16.xpose.msra.mxu0 0
        %3998 = vmatprep.subr.bf16.mxu0 0
        %3999 = vmatpush1.bf16.xpose.msra.mxu0 0
        %4000 = vmatprep.subr.bf16.mxu0 0
        %4001 = vmatpush1.bf16.xpose.msra.mxu0 0
        %4002 = vmatprep.subr.bf16.mxu0 0
        %4003 = vmatpush1.bf16.xpose.msra.mxu0 0
        %4004 = vmatprep.subr.bf16.mxu0 0
        %4005 = vmatpush1.bf16.xpose.msra.mxu0 %v3988
        %4006 = vmatprep.subr.bf16.mxu0 0
        %4007 = vmatpush2.bf16.xpose.msra.mxu0 0
        %4008 = vmatprep.subr.bf16.mxu0 0
        %4009 = vmatpush2.bf16.xpose.msra.mxu0 0
        %4010 = vmatprep.subr.bf16.mxu0 0
        %4011 = vmatpush2.bf16.xpose.msra.mxu0 0
        %4012 = vmatprep.subr.bf16.mxu0 0
        %4013 = vmatpush2.bf16.xpose.msra.mxu0 0
        %4014 = vmatprep.subr.bf16.mxu0 0
        %4015 = vmatpush2.bf16.xpose.msra.mxu0 0
        %4016 = vmatprep.subr.bf16.mxu0 0
        %4017 = vmatpush2.bf16.xpose.msra.mxu0 0
        %4018 = vmatprep.subr.bf16.mxu0 0
        %4019 = vmatpush2.bf16.xpose.msra.mxu0 0
        %4020 = vmatprep.subr.bf16.mxu0 0
        %4021 = vmatpush2.bf16.xpose.msra.mxu0 0
        %4022 = vmatprep.mubr.bf16.mxu0 0
        %4023 = vmatmul.mubr.bf16.gmra.mxu0 %v3985
        %v4024 = vpop.f32.mrf.mxu0
        %v4025 = vadd.f32 0.0, %v4024
        %v4026 = vpop.f32.mrf.mxu0
        %v4027 = vpop.f32.mrf.mxu0
        %v4028 = vpop.f32.mrf.mxu0
        %4029 = vdwg.mxu0
        %v4030 = vmul.f32 %v4025, 0.35355338
        %v4031 = vadd.f32 %v4030, %v3426
        %v4032 = vsel %vm3676, %v4031, -inf
        %4033 = vmax.xlane.f32.xlu0 %v4032
        %v4034 = vpop.xlane.xlu0 %4033
        %v4035 = vsub.f32 %v4031, %v4034
        %v4036 = vmul.f32 %v4035, 1.442695
        %v4037 = vpow.pop %v4036
        %v4038 = vsel %vm3676, %v4037, 0.0
        %4039 = vadd.xlane.f32.xlu0 %v4038
        %v4040 = vpop.xlane.xlu0 %4039
        %v4041 = vrcp.pop %v4040
        %v4042 = vmul.f32 %v4037, %v4041
        %v4043 = vpack.c.bf16 %v4042, %v4042
        %4044 = vrot.lane.b32.xlu0 %v3627, 72
        %v4045 = vpop.permute.xlu0 %4044
        %v4047 = vsel %vm3692, %v4043, 0
        %v4050 = vand.u32 %v4045, %v3698
        %4052 = vmatprep.subr.bf16.mxu0 0
        %4053 = vmatpush1.bf16.msra.mxu0 0
        %4054 = vmatprep.subr.bf16.mxu0 0
        %4055 = vmatpush1.bf16.msra.mxu0 0
        %4056 = vmatprep.subr.bf16.mxu0 0
        %4057 = vmatpush1.bf16.msra.mxu0 0
        %4058 = vmatprep.subr.bf16.mxu0 0
        %4059 = vmatpush1.bf16.msra.mxu0 0
        %4060 = vmatprep.subr.bf16.mxu0 0
        %4061 = vmatpush1.bf16.msra.mxu0 0
        %4062 = vmatprep.subr.bf16.mxu0 0
        %4063 = vmatpush1.bf16.msra.mxu0 0
        %4064 = vmatprep.subr.bf16.mxu0 0
        %4065 = vmatpush1.bf16.msra.mxu0 0
        %4066 = vmatprep.subr.bf16.mxu0 0
        %4067 = vmatpush1.bf16.msra.mxu0 %v4050
        %4068 = vmatprep.subr.bf16.mxu0 0
        %4069 = vmatpush2.bf16.msra.mxu0 0
        %4070 = vmatprep.subr.bf16.mxu0 0
        %4071 = vmatpush2.bf16.msra.mxu0 0
        %4072 = vmatprep.subr.bf16.mxu0 0
        %4073 = vmatpush2.bf16.msra.mxu0 0
        %4074 = vmatprep.subr.bf16.mxu0 0
        %4075 = vmatpush2.bf16.msra.mxu0 0
        %4076 = vmatprep.subr.bf16.mxu0 0
        %4077 = vmatpush2.bf16.msra.mxu0 0
        %4078 = vmatprep.subr.bf16.mxu0 0
        %4079 = vmatpush2.bf16.msra.mxu0 0
        %4080 = vmatprep.subr.bf16.mxu0 0
        %4081 = vmatpush2.bf16.msra.mxu0 0
        %4082 = vmatprep.subr.bf16.mxu0 0
        %4083 = vmatpush2.bf16.msra.mxu0 0
        %4084 = vmatprep.mubr.bf16.mxu0 0
        %4085 = vmatmul.mubr.bf16.gmra.mxu0 %v4047
        %v4086 = vpop.f32.mrf.mxu0
        %v4087 = vadd.f32 0.0, %v4086
        %v4088 = vpop.f32.mrf.mxu0
        %v4089 = vpop.f32.mrf.mxu0
        %v4090 = vpop.f32.mrf.mxu0
        %4091 = vdwg.mxu0
        %4093 = vrot.lane.b32.xlu0 %v4087, 24
        %v4094 = vpop.permute.xlu0 %4093
        %vm4096 = vcmask 254144
        %4097 = vst.msk [vmem:[#allocation4] sm:$0x1] %vm4096, %v4094
        %v4098 = vld [vmem:[#allocation4] sm:$0x1]
        %v4099 = vpack.c.bf16 %v4098, %v4098
        %v4104 = vunpack.c.l.b16 %v3439
        %v4105 = vunpack.c.l.b16 %v3440
        %v4106 = vunpack.c.l.b16 %v3441
        %v4107 = vunpack.c.l.b16 %v3442
        %v4108 = vpack.c.b16 %v4105, %v4104
        %v4109 = vpack.c.b16 %v4107, %v4106
        %v4113 = vsel %vm1697, %v4099, 0
        %4115 = vmatprep.subr.bf16.mxu0 0
        %4116 = vmatpush1.bf16.msra.mxu0 0
        %4117 = vmatprep.subr.bf16.mxu0 0
        %4118 = vmatpush1.bf16.msra.mxu0 0
        %4119 = vmatprep.subr.bf16.mxu0 0
        %4120 = vmatpush1.bf16.msra.mxu0 0
        %4121 = vmatprep.subr.bf16.mxu0 0
        %4122 = vmatpush1.bf16.msra.mxu0 0
        %4123 = vmatprep.subr.bf16.mxu0 0
        %4124 = vmatpush1.bf16.msra.mxu0 0
        %4125 = vmatprep.subr.bf16.mxu0 0
        %4126 = vmatpush1.bf16.msra.mxu0 0
        %4127 = vmatprep.subr.bf16.mxu0 0
        %4128 = vmatpush1.bf16.msra.mxu0 %v4109
        %4129 = vmatprep.subr.bf16.mxu0 0
        %4130 = vmatpush1.bf16.msra.mxu0 %v4108
        %4131 = vmatprep.subr.bf16.mxu0 0
        %4132 = vmatpush2.bf16.msra.mxu0 0
        %4133 = vmatprep.subr.bf16.mxu0 0
        %4134 = vmatpush2.bf16.msra.mxu0 0
        %4135 = vmatprep.subr.bf16.mxu0 0
        %4136 = vmatpush2.bf16.msra.mxu0 0
        %4137 = vmatprep.subr.bf16.mxu0 0
        %4138 = vmatpush2.bf16.msra.mxu0 0
        %4139 = vmatprep.subr.bf16.mxu0 0
        %4140 = vmatpush2.bf16.msra.mxu0 0
        %4141 = vmatprep.subr.bf16.mxu0 0
        %4142 = vmatpush2.bf16.msra.mxu0 0
        %4143 = vmatprep.subr.bf16.mxu0 0
        %4144 = vmatpush2.bf16.msra.mxu0 0
        %4145 = vmatprep.subr.bf16.mxu0 0
        %4146 = vmatpush2.bf16.msra.mxu0 0
        %4147 = vmatprep.mubr.bf16.mxu0 0
        %4148 = vmatmul.mubr.bf16.gmra.mxu0 %v4113
        %v4149 = vpop.f32.mrf.mxu0
        %v4150 = vadd.f32 %v3443, %v4149
        %v4151 = vpop.f32.mrf.mxu0
        %v4152 = vpop.f32.mrf.mxu0
        %v4153 = vpop.f32.mrf.mxu0
        %4154 = vdwg.mxu0
        %v4155 = vadd.f32 %v3419, %v4150
        %v4156 = vsel %vm3461, %v4155, 0.0
        %4157 = vadd.xlane.f32.xlu0 %v4156
        %v4158 = vpop.xlane.xlu0 %4157
        %v4159 = vmul.f32 %v4158, %v1787
        %v4160 = vsub.f32 %v4155, %v4159
        %v4161 = vmul.f32 %v4160, %v4160
        %v4162 = vsel %vm3461, %v4161, 0.0
        %4163 = vadd.xlane.f32.xlu0 %v4162
        %v4164 = vpop.xlane.xlu0 %4163
        %v4165 = vmul.f32 %v4164, %v1787
        %v4166 = vadd.f32 %v4165, 1e-05
        %v4167 = vrsqrt.pop %v4166
        %v4168 = vmul.f32 %v4160, %v4167
        %v4169 = vmul.f32 %v4168, %v3444
        %v4170 = vadd.f32 %v4169, %v3445
        %v4171 = vpack.c.bf16 %v4170, %v4170
        %v4176 = vunpack.c.l.b16 %v3446
        %v4177 = vunpack.c.l.b16 %v3447
        %v4178 = vunpack.c.l.b16 %v3448
        %v4179 = vunpack.c.l.b16 %v3449
        %v4180 = vpack.c.b16 %v4177, %v4176
        %v4181 = vpack.c.b16 %v4179, %v4178
        %v4185 = vsel %vm1697, %v4171, 0
        %4187 = vmatprep.subr.bf16.mxu0 0
        %4188 = vmatpush1.bf16.msra.mxu0 0
        %4189 = vmatprep.subr.bf16.mxu0 0
        %4190 = vmatpush1.bf16.msra.mxu0 0
        %4191 = vmatprep.subr.bf16.mxu0 0
        %4192 = vmatpush1.bf16.msra.mxu0 0
        %4193 = vmatprep.subr.bf16.mxu0 0
        %4194 = vmatpush1.bf16.msra.mxu0 0
        %4195 = vmatprep.subr.bf16.mxu0 0
        %4196 = vmatpush1.bf16.msra.mxu0 0
        %4197 = vmatprep.subr.bf16.mxu0 0
        %4198 = vmatpush1.bf16.msra.mxu0 0
        %4199 = vmatprep.subr.bf16.mxu0 0
        %4200 = vmatpush1.bf16.msra.mxu0 %v4181
        %4201 = vmatprep.subr.bf16.mxu0 0
        %4202 = vmatpush1.bf16.msra.mxu0 %v4180
        %4203 = vmatprep.subr.bf16.mxu0 0
        %4204 = vmatpush2.bf16.msra.mxu0 0
        %4205 = vmatprep.subr.bf16.mxu0 0
        %4206 = vmatpush2.bf16.msra.mxu0 0
        %4207 = vmatprep.subr.bf16.mxu0 0
        %4208 = vmatpush2.bf16.msra.mxu0 0
        %4209 = vmatprep.subr.bf16.mxu0 0
        %4210 = vmatpush2.bf16.msra.mxu0 0
        %4211 = vmatprep.subr.bf16.mxu0 0
        %4212 = vmatpush2.bf16.msra.mxu0 0
        %4213 = vmatprep.subr.bf16.mxu0 0
        %4214 = vmatpush2.bf16.msra.mxu0 0
        %4215 = vmatprep.subr.bf16.mxu0 0
        %4216 = vmatpush2.bf16.msra.mxu0 0
        %4217 = vmatprep.subr.bf16.mxu0 0
        %4218 = vmatpush2.bf16.msra.mxu0 0
        %4219 = vmatprep.mubr.bf16.mxu0 0
        %4220 = vmatmul.mubr.bf16.gmra.mxu0 %v4185
        %v4221 = vpop.f32.mrf.mxu0
        %v4222 = vadd.f32 %v3450, %v4221
        %v4223 = vpop.f32.mrf.mxu0
        %v4224 = vpop.f32.mrf.mxu0
        %v4225 = vpop.f32.mrf.mxu0
        %4226 = vdwg.mxu0
        %v4227 = vmul.f32 %v4222, 0.5
        %v4228 = vmul.f32 %v4222, 0.044715
        %v4229 = vmul.f32 %v4228, %v4222
        %v4230 = vmul.f32 %v4229, %v4222
        %v4231 = vadd.f32 %v4222, %v4230
        %v4232 = vmul.f32 %v4231, 0.7978846
        %v4233 = vtanh.pop %v4232
        %v4234 = vadd.f32 %v4233, 1.0
        %v4235 = vmul.f32 %v4227, %v4234
        %v4236 = vpack.c.bf16 %v4235, %v4235
        %v4245 = vunpack.c.l.b16 %v3451
        %v4246 = vunpack.c.l.b16 %v3452
        %v4247 = vunpack.c.l.b16 %v3453
        %v4248 = vunpack.c.l.b16 %v3454
        %v4249 = vunpack.c.l.b16 %v3455
        %v4250 = vunpack.c.l.b16 %v3456
        %v4251 = vunpack.c.l.b16 %v3457
        %v4252 = vunpack.c.l.b16 %v3458
        %v4253 = vpack.c.b16 %v4246, %v4245
        %v4254 = vpack.c.b16 %v4248, %v4247
        %v4255 = vpack.c.b16 %v4250, %v4249
        %v4256 = vpack.c.b16 %v4252, %v4251
        %v4262 = vsel %vm2537, %v4236, 0
        %4264 = vmatprep.subr.bf16.mxu0 0
        %4265 = vmatpush1.bf16.msra.mxu0 0
        %4266 = vmatprep.subr.bf16.mxu0 0
        %4267 = vmatpush1.bf16.msra.mxu0 0
        %4268 = vmatprep.subr.bf16.mxu0 0
        %4269 = vmatpush1.bf16.msra.mxu0 0
        %4270 = vmatprep.subr.bf16.mxu0 0
        %4271 = vmatpush1.bf16.msra.mxu0 0
        %4272 = vmatprep.subr.bf16.mxu0 0
        %4273 = vmatpush1.bf16.msra.mxu0 %v4256
        %4274 = vmatprep.subr.bf16.mxu0 0
        %4275 = vmatpush1.bf16.msra.mxu0 %v4255
        %4276 = vmatprep.subr.bf16.mxu0 0
        %4277 = vmatpush1.bf16.msra.mxu0 %v4254
        %4278 = vmatprep.subr.bf16.mxu0 0
        %4279 = vmatpush1.bf16.msra.mxu0 %v4253
        %4280 = vmatprep.subr.bf16.mxu0 0
        %4281 = vmatpush2.bf16.msra.mxu0 0
        %4282 = vmatprep.subr.bf16.mxu0 0
        %4283 = vmatpush2.bf16.msra.mxu0 0
        %4284 = vmatprep.subr.bf16.mxu0 0
        %4285 = vmatpush2.bf16.msra.mxu0 0
        %4286 = vmatprep.subr.bf16.mxu0 0
        %4287 = vmatpush2.bf16.msra.mxu0 0
        %4288 = vmatprep.subr.bf16.mxu0 0
        %4289 = vmatpush2.bf16.msra.mxu0 0
        %4290 = vmatprep.subr.bf16.mxu0 0
        %4291 = vmatpush2.bf16.msra.mxu0 0
        %4292 = vmatprep.subr.bf16.mxu0 0
        %4293 = vmatpush2.bf16.msra.mxu0 0
        %4294 = vmatprep.subr.bf16.mxu0 0
        %4295 = vmatpush2.bf16.msra.mxu0 0
        %4296 = vmatprep.mubr.bf16.mxu0 0
        %4297 = vmatmul.mubr.bf16.gmra.mxu0 %v4262
        %v4298 = vpop.f32.mrf.mxu0
        %v4299 = vadd.f32 0.0, %v4298
        %v4300 = vpop.f32.mrf.mxu0
        %v4301 = vpop.f32.mrf.mxu0
        %v4302 = vpop.f32.mrf.mxu0
        %4303 = vdwg.mxu0
        %v4304 = vadd.f32 %v4155, %v4299
        %v4305 = vadd.f32 %v4304, %v3459
        %v4306 = vld [vmem:[%s95] sm:$0x1]
        %v4307 = vld [vmem:[%s97] sm:$0x1]
        %v4308 = vld [vmem:[%s99] sm:$0xf]
        %v4309 = vld [vmem:[%s99 + $0x4] sm:$0xf]
        %v4310 = vld [vmem:[%s99 + $0x8] sm:$0xf]
        %v4311 = vld [vmem:[%s99 + $0xc] sm:$0xf]
        %v4312 = vld [vmem:[%s101] sm:$0x1]
        %v4313 = vsel %vm3461, %v4305, 0.0
        %4314 = vadd.xlane.f32.xlu0 %v4313
        %v4315 = vpop.xlane.xlu0 %4314
        %v4316 = vmul.f32 %v4315, %v1787
        %v4317 = vsub.f32 %v4305, %v4316
        %v4318 = vmul.f32 %v4317, %v4317
        %v4319 = vsel %vm3461, %v4318, 0.0
        %4320 = vadd.xlane.f32.xlu0 %v4319
        %v4321 = vpop.xlane.xlu0 %4320
        %v4322 = vmul.f32 %v4321, %v1787
        %v4323 = vadd.f32 %v4322, 1e-05
        %v4324 = vrsqrt.pop %v4323
        %v4325 = vmul.f32 %v4317, %v4324
        %v4326 = vmul.f32 %v4325, %v4306
        %v4327 = vadd.f32 %v4326, %v4307
        %v4328 = vpack.c.bf16 %v4327, %v4327
        %v4333 = vunpack.c.l.b16 %v4308
        %v4334 = vunpack.c.l.b16 %v4309
        %v4335 = vunpack.c.l.b16 %v4310
        %v4336 = vunpack.c.l.b16 %v4311
        %v4337 = vpack.c.b16 %v4334, %v4333
        %v4338 = vpack.c.b16 %v4336, %v4335
        %v4342 = vsel %vm1697, %v4328, 0
        %4344 = vmatprep.subr.bf16.mxu0 0
        %4345 = vmatpush1.bf16.msra.mxu0 0
        %4346 = vmatprep.subr.bf16.mxu0 0
        %4347 = vmatpush1.bf16.msra.mxu0 0
        %4348 = vmatprep.subr.bf16.mxu0 0
        %4349 = vmatpush1.bf16.msra.mxu0 0
        %4350 = vmatprep.subr.bf16.mxu0 0
        %4351 = vmatpush1.bf16.msra.mxu0 0
        %4352 = vmatprep.subr.bf16.mxu0 0
        %4353 = vmatpush1.bf16.msra.mxu0 0
        %4354 = vmatprep.subr.bf16.mxu0 0
        %4355 = vmatpush1.bf16.msra.mxu0 0
        %4356 = vmatprep.subr.bf16.mxu0 0
        %4357 = vmatpush1.bf16.msra.mxu0 %v4338
        %4358 = vmatprep.subr.bf16.mxu0 0
        %4359 = vmatpush1.bf16.msra.mxu0 %v4337
        %4360 = vmatprep.subr.bf16.mxu0 0
        %4361 = vmatpush2.bf16.msra.mxu0 0
        %4362 = vmatprep.subr.bf16.mxu0 0
        %4363 = vmatpush2.bf16.msra.mxu0 0
        %4364 = vmatprep.subr.bf16.mxu0 0
        %4365 = vmatpush2.bf16.msra.mxu0 0
        %4366 = vmatprep.subr.bf16.mxu0 0
        %4367 = vmatpush2.bf16.msra.mxu0 0
        %4368 = vmatprep.subr.bf16.mxu0 0
        %4369 = vmatpush2.bf16.msra.mxu0 0
        %4370 = vmatprep.subr.bf16.mxu0 0
        %4371 = vmatpush2.bf16.msra.mxu0 0
        %4372 = vmatprep.subr.bf16.mxu0 0
        %4373 = vmatpush2.bf16.msra.mxu0 0
        %4374 = vmatprep.subr.bf16.mxu0 0
        %4375 = vmatpush2.bf16.msra.mxu0 0
        %4376 = vmatprep.mubr.bf16.mxu0 0
        %4377 = vmatmul.mubr.bf16.gmra.mxu0 %v4342
        %v4378 = vpop.f32.mrf.mxu0
        %v4379 = vadd.f32 %v4312, %v4378
        %v4380 = vpop.f32.mrf.mxu0
        %v4381 = vpop.f32.mrf.mxu0
        %v4382 = vpop.f32.mrf.mxu0
        %4383 = vdwg.mxu0
        %vm4384 = vcmask 32768
        %4385 = vst.msk [vmem:[%s1579] sm:$0x1] %vm4384, %v4379
        %s4386 = sand.u32 %s1222, 1
        %s4387 = scalar_lea.sflag [#allocation6], %s4386
        %s4388 = sand.u32 %s1222, 1
        %s4389 = scalar_lea.vmem [#allocation5], %s4388
        %s4390 = sand.u32 %s1248, 1
        %s4391 = scalar_lea.sflag [#allocation8], %s4390
        %s4392 = sand.u32 %s1248, 1
        %s4393 = smul.addr %s4392, 32
        %s4394 = scalar_lea.vmem [#allocation7], %s4393
        // Predicated region
        $region225: #{part_forward.3} parent=223 // pred_check
          %p4395 = pneg %p1232
        $region226: #{part_forward.3} parent=223 // pred_check_branch
          %4397 = sbr.rel (%p4395) target = $region228
        $region227: #{part_forward.3} parent=223 // pred_region
          %s4399 = ssub.s32 16, 16
          %4400 = vsyncadd %s4387, %s4399
          %s4401 = smul.addr %s123, 16
          %s4402 = scalar_lea.hbm %s103, %s4401
          %s4404 = sshll.u32 %s4389, 4
          %s4405 = int_to_ptr.vmem [resolvable:$true] %s4404
          %4407 = dma.vmem_to_hbm [thread:$0]  %s4405, 16, %s4402, %s4387
        $region228: #{part_forward.3} parent=223 // pred_fallthru
          _
        // Predicated region
        $region229: #{part_forward.3} parent=223 // pred_check
          %p4408 = pneg %p1258
        $region230: #{part_forward.3} parent=223 // pred_check_branch
          %4410 = sbr.rel (%p4408) target = $region232
        $region231: #{part_forward.3} parent=223 // pred_region
          %s4412 = ssub.s32 512, 512
          %4413 = vsyncadd %s4391, %s4412
          %s4414 = smul.addr %s123, 4
          %s4415 = smul.addr %s4414, 128
          %s4416 = scalar_lea.hbm %s105, %s4415
          %s4417 = sshll.u32 %s4394, 4
          %s4418 = int_to_ptr.vmem [resolvable:$true] %s4417
          %4423 = dma.vmem_to_hbm [thread:$0]  %s4418, 512, %s4416, %s4391, 128, 128, 8
        $region232: #{part_forward.3} parent=223 // pred_fallthru
          _
      $region224: #{part_forward.3} parent=5 // pred_fallthru
        _
      %p4424 = scmp.le.s32.totalorder 2, %s118
      // Predicated region
      $region233: #{part_forward.3} parent=5 // pred_check
        %p4425 = pneg %p4424
      $region234: #{part_forward.3} parent=5 // pred_check_branch
        %4427 = sbr.rel (%p4425) target = $region236
      $region235: #{part_forward.3} parent=5 // pred_region
        %s4428 = ssub.s32 %s118, 2
        // Predicated region
        $region237: #{part_forward.3} parent=235 // pred_check
          %p4429 = pneg %p1238
        $region238: #{part_forward.3} parent=235 // pred_check_branch
          %4431 = sbr.rel (%p4429) target = $region240
        $region239: #{part_forward.3} parent=235 // pred_region
          %s4432 = sand.u32 %s1223, 1
          %s4433 = scalar_lea.sflag [#allocation6], %s4432
          %s4434 = sand.u32 %s1223, 1
          %s4435 = scalar_lea.vmem [#allocation5], %s4434
          %4436 = dma.done %s4433, 16
        $region240: #{part_forward.3} parent=235 // pred_fallthru
          _
        // Predicated region
        $region241: #{part_forward.3} parent=235 // pred_check
          %p4437 = pneg %p1264
        $region242: #{part_forward.3} parent=235 // pred_check_branch
          %4439 = sbr.rel (%p4437) target = $region244
        $region243: #{part_forward.3} parent=235 // pred_region
          %s4440 = sand.u32 %s1249, 1
          %s4441 = scalar_lea.sflag [#allocation8], %s4440
          %s4442 = sand.u32 %s1249, 1
          %s4443 = smul.addr %s4442, 32
          %s4444 = scalar_lea.vmem [#allocation7], %s4443
          %4445 = dma.done %s4441, 512
        $region244: #{part_forward.3} parent=235 // pred_fallthru
          _
      $region236: #{part_forward.3} parent=5 // pred_fallthru
        _
    $region6: #{part_forward.3} parent=1 // loop_footer
      %s122 = sadd.s32 1, %s118
    $region7: #{part_forward.3} parent=1 // loop_footer_branch
      %117 = sbr.rel target = $region3
    $region8: #{part_forward.3} parent=1 // loop_exit
      _
    %4446 = vsyncpa [#allocation6], 1
    %s4447 = scalar_lea.sflag [#allocation6], 1
    %4448 = vsyncpa %s4447, 1
    %4449 = vsyncpa [#allocation8], 1
    %s4450 = scalar_lea.sflag [#allocation8], 1
    %4451 = vsyncpa %s4450, 1

</llo_original>
